<compile_context>
chip_gen: v6e
topology: v6e:2x2x1
jax: 0.10.0
libtpu: 0.0.40
codegen_flags: <defaults>
</compile_context>

<pallas_src>
import functools

import numpy as np
import jax
import jax.numpy as jnp
from jax import lax
from jax.experimental import pallas as pl
from jax.experimental.pallas import tpu as pltpu

NUM_CHANNEL = 4                 # the PyTorch file references an (undefined) NUM_CHANNEL; pick 4
BOARD_SIZE = 4
P = BOARD_SIZE * BOARD_SIZE     # 16 spatial positions per sample
HIDDEN = 128
GROUPS = 16
GSIZE = HIDDEN // GROUPS
CIN_PAD = 8                     # Cin=4 zero-padded to 8 (sublane-friendly)
EPS = 1e-5                      # nn.GroupNorm default eps


# --------------------------------------------------------------------------
# in-kernel math helpers
# --------------------------------------------------------------------------
def _gelu(x):
    # exact (erf) GELU, matching torch.nn.functional.gelu default
    return 0.5 * x * (1.0 + lax.erf(x * 0.7071067811865476))


# --------------------------------------------------------------------------
# single fused Pallas kernel: one sample (P=16 rows) per grid step
# --------------------------------------------------------------------------
def encoder_kernel(x_ref, s_ref,
                   r1w_ref, r1b_ref,
                   c1w_ref, c1b_ref, g1g_ref, g1b_ref,
                   c2w_ref, c2b_ref, g2g_ref, g2b_ref,
                   c3w_ref, c3b_ref, g3g_ref, g3b_ref,
                   mcg_ref, mgc_ref,
                   wh_ref, bh_ref, w2_ref, b2_ref,
                   o_ref):
    f32 = jnp.float32
    x = x_ref[0]                    # (P, CIN_PAD) current sample
    mcg = mcg_ref[...]              # (C, G)  channel -> group one-hot
    mgc = mgc_ref[...]              # (G, C)  group -> channel one-hot

    def conv3x3(a, w_ref, b_ref, k_in):
        # 3x3 conv, pad=1, expressed as 9 accumulating matmuls:
        #   out = sum_k (S_k @ a) @ W_k   with S_k a masked spatial shift.
        acc = jnp.zeros((P, HIDDEN), f32)
        for k in range(9):                                   # static unroll
            sk = s_ref[k * P:(k + 1) * P, :]                 # (P, P)
            xs = jnp.dot(sk, a, preferred_element_type=f32)  # (P, k_in)
            wk = w_ref[k * k_in:(k + 1) * k_in, :]           # (k_in, HIDDEN)
            acc = acc + jnp.dot(xs, wk, preferred_element_type=f32)
        return acc + b_ref[...]

    def group_norm(a, gamma_ref, beta_ref):
        # per-sample GroupNorm(16, 128); two-pass (centered) variance
        cnt = float(P * GSIZE)
        s1 = jnp.sum(a, axis=0, keepdims=True)                              # (1, C)
        mean_g = jnp.dot(s1, mcg, preferred_element_type=f32) / cnt         # (1, G)
        mean_c = jnp.dot(mean_g, mgc, preferred_element_type=f32)           # (1, C)
        d = a - mean_c
        s2 = jnp.sum(d * d, axis=0, keepdims=True)                          # (1, C)
        var_g = jnp.dot(s2, mcg, preferred_element_type=f32) / cnt          # (1, G)
        inv_c = jnp.dot(lax.rsqrt(var_g + EPS), mgc, preferred_element_type=f32)
        return d * inv_c * gamma_ref[...] + beta_ref[...]

    # res1: 1x1 conv (channel matmul)
    x_res = jnp.dot(x, r1w_ref[...], preferred_element_type=f32) + r1b_ref[...]

    # three conv -> GELU -> GroupNorm stages, activations resident in VMEM
    h = group_norm(_gelu(conv3x3(x, c1w_ref, c1b_ref, CIN_PAD)), g1g_ref, g1b_ref)
    h = group_norm(_gelu(conv3x3(h, c2w_ref, c2b_ref, HIDDEN)), g2g_ref, g2b_ref)
    h = group_norm(_gelu(conv3x3(h, c3w_ref, c3b_ref, HIDDEN)), g3g_ref, g3b_ref)
    h = h + x_res                                                           # (P, HIDDEN)

    # MLP head.  The NCHW flatten is absorbed into the row-permuted, fused
    # weight W_head = [res2_w | lin1_w] (rows ordered p*C + c), so the head is
    # an accumulation over spatial positions with per-position (C, 2C) tiles.
    acc = jnp.zeros((1, 2 * HIDDEN), f32)
    for p in range(P):                                       # static unroll
        acc = acc + jnp.dot(h[p:p + 1, :],
                            wh_ref[p * HIDDEN:(p + 1) * HIDDEN, :],
                            preferred_element_type=f32)
    acc = acc + bh_ref[...]
    r = acc[:, :HIDDEN]                                      # res2 branch
    z = jnp.dot(_gelu(acc[:, HIDDEN:]), w2_ref[...],
                preferred_element_type=f32) + b2_ref[...]    # lin1 -> gelu -> lin2
    o_ref[0] = (z + r).astype(o_ref.dtype)


# --------------------------------------------------------------------------
# pallas_call plumbing
# --------------------------------------------------------------------------
def _const_spec(shape):
    nd = len(shape)
    return pl.BlockSpec(shape, lambda b, _n=nd: (0,) * _n)   # resident across grid steps


@jax.jit
def encoder_forward(x_nchw, prep):
    B = x_nchw.shape[0]
    # NCHW -> (B, P, Cin), zero-pad channels to CIN_PAD (tiny input-only glue)
    x_rows = jnp.transpose(x_nchw, (0, 2, 3, 1)).reshape(B, P, NUM_CHANNEL)
    x_pad = jnp.pad(x_rows, ((0, 0), (0, 0), (0, CIN_PAD - NUM_CHANNEL)))

    in_specs = [
        pl.BlockSpec((1, P, CIN_PAD), lambda b: (b, 0, 0)),   # per-sample input slab
        _const_spec((9 * P, P)),                              # shift matrices
        _const_spec((CIN_PAD, HIDDEN)), _const_spec((1, HIDDEN)),        # res1
        _const_spec((9 * CIN_PAD, HIDDEN)), _const_spec((1, HIDDEN)),    # conv1
        _const_spec((1, HIDDEN)), _const_spec((1, HIDDEN)),              # gn1
        _const_spec((9 * HIDDEN, HIDDEN)), _const_spec((1, HIDDEN)),     # conv2
        _const_spec((1, HIDDEN)), _const_spec((1, HIDDEN)),              # gn2
        _const_spec((9 * HIDDEN, HIDDEN)), _const_spec((1, HIDDEN)),     # conv3
        _const_spec((1, HIDDEN)), _const_spec((1, HIDDEN)),              # gn3
        _const_spec((HIDDEN, GROUPS)), _const_spec((GROUPS, HIDDEN)),    # GN one-hots
        _const_spec((P * HIDDEN, 2 * HIDDEN)), _const_spec((1, 2 * HIDDEN)),  # head
        _const_spec((HIDDEN, HIDDEN)), _const_spec((1, HIDDEN)),         # lin2
    ]
    out = pl.pallas_call(
        encoder_kernel,
        out_shape=jax.ShapeDtypeStruct((B, 1, HIDDEN), jnp.float32),
        grid=(B,),
        in_specs=in_specs,
        out_specs=pl.BlockSpec((1, 1, HIDDEN), lambda b: (b, 0, 0)),
        compiler_params=pltpu.CompilerParams(
            dimension_semantics=("parallel",)),               # v7x: 2 TCs split the batch
    )(x_pad, prep["shift"],
      prep["res1_w"], prep["res1_b"],
      prep["conv1_w"], prep["conv1_b"], prep["gn1_gamma"], prep["gn1_beta"],
      prep["conv2_w"], prep["conv2_b"], prep["gn2_gamma"], prep["gn2_beta"],
      prep["conv3_w"], prep["conv3_b"], prep["gn3_gamma"], prep["gn3_beta"],
      prep["m_cg"], prep["m_gc"],
      prep["w_head"], prep["b_head"], prep["lin2_w"], prep["lin2_b"])
    return out.reshape(B, HIDDEN)


# --------------------------------------------------------------------------
# deterministic parameter construction (PyTorch-equivalent layout)
# --------------------------------------------------------------------------
def init_params(key):
    ks = jax.random.split(key, 16)

    def w(k, shape, scale):
        return scale * jax.random.normal(k, shape, dtype=jnp.float32)

    cin = NUM_CHANNEL
    flat_dim = HIDDEN * BOARD_SIZE ** 2
    p = {
        "res1_w": w(ks[0], (cin, HIDDEN), 0.2),          # Conv2d(cin,128,k=1) as (Cin,Cout)
        "res1_b": w(ks[1], (1, HIDDEN), 0.1),
        "conv1_w": w(ks[2], (3, 3, cin, HIDDEN), 0.2),   # HWIO
        "conv1_b": w(ks[3], (1, HIDDEN), 0.1),
        "conv2_w": w(ks[4], (3, 3, HIDDEN, HIDDEN), 0.05),
        "conv2_b": w(ks[5], (1, HIDDEN), 0.1),
        "conv3_w": w(ks[6], (3, 3, HIDDEN, HIDDEN), 0.05),
        "conv3_b": w(ks[7], (1, HIDDEN), 0.1),
        "res2_w": w(ks[11], (flat_dim, HIDDEN), 0.02),   # Linear as (in, out), in-index c*P+p
        "res2_b": w(ks[12], (1, HIDDEN), 0.1),
        "lin1_w": w(ks[13], (flat_dim, HIDDEN), 0.02),
        "lin1_b": w(ks[14], (1, HIDDEN), 0.1),
    }
    for i, kk in zip((1, 2, 3), (ks[8], ks[9], ks[10])):
        k1, k2 = jax.random.split(kk)
        p[f"gn{i}_gamma"] = 1.0 + 0.1 * jax.random.normal(k1, (1, HIDDEN), dtype=jnp.float32)
        p[f"gn{i}_beta"] = 0.1 * jax.random.normal(k2, (1, HIDDEN), dtype=jnp.float32)
    k1, k2 = jax.random.split(ks[15])
    p["lin2_w"] = w(k1, (HIDDEN, HIDDEN), 0.05)
    p["lin2_b"] = w(k2, (1, HIDDEN), 0.1)
    return p


def prepare_params(params):
    """One-time (init-time) conversion of PyTorch-layout params to kernel layout."""
    H = W = BOARD_SIZE
    # 9 masked spatial-shift matrices for the 3x3 / pad=1 conv
    S = np.zeros((9, P, P), np.float32)
    for dh in range(3):
        for dw in range(3):
            k = dh * 3 + dw
            for h in range(H):
                for w in range(W):
                    hh, ww = h + dh - 1, w + dw - 1
                    if 0 <= hh < H and 0 <= ww < W:
                        S[k, h * W + w, hh * W + ww] = 1.0
    # GroupNorm one-hot reduce / broadcast matrices
    m_cg = np.zeros((HIDDEN, GROUPS), np.float32)
    m_cg[np.arange(HIDDEN), np.arange(HIDDEN) // GSIZE] = 1.0

    def pad_cin(w):  # zero-pad the Cin axis (second to last) up to CIN_PAD
        pad = [(0, 0)] * (w.ndim - 2) + [(0, CIN_PAD - NUM_CHANNEL), (0, 0)]
        return jnp.pad(w, pad)

    def permute_flat(w):  # rows c*P+p  ->  rows p*C+c  (absorbs NCHW flatten)
        return w.reshape(HIDDEN, P, HIDDEN).transpose(1, 0, 2).reshape(P * HIDDEN, HIDDEN)

    prep = {
        "shift": jnp.asarray(S.reshape(9 * P, P)),
        "m_cg": jnp.asarray(m_cg),
        "m_gc": jnp.asarray(m_cg.T),
        "res1_w": pad_cin(params["res1_w"]),
        "res1_b": params["res1_b"],
        "conv1_w": pad_cin(params["conv1_w"]).reshape(9 * CIN_PAD, HIDDEN),
        "conv1_b": params["conv1_b"],
        "conv2_w": params["conv2_w"].reshape(9 * HIDDEN, HIDDEN),
        "conv2_b": params["conv2_b"],
        "conv3_w": params["conv3_w"].reshape(9 * HIDDEN, HIDDEN),
        "conv3_b": params["conv3_b"],
        "w_head": jnp.concatenate([permute_flat(params["res2_w"]),
                                   permute_flat(params["lin1_w"])], axis=1),
        "b_head": jnp.concatenate([params["res2_b"], params["lin1_b"]], axis=1),
        "lin2_w": params["lin2_w"],
        "lin2_b": params["lin2_b"],
    }
    for i in (1, 2, 3):
        prep[f"gn{i}_gamma"] = params[f"gn{i}_gamma"]
        prep[f"gn{i}_beta"] = params[f"gn{i}_beta"]
    return jax.tree_util.tree_map(jnp.asarray, prep)


# --------------------------------------------------------------------------
# pure-JAX reference (PyTorch semantics, original-layout weights)
# --------------------------------------------------------------------------
def reference_forward(x_nchw, params):
    B, Cin, H, W = x_nchw.shape
    sp = H * W
    x = jnp.transpose(x_nchw, (0, 2, 3, 1))

    def conv3x3(inp, w_hwio, b):
        return lax.conv_general_dilated(
            inp, w_hwio, window_strides=(1, 1), padding="SAME",
            dimension_numbers=("NHWC", "HWIO", "NHWC")) + b.reshape(1, 1, 1, -1)

    def gn(v, gamma, beta):
        vv = v.reshape(B, sp, GROUPS, HIDDEN // GROUPS)
        mean = vv.mean(axis=(1, 3), keepdims=True)
        var = vv.var(axis=(1, 3), keepdims=True)
        out = ((vv - mean) / jnp.sqrt(var + EPS)).reshape(B, H, W, HIDDEN)
        return out * gamma.reshape(1, 1, 1, -1) + beta.reshape(1, 1, 1, -1)

    x_res = jnp.einsum("bhwc,cd->bhwd", x, params["res1_w"]) + params["res1_b"].reshape(1, 1, 1, -1)
    h = conv3x3(x, params["conv1_w"], params["conv1_b"])
    h = gn(_gelu(h), params["gn1_gamma"], params["gn1_beta"])
    h = conv3x3(h, params["conv2_w"], params["conv2_b"])
    h = gn(_gelu(h), params["gn2_gamma"], params["gn2_beta"])
    h = conv3x3(h, params["conv3_w"], params["conv3_b"])
    h = gn(_gelu(h), params["gn3_gamma"], params["gn3_beta"])
    h = h + x_res
    flat = jnp.transpose(h, (0, 3, 1, 2)).reshape(B, HIDDEN * sp)   # NCHW flatten
    r = flat @ params["res2_w"] + params["res2_b"]
    z = _gelu(flat @ params["lin1_w"] + params["lin1_b"])
    z = z @ params["lin2_w"] + params["lin2_b"]
    return z + r


if __name__ == "__main__":
    key = jax.random.PRNGKey(0)
    kx, kp = jax.random.split(key)
    x = jax.random.normal(kx, (2, NUM_CHANNEL, BOARD_SIZE, BOARD_SIZE), dtype=jnp.float32)
    params = init_params(kp)
    prep = prepare_params(params)        # one-time init-cost layout conversion

    out = encoder_forward(x, prep)
    out = jax.block_until_ready(out)

    assert out.shape == (2, HIDDEN), out.shape
    assert bool(jnp.all(jnp.isfinite(out)))

    ref = reference_forward(x, params)
    np.testing.assert_allclose(np.asarray(out), np.asarray(ref), rtol=3e-3, atol=3e-3)

    print("KERNEL_OK")
</pallas_src>

<mosaic_0001>
module attributes {stable_mosaic.version = 11 : i64} {
  func.func @encoder_kernel(%arg0: i32, %arg1: memref<1x16x8xf32, #tpu.memory_space<vmem>>, %arg2: memref<144x16xf32, #tpu.memory_space<vmem>>, %arg3: memref<8x128xf32, #tpu.memory_space<vmem>>, %arg4: memref<1x128xf32, #tpu.memory_space<vmem>>, %arg5: memref<72x128xf32, #tpu.memory_space<vmem>>, %arg6: memref<1x128xf32, #tpu.memory_space<vmem>>, %arg7: memref<1x128xf32, #tpu.memory_space<vmem>>, %arg8: memref<1x128xf32, #tpu.memory_space<vmem>>, %arg9: memref<1152x128xf32, #tpu.memory_space<vmem>>, %arg10: memref<1x128xf32, #tpu.memory_space<vmem>>, %arg11: memref<1x128xf32, #tpu.memory_space<vmem>>, %arg12: memref<1x128xf32, #tpu.memory_space<vmem>>, %arg13: memref<1152x128xf32, #tpu.memory_space<vmem>>, %arg14: memref<1x128xf32, #tpu.memory_space<vmem>>, %arg15: memref<1x128xf32, #tpu.memory_space<vmem>>, %arg16: memref<1x128xf32, #tpu.memory_space<vmem>>, %arg17: memref<128x16xf32, #tpu.memory_space<vmem>>, %arg18: memref<16x128xf32, #tpu.memory_space<vmem>>, %arg19: memref<2048x256xf32, #tpu.memory_space<vmem>>, %arg20: memref<1x256xf32, #tpu.memory_space<vmem>>, %arg21: memref<128x128xf32, #tpu.memory_space<vmem>>, %arg22: memref<1x128xf32, #tpu.memory_space<vmem>>, %arg23: memref<1x1x128xf32, #tpu.memory_space<vmem>>) attributes {dimension_semantics = [#tpu.dimension_semantics<parallel>], iteration_bounds = array<i64: 2>, scalar_prefetch = 0 : i64, scratch_operands = 0 : i64, tpu.core_type = #tpu.core_type<tc>, window_params = [{transform_indices = @transform_0, window_bounds = array<i64: 1, 16, 8>}, {pipeline_mode = #tpu.pipeline_mode<synchronous>, transform_indices = @transform_1, window_bounds = array<i64: 144, 16>}, {pipeline_mode = #tpu.pipeline_mode<synchronous>, transform_indices = @transform_2, window_bounds = array<i64: 8, 128>}, {pipeline_mode = #tpu.pipeline_mode<synchronous>, transform_indices = @transform_3, window_bounds = array<i64: 1, 128>}, {pipeline_mode = #tpu.pipeline_mode<synchronous>, transform_indices = @transform_4, window_bounds = array<i64: 72, 128>}, {pipeline_mode = #tpu.pipeline_mode<synchronous>, transform_indices = @transform_5, window_bounds = array<i64: 1, 128>}, {pipeline_mode = #tpu.pipeline_mode<synchronous>, transform_indices = @transform_6, window_bounds = array<i64: 1, 128>}, {pipeline_mode = #tpu.pipeline_mode<synchronous>, transform_indices = @transform_7, window_bounds = array<i64: 1, 128>}, {pipeline_mode = #tpu.pipeline_mode<synchronous>, transform_indices = @transform_8, window_bounds = array<i64: 1152, 128>}, {pipeline_mode = #tpu.pipeline_mode<synchronous>, transform_indices = @transform_9, window_bounds = array<i64: 1, 128>}, {pipeline_mode = #tpu.pipeline_mode<synchronous>, transform_indices = @transform_10, window_bounds = array<i64: 1, 128>}, {pipeline_mode = #tpu.pipeline_mode<synchronous>, transform_indices = @transform_11, window_bounds = array<i64: 1, 128>}, {pipeline_mode = #tpu.pipeline_mode<synchronous>, transform_indices = @transform_12, window_bounds = array<i64: 1152, 128>}, {pipeline_mode = #tpu.pipeline_mode<synchronous>, transform_indices = @transform_13, window_bounds = array<i64: 1, 128>}, {pipeline_mode = #tpu.pipeline_mode<synchronous>, transform_indices = @transform_14, window_bounds = array<i64: 1, 128>}, {pipeline_mode = #tpu.pipeline_mode<synchronous>, transform_indices = @transform_15, window_bounds = array<i64: 1, 128>}, {pipeline_mode = #tpu.pipeline_mode<synchronous>, transform_indices = @transform_16, window_bounds = array<i64: 128, 16>}, {pipeline_mode = #tpu.pipeline_mode<synchronous>, transform_indices = @transform_17, window_bounds = array<i64: 16, 128>}, {pipeline_mode = #tpu.pipeline_mode<synchronous>, transform_indices = @transform_18, window_bounds = array<i64: 2048, 256>}, {pipeline_mode = #tpu.pipeline_mode<synchronous>, transform_indices = @transform_19, window_bounds = array<i64: 1, 256>}, {pipeline_mode = #tpu.pipeline_mode<synchronous>, transform_indices = @transform_20, window_bounds = array<i64: 128, 128>}, {pipeline_mode = #tpu.pipeline_mode<synchronous>, transform_indices = @transform_21, window_bounds = array<i64: 1, 128>}, {transform_indices = @transform_22, window_bounds = array<i64: 1, 1, 128>}]} {
    %c0 = arith.constant 0 : index
    %c0_0 = arith.constant 0 : index
    %c0_1 = arith.constant 0 : index
    %0 = vector.load %arg1[%c0, %c0_0, %c0_1] : memref<1x16x8xf32, #tpu.memory_space<vmem>>, vector<1x16x8xf32>
    %1 = vector.shape_cast %0 : vector<1x16x8xf32> to vector<16x8xf32>
    %c0_2 = arith.constant 0 : index
    %c0_3 = arith.constant 0 : index
    %2 = vector.load %arg17[%c0_2, %c0_3] : memref<128x16xf32, #tpu.memory_space<vmem>>, vector<128x16xf32>
    %c0_4 = arith.constant 0 : index
    %c0_5 = arith.constant 0 : index
    %3 = vector.load %arg18[%c0_4, %c0_5] : memref<16x128xf32, #tpu.memory_space<vmem>>, vector<16x128xf32>
    %c0_6 = arith.constant 0 : index
    %c0_7 = arith.constant 0 : index
    %4 = vector.load %arg3[%c0_6, %c0_7] : memref<8x128xf32, #tpu.memory_space<vmem>>, vector<8x128xf32>
    %cst = arith.constant dense<0.000000e+00> : vector<16x128xf32>
    %5 = tpu.matmul %1, %4, %cst {dimension_numbers = #tpu.dot_dimension_numbers<[1], [0], [0], [1], [0, 0, 1, 1], [], []>} : vector<16x8xf32>, vector<8x128xf32>, vector<16x128xf32> -> vector<16x128xf32>
    %c0_8 = arith.constant 0 : index
    %c0_9 = arith.constant 0 : index
    %6 = vector.load %arg4[%c0_8, %c0_9] : memref<1x128xf32, #tpu.memory_space<vmem>>, vector<1x128xf32>
    %7 = vector.broadcast %6 : vector<1x128xf32> to vector<16x128xf32>
    %8 = arith.addf %5, %7 : vector<16x128xf32>
    %cst_10 = arith.constant 0.000000e+00 : f32
    %9 = vector.broadcast %cst_10 : f32 to vector<16x128xf32>
    %c0_11 = arith.constant 0 : index
    %c0_12 = arith.constant 0 : index
    %10 = vector.load %arg2[%c0_11, %c0_12] : memref<144x16xf32, #tpu.memory_space<vmem>>, vector<16x16xf32>
    %cst_13 = arith.constant dense<0.000000e+00> : vector<16x8xf32>
    %11 = tpu.matmul %10, %1, %cst_13 {dimension_numbers = #tpu.dot_dimension_numbers<[1], [0], [0], [1], [0, 0, 1, 1], [], []>} : vector<16x16xf32>, vector<16x8xf32>, vector<16x8xf32> -> vector<16x8xf32>
    %c0_14 = arith.constant 0 : index
    %c0_15 = arith.constant 0 : index
    %12 = vector.load %arg5[%c0_14, %c0_15] : memref<72x128xf32, #tpu.memory_space<vmem>>, vector<8x128xf32>
    %cst_16 = arith.constant dense<0.000000e+00> : vector<16x128xf32>
    %13 = tpu.matmul %11, %12, %cst_16 {dimension_numbers = #tpu.dot_dimension_numbers<[1], [0], [0], [1], [0, 0, 1, 1], [], []>} : vector<16x8xf32>, vector<8x128xf32>, vector<16x128xf32> -> vector<16x128xf32>
    %14 = arith.addf %9, %13 : vector<16x128xf32>
    %c16 = arith.constant 16 : index
    %c0_17 = arith.constant 0 : index
    %15 = vector.load %arg2[%c16, %c0_17] : memref<144x16xf32, #tpu.memory_space<vmem>>, vector<16x16xf32>
    %cst_18 = arith.constant dense<0.000000e+00> : vector<16x8xf32>
    %16 = tpu.matmul %15, %1, %cst_18 {dimension_numbers = #tpu.dot_dimension_numbers<[1], [0], [0], [1], [0, 0, 1, 1], [], []>} : vector<16x16xf32>, vector<16x8xf32>, vector<16x8xf32> -> vector<16x8xf32>
    %c8 = arith.constant 8 : index
    %c0_19 = arith.constant 0 : index
    %17 = vector.load %arg5[%c8, %c0_19] : memref<72x128xf32, #tpu.memory_space<vmem>>, vector<8x128xf32>
    %cst_20 = arith.constant dense<0.000000e+00> : vector<16x128xf32>
    %18 = tpu.matmul %16, %17, %cst_20 {dimension_numbers = #tpu.dot_dimension_numbers<[1], [0], [0], [1], [0, 0, 1, 1], [], []>} : vector<16x8xf32>, vector<8x128xf32>, vector<16x128xf32> -> vector<16x128xf32>
    %19 = arith.addf %14, %18 : vector<16x128xf32>
    %c32 = arith.constant 32 : index
    %c0_21 = arith.constant 0 : index
    %20 = vector.load %arg2[%c32, %c0_21] : memref<144x16xf32, #tpu.memory_space<vmem>>, vector<16x16xf32>
    %cst_22 = arith.constant dense<0.000000e+00> : vector<16x8xf32>
    %21 = tpu.matmul %20, %1, %cst_22 {dimension_numbers = #tpu.dot_dimension_numbers<[1], [0], [0], [1], [0, 0, 1, 1], [], []>} : vector<16x16xf32>, vector<16x8xf32>, vector<16x8xf32> -> vector<16x8xf32>
    %c16_23 = arith.constant 16 : index
    %c0_24 = arith.constant 0 : index
    %22 = vector.load %arg5[%c16_23, %c0_24] : memref<72x128xf32, #tpu.memory_space<vmem>>, vector<8x128xf32>
    %cst_25 = arith.constant dense<0.000000e+00> : vector<16x128xf32>
    %23 = tpu.matmul %21, %22, %cst_25 {dimension_numbers = #tpu.dot_dimension_numbers<[1], [0], [0], [1], [0, 0, 1, 1], [], []>} : vector<16x8xf32>, vector<8x128xf32>, vector<16x128xf32> -> vector<16x128xf32>
    %24 = arith.addf %19, %23 : vector<16x128xf32>
    %c48 = arith.constant 48 : index
    %c0_26 = arith.constant 0 : index
    %25 = vector.load %arg2[%c48, %c0_26] : memref<144x16xf32, #tpu.memory_space<vmem>>, vector<16x16xf32>
    %cst_27 = arith.constant dense<0.000000e+00> : vector<16x8xf32>
    %26 = tpu.matmul %25, %1, %cst_27 {dimension_numbers = #tpu.dot_dimension_numbers<[1], [0], [0], [1], [0, 0, 1, 1], [], []>} : vector<16x16xf32>, vector<16x8xf32>, vector<16x8xf32> -> vector<16x8xf32>
    %c24 = arith.constant 24 : index
    %c0_28 = arith.constant 0 : index
    %27 = vector.load %arg5[%c24, %c0_28] : memref<72x128xf32, #tpu.memory_space<vmem>>, vector<8x128xf32>
    %cst_29 = arith.constant dense<0.000000e+00> : vector<16x128xf32>
    %28 = tpu.matmul %26, %27, %cst_29 {dimension_numbers = #tpu.dot_dimension_numbers<[1], [0], [0], [1], [0, 0, 1, 1], [], []>} : vector<16x8xf32>, vector<8x128xf32>, vector<16x128xf32> -> vector<16x128xf32>
    %29 = arith.addf %24, %28 : vector<16x128xf32>
    %c64 = arith.constant 64 : index
    %c0_30 = arith.constant 0 : index
    %30 = vector.load %arg2[%c64, %c0_30] : memref<144x16xf32, #tpu.memory_space<vmem>>, vector<16x16xf32>
    %cst_31 = arith.constant dense<0.000000e+00> : vector<16x8xf32>
    %31 = tpu.matmul %30, %1, %cst_31 {dimension_numbers = #tpu.dot_dimension_numbers<[1], [0], [0], [1], [0, 0, 1, 1], [], []>} : vector<16x16xf32>, vector<16x8xf32>, vector<16x8xf32> -> vector<16x8xf32>
    %c32_32 = arith.constant 32 : index
    %c0_33 = arith.constant 0 : index
    %32 = vector.load %arg5[%c32_32, %c0_33] : memref<72x128xf32, #tpu.memory_space<vmem>>, vector<8x128xf32>
    %cst_34 = arith.constant dense<0.000000e+00> : vector<16x128xf32>
    %33 = tpu.matmul %31, %32, %cst_34 {dimension_numbers = #tpu.dot_dimension_numbers<[1], [0], [0], [1], [0, 0, 1, 1], [], []>} : vector<16x8xf32>, vector<8x128xf32>, vector<16x128xf32> -> vector<16x128xf32>
    %34 = arith.addf %29, %33 : vector<16x128xf32>
    %c80 = arith.constant 80 : index
    %c0_35 = arith.constant 0 : index
    %35 = vector.load %arg2[%c80, %c0_35] : memref<144x16xf32, #tpu.memory_space<vmem>>, vector<16x16xf32>
    %cst_36 = arith.constant dense<0.000000e+00> : vector<16x8xf32>
    %36 = tpu.matmul %35, %1, %cst_36 {dimension_numbers = #tpu.dot_dimension_numbers<[1], [0], [0], [1], [0, 0, 1, 1], [], []>} : vector<16x16xf32>, vector<16x8xf32>, vector<16x8xf32> -> vector<16x8xf32>
    %c40 = arith.constant 40 : index
    %c0_37 = arith.constant 0 : index
    %37 = vector.load %arg5[%c40, %c0_37] : memref<72x128xf32, #tpu.memory_space<vmem>>, vector<8x128xf32>
    %cst_38 = arith.constant dense<0.000000e+00> : vector<16x128xf32>
    %38 = tpu.matmul %36, %37, %cst_38 {dimension_numbers = #tpu.dot_dimension_numbers<[1], [0], [0], [1], [0, 0, 1, 1], [], []>} : vector<16x8xf32>, vector<8x128xf32>, vector<16x128xf32> -> vector<16x128xf32>
    %39 = arith.addf %34, %38 : vector<16x128xf32>
    %c96 = arith.constant 96 : index
    %c0_39 = arith.constant 0 : index
    %40 = vector.load %arg2[%c96, %c0_39] : memref<144x16xf32, #tpu.memory_space<vmem>>, vector<16x16xf32>
    %cst_40 = arith.constant dense<0.000000e+00> : vector<16x8xf32>
    %41 = tpu.matmul %40, %1, %cst_40 {dimension_numbers = #tpu.dot_dimension_numbers<[1], [0], [0], [1], [0, 0, 1, 1], [], []>} : vector<16x16xf32>, vector<16x8xf32>, vector<16x8xf32> -> vector<16x8xf32>
    %c48_41 = arith.constant 48 : index
    %c0_42 = arith.constant 0 : index
    %42 = vector.load %arg5[%c48_41, %c0_42] : memref<72x128xf32, #tpu.memory_space<vmem>>, vector<8x128xf32>
    %cst_43 = arith.constant dense<0.000000e+00> : vector<16x128xf32>
    %43 = tpu.matmul %41, %42, %cst_43 {dimension_numbers = #tpu.dot_dimension_numbers<[1], [0], [0], [1], [0, 0, 1, 1], [], []>} : vector<16x8xf32>, vector<8x128xf32>, vector<16x128xf32> -> vector<16x128xf32>
    %44 = arith.addf %39, %43 : vector<16x128xf32>
    %c112 = arith.constant 112 : index
    %c0_44 = arith.constant 0 : index
    %45 = vector.load %arg2[%c112, %c0_44] : memref<144x16xf32, #tpu.memory_space<vmem>>, vector<16x16xf32>
    %cst_45 = arith.constant dense<0.000000e+00> : vector<16x8xf32>
    %46 = tpu.matmul %45, %1, %cst_45 {dimension_numbers = #tpu.dot_dimension_numbers<[1], [0], [0], [1], [0, 0, 1, 1], [], []>} : vector<16x16xf32>, vector<16x8xf32>, vector<16x8xf32> -> vector<16x8xf32>
    %c56 = arith.constant 56 : index
    %c0_46 = arith.constant 0 : index
    %47 = vector.load %arg5[%c56, %c0_46] : memref<72x128xf32, #tpu.memory_space<vmem>>, vector<8x128xf32>
    %cst_47 = arith.constant dense<0.000000e+00> : vector<16x128xf32>
    %48 = tpu.matmul %46, %47, %cst_47 {dimension_numbers = #tpu.dot_dimension_numbers<[1], [0], [0], [1], [0, 0, 1, 1], [], []>} : vector<16x8xf32>, vector<8x128xf32>, vector<16x128xf32> -> vector<16x128xf32>
    %49 = arith.addf %44, %48 : vector<16x128xf32>
    %c128 = arith.constant 128 : index
    %c0_48 = arith.constant 0 : index
    %50 = vector.load %arg2[%c128, %c0_48] : memref<144x16xf32, #tpu.memory_space<vmem>>, vector<16x16xf32>
    %cst_49 = arith.constant dense<0.000000e+00> : vector<16x8xf32>
    %51 = tpu.matmul %50, %1, %cst_49 {dimension_numbers = #tpu.dot_dimension_numbers<[1], [0], [0], [1], [0, 0, 1, 1], [], []>} : vector<16x16xf32>, vector<16x8xf32>, vector<16x8xf32> -> vector<16x8xf32>
    %c64_50 = arith.constant 64 : index
    %c0_51 = arith.constant 0 : index
    %52 = vector.load %arg5[%c64_50, %c0_51] : memref<72x128xf32, #tpu.memory_space<vmem>>, vector<8x128xf32>
    %cst_52 = arith.constant dense<0.000000e+00> : vector<16x128xf32>
    %53 = tpu.matmul %51, %52, %cst_52 {dimension_numbers = #tpu.dot_dimension_numbers<[1], [0], [0], [1], [0, 0, 1, 1], [], []>} : vector<16x8xf32>, vector<8x128xf32>, vector<16x128xf32> -> vector<16x128xf32>
    %54 = arith.addf %49, %53 : vector<16x128xf32>
    %c0_53 = arith.constant 0 : index
    %c0_54 = arith.constant 0 : index
    %55 = vector.load %arg6[%c0_53, %c0_54] : memref<1x128xf32, #tpu.memory_space<vmem>>, vector<1x128xf32>
    %56 = vector.broadcast %55 : vector<1x128xf32> to vector<16x128xf32>
    %57 = arith.addf %54, %56 : vector<16x128xf32>
    %cst_55 = arith.constant 5.000000e-01 : f32
    %58 = vector.broadcast %cst_55 : f32 to vector<16x128xf32>
    %59 = arith.mulf %58, %57 : vector<16x128xf32>
    %cst_56 = arith.constant 0.707106769 : f32
    %60 = vector.broadcast %cst_56 : f32 to vector<16x128xf32>
    %61 = arith.mulf %57, %60 : vector<16x128xf32>
    %62 = math.erf %61 : vector<16x128xf32>
    %cst_57 = arith.constant 1.000000e+00 : f32
    %63 = vector.broadcast %cst_57 : f32 to vector<16x128xf32>
    %64 = arith.addf %63, %62 : vector<16x128xf32>
    %65 = arith.mulf %59, %64 : vector<16x128xf32>
    %cst_58 = arith.constant dense<0.000000e+00> : vector<128xf32>
    %66 = vector.multi_reduction <add>, %65, %cst_58 [0] : vector<16x128xf32> to vector<128xf32>
    %67 = vector.shape_cast %66 : vector<128xf32> to vector<1x128xf32>
    %cst_59 = arith.constant dense<0.000000e+00> : vector<1x16xf32>
    %68 = tpu.matmul %67, %2, %cst_59 {dimension_numbers = #tpu.dot_dimension_numbers<[1], [0], [0], [1], [0, 0, 1, 1], [], []>} : vector<1x128xf32>, vector<128x16xf32>, vector<1x16xf32> -> vector<1x16xf32>
    %cst_60 = arith.constant 1.280000e+02 : f32
    %69 = vector.broadcast %cst_60 : f32 to vector<1x16xf32>
    %70 = arith.divf %68, %69 : vector<1x16xf32>
    %cst_61 = arith.constant dense<0.000000e+00> : vector<1x128xf32>
    %71 = tpu.matmul %70, %3, %cst_61 {dimension_numbers = #tpu.dot_dimension_numbers<[1], [0], [0], [1], [0, 0, 1, 1], [], []>} : vector<1x16xf32>, vector<16x128xf32>, vector<1x128xf32> -> vector<1x128xf32>
    %72 = vector.broadcast %71 : vector<1x128xf32> to vector<16x128xf32>
    %73 = arith.subf %65, %72 : vector<16x128xf32>
    %74 = arith.mulf %73, %73 : vector<16x128xf32>
    %cst_62 = arith.constant dense<0.000000e+00> : vector<128xf32>
    %75 = vector.multi_reduction <add>, %74, %cst_62 [0] : vector<16x128xf32> to vector<128xf32>
    %76 = vector.shape_cast %75 : vector<128xf32> to vector<1x128xf32>
    %cst_63 = arith.constant dense<0.000000e+00> : vector<1x16xf32>
    %77 = tpu.matmul %76, %2, %cst_63 {dimension_numbers = #tpu.dot_dimension_numbers<[1], [0], [0], [1], [0, 0, 1, 1], [], []>} : vector<1x128xf32>, vector<128x16xf32>, vector<1x16xf32> -> vector<1x16xf32>
    %cst_64 = arith.constant 1.280000e+02 : f32
    %78 = vector.broadcast %cst_64 : f32 to vector<1x16xf32>
    %79 = arith.divf %77, %78 : vector<1x16xf32>
    %cst_65 = arith.constant 9.99999974E-6 : f32
    %80 = vector.broadcast %cst_65 : f32 to vector<1x16xf32>
    %81 = arith.addf %79, %80 : vector<1x16xf32>
    %82 = math.rsqrt %81 : vector<1x16xf32>
    %cst_66 = arith.constant dense<0.000000e+00> : vector<1x128xf32>
    %83 = tpu.matmul %82, %3, %cst_66 {dimension_numbers = #tpu.dot_dimension_numbers<[1], [0], [0], [1], [0, 0, 1, 1], [], []>} : vector<1x16xf32>, vector<16x128xf32>, vector<1x128xf32> -> vector<1x128xf32>
    %84 = vector.broadcast %83 : vector<1x128xf32> to vector<16x128xf32>
    %85 = arith.mulf %73, %84 : vector<16x128xf32>
    %c0_67 = arith.constant 0 : index
    %c0_68 = arith.constant 0 : index
    %86 = vector.load %arg7[%c0_67, %c0_68] : memref<1x128xf32, #tpu.memory_space<vmem>>, vector<1x128xf32>
    %87 = vector.broadcast %86 : vector<1x128xf32> to vector<16x128xf32>
    %88 = arith.mulf %85, %87 : vector<16x128xf32>
    %c0_69 = arith.constant 0 : index
    %c0_70 = arith.constant 0 : index
    %89 = vector.load %arg8[%c0_69, %c0_70] : memref<1x128xf32, #tpu.memory_space<vmem>>, vector<1x128xf32>
    %90 = vector.broadcast %89 : vector<1x128xf32> to vector<16x128xf32>
    %91 = arith.addf %88, %90 : vector<16x128xf32>
    %cst_71 = arith.constant 0.000000e+00 : f32
    %92 = vector.broadcast %cst_71 : f32 to vector<16x128xf32>
    %c0_72 = arith.constant 0 : index
    %c0_73 = arith.constant 0 : index
    %93 = vector.load %arg2[%c0_72, %c0_73] : memref<144x16xf32, #tpu.memory_space<vmem>>, vector<16x16xf32>
    %cst_74 = arith.constant dense<0.000000e+00> : vector<16x128xf32>
    %94 = tpu.matmul %93, %91, %cst_74 {dimension_numbers = #tpu.dot_dimension_numbers<[1], [0], [0], [1], [0, 0, 1, 1], [], []>} : vector<16x16xf32>, vector<16x128xf32>, vector<16x128xf32> -> vector<16x128xf32>
    %c0_75 = arith.constant 0 : index
    %c0_76 = arith.constant 0 : index
    %95 = vector.load %arg9[%c0_75, %c0_76] : memref<1152x128xf32, #tpu.memory_space<vmem>>, vector<128x128xf32>
    %cst_77 = arith.constant dense<0.000000e+00> : vector<16x128xf32>
    %96 = tpu.matmul %94, %95, %cst_77 {dimension_numbers = #tpu.dot_dimension_numbers<[1], [0], [0], [1], [0, 0, 1, 1], [], []>} : vector<16x128xf32>, vector<128x128xf32>, vector<16x128xf32> -> vector<16x128xf32>
    %97 = arith.addf %92, %96 : vector<16x128xf32>
    %c16_78 = arith.constant 16 : index
    %c0_79 = arith.constant 0 : index
    %98 = vector.load %arg2[%c16_78, %c0_79] : memref<144x16xf32, #tpu.memory_space<vmem>>, vector<16x16xf32>
    %cst_80 = arith.constant dense<0.000000e+00> : vector<16x128xf32>
    %99 = tpu.matmul %98, %91, %cst_80 {dimension_numbers = #tpu.dot_dimension_numbers<[1], [0], [0], [1], [0, 0, 1, 1], [], []>} : vector<16x16xf32>, vector<16x128xf32>, vector<16x128xf32> -> vector<16x128xf32>
    %c128_81 = arith.constant 128 : index
    %c0_82 = arith.constant 0 : index
    %100 = vector.load %arg9[%c128_81, %c0_82] : memref<1152x128xf32, #tpu.memory_space<vmem>>, vector<128x128xf32>
    %cst_83 = arith.constant dense<0.000000e+00> : vector<16x128xf32>
    %101 = tpu.matmul %99, %100, %cst_83 {dimension_numbers = #tpu.dot_dimension_numbers<[1], [0], [0], [1], [0, 0, 1, 1], [], []>} : vector<16x128xf32>, vector<128x128xf32>, vector<16x128xf32> -> vector<16x128xf32>
    %102 = arith.addf %97, %101 : vector<16x128xf32>
    %c32_84 = arith.constant 32 : index
    %c0_85 = arith.constant 0 : index
    %103 = vector.load %arg2[%c32_84, %c0_85] : memref<144x16xf32, #tpu.memory_space<vmem>>, vector<16x16xf32>
    %cst_86 = arith.constant dense<0.000000e+00> : vector<16x128xf32>
    %104 = tpu.matmul %103, %91, %cst_86 {dimension_numbers = #tpu.dot_dimension_numbers<[1], [0], [0], [1], [0, 0, 1, 1], [], []>} : vector<16x16xf32>, vector<16x128xf32>, vector<16x128xf32> -> vector<16x128xf32>
    %c256 = arith.constant 256 : index
    %c0_87 = arith.constant 0 : index
    %105 = vector.load %arg9[%c256, %c0_87] : memref<1152x128xf32, #tpu.memory_space<vmem>>, vector<128x128xf32>
    %cst_88 = arith.constant dense<0.000000e+00> : vector<16x128xf32>
    %106 = tpu.matmul %104, %105, %cst_88 {dimension_numbers = #tpu.dot_dimension_numbers<[1], [0], [0], [1], [0, 0, 1, 1], [], []>} : vector<16x128xf32>, vector<128x128xf32>, vector<16x128xf32> -> vector<16x128xf32>
    %107 = arith.addf %102, %106 : vector<16x128xf32>
    %c48_89 = arith.constant 48 : index
    %c0_90 = arith.constant 0 : index
    %108 = vector.load %arg2[%c48_89, %c0_90] : memref<144x16xf32, #tpu.memory_space<vmem>>, vector<16x16xf32>
    %cst_91 = arith.constant dense<0.000000e+00> : vector<16x128xf32>
    %109 = tpu.matmul %108, %91, %cst_91 {dimension_numbers = #tpu.dot_dimension_numbers<[1], [0], [0], [1], [0, 0, 1, 1], [], []>} : vector<16x16xf32>, vector<16x128xf32>, vector<16x128xf32> -> vector<16x128xf32>
    %c384 = arith.constant 384 : index
    %c0_92 = arith.constant 0 : index
    %110 = vector.load %arg9[%c384, %c0_92] : memref<1152x128xf32, #tpu.memory_space<vmem>>, vector<128x128xf32>
    %cst_93 = arith.constant dense<0.000000e+00> : vector<16x128xf32>
    %111 = tpu.matmul %109, %110, %cst_93 {dimension_numbers = #tpu.dot_dimension_numbers<[1], [0], [0], [1], [0, 0, 1, 1], [], []>} : vector<16x128xf32>, vector<128x128xf32>, vector<16x128xf32> -> vector<16x128xf32>
    %112 = arith.addf %107, %111 : vector<16x128xf32>
    %c64_94 = arith.constant 64 : index
    %c0_95 = arith.constant 0 : index
    %113 = vector.load %arg2[%c64_94, %c0_95] : memref<144x16xf32, #tpu.memory_space<vmem>>, vector<16x16xf32>
    %cst_96 = arith.constant dense<0.000000e+00> : vector<16x128xf32>
    %114 = tpu.matmul %113, %91, %cst_96 {dimension_numbers = #tpu.dot_dimension_numbers<[1], [0], [0], [1], [0, 0, 1, 1], [], []>} : vector<16x16xf32>, vector<16x128xf32>, vector<16x128xf32> -> vector<16x128xf32>
    %c512 = arith.constant 512 : index
    %c0_97 = arith.constant 0 : index
    %115 = vector.load %arg9[%c512, %c0_97] : memref<1152x128xf32, #tpu.memory_space<vmem>>, vector<128x128xf32>
    %cst_98 = arith.constant dense<0.000000e+00> : vector<16x128xf32>
    %116 = tpu.matmul %114, %115, %cst_98 {dimension_numbers = #tpu.dot_dimension_numbers<[1], [0], [0], [1], [0, 0, 1, 1], [], []>} : vector<16x128xf32>, vector<128x128xf32>, vector<16x128xf32> -> vector<16x128xf32>
    %117 = arith.addf %112, %116 : vector<16x128xf32>
    %c80_99 = arith.constant 80 : index
    %c0_100 = arith.constant 0 : index
    %118 = vector.load %arg2[%c80_99, %c0_100] : memref<144x16xf32, #tpu.memory_space<vmem>>, vector<16x16xf32>
    %cst_101 = arith.constant dense<0.000000e+00> : vector<16x128xf32>
    %119 = tpu.matmul %118, %91, %cst_101 {dimension_numbers = #tpu.dot_dimension_numbers<[1], [0], [0], [1], [0, 0, 1, 1], [], []>} : vector<16x16xf32>, vector<16x128xf32>, vector<16x128xf32> -> vector<16x128xf32>
    %c640 = arith.constant 640 : index
    %c0_102 = arith.constant 0 : index
    %120 = vector.load %arg9[%c640, %c0_102] : memref<1152x128xf32, #tpu.memory_space<vmem>>, vector<128x128xf32>
    %cst_103 = arith.constant dense<0.000000e+00> : vector<16x128xf32>
    %121 = tpu.matmul %119, %120, %cst_103 {dimension_numbers = #tpu.dot_dimension_numbers<[1], [0], [0], [1], [0, 0, 1, 1], [], []>} : vector<16x128xf32>, vector<128x128xf32>, vector<16x128xf32> -> vector<16x128xf32>
    %122 = arith.addf %117, %121 : vector<16x128xf32>
    %c96_104 = arith.constant 96 : index
    %c0_105 = arith.constant 0 : index
    %123 = vector.load %arg2[%c96_104, %c0_105] : memref<144x16xf32, #tpu.memory_space<vmem>>, vector<16x16xf32>
    %cst_106 = arith.constant dense<0.000000e+00> : vector<16x128xf32>
    %124 = tpu.matmul %123, %91, %cst_106 {dimension_numbers = #tpu.dot_dimension_numbers<[1], [0], [0], [1], [0, 0, 1, 1], [], []>} : vector<16x16xf32>, vector<16x128xf32>, vector<16x128xf32> -> vector<16x128xf32>
    %c768 = arith.constant 768 : index
    %c0_107 = arith.constant 0 : index
    %125 = vector.load %arg9[%c768, %c0_107] : memref<1152x128xf32, #tpu.memory_space<vmem>>, vector<128x128xf32>
    %cst_108 = arith.constant dense<0.000000e+00> : vector<16x128xf32>
    %126 = tpu.matmul %124, %125, %cst_108 {dimension_numbers = #tpu.dot_dimension_numbers<[1], [0], [0], [1], [0, 0, 1, 1], [], []>} : vector<16x128xf32>, vector<128x128xf32>, vector<16x128xf32> -> vector<16x128xf32>
    %127 = arith.addf %122, %126 : vector<16x128xf32>
    %c112_109 = arith.constant 112 : index
    %c0_110 = arith.constant 0 : index
    %128 = vector.load %arg2[%c112_109, %c0_110] : memref<144x16xf32, #tpu.memory_space<vmem>>, vector<16x16xf32>
    %cst_111 = arith.constant dense<0.000000e+00> : vector<16x128xf32>
    %129 = tpu.matmul %128, %91, %cst_111 {dimension_numbers = #tpu.dot_dimension_numbers<[1], [0], [0], [1], [0, 0, 1, 1], [], []>} : vector<16x16xf32>, vector<16x128xf32>, vector<16x128xf32> -> vector<16x128xf32>
    %c896 = arith.constant 896 : index
    %c0_112 = arith.constant 0 : index
    %130 = vector.load %arg9[%c896, %c0_112] : memref<1152x128xf32, #tpu.memory_space<vmem>>, vector<128x128xf32>
    %cst_113 = arith.constant dense<0.000000e+00> : vector<16x128xf32>
    %131 = tpu.matmul %129, %130, %cst_113 {dimension_numbers = #tpu.dot_dimension_numbers<[1], [0], [0], [1], [0, 0, 1, 1], [], []>} : vector<16x128xf32>, vector<128x128xf32>, vector<16x128xf32> -> vector<16x128xf32>
    %132 = arith.addf %127, %131 : vector<16x128xf32>
    %c128_114 = arith.constant 128 : index
    %c0_115 = arith.constant 0 : index
    %133 = vector.load %arg2[%c128_114, %c0_115] : memref<144x16xf32, #tpu.memory_space<vmem>>, vector<16x16xf32>
    %cst_116 = arith.constant dense<0.000000e+00> : vector<16x128xf32>
    %134 = tpu.matmul %133, %91, %cst_116 {dimension_numbers = #tpu.dot_dimension_numbers<[1], [0], [0], [1], [0, 0, 1, 1], [], []>} : vector<16x16xf32>, vector<16x128xf32>, vector<16x128xf32> -> vector<16x128xf32>
    %c1024 = arith.constant 1024 : index
    %c0_117 = arith.constant 0 : index
    %135 = vector.load %arg9[%c1024, %c0_117] : memref<1152x128xf32, #tpu.memory_space<vmem>>, vector<128x128xf32>
    %cst_118 = arith.constant dense<0.000000e+00> : vector<16x128xf32>
    %136 = tpu.matmul %134, %135, %cst_118 {dimension_numbers = #tpu.dot_dimension_numbers<[1], [0], [0], [1], [0, 0, 1, 1], [], []>} : vector<16x128xf32>, vector<128x128xf32>, vector<16x128xf32> -> vector<16x128xf32>
    %137 = arith.addf %132, %136 : vector<16x128xf32>
    %c0_119 = arith.constant 0 : index
    %c0_120 = arith.constant 0 : index
    %138 = vector.load %arg10[%c0_119, %c0_120] : memref<1x128xf32, #tpu.memory_space<vmem>>, vector<1x128xf32>
    %139 = vector.broadcast %138 : vector<1x128xf32> to vector<16x128xf32>
    %140 = arith.addf %137, %139 : vector<16x128xf32>
    %cst_121 = arith.constant 5.000000e-01 : f32
    %141 = vector.broadcast %cst_121 : f32 to vector<16x128xf32>
    %142 = arith.mulf %141, %140 : vector<16x128xf32>
    %cst_122 = arith.constant 0.707106769 : f32
    %143 = vector.broadcast %cst_122 : f32 to vector<16x128xf32>
    %144 = arith.mulf %140, %143 : vector<16x128xf32>
    %145 = math.erf %144 : vector<16x128xf32>
    %cst_123 = arith.constant 1.000000e+00 : f32
    %146 = vector.broadcast %cst_123 : f32 to vector<16x128xf32>
    %147 = arith.addf %146, %145 : vector<16x128xf32>
    %148 = arith.mulf %142, %147 : vector<16x128xf32>
    %cst_124 = arith.constant dense<0.000000e+00> : vector<128xf32>
    %149 = vector.multi_reduction <add>, %148, %cst_124 [0] : vector<16x128xf32> to vector<128xf32>
    %150 = vector.shape_cast %149 : vector<128xf32> to vector<1x128xf32>
    %cst_125 = arith.constant dense<0.000000e+00> : vector<1x16xf32>
    %151 = tpu.matmul %150, %2, %cst_125 {dimension_numbers = #tpu.dot_dimension_numbers<[1], [0], [0], [1], [0, 0, 1, 1], [], []>} : vector<1x128xf32>, vector<128x16xf32>, vector<1x16xf32> -> vector<1x16xf32>
    %cst_126 = arith.constant 1.280000e+02 : f32
    %152 = vector.broadcast %cst_126 : f32 to vector<1x16xf32>
    %153 = arith.divf %151, %152 : vector<1x16xf32>
    %cst_127 = arith.constant dense<0.000000e+00> : vector<1x128xf32>
    %154 = tpu.matmul %153, %3, %cst_127 {dimension_numbers = #tpu.dot_dimension_numbers<[1], [0], [0], [1], [0, 0, 1, 1], [], []>} : vector<1x16xf32>, vector<16x128xf32>, vector<1x128xf32> -> vector<1x128xf32>
    %155 = vector.broadcast %154 : vector<1x128xf32> to vector<16x128xf32>
    %156 = arith.subf %148, %155 : vector<16x128xf32>
    %157 = arith.mulf %156, %156 : vector<16x128xf32>
    %cst_128 = arith.constant dense<0.000000e+00> : vector<128xf32>
    %158 = vector.multi_reduction <add>, %157, %cst_128 [0] : vector<16x128xf32> to vector<128xf32>
    %159 = vector.shape_cast %158 : vector<128xf32> to vector<1x128xf32>
    %cst_129 = arith.constant dense<0.000000e+00> : vector<1x16xf32>
    %160 = tpu.matmul %159, %2, %cst_129 {dimension_numbers = #tpu.dot_dimension_numbers<[1], [0], [0], [1], [0, 0, 1, 1], [], []>} : vector<1x128xf32>, vector<128x16xf32>, vector<1x16xf32> -> vector<1x16xf32>
    %cst_130 = arith.constant 1.280000e+02 : f32
    %161 = vector.broadcast %cst_130 : f32 to vector<1x16xf32>
    %162 = arith.divf %160, %161 : vector<1x16xf32>
    %cst_131 = arith.constant 9.99999974E-6 : f32
    %163 = vector.broadcast %cst_131 : f32 to vector<1x16xf32>
    %164 = arith.addf %162, %163 : vector<1x16xf32>
    %165 = math.rsqrt %164 : vector<1x16xf32>
    %cst_132 = arith.constant dense<0.000000e+00> : vector<1x128xf32>
    %166 = tpu.matmul %165, %3, %cst_132 {dimension_numbers = #tpu.dot_dimension_numbers<[1], [0], [0], [1], [0, 0, 1, 1], [], []>} : vector<1x16xf32>, vector<16x128xf32>, vector<1x128xf32> -> vector<1x128xf32>
    %167 = vector.broadcast %166 : vector<1x128xf32> to vector<16x128xf32>
    %168 = arith.mulf %156, %167 : vector<16x128xf32>
    %c0_133 = arith.constant 0 : index
    %c0_134 = arith.constant 0 : index
    %169 = vector.load %arg11[%c0_133, %c0_134] : memref<1x128xf32, #tpu.memory_space<vmem>>, vector<1x128xf32>
    %170 = vector.broadcast %169 : vector<1x128xf32> to vector<16x128xf32>
    %171 = arith.mulf %168, %170 : vector<16x128xf32>
    %c0_135 = arith.constant 0 : index
    %c0_136 = arith.constant 0 : index
    %172 = vector.load %arg12[%c0_135, %c0_136] : memref<1x128xf32, #tpu.memory_space<vmem>>, vector<1x128xf32>
    %173 = vector.broadcast %172 : vector<1x128xf32> to vector<16x128xf32>
    %174 = arith.addf %171, %173 : vector<16x128xf32>
    %cst_137 = arith.constant 0.000000e+00 : f32
    %175 = vector.broadcast %cst_137 : f32 to vector<16x128xf32>
    %c0_138 = arith.constant 0 : index
    %c0_139 = arith.constant 0 : index
    %176 = vector.load %arg2[%c0_138, %c0_139] : memref<144x16xf32, #tpu.memory_space<vmem>>, vector<16x16xf32>
    %cst_140 = arith.constant dense<0.000000e+00> : vector<16x128xf32>
    %177 = tpu.matmul %176, %174, %cst_140 {dimension_numbers = #tpu.dot_dimension_numbers<[1], [0], [0], [1], [0, 0, 1, 1], [], []>} : vector<16x16xf32>, vector<16x128xf32>, vector<16x128xf32> -> vector<16x128xf32>
    %c0_141 = arith.constant 0 : index
    %c0_142 = arith.constant 0 : index
    %178 = vector.load %arg13[%c0_141, %c0_142] : memref<1152x128xf32, #tpu.memory_space<vmem>>, vector<128x128xf32>
    %cst_143 = arith.constant dense<0.000000e+00> : vector<16x128xf32>
    %179 = tpu.matmul %177, %178, %cst_143 {dimension_numbers = #tpu.dot_dimension_numbers<[1], [0], [0], [1], [0, 0, 1, 1], [], []>} : vector<16x128xf32>, vector<128x128xf32>, vector<16x128xf32> -> vector<16x128xf32>
    %180 = arith.addf %175, %179 : vector<16x128xf32>
    %c16_144 = arith.constant 16 : index
    %c0_145 = arith.constant 0 : index
    %181 = vector.load %arg2[%c16_144, %c0_145] : memref<144x16xf32, #tpu.memory_space<vmem>>, vector<16x16xf32>
    %cst_146 = arith.constant dense<0.000000e+00> : vector<16x128xf32>
    %182 = tpu.matmul %181, %174, %cst_146 {dimension_numbers = #tpu.dot_dimension_numbers<[1], [0], [0], [1], [0, 0, 1, 1], [], []>} : vector<16x16xf32>, vector<16x128xf32>, vector<16x128xf32> -> vector<16x128xf32>
    %c128_147 = arith.constant 128 : index
    %c0_148 = arith.constant 0 : index
    %183 = vector.load %arg13[%c128_147, %c0_148] : memref<1152x128xf32, #tpu.memory_space<vmem>>, vector<128x128xf32>
    %cst_149 = arith.constant dense<0.000000e+00> : vector<16x128xf32>
    %184 = tpu.matmul %182, %183, %cst_149 {dimension_numbers = #tpu.dot_dimension_numbers<[1], [0], [0], [1], [0, 0, 1, 1], [], []>} : vector<16x128xf32>, vector<128x128xf32>, vector<16x128xf32> -> vector<16x128xf32>
    %185 = arith.addf %180, %184 : vector<16x128xf32>
    %c32_150 = arith.constant 32 : index
    %c0_151 = arith.constant 0 : index
    %186 = vector.load %arg2[%c32_150, %c0_151] : memref<144x16xf32, #tpu.memory_space<vmem>>, vector<16x16xf32>
    %cst_152 = arith.constant dense<0.000000e+00> : vector<16x128xf32>
    %187 = tpu.matmul %186, %174, %cst_152 {dimension_numbers = #tpu.dot_dimension_numbers<[1], [0], [0], [1], [0, 0, 1, 1], [], []>} : vector<16x16xf32>, vector<16x128xf32>, vector<16x128xf32> -> vector<16x128xf32>
    %c256_153 = arith.constant 256 : index
    %c0_154 = arith.constant 0 : index
    %188 = vector.load %arg13[%c256_153, %c0_154] : memref<1152x128xf32, #tpu.memory_space<vmem>>, vector<128x128xf32>
    %cst_155 = arith.constant dense<0.000000e+00> : vector<16x128xf32>
    %189 = tpu.matmul %187, %188, %cst_155 {dimension_numbers = #tpu.dot_dimension_numbers<[1], [0], [0], [1], [0, 0, 1, 1], [], []>} : vector<16x128xf32>, vector<128x128xf32>, vector<16x128xf32> -> vector<16x128xf32>
    %190 = arith.addf %185, %189 : vector<16x128xf32>
    %c48_156 = arith.constant 48 : index
    %c0_157 = arith.constant 0 : index
    %191 = vector.load %arg2[%c48_156, %c0_157] : memref<144x16xf32, #tpu.memory_space<vmem>>, vector<16x16xf32>
    %cst_158 = arith.constant dense<0.000000e+00> : vector<16x128xf32>
    %192 = tpu.matmul %191, %174, %cst_158 {dimension_numbers = #tpu.dot_dimension_numbers<[1], [0], [0], [1], [0, 0, 1, 1], [], []>} : vector<16x16xf32>, vector<16x128xf32>, vector<16x128xf32> -> vector<16x128xf32>
    %c384_159 = arith.constant 384 : index
    %c0_160 = arith.constant 0 : index
    %193 = vector.load %arg13[%c384_159, %c0_160] : memref<1152x128xf32, #tpu.memory_space<vmem>>, vector<128x128xf32>
    %cst_161 = arith.constant dense<0.000000e+00> : vector<16x128xf32>
    %194 = tpu.matmul %192, %193, %cst_161 {dimension_numbers = #tpu.dot_dimension_numbers<[1], [0], [0], [1], [0, 0, 1, 1], [], []>} : vector<16x128xf32>, vector<128x128xf32>, vector<16x128xf32> -> vector<16x128xf32>
    %195 = arith.addf %190, %194 : vector<16x128xf32>
    %c64_162 = arith.constant 64 : index
    %c0_163 = arith.constant 0 : index
    %196 = vector.load %arg2[%c64_162, %c0_163] : memref<144x16xf32, #tpu.memory_space<vmem>>, vector<16x16xf32>
    %cst_164 = arith.constant dense<0.000000e+00> : vector<16x128xf32>
    %197 = tpu.matmul %196, %174, %cst_164 {dimension_numbers = #tpu.dot_dimension_numbers<[1], [0], [0], [1], [0, 0, 1, 1], [], []>} : vector<16x16xf32>, vector<16x128xf32>, vector<16x128xf32> -> vector<16x128xf32>
    %c512_165 = arith.constant 512 : index
    %c0_166 = arith.constant 0 : index
    %198 = vector.load %arg13[%c512_165, %c0_166] : memref<1152x128xf32, #tpu.memory_space<vmem>>, vector<128x128xf32>
    %cst_167 = arith.constant dense<0.000000e+00> : vector<16x128xf32>
    %199 = tpu.matmul %197, %198, %cst_167 {dimension_numbers = #tpu.dot_dimension_numbers<[1], [0], [0], [1], [0, 0, 1, 1], [], []>} : vector<16x128xf32>, vector<128x128xf32>, vector<16x128xf32> -> vector<16x128xf32>
    %200 = arith.addf %195, %199 : vector<16x128xf32>
    %c80_168 = arith.constant 80 : index
    %c0_169 = arith.constant 0 : index
    %201 = vector.load %arg2[%c80_168, %c0_169] : memref<144x16xf32, #tpu.memory_space<vmem>>, vector<16x16xf32>
    %cst_170 = arith.constant dense<0.000000e+00> : vector<16x128xf32>
    %202 = tpu.matmul %201, %174, %cst_170 {dimension_numbers = #tpu.dot_dimension_numbers<[1], [0], [0], [1], [0, 0, 1, 1], [], []>} : vector<16x16xf32>, vector<16x128xf32>, vector<16x128xf32> -> vector<16x128xf32>
    %c640_171 = arith.constant 640 : index
    %c0_172 = arith.constant 0 : index
    %203 = vector.load %arg13[%c640_171, %c0_172] : memref<1152x128xf32, #tpu.memory_space<vmem>>, vector<128x128xf32>
    %cst_173 = arith.constant dense<0.000000e+00> : vector<16x128xf32>
    %204 = tpu.matmul %202, %203, %cst_173 {dimension_numbers = #tpu.dot_dimension_numbers<[1], [0], [0], [1], [0, 0, 1, 1], [], []>} : vector<16x128xf32>, vector<128x128xf32>, vector<16x128xf32> -> vector<16x128xf32>
    %205 = arith.addf %200, %204 : vector<16x128xf32>
    %c96_174 = arith.constant 96 : index
    %c0_175 = arith.constant 0 : index
    %206 = vector.load %arg2[%c96_174, %c0_175] : memref<144x16xf32, #tpu.memory_space<vmem>>, vector<16x16xf32>
    %cst_176 = arith.constant dense<0.000000e+00> : vector<16x128xf32>
    %207 = tpu.matmul %206, %174, %cst_176 {dimension_numbers = #tpu.dot_dimension_numbers<[1], [0], [0], [1], [0, 0, 1, 1], [], []>} : vector<16x16xf32>, vector<16x128xf32>, vector<16x128xf32> -> vector<16x128xf32>
    %c768_177 = arith.constant 768 : index
    %c0_178 = arith.constant 0 : index
    %208 = vector.load %arg13[%c768_177, %c0_178] : memref<1152x128xf32, #tpu.memory_space<vmem>>, vector<128x128xf32>
    %cst_179 = arith.constant dense<0.000000e+00> : vector<16x128xf32>
    %209 = tpu.matmul %207, %208, %cst_179 {dimension_numbers = #tpu.dot_dimension_numbers<[1], [0], [0], [1], [0, 0, 1, 1], [], []>} : vector<16x128xf32>, vector<128x128xf32>, vector<16x128xf32> -> vector<16x128xf32>
    %210 = arith.addf %205, %209 : vector<16x128xf32>
    %c112_180 = arith.constant 112 : index
    %c0_181 = arith.constant 0 : index
    %211 = vector.load %arg2[%c112_180, %c0_181] : memref<144x16xf32, #tpu.memory_space<vmem>>, vector<16x16xf32>
    %cst_182 = arith.constant dense<0.000000e+00> : vector<16x128xf32>
    %212 = tpu.matmul %211, %174, %cst_182 {dimension_numbers = #tpu.dot_dimension_numbers<[1], [0], [0], [1], [0, 0, 1, 1], [], []>} : vector<16x16xf32>, vector<16x128xf32>, vector<16x128xf32> -> vector<16x128xf32>
    %c896_183 = arith.constant 896 : index
    %c0_184 = arith.constant 0 : index
    %213 = vector.load %arg13[%c896_183, %c0_184] : memref<1152x128xf32, #tpu.memory_space<vmem>>, vector<128x128xf32>
    %cst_185 = arith.constant dense<0.000000e+00> : vector<16x128xf32>
    %214 = tpu.matmul %212, %213, %cst_185 {dimension_numbers = #tpu.dot_dimension_numbers<[1], [0], [0], [1], [0, 0, 1, 1], [], []>} : vector<16x128xf32>, vector<128x128xf32>, vector<16x128xf32> -> vector<16x128xf32>
    %215 = arith.addf %210, %214 : vector<16x128xf32>
    %c128_186 = arith.constant 128 : index
    %c0_187 = arith.constant 0 : index
    %216 = vector.load %arg2[%c128_186, %c0_187] : memref<144x16xf32, #tpu.memory_space<vmem>>, vector<16x16xf32>
    %cst_188 = arith.constant dense<0.000000e+00> : vector<16x128xf32>
    %217 = tpu.matmul %216, %174, %cst_188 {dimension_numbers = #tpu.dot_dimension_numbers<[1], [0], [0], [1], [0, 0, 1, 1], [], []>} : vector<16x16xf32>, vector<16x128xf32>, vector<16x128xf32> -> vector<16x128xf32>
    %c1024_189 = arith.constant 1024 : index
    %c0_190 = arith.constant 0 : index
    %218 = vector.load %arg13[%c1024_189, %c0_190] : memref<1152x128xf32, #tpu.memory_space<vmem>>, vector<128x128xf32>
    %cst_191 = arith.constant dense<0.000000e+00> : vector<16x128xf32>
    %219 = tpu.matmul %217, %218, %cst_191 {dimension_numbers = #tpu.dot_dimension_numbers<[1], [0], [0], [1], [0, 0, 1, 1], [], []>} : vector<16x128xf32>, vector<128x128xf32>, vector<16x128xf32> -> vector<16x128xf32>
    %220 = arith.addf %215, %219 : vector<16x128xf32>
    %c0_192 = arith.constant 0 : index
    %c0_193 = arith.constant 0 : index
    %221 = vector.load %arg14[%c0_192, %c0_193] : memref<1x128xf32, #tpu.memory_space<vmem>>, vector<1x128xf32>
    %222 = vector.broadcast %221 : vector<1x128xf32> to vector<16x128xf32>
    %223 = arith.addf %220, %222 : vector<16x128xf32>
    %cst_194 = arith.constant 5.000000e-01 : f32
    %224 = vector.broadcast %cst_194 : f32 to vector<16x128xf32>
    %225 = arith.mulf %224, %223 : vector<16x128xf32>
    %cst_195 = arith.constant 0.707106769 : f32
    %226 = vector.broadcast %cst_195 : f32 to vector<16x128xf32>
    %227 = arith.mulf %223, %226 : vector<16x128xf32>
    %228 = math.erf %227 : vector<16x128xf32>
    %cst_196 = arith.constant 1.000000e+00 : f32
    %229 = vector.broadcast %cst_196 : f32 to vector<16x128xf32>
    %230 = arith.addf %229, %228 : vector<16x128xf32>
    %231 = arith.mulf %225, %230 : vector<16x128xf32>
    %cst_197 = arith.constant dense<0.000000e+00> : vector<128xf32>
    %232 = vector.multi_reduction <add>, %231, %cst_197 [0] : vector<16x128xf32> to vector<128xf32>
    %233 = vector.shape_cast %232 : vector<128xf32> to vector<1x128xf32>
    %cst_198 = arith.constant dense<0.000000e+00> : vector<1x16xf32>
    %234 = tpu.matmul %233, %2, %cst_198 {dimension_numbers = #tpu.dot_dimension_numbers<[1], [0], [0], [1], [0, 0, 1, 1], [], []>} : vector<1x128xf32>, vector<128x16xf32>, vector<1x16xf32> -> vector<1x16xf32>
    %cst_199 = arith.constant 1.280000e+02 : f32
    %235 = vector.broadcast %cst_199 : f32 to vector<1x16xf32>
    %236 = arith.divf %234, %235 : vector<1x16xf32>
    %cst_200 = arith.constant dense<0.000000e+00> : vector<1x128xf32>
    %237 = tpu.matmul %236, %3, %cst_200 {dimension_numbers = #tpu.dot_dimension_numbers<[1], [0], [0], [1], [0, 0, 1, 1], [], []>} : vector<1x16xf32>, vector<16x128xf32>, vector<1x128xf32> -> vector<1x128xf32>
    %238 = vector.broadcast %237 : vector<1x128xf32> to vector<16x128xf32>
    %239 = arith.subf %231, %238 : vector<16x128xf32>
    %240 = arith.mulf %239, %239 : vector<16x128xf32>
    %cst_201 = arith.constant dense<0.000000e+00> : vector<128xf32>
    %241 = vector.multi_reduction <add>, %240, %cst_201 [0] : vector<16x128xf32> to vector<128xf32>
    %242 = vector.shape_cast %241 : vector<128xf32> to vector<1x128xf32>
    %cst_202 = arith.constant dense<0.000000e+00> : vector<1x16xf32>
    %243 = tpu.matmul %242, %2, %cst_202 {dimension_numbers = #tpu.dot_dimension_numbers<[1], [0], [0], [1], [0, 0, 1, 1], [], []>} : vector<1x128xf32>, vector<128x16xf32>, vector<1x16xf32> -> vector<1x16xf32>
    %cst_203 = arith.constant 1.280000e+02 : f32
    %244 = vector.broadcast %cst_203 : f32 to vector<1x16xf32>
    %245 = arith.divf %243, %244 : vector<1x16xf32>
    %cst_204 = arith.constant 9.99999974E-6 : f32
    %246 = vector.broadcast %cst_204 : f32 to vector<1x16xf32>
    %247 = arith.addf %245, %246 : vector<1x16xf32>
    %248 = math.rsqrt %247 : vector<1x16xf32>
    %cst_205 = arith.constant dense<0.000000e+00> : vector<1x128xf32>
    %249 = tpu.matmul %248, %3, %cst_205 {dimension_numbers = #tpu.dot_dimension_numbers<[1], [0], [0], [1], [0, 0, 1, 1], [], []>} : vector<1x16xf32>, vector<16x128xf32>, vector<1x128xf32> -> vector<1x128xf32>
    %250 = vector.broadcast %249 : vector<1x128xf32> to vector<16x128xf32>
    %251 = arith.mulf %239, %250 : vector<16x128xf32>
    %c0_206 = arith.constant 0 : index
    %c0_207 = arith.constant 0 : index
    %252 = vector.load %arg15[%c0_206, %c0_207] : memref<1x128xf32, #tpu.memory_space<vmem>>, vector<1x128xf32>
    %253 = vector.broadcast %252 : vector<1x128xf32> to vector<16x128xf32>
    %254 = arith.mulf %251, %253 : vector<16x128xf32>
    %c0_208 = arith.constant 0 : index
    %c0_209 = arith.constant 0 : index
    %255 = vector.load %arg16[%c0_208, %c0_209] : memref<1x128xf32, #tpu.memory_space<vmem>>, vector<1x128xf32>
    %256 = vector.broadcast %255 : vector<1x128xf32> to vector<16x128xf32>
    %257 = arith.addf %254, %256 : vector<16x128xf32>
    %258 = arith.addf %257, %8 : vector<16x128xf32>
    %cst_210 = arith.constant 0.000000e+00 : f32
    %259 = vector.broadcast %cst_210 : f32 to vector<1x256xf32>
    %260 = vector.extract_strided_slice %258 {offsets = [0, 0], sizes = [1, 128], strides = [1, 1]} : vector<16x128xf32> to vector<1x128xf32>
    %c0_211 = arith.constant 0 : index
    %c0_212 = arith.constant 0 : index
    %261 = vector.load %arg19[%c0_211, %c0_212] : memref<2048x256xf32, #tpu.memory_space<vmem>>, vector<128x256xf32>
    %cst_213 = arith.constant dense<0.000000e+00> : vector<1x256xf32>
    %262 = tpu.matmul %260, %261, %cst_213 {dimension_numbers = #tpu.dot_dimension_numbers<[1], [0], [0], [1], [0, 0, 1, 1], [], []>} : vector<1x128xf32>, vector<128x256xf32>, vector<1x256xf32> -> vector<1x256xf32>
    %263 = arith.addf %259, %262 : vector<1x256xf32>
    %264 = vector.extract_strided_slice %258 {offsets = [1, 0], sizes = [1, 128], strides = [1, 1]} : vector<16x128xf32> to vector<1x128xf32>
    %c128_214 = arith.constant 128 : index
    %c0_215 = arith.constant 0 : index
    %265 = vector.load %arg19[%c128_214, %c0_215] : memref<2048x256xf32, #tpu.memory_space<vmem>>, vector<128x256xf32>
    %cst_216 = arith.constant dense<0.000000e+00> : vector<1x256xf32>
    %266 = tpu.matmul %264, %265, %cst_216 {dimension_numbers = #tpu.dot_dimension_numbers<[1], [0], [0], [1], [0, 0, 1, 1], [], []>} : vector<1x128xf32>, vector<128x256xf32>, vector<1x256xf32> -> vector<1x256xf32>
    %267 = arith.addf %263, %266 : vector<1x256xf32>
    %268 = vector.extract_strided_slice %258 {offsets = [2, 0], sizes = [1, 128], strides = [1, 1]} : vector<16x128xf32> to vector<1x128xf32>
    %c256_217 = arith.constant 256 : index
    %c0_218 = arith.constant 0 : index
    %269 = vector.load %arg19[%c256_217, %c0_218] : memref<2048x256xf32, #tpu.memory_space<vmem>>, vector<128x256xf32>
    %cst_219 = arith.constant dense<0.000000e+00> : vector<1x256xf32>
    %270 = tpu.matmul %268, %269, %cst_219 {dimension_numbers = #tpu.dot_dimension_numbers<[1], [0], [0], [1], [0, 0, 1, 1], [], []>} : vector<1x128xf32>, vector<128x256xf32>, vector<1x256xf32> -> vector<1x256xf32>
    %271 = arith.addf %267, %270 : vector<1x256xf32>
    %272 = vector.extract_strided_slice %258 {offsets = [3, 0], sizes = [1, 128], strides = [1, 1]} : vector<16x128xf32> to vector<1x128xf32>
    %c384_220 = arith.constant 384 : index
    %c0_221 = arith.constant 0 : index
    %273 = vector.load %arg19[%c384_220, %c0_221] : memref<2048x256xf32, #tpu.memory_space<vmem>>, vector<128x256xf32>
    %cst_222 = arith.constant dense<0.000000e+00> : vector<1x256xf32>
    %274 = tpu.matmul %272, %273, %cst_222 {dimension_numbers = #tpu.dot_dimension_numbers<[1], [0], [0], [1], [0, 0, 1, 1], [], []>} : vector<1x128xf32>, vector<128x256xf32>, vector<1x256xf32> -> vector<1x256xf32>
    %275 = arith.addf %271, %274 : vector<1x256xf32>
    %276 = vector.extract_strided_slice %258 {offsets = [4, 0], sizes = [1, 128], strides = [1, 1]} : vector<16x128xf32> to vector<1x128xf32>
    %c512_223 = arith.constant 512 : index
    %c0_224 = arith.constant 0 : index
    %277 = vector.load %arg19[%c512_223, %c0_224] : memref<2048x256xf32, #tpu.memory_space<vmem>>, vector<128x256xf32>
    %cst_225 = arith.constant dense<0.000000e+00> : vector<1x256xf32>
    %278 = tpu.matmul %276, %277, %cst_225 {dimension_numbers = #tpu.dot_dimension_numbers<[1], [0], [0], [1], [0, 0, 1, 1], [], []>} : vector<1x128xf32>, vector<128x256xf32>, vector<1x256xf32> -> vector<1x256xf32>
    %279 = arith.addf %275, %278 : vector<1x256xf32>
    %280 = vector.extract_strided_slice %258 {offsets = [5, 0], sizes = [1, 128], strides = [1, 1]} : vector<16x128xf32> to vector<1x128xf32>
    %c640_226 = arith.constant 640 : index
    %c0_227 = arith.constant 0 : index
    %281 = vector.load %arg19[%c640_226, %c0_227] : memref<2048x256xf32, #tpu.memory_space<vmem>>, vector<128x256xf32>
    %cst_228 = arith.constant dense<0.000000e+00> : vector<1x256xf32>
    %282 = tpu.matmul %280, %281, %cst_228 {dimension_numbers = #tpu.dot_dimension_numbers<[1], [0], [0], [1], [0, 0, 1, 1], [], []>} : vector<1x128xf32>, vector<128x256xf32>, vector<1x256xf32> -> vector<1x256xf32>
    %283 = arith.addf %279, %282 : vector<1x256xf32>
    %284 = vector.extract_strided_slice %258 {offsets = [6, 0], sizes = [1, 128], strides = [1, 1]} : vector<16x128xf32> to vector<1x128xf32>
    %c768_229 = arith.constant 768 : index
    %c0_230 = arith.constant 0 : index
    %285 = vector.load %arg19[%c768_229, %c0_230] : memref<2048x256xf32, #tpu.memory_space<vmem>>, vector<128x256xf32>
    %cst_231 = arith.constant dense<0.000000e+00> : vector<1x256xf32>
    %286 = tpu.matmul %284, %285, %cst_231 {dimension_numbers = #tpu.dot_dimension_numbers<[1], [0], [0], [1], [0, 0, 1, 1], [], []>} : vector<1x128xf32>, vector<128x256xf32>, vector<1x256xf32> -> vector<1x256xf32>
    %287 = arith.addf %283, %286 : vector<1x256xf32>
    %288 = vector.extract_strided_slice %258 {offsets = [7, 0], sizes = [1, 128], strides = [1, 1]} : vector<16x128xf32> to vector<1x128xf32>
    %c896_232 = arith.constant 896 : index
    %c0_233 = arith.constant 0 : index
    %289 = vector.load %arg19[%c896_232, %c0_233] : memref<2048x256xf32, #tpu.memory_space<vmem>>, vector<128x256xf32>
    %cst_234 = arith.constant dense<0.000000e+00> : vector<1x256xf32>
    %290 = tpu.matmul %288, %289, %cst_234 {dimension_numbers = #tpu.dot_dimension_numbers<[1], [0], [0], [1], [0, 0, 1, 1], [], []>} : vector<1x128xf32>, vector<128x256xf32>, vector<1x256xf32> -> vector<1x256xf32>
    %291 = arith.addf %287, %290 : vector<1x256xf32>
    %292 = vector.extract_strided_slice %258 {offsets = [8, 0], sizes = [1, 128], strides = [1, 1]} : vector<16x128xf32> to vector<1x128xf32>
    %c1024_235 = arith.constant 1024 : index
    %c0_236 = arith.constant 0 : index
    %293 = vector.load %arg19[%c1024_235, %c0_236] : memref<2048x256xf32, #tpu.memory_space<vmem>>, vector<128x256xf32>
    %cst_237 = arith.constant dense<0.000000e+00> : vector<1x256xf32>
    %294 = tpu.matmul %292, %293, %cst_237 {dimension_numbers = #tpu.dot_dimension_numbers<[1], [0], [0], [1], [0, 0, 1, 1], [], []>} : vector<1x128xf32>, vector<128x256xf32>, vector<1x256xf32> -> vector<1x256xf32>
    %295 = arith.addf %291, %294 : vector<1x256xf32>
    %296 = vector.extract_strided_slice %258 {offsets = [9, 0], sizes = [1, 128], strides = [1, 1]} : vector<16x128xf32> to vector<1x128xf32>
    %c1152 = arith.constant 1152 : index
    %c0_238 = arith.constant 0 : index
    %297 = vector.load %arg19[%c1152, %c0_238] : memref<2048x256xf32, #tpu.memory_space<vmem>>, vector<128x256xf32>
    %cst_239 = arith.constant dense<0.000000e+00> : vector<1x256xf32>
    %298 = tpu.matmul %296, %297, %cst_239 {dimension_numbers = #tpu.dot_dimension_numbers<[1], [0], [0], [1], [0, 0, 1, 1], [], []>} : vector<1x128xf32>, vector<128x256xf32>, vector<1x256xf32> -> vector<1x256xf32>
    %299 = arith.addf %295, %298 : vector<1x256xf32>
    %300 = vector.extract_strided_slice %258 {offsets = [10, 0], sizes = [1, 128], strides = [1, 1]} : vector<16x128xf32> to vector<1x128xf32>
    %c1280 = arith.constant 1280 : index
    %c0_240 = arith.constant 0 : index
    %301 = vector.load %arg19[%c1280, %c0_240] : memref<2048x256xf32, #tpu.memory_space<vmem>>, vector<128x256xf32>
    %cst_241 = arith.constant dense<0.000000e+00> : vector<1x256xf32>
    %302 = tpu.matmul %300, %301, %cst_241 {dimension_numbers = #tpu.dot_dimension_numbers<[1], [0], [0], [1], [0, 0, 1, 1], [], []>} : vector<1x128xf32>, vector<128x256xf32>, vector<1x256xf32> -> vector<1x256xf32>
    %303 = arith.addf %299, %302 : vector<1x256xf32>
    %304 = vector.extract_strided_slice %258 {offsets = [11, 0], sizes = [1, 128], strides = [1, 1]} : vector<16x128xf32> to vector<1x128xf32>
    %c1408 = arith.constant 1408 : index
    %c0_242 = arith.constant 0 : index
    %305 = vector.load %arg19[%c1408, %c0_242] : memref<2048x256xf32, #tpu.memory_space<vmem>>, vector<128x256xf32>
    %cst_243 = arith.constant dense<0.000000e+00> : vector<1x256xf32>
    %306 = tpu.matmul %304, %305, %cst_243 {dimension_numbers = #tpu.dot_dimension_numbers<[1], [0], [0], [1], [0, 0, 1, 1], [], []>} : vector<1x128xf32>, vector<128x256xf32>, vector<1x256xf32> -> vector<1x256xf32>
    %307 = arith.addf %303, %306 : vector<1x256xf32>
    %308 = vector.extract_strided_slice %258 {offsets = [12, 0], sizes = [1, 128], strides = [1, 1]} : vector<16x128xf32> to vector<1x128xf32>
    %c1536 = arith.constant 1536 : index
    %c0_244 = arith.constant 0 : index
    %309 = vector.load %arg19[%c1536, %c0_244] : memref<2048x256xf32, #tpu.memory_space<vmem>>, vector<128x256xf32>
    %cst_245 = arith.constant dense<0.000000e+00> : vector<1x256xf32>
    %310 = tpu.matmul %308, %309, %cst_245 {dimension_numbers = #tpu.dot_dimension_numbers<[1], [0], [0], [1], [0, 0, 1, 1], [], []>} : vector<1x128xf32>, vector<128x256xf32>, vector<1x256xf32> -> vector<1x256xf32>
    %311 = arith.addf %307, %310 : vector<1x256xf32>
    %312 = vector.extract_strided_slice %258 {offsets = [13, 0], sizes = [1, 128], strides = [1, 1]} : vector<16x128xf32> to vector<1x128xf32>
    %c1664 = arith.constant 1664 : index
    %c0_246 = arith.constant 0 : index
    %313 = vector.load %arg19[%c1664, %c0_246] : memref<2048x256xf32, #tpu.memory_space<vmem>>, vector<128x256xf32>
    %cst_247 = arith.constant dense<0.000000e+00> : vector<1x256xf32>
    %314 = tpu.matmul %312, %313, %cst_247 {dimension_numbers = #tpu.dot_dimension_numbers<[1], [0], [0], [1], [0, 0, 1, 1], [], []>} : vector<1x128xf32>, vector<128x256xf32>, vector<1x256xf32> -> vector<1x256xf32>
    %315 = arith.addf %311, %314 : vector<1x256xf32>
    %316 = vector.extract_strided_slice %258 {offsets = [14, 0], sizes = [1, 128], strides = [1, 1]} : vector<16x128xf32> to vector<1x128xf32>
    %c1792 = arith.constant 1792 : index
    %c0_248 = arith.constant 0 : index
    %317 = vector.load %arg19[%c1792, %c0_248] : memref<2048x256xf32, #tpu.memory_space<vmem>>, vector<128x256xf32>
    %cst_249 = arith.constant dense<0.000000e+00> : vector<1x256xf32>
    %318 = tpu.matmul %316, %317, %cst_249 {dimension_numbers = #tpu.dot_dimension_numbers<[1], [0], [0], [1], [0, 0, 1, 1], [], []>} : vector<1x128xf32>, vector<128x256xf32>, vector<1x256xf32> -> vector<1x256xf32>
    %319 = arith.addf %315, %318 : vector<1x256xf32>
    %320 = vector.extract_strided_slice %258 {offsets = [15, 0], sizes = [1, 128], strides = [1, 1]} : vector<16x128xf32> to vector<1x128xf32>
    %c1920 = arith.constant 1920 : index
    %c0_250 = arith.constant 0 : index
    %321 = vector.load %arg19[%c1920, %c0_250] : memref<2048x256xf32, #tpu.memory_space<vmem>>, vector<128x256xf32>
    %cst_251 = arith.constant dense<0.000000e+00> : vector<1x256xf32>
    %322 = tpu.matmul %320, %321, %cst_251 {dimension_numbers = #tpu.dot_dimension_numbers<[1], [0], [0], [1], [0, 0, 1, 1], [], []>} : vector<1x128xf32>, vector<128x256xf32>, vector<1x256xf32> -> vector<1x256xf32>
    %323 = arith.addf %319, %322 : vector<1x256xf32>
    %c0_252 = arith.constant 0 : index
    %c0_253 = arith.constant 0 : index
    %324 = vector.load %arg20[%c0_252, %c0_253] : memref<1x256xf32, #tpu.memory_space<vmem>>, vector<1x256xf32>
    %325 = arith.addf %323, %324 : vector<1x256xf32>
    %326 = vector.extract_strided_slice %325 {offsets = [0, 0], sizes = [1, 128], strides = [1, 1]} : vector<1x256xf32> to vector<1x128xf32>
    %327 = vector.extract_strided_slice %325 {offsets = [0, 128], sizes = [1, 128], strides = [1, 1]} : vector<1x256xf32> to vector<1x128xf32>
    %cst_254 = arith.constant 5.000000e-01 : f32
    %328 = vector.broadcast %cst_254 : f32 to vector<1x128xf32>
    %329 = arith.mulf %328, %327 : vector<1x128xf32>
    %cst_255 = arith.constant 0.707106769 : f32
    %330 = vector.broadcast %cst_255 : f32 to vector<1x128xf32>
    %331 = arith.mulf %327, %330 : vector<1x128xf32>
    %332 = math.erf %331 : vector<1x128xf32>
    %cst_256 = arith.constant 1.000000e+00 : f32
    %333 = vector.broadcast %cst_256 : f32 to vector<1x128xf32>
    %334 = arith.addf %333, %332 : vector<1x128xf32>
    %335 = arith.mulf %329, %334 : vector<1x128xf32>
    %c0_257 = arith.constant 0 : index
    %c0_258 = arith.constant 0 : index
    %336 = vector.load %arg21[%c0_257, %c0_258] : memref<128x128xf32, #tpu.memory_space<vmem>>, vector<128x128xf32>
    %cst_259 = arith.constant dense<0.000000e+00> : vector<1x128xf32>
    %337 = tpu.matmul %335, %336, %cst_259 {dimension_numbers = #tpu.dot_dimension_numbers<[1], [0], [0], [1], [0, 0, 1, 1], [], []>} : vector<1x128xf32>, vector<128x128xf32>, vector<1x128xf32> -> vector<1x128xf32>
    %c0_260 = arith.constant 0 : index
    %c0_261 = arith.constant 0 : index
    %338 = vector.load %arg22[%c0_260, %c0_261] : memref<1x128xf32, #tpu.memory_space<vmem>>, vector<1x128xf32>
    %339 = arith.addf %337, %338 : vector<1x128xf32>
    %340 = arith.addf %339, %326 : vector<1x128xf32>
    %c0_262 = arith.constant 0 : index
    %c0_263 = arith.constant 0 : index
    %c0_264 = arith.constant 0 : index
    %341 = vector.load %arg23[%c0_262, %c0_263, %c0_264] : memref<1x1x128xf32, #tpu.memory_space<vmem>>, vector<1x1x128xf32>
    %342 = vector.shape_cast %341 : vector<1x1x128xf32> to vector<1x128xf32>
    %343 = vector.shape_cast %340 : vector<1x128xf32> to vector<1x1x128xf32>
    tpu.vector_store %arg23[%c0_262, %c0_263, %c0_264], %343 {strides = array<i32>} : memref<1x1x128xf32, #tpu.memory_space<vmem>>, vector<1x1x128xf32>,
    return
  }
  func.func @transform_0(%arg0: i32) -> (i32, i32, i32) {
    %c0_i32 = arith.constant 0 : i32
    %c0_i32_0 = arith.constant 0 : i32
    %c0_i32_1 = arith.constant 0 : i32
    return %arg0, %c0_i32, %c0_i32_0 : i32, i32, i32
  }
  func.func @transform_1(%arg0: i32) -> (i32, i32) {
    %c0_i32 = arith.constant 0 : i32
    %c0_i32_0 = arith.constant 0 : i32
    %c0_i32_1 = arith.constant 0 : i32
    return %c0_i32, %c0_i32_0 : i32, i32
  }
  func.func @transform_2(%arg0: i32) -> (i32, i32) {
    %c0_i32 = arith.constant 0 : i32
    %c0_i32_0 = arith.constant 0 : i32
    %c0_i32_1 = arith.constant 0 : i32
    return %c0_i32, %c0_i32_0 : i32, i32
  }
  func.func @transform_3(%arg0: i32) -> (i32, i32) {
    %c0_i32 = arith.constant 0 : i32
    %c0_i32_0 = arith.constant 0 : i32
    %c0_i32_1 = arith.constant 0 : i32
    return %c0_i32, %c0_i32_0 : i32, i32
  }
  func.func @transform_4(%arg0: i32) -> (i32, i32) {
    %c0_i32 = arith.constant 0 : i32
    %c0_i32_0 = arith.constant 0 : i32
    %c0_i32_1 = arith.constant 0 : i32
    return %c0_i32, %c0_i32_0 : i32, i32
  }
  func.func @transform_5(%arg0: i32) -> (i32, i32) {
    %c0_i32 = arith.constant 0 : i32
    %c0_i32_0 = arith.constant 0 : i32
    %c0_i32_1 = arith.constant 0 : i32
    return %c0_i32, %c0_i32_0 : i32, i32
  }
  func.func @transform_6(%arg0: i32) -> (i32, i32) {
    %c0_i32 = arith.constant 0 : i32
    %c0_i32_0 = arith.constant 0 : i32
    %c0_i32_1 = arith.constant 0 : i32
    return %c0_i32, %c0_i32_0 : i32, i32
  }
  func.func @transform_7(%arg0: i32) -> (i32, i32) {
    %c0_i32 = arith.constant 0 : i32
    %c0_i32_0 = arith.constant 0 : i32
    %c0_i32_1 = arith.constant 0 : i32
    return %c0_i32, %c0_i32_0 : i32, i32
  }
  func.func @transform_8(%arg0: i32) -> (i32, i32) {
    %c0_i32 = arith.constant 0 : i32
    %c0_i32_0 = arith.constant 0 : i32
    %c0_i32_1 = arith.constant 0 : i32
    return %c0_i32, %c0_i32_0 : i32, i32
  }
  func.func @transform_9(%arg0: i32) -> (i32, i32) {
    %c0_i32 = arith.constant 0 : i32
    %c0_i32_0 = arith.constant 0 : i32
    %c0_i32_1 = arith.constant 0 : i32
    return %c0_i32, %c0_i32_0 : i32, i32
  }
  func.func @transform_10(%arg0: i32) -> (i32, i32) {
    %c0_i32 = arith.constant 0 : i32
    %c0_i32_0 = arith.constant 0 : i32
    %c0_i32_1 = arith.constant 0 : i32
    return %c0_i32, %c0_i32_0 : i32, i32
  }
  func.func @transform_11(%arg0: i32) -> (i32, i32) {
    %c0_i32 = arith.constant 0 : i32
    %c0_i32_0 = arith.constant 0 : i32
    %c0_i32_1 = arith.constant 0 : i32
    return %c0_i32, %c0_i32_0 : i32, i32
  }
  func.func @transform_12(%arg0: i32) -> (i32, i32) {
    %c0_i32 = arith.constant 0 : i32
    %c0_i32_0 = arith.constant 0 : i32
    %c0_i32_1 = arith.constant 0 : i32
    return %c0_i32, %c0_i32_0 : i32, i32
  }
  func.func @transform_13(%arg0: i32) -> (i32, i32) {
    %c0_i32 = arith.constant 0 : i32
    %c0_i32_0 = arith.constant 0 : i32
    %c0_i32_1 = arith.constant 0 : i32
    return %c0_i32, %c0_i32_0 : i32, i32
  }
  func.func @transform_14(%arg0: i32) -> (i32, i32) {
    %c0_i32 = arith.constant 0 : i32
    %c0_i32_0 = arith.constant 0 : i32
    %c0_i32_1 = arith.constant 0 : i32
    return %c0_i32, %c0_i32_0 : i32, i32
  }
  func.func @transform_15(%arg0: i32) -> (i32, i32) {
    %c0_i32 = arith.constant 0 : i32
    %c0_i32_0 = arith.constant 0 : i32
    %c0_i32_1 = arith.constant 0 : i32
    return %c0_i32, %c0_i32_0 : i32, i32
  }
  func.func @transform_16(%arg0: i32) -> (i32, i32) {
    %c0_i32 = arith.constant 0 : i32
    %c0_i32_0 = arith.constant 0 : i32
    %c0_i32_1 = arith.constant 0 : i32
    return %c0_i32, %c0_i32_0 : i32, i32
  }
  func.func @transform_17(%arg0: i32) -> (i32, i32) {
    %c0_i32 = arith.constant 0 : i32
    %c0_i32_0 = arith.constant 0 : i32
    %c0_i32_1 = arith.constant 0 : i32
    return %c0_i32, %c0_i32_0 : i32, i32
  }
  func.func @transform_18(%arg0: i32) -> (i32, i32) {
    %c0_i32 = arith.constant 0 : i32
    %c0_i32_0 = arith.constant 0 : i32
    %c0_i32_1 = arith.constant 0 : i32
    return %c0_i32, %c0_i32_0 : i32, i32
  }
  func.func @transform_19(%arg0: i32) -> (i32, i32) {
    %c0_i32 = arith.constant 0 : i32
    %c0_i32_0 = arith.constant 0 : i32
    %c0_i32_1 = arith.constant 0 : i32
    return %c0_i32, %c0_i32_0 : i32, i32
  }
  func.func @transform_20(%arg0: i32) -> (i32, i32) {
    %c0_i32 = arith.constant 0 : i32
    %c0_i32_0 = arith.constant 0 : i32
    %c0_i32_1 = arith.constant 0 : i32
    return %c0_i32, %c0_i32_0 : i32, i32
  }
  func.func @transform_21(%arg0: i32) -> (i32, i32) {
    %c0_i32 = arith.constant 0 : i32
    %c0_i32_0 = arith.constant 0 : i32
    %c0_i32_1 = arith.constant 0 : i32
    return %c0_i32, %c0_i32_0 : i32, i32
  }
  func.func @transform_22(%arg0: i32) -> (i32, i32, i32) {
    %c0_i32 = arith.constant 0 : i32
    %c0_i32_0 = arith.constant 0 : i32
    %c0_i32_1 = arith.constant 0 : i32
    return %arg0, %c0_i32, %c0_i32_0 : i32, i32, i32
  }
}

</mosaic_0001>

<llo_original>
// kernel: encoder_forward.1
$region0: #{encoder_forward.1}
  #allocation0 [shape = 'u32[]', space=smem, size = 0x4, offset = 0x4, fixed_abs, tag = 'smem constant byte address 0x4 - core index']
  #allocation1 [shape = 'u32[144,128]{1,0:T(1,128)}', space=vmem, size = 0x12000, scoped, tag = 'internal scratch']
  %s0 = inlined_call_operand.vmem [shape: f32[2,16,8], index: 0, kind: input, shape index: {}]
  %s1 = inlined_call_operand.vmem [shape: f32[144,16], index: 1, kind: input, shape index: {}]
  %s2 = inlined_call_operand.hbm [shape: f32[8,128], index: 2, kind: input, shape index: {}]
  %s3 = inlined_call_operand.hbm [shape: f32[1,128], index: 3, kind: input, shape index: {}]
  %s4 = inlined_call_operand.hbm [shape: f32[72,128], index: 4, kind: input, shape index: {}]
  %s5 = inlined_call_operand.hbm [shape: f32[1,128], index: 5, kind: input, shape index: {}]
  %s6 = inlined_call_operand.hbm [shape: f32[1,128], index: 6, kind: input, shape index: {}]
  %s7 = inlined_call_operand.hbm [shape: f32[1,128], index: 7, kind: input, shape index: {}]
  %s8 = inlined_call_operand.hbm [shape: f32[1152,128], index: 8, kind: input, shape index: {}]
  %s9 = inlined_call_operand.hbm [shape: f32[1,128], index: 9, kind: input, shape index: {}]
  %s10 = inlined_call_operand.hbm [shape: f32[1,128], index: 10, kind: input, shape index: {}]
  %s11 = inlined_call_operand.hbm [shape: f32[1,128], index: 11, kind: input, shape index: {}]
  %s12 = inlined_call_operand.hbm [shape: f32[1152,128], index: 12, kind: input, shape index: {}]
  %s13 = inlined_call_operand.hbm [shape: f32[1,128], index: 13, kind: input, shape index: {}]
  %s14 = inlined_call_operand.hbm [shape: f32[1,128], index: 14, kind: input, shape index: {}]
  %s15 = inlined_call_operand.hbm [shape: f32[1,128], index: 15, kind: input, shape index: {}]
  %s16 = inlined_call_operand.vmem [shape: f32[128,16], index: 16, kind: input, shape index: {}]
  %s17 = inlined_call_operand.hbm [shape: f32[16,128], index: 17, kind: input, shape index: {}]
  %s18 = inlined_call_operand.hbm [shape: f32[2048,256], index: 18, kind: input, shape index: {}]
  %s19 = inlined_call_operand.hbm [shape: f32[1,256], index: 19, kind: input, shape index: {}]
  %s20 = inlined_call_operand.hbm [shape: f32[128,128], index: 20, kind: input, shape index: {}]
  %s21 = inlined_call_operand.hbm [shape: f32[1,128], index: 21, kind: input, shape index: {}]
  %s22 = inlined_call_operand.hbm [shape: f32[2,1,128], index: 22, kind: output, shape index: {}]
  %s23 = sld [smem:[#allocation0]]
  $region197: #{encoder_forward.1} parent=0
    _
  %s25 = ssub.s32 1, %s23
  %s26 = scalar_select 0, %s25, %s23
  $region1: #{encoder_forward.1} parent=0
    #allocation2 [shape = 'u8[4096]{0}', space=vmem, size = 0x1000, scoped, tag = 'input window, operand 2, single buffered']
    #allocation3 [shape = 's32[2]{0}', space=sflag, size = 0x8, scoped, tag = 'scoped memory for encoder_forward.1']
    #allocation4 [shape = 's32[2]{0}', space=sflag, size = 0x8, scoped, tag = 'scoped memory for encoder_forward.1']
    #allocation5 [shape = 'u8[512]{0}', space=vmem, size = 0x400, scoped, tag = 'input window, operand 3, single buffered']
    #allocation6 [shape = 's32[1]{0}', space=sflag, size = 0x4, scoped, tag = 'scoped memory for encoder_forward.1']
    #allocation7 [shape = 'u8[36864]{0}', space=vmem, size = 0x9000, scoped, tag = 'input window, operand 4, single buffered']
    #allocation8 [shape = 'u8[512]{0}', space=vmem, size = 0x400, scoped, tag = 'input window, operand 5, single buffered']
    #allocation9 [shape = 's32[1]{0}', space=sflag, size = 0x4, scoped, tag = 'scoped memory for encoder_forward.1']
    #allocation10 [shape = 'u8[512]{0}', space=vmem, size = 0x400, scoped, tag = 'input window, operand 6, single buffered']
    #allocation11 [shape = 'u8[512]{0}', space=vmem, size = 0x400, scoped, tag = 'input window, operand 7, single buffered']
    #allocation12 [shape = 's32[1]{0}', space=sflag, size = 0x4, scoped, tag = 'scoped memory for encoder_forward.1']
    #allocation13 [shape = 'u8[589824]{0}', space=vmem, size = 0x90000, scoped, tag = 'input window, operand 8, single buffered']
    #allocation14 [shape = 'u8[512]{0}', space=vmem, size = 0x400, scoped, tag = 'input window, operand 9, single buffered']
    #allocation15 [shape = 's32[1]{0}', space=sflag, size = 0x4, scoped, tag = 'scoped memory for encoder_forward.1']
    #allocation16 [shape = 'u8[512]{0}', space=vmem, size = 0x400, scoped, tag = 'input window, operand 10, single buffered']
    #allocation17 [shape = 'u8[512]{0}', space=vmem, size = 0x400, scoped, tag = 'input window, operand 11, single buffered']
    #allocation18 [shape = 's32[1]{0}', space=sflag, size = 0x4, scoped, tag = 'scoped memory for encoder_forward.1']
    #allocation19 [shape = 'u8[589824]{0}', space=vmem, size = 0x90000, scoped, tag = 'input window, operand 12, single buffered']
    #allocation20 [shape = 'u8[512]{0}', space=vmem, size = 0x400, scoped, tag = 'input window, operand 13, single buffered']
    #allocation21 [shape = 's32[1]{0}', space=sflag, size = 0x4, scoped, tag = 'scoped memory for encoder_forward.1']
    #allocation22 [shape = 'u8[512]{0}', space=vmem, size = 0x400, scoped, tag = 'input window, operand 14, single buffered']
    #allocation23 [shape = 'u8[512]{0}', space=vmem, size = 0x400, scoped, tag = 'input window, operand 15, single buffered']
    #allocation24 [shape = 's32[1]{0}', space=sflag, size = 0x4, scoped, tag = 'scoped memory for encoder_forward.1']
    #allocation25 [shape = 'u8[8192]{0}', space=vmem, size = 0x2000, scoped, tag = 'input window, operand 17, single buffered']
    #allocation26 [shape = 'u8[2097152]{0}', space=vmem, size = 0x200000, scoped, tag = 'input window, operand 18, single buffered']
    #allocation27 [shape = 's32[1]{0}', space=sflag, size = 0x4, scoped, tag = 'scoped memory for encoder_forward.1']
    #allocation28 [shape = 'u8[1024]{0}', space=vmem, size = 0x400, scoped, tag = 'input window, operand 19, single buffered']
    #allocation29 [shape = 'u8[65536]{0}', space=vmem, size = 0x10000, scoped, tag = 'input window, operand 20, single buffered']
    #allocation30 [shape = 's32[1]{0}', space=sflag, size = 0x4, scoped, tag = 'scoped memory for encoder_forward.1']
    #allocation31 [shape = 'u8[512]{0}', space=vmem, size = 0x400, scoped, tag = 'input window, operand 21, single buffered']
    #allocation32 [shape = 'u8[1024]{0}', space=vmem, size = 0x400, scoped, tag = 'output window, operand 0']
    %27 = vsyncpa [#allocation3], 0
    %28 = vsyncpa [#allocation6], 0
    %29 = vsyncpa [#allocation9], 0
    %30 = vsyncpa [#allocation12], 0
    %31 = vsyncpa [#allocation15], 0
    %32 = vsyncpa [#allocation18], 0
    %33 = vsyncpa [#allocation21], 0
    %34 = vsyncpa [#allocation24], 0
    %35 = vsyncpa [#allocation27], 0
    %36 = vsyncpa [#allocation30], 0
    %37 = vsyncpa [#allocation4], 0
    %s38 = scalar_lea.sflag [#allocation4], 1
    %39 = vsyncpa %s38, 0
    loop: start=0, step=1, limit=4
    $region2: #{encoder_forward.1} parent=1 // loop_pre_header
      _
    $region3: #{encoder_forward.1} parent=1 // loop_header
      %s41 = sphi 0, %s45
      %p42 = scmp.ge.s32.totalorder %s41, 4
      %s51 = sphi 0, %s53
      %s54 = sphi 0, %s51
      %s55 = sphi 0, %s54
      %s71 = sphi 0, %s55
      %s75 = sphi 0, %s75
      %s77 = sphi 0, %s75
      %s78 = sphi 0, %s77
      %s92 = sphi 0, %s78
      %s96 = sphi 0, %s96
      %s98 = sphi 0, %s96
      %s99 = sphi 0, %s98
      %s113 = sphi 0, %s99
      %s117 = sphi 0, %s117
      %s119 = sphi 0, %s117
      %s120 = sphi 0, %s119
      %s134 = sphi 0, %s120
      %s138 = sphi 0, %s138
      %s140 = sphi 0, %s138
      %s141 = sphi 0, %s140
      %s155 = sphi 0, %s141
      %s159 = sphi 0, %s159
      %s161 = sphi 0, %s159
      %s162 = sphi 0, %s161
      %s176 = sphi 0, %s162
      %s180 = sphi 0, %s180
      %s182 = sphi 0, %s180
      %s183 = sphi 0, %s182
      %s197 = sphi 0, %s183
      %s201 = sphi 0, %s201
      %s203 = sphi 0, %s201
      %s204 = sphi 0, %s203
      %s218 = sphi 0, %s204
      %s222 = sphi 0, %s222
      %s224 = sphi 0, %s222
      %s225 = sphi 0, %s224
      %s239 = sphi 0, %s225
      %s243 = sphi 0, %s243
      %s245 = sphi 0, %s243
      %s246 = sphi 0, %s245
      %s260 = sphi 0, %s246
      %s264 = sphi 0, %s264
      %s266 = sphi 0, %s264
      %s267 = sphi 0, %s266
      %s281 = sphi 0, %s267
      %s285 = sphi 0, %s285
      %s287 = sphi 0, %s285
      %s288 = sphi 0, %s287
      %s302 = sphi 0, %s288
      %s306 = sphi 0, %s306
      %s308 = sphi 0, %s306
      %s309 = sphi 0, %s308
      %s323 = sphi 0, %s309
      %s327 = sphi 0, %s327
      %s329 = sphi 0, %s327
      %s330 = sphi 0, %s329
      %s344 = sphi 0, %s330
      %s348 = sphi 0, %s348
      %s350 = sphi 0, %s348
      %s351 = sphi 0, %s350
      %s365 = sphi 0, %s351
      %s369 = sphi 0, %s369
      %s371 = sphi 0, %s369
      %s372 = sphi 0, %s371
      %s386 = sphi 0, %s372
      %s390 = sphi 0, %s390
      %s392 = sphi 0, %s390
      %s393 = sphi 0, %s392
      %s407 = sphi 0, %s393
      %s411 = sphi 0, %s411
      %s413 = sphi 0, %s411
      %s414 = sphi 0, %s413
      %s428 = sphi 0, %s414
      %s432 = sphi 0, %s432
      %s434 = sphi 0, %s432
      %s435 = sphi 0, %s434
      %s449 = sphi 0, %s435
      %s453 = sphi 0, %s453
      %s455 = sphi 0, %s453
      %s456 = sphi 0, %s455
      %s470 = sphi 0, %s456
      %s474 = sphi 0, %s474
      %s476 = sphi 0, %s474
      %s477 = sphi 0, %s476
      %s491 = sphi 0, %s477
      %s495 = sphi 0, %s495
      %s497 = sphi 0, %s495
      %s498 = sphi 0, %s497
      %s512 = sphi 0, %s498
      %s518 = sphi 0, %s520
      %s521 = sphi 0, %s518
      %s522 = sphi 0, %s521
      %s538 = sphi 0, %s522
    $region4: #{encoder_forward.1} parent=1 // loop_header_branch
      %44 = sbr.rel (%p42) target = $region8
    $region5: #{encoder_forward.1} parent=1 // loop_body
      %s46 = ssub.s32 %s41, 1
      %s47 = ssub.s32 %s41, 2
      %s48 = sadd.s32 %s41, 1
      %s49 = ssub.s32 %s41, %s48
      %p50 = scmp.eq.s32.totalorder %s49, 0
      %s52 = sadd.s32 %s51, 1
      %s53 = scalar_select %p50, %s51, %s52
      %p56 = pneg %p50
      %p57 = scmp.eq.s32.totalorder %s41, 1
      %p58 = por %p56, %p57
      %p59 = scmp.ne.s32.totalorder %s51, %s54
      %p60 = scmp.eq.s32.totalorder %s41, 0
      %p61 = por %p59, %p60
      %p62 = scmp.ne.s32.totalorder %s51, %s54
      %p63 = scmp.eq.s32.totalorder %s46, 1
      %p64 = por %p62, %p63
      %p65 = scmp.ne.s32.totalorder %s54, %s55
      %p66 = scmp.eq.s32.totalorder %s46, 0
      %p67 = por %p65, %p66
      %p68 = scmp.ne.s32.totalorder %s54, %s55
      %p69 = scmp.eq.s32.totalorder %s47, 1
      %p70 = por %p68, %p69
      %p72 = scmp.ne.s32.totalorder %s55, %s71
      %p73 = scmp.eq.s32.totalorder %s47, 0
      %p74 = por %p72, %p73
      %s76 = sadd.s32 %s75, 1
      %p79 = scmp.eq.s32.totalorder %s41, 1
      %p80 = scmp.ne.s32.totalorder %s75, %s77
      %p81 = scmp.eq.s32.totalorder %s41, 0
      %p82 = por %p80, %p81
      %p83 = scmp.ne.s32.totalorder %s75, %s77
      %p84 = scmp.eq.s32.totalorder %s46, 1
      %p85 = por %p83, %p84
      %p86 = scmp.ne.s32.totalorder %s77, %s78
      %p87 = scmp.eq.s32.totalorder %s46, 0
      %p88 = por %p86, %p87
      %p89 = scmp.ne.s32.totalorder %s77, %s78
      %p90 = scmp.eq.s32.totalorder %s47, 1
      %p91 = por %p89, %p90
      %p93 = scmp.ne.s32.totalorder %s78, %s92
      %p94 = scmp.eq.s32.totalorder %s47, 0
      %p95 = por %p93, %p94
      %s97 = sadd.s32 %s96, 1
      %p100 = scmp.eq.s32.totalorder %s41, 1
      %p101 = scmp.ne.s32.totalorder %s96, %s98
      %p102 = scmp.eq.s32.totalorder %s41, 0
      %p103 = por %p101, %p102
      %p104 = scmp.ne.s32.totalorder %s96, %s98
      %p105 = scmp.eq.s32.totalorder %s46, 1
      %p106 = por %p104, %p105
      %p107 = scmp.ne.s32.totalorder %s98, %s99
      %p108 = scmp.eq.s32.totalorder %s46, 0
      %p109 = por %p107, %p108
      %p110 = scmp.ne.s32.totalorder %s98, %s99
      %p111 = scmp.eq.s32.totalorder %s47, 1
      %p112 = por %p110, %p111
      %p114 = scmp.ne.s32.totalorder %s99, %s113
      %p115 = scmp.eq.s32.totalorder %s47, 0
      %p116 = por %p114, %p115
      %s118 = sadd.s32 %s117, 1
      %p121 = scmp.eq.s32.totalorder %s41, 1
      %p122 = scmp.ne.s32.totalorder %s117, %s119
      %p123 = scmp.eq.s32.totalorder %s41, 0
      %p124 = por %p122, %p123
      %p125 = scmp.ne.s32.totalorder %s117, %s119
      %p126 = scmp.eq.s32.totalorder %s46, 1
      %p127 = por %p125, %p126
      %p128 = scmp.ne.s32.totalorder %s119, %s120
      %p129 = scmp.eq.s32.totalorder %s46, 0
      %p130 = por %p128, %p129
      %p131 = scmp.ne.s32.totalorder %s119, %s120
      %p132 = scmp.eq.s32.totalorder %s47, 1
      %p133 = por %p131, %p132
      %p135 = scmp.ne.s32.totalorder %s120, %s134
      %p136 = scmp.eq.s32.totalorder %s47, 0
      %p137 = por %p135, %p136
      %s139 = sadd.s32 %s138, 1
      %p142 = scmp.eq.s32.totalorder %s41, 1
      %p143 = scmp.ne.s32.totalorder %s138, %s140
      %p144 = scmp.eq.s32.totalorder %s41, 0
      %p145 = por %p143, %p144
      %p146 = scmp.ne.s32.totalorder %s138, %s140
      %p147 = scmp.eq.s32.totalorder %s46, 1
      %p148 = por %p146, %p147
      %p149 = scmp.ne.s32.totalorder %s140, %s141
      %p150 = scmp.eq.s32.totalorder %s46, 0
      %p151 = por %p149, %p150
      %p152 = scmp.ne.s32.totalorder %s140, %s141
      %p153 = scmp.eq.s32.totalorder %s47, 1
      %p154 = por %p152, %p153
      %p156 = scmp.ne.s32.totalorder %s141, %s155
      %p157 = scmp.eq.s32.totalorder %s47, 0
      %p158 = por %p156, %p157
      %s160 = sadd.s32 %s159, 1
      %p163 = scmp.eq.s32.totalorder %s41, 1
      %p164 = scmp.ne.s32.totalorder %s159, %s161
      %p165 = scmp.eq.s32.totalorder %s41, 0
      %p166 = por %p164, %p165
      %p167 = scmp.ne.s32.totalorder %s159, %s161
      %p168 = scmp.eq.s32.totalorder %s46, 1
      %p169 = por %p167, %p168
      %p170 = scmp.ne.s32.totalorder %s161, %s162
      %p171 = scmp.eq.s32.totalorder %s46, 0
      %p172 = por %p170, %p171
      %p173 = scmp.ne.s32.totalorder %s161, %s162
      %p174 = scmp.eq.s32.totalorder %s47, 1
      %p175 = por %p173, %p174
      %p177 = scmp.ne.s32.totalorder %s162, %s176
      %p178 = scmp.eq.s32.totalorder %s47, 0
      %p179 = por %p177, %p178
      %s181 = sadd.s32 %s180, 1
      %p184 = scmp.eq.s32.totalorder %s41, 1
      %p185 = scmp.ne.s32.totalorder %s180, %s182
      %p186 = scmp.eq.s32.totalorder %s41, 0
      %p187 = por %p185, %p186
      %p188 = scmp.ne.s32.totalorder %s180, %s182
      %p189 = scmp.eq.s32.totalorder %s46, 1
      %p190 = por %p188, %p189
      %p191 = scmp.ne.s32.totalorder %s182, %s183
      %p192 = scmp.eq.s32.totalorder %s46, 0
      %p193 = por %p191, %p192
      %p194 = scmp.ne.s32.totalorder %s182, %s183
      %p195 = scmp.eq.s32.totalorder %s47, 1
      %p196 = por %p194, %p195
      %p198 = scmp.ne.s32.totalorder %s183, %s197
      %p199 = scmp.eq.s32.totalorder %s47, 0
      %p200 = por %p198, %p199
      %s202 = sadd.s32 %s201, 1
      %p205 = scmp.eq.s32.totalorder %s41, 1
      %p206 = scmp.ne.s32.totalorder %s201, %s203
      %p207 = scmp.eq.s32.totalorder %s41, 0
      %p208 = por %p206, %p207
      %p209 = scmp.ne.s32.totalorder %s201, %s203
      %p210 = scmp.eq.s32.totalorder %s46, 1
      %p211 = por %p209, %p210
      %p212 = scmp.ne.s32.totalorder %s203, %s204
      %p213 = scmp.eq.s32.totalorder %s46, 0
      %p214 = por %p212, %p213
      %p215 = scmp.ne.s32.totalorder %s203, %s204
      %p216 = scmp.eq.s32.totalorder %s47, 1
      %p217 = por %p215, %p216
      %p219 = scmp.ne.s32.totalorder %s204, %s218
      %p220 = scmp.eq.s32.totalorder %s47, 0
      %p221 = por %p219, %p220
      %s223 = sadd.s32 %s222, 1
      %p226 = scmp.eq.s32.totalorder %s41, 1
      %p227 = scmp.ne.s32.totalorder %s222, %s224
      %p228 = scmp.eq.s32.totalorder %s41, 0
      %p229 = por %p227, %p228
      %p230 = scmp.ne.s32.totalorder %s222, %s224
      %p231 = scmp.eq.s32.totalorder %s46, 1
      %p232 = por %p230, %p231
      %p233 = scmp.ne.s32.totalorder %s224, %s225
      %p234 = scmp.eq.s32.totalorder %s46, 0
      %p235 = por %p233, %p234
      %p236 = scmp.ne.s32.totalorder %s224, %s225
      %p237 = scmp.eq.s32.totalorder %s47, 1
      %p238 = por %p236, %p237
      %p240 = scmp.ne.s32.totalorder %s225, %s239
      %p241 = scmp.eq.s32.totalorder %s47, 0
      %p242 = por %p240, %p241
      %s244 = sadd.s32 %s243, 1
      %p247 = scmp.eq.s32.totalorder %s41, 1
      %p248 = scmp.ne.s32.totalorder %s243, %s245
      %p249 = scmp.eq.s32.totalorder %s41, 0
      %p250 = por %p248, %p249
      %p251 = scmp.ne.s32.totalorder %s243, %s245
      %p252 = scmp.eq.s32.totalorder %s46, 1
      %p253 = por %p251, %p252
      %p254 = scmp.ne.s32.totalorder %s245, %s246
      %p255 = scmp.eq.s32.totalorder %s46, 0
      %p256 = por %p254, %p255
      %p257 = scmp.ne.s32.totalorder %s245, %s246
      %p258 = scmp.eq.s32.totalorder %s47, 1
      %p259 = por %p257, %p258
      %p261 = scmp.ne.s32.totalorder %s246, %s260
      %p262 = scmp.eq.s32.totalorder %s47, 0
      %p263 = por %p261, %p262
      %s265 = sadd.s32 %s264, 1
      %p268 = scmp.eq.s32.totalorder %s41, 1
      %p269 = scmp.ne.s32.totalorder %s264, %s266
      %p270 = scmp.eq.s32.totalorder %s41, 0
      %p271 = por %p269, %p270
      %p272 = scmp.ne.s32.totalorder %s264, %s266
      %p273 = scmp.eq.s32.totalorder %s46, 1
      %p274 = por %p272, %p273
      %p275 = scmp.ne.s32.totalorder %s266, %s267
      %p276 = scmp.eq.s32.totalorder %s46, 0
      %p277 = por %p275, %p276
      %p278 = scmp.ne.s32.totalorder %s266, %s267
      %p279 = scmp.eq.s32.totalorder %s47, 1
      %p280 = por %p278, %p279
      %p282 = scmp.ne.s32.totalorder %s267, %s281
      %p283 = scmp.eq.s32.totalorder %s47, 0
      %p284 = por %p282, %p283
      %s286 = sadd.s32 %s285, 1
      %p289 = scmp.eq.s32.totalorder %s41, 1
      %p290 = scmp.ne.s32.totalorder %s285, %s287
      %p291 = scmp.eq.s32.totalorder %s41, 0
      %p292 = por %p290, %p291
      %p293 = scmp.ne.s32.totalorder %s285, %s287
      %p294 = scmp.eq.s32.totalorder %s46, 1
      %p295 = por %p293, %p294
      %p296 = scmp.ne.s32.totalorder %s287, %s288
      %p297 = scmp.eq.s32.totalorder %s46, 0
      %p298 = por %p296, %p297
      %p299 = scmp.ne.s32.totalorder %s287, %s288
      %p300 = scmp.eq.s32.totalorder %s47, 1
      %p301 = por %p299, %p300
      %p303 = scmp.ne.s32.totalorder %s288, %s302
      %p304 = scmp.eq.s32.totalorder %s47, 0
      %p305 = por %p303, %p304
      %s307 = sadd.s32 %s306, 1
      %p310 = scmp.eq.s32.totalorder %s41, 1
      %p311 = scmp.ne.s32.totalorder %s306, %s308
      %p312 = scmp.eq.s32.totalorder %s41, 0
      %p313 = por %p311, %p312
      %p314 = scmp.ne.s32.totalorder %s306, %s308
      %p315 = scmp.eq.s32.totalorder %s46, 1
      %p316 = por %p314, %p315
      %p317 = scmp.ne.s32.totalorder %s308, %s309
      %p318 = scmp.eq.s32.totalorder %s46, 0
      %p319 = por %p317, %p318
      %p320 = scmp.ne.s32.totalorder %s308, %s309
      %p321 = scmp.eq.s32.totalorder %s47, 1
      %p322 = por %p320, %p321
      %p324 = scmp.ne.s32.totalorder %s309, %s323
      %p325 = scmp.eq.s32.totalorder %s47, 0
      %p326 = por %p324, %p325
      %s328 = sadd.s32 %s327, 1
      %p331 = scmp.eq.s32.totalorder %s41, 1
      %p332 = scmp.ne.s32.totalorder %s327, %s329
      %p333 = scmp.eq.s32.totalorder %s41, 0
      %p334 = por %p332, %p333
      %p335 = scmp.ne.s32.totalorder %s327, %s329
      %p336 = scmp.eq.s32.totalorder %s46, 1
      %p337 = por %p335, %p336
      %p338 = scmp.ne.s32.totalorder %s329, %s330
      %p339 = scmp.eq.s32.totalorder %s46, 0
      %p340 = por %p338, %p339
      %p341 = scmp.ne.s32.totalorder %s329, %s330
      %p342 = scmp.eq.s32.totalorder %s47, 1
      %p343 = por %p341, %p342
      %p345 = scmp.ne.s32.totalorder %s330, %s344
      %p346 = scmp.eq.s32.totalorder %s47, 0
      %p347 = por %p345, %p346
      %s349 = sadd.s32 %s348, 1
      %p352 = scmp.eq.s32.totalorder %s41, 1
      %p353 = scmp.ne.s32.totalorder %s348, %s350
      %p354 = scmp.eq.s32.totalorder %s41, 0
      %p355 = por %p353, %p354
      %p356 = scmp.ne.s32.totalorder %s348, %s350
      %p357 = scmp.eq.s32.totalorder %s46, 1
      %p358 = por %p356, %p357
      %p359 = scmp.ne.s32.totalorder %s350, %s351
      %p360 = scmp.eq.s32.totalorder %s46, 0
      %p361 = por %p359, %p360
      %p362 = scmp.ne.s32.totalorder %s350, %s351
      %p363 = scmp.eq.s32.totalorder %s47, 1
      %p364 = por %p362, %p363
      %p366 = scmp.ne.s32.totalorder %s351, %s365
      %p367 = scmp.eq.s32.totalorder %s47, 0
      %p368 = por %p366, %p367
      %s370 = sadd.s32 %s369, 1
      %p373 = scmp.eq.s32.totalorder %s41, 1
      %p374 = scmp.ne.s32.totalorder %s369, %s371
      %p375 = scmp.eq.s32.totalorder %s41, 0
      %p376 = por %p374, %p375
      %p377 = scmp.ne.s32.totalorder %s369, %s371
      %p378 = scmp.eq.s32.totalorder %s46, 1
      %p379 = por %p377, %p378
      %p380 = scmp.ne.s32.totalorder %s371, %s372
      %p381 = scmp.eq.s32.totalorder %s46, 0
      %p382 = por %p380, %p381
      %p383 = scmp.ne.s32.totalorder %s371, %s372
      %p384 = scmp.eq.s32.totalorder %s47, 1
      %p385 = por %p383, %p384
      %p387 = scmp.ne.s32.totalorder %s372, %s386
      %p388 = scmp.eq.s32.totalorder %s47, 0
      %p389 = por %p387, %p388
      %s391 = sadd.s32 %s390, 1
      %p394 = scmp.eq.s32.totalorder %s41, 1
      %p395 = scmp.ne.s32.totalorder %s390, %s392
      %p396 = scmp.eq.s32.totalorder %s41, 0
      %p397 = por %p395, %p396
      %p398 = scmp.ne.s32.totalorder %s390, %s392
      %p399 = scmp.eq.s32.totalorder %s46, 1
      %p400 = por %p398, %p399
      %p401 = scmp.ne.s32.totalorder %s392, %s393
      %p402 = scmp.eq.s32.totalorder %s46, 0
      %p403 = por %p401, %p402
      %p404 = scmp.ne.s32.totalorder %s392, %s393
      %p405 = scmp.eq.s32.totalorder %s47, 1
      %p406 = por %p404, %p405
      %p408 = scmp.ne.s32.totalorder %s393, %s407
      %p409 = scmp.eq.s32.totalorder %s47, 0
      %p410 = por %p408, %p409
      %s412 = sadd.s32 %s411, 1
      %p415 = scmp.eq.s32.totalorder %s41, 1
      %p416 = scmp.ne.s32.totalorder %s411, %s413
      %p417 = scmp.eq.s32.totalorder %s41, 0
      %p418 = por %p416, %p417
      %p419 = scmp.ne.s32.totalorder %s411, %s413
      %p420 = scmp.eq.s32.totalorder %s46, 1
      %p421 = por %p419, %p420
      %p422 = scmp.ne.s32.totalorder %s413, %s414
      %p423 = scmp.eq.s32.totalorder %s46, 0
      %p424 = por %p422, %p423
      %p425 = scmp.ne.s32.totalorder %s413, %s414
      %p426 = scmp.eq.s32.totalorder %s47, 1
      %p427 = por %p425, %p426
      %p429 = scmp.ne.s32.totalorder %s414, %s428
      %p430 = scmp.eq.s32.totalorder %s47, 0
      %p431 = por %p429, %p430
      %s433 = sadd.s32 %s432, 1
      %p436 = scmp.eq.s32.totalorder %s41, 1
      %p437 = scmp.ne.s32.totalorder %s432, %s434
      %p438 = scmp.eq.s32.totalorder %s41, 0
      %p439 = por %p437, %p438
      %p440 = scmp.ne.s32.totalorder %s432, %s434
      %p441 = scmp.eq.s32.totalorder %s46, 1
      %p442 = por %p440, %p441
      %p443 = scmp.ne.s32.totalorder %s434, %s435
      %p444 = scmp.eq.s32.totalorder %s46, 0
      %p445 = por %p443, %p444
      %p446 = scmp.ne.s32.totalorder %s434, %s435
      %p447 = scmp.eq.s32.totalorder %s47, 1
      %p448 = por %p446, %p447
      %p450 = scmp.ne.s32.totalorder %s435, %s449
      %p451 = scmp.eq.s32.totalorder %s47, 0
      %p452 = por %p450, %p451
      %s454 = sadd.s32 %s453, 1
      %p457 = scmp.eq.s32.totalorder %s41, 1
      %p458 = scmp.ne.s32.totalorder %s453, %s455
      %p459 = scmp.eq.s32.totalorder %s41, 0
      %p460 = por %p458, %p459
      %p461 = scmp.ne.s32.totalorder %s453, %s455
      %p462 = scmp.eq.s32.totalorder %s46, 1
      %p463 = por %p461, %p462
      %p464 = scmp.ne.s32.totalorder %s455, %s456
      %p465 = scmp.eq.s32.totalorder %s46, 0
      %p466 = por %p464, %p465
      %p467 = scmp.ne.s32.totalorder %s455, %s456
      %p468 = scmp.eq.s32.totalorder %s47, 1
      %p469 = por %p467, %p468
      %p471 = scmp.ne.s32.totalorder %s456, %s470
      %p472 = scmp.eq.s32.totalorder %s47, 0
      %p473 = por %p471, %p472
      %s475 = sadd.s32 %s474, 1
      %p478 = scmp.eq.s32.totalorder %s41, 1
      %p479 = scmp.ne.s32.totalorder %s474, %s476
      %p480 = scmp.eq.s32.totalorder %s41, 0
      %p481 = por %p479, %p480
      %p482 = scmp.ne.s32.totalorder %s474, %s476
      %p483 = scmp.eq.s32.totalorder %s46, 1
      %p484 = por %p482, %p483
      %p485 = scmp.ne.s32.totalorder %s476, %s477
      %p486 = scmp.eq.s32.totalorder %s46, 0
      %p487 = por %p485, %p486
      %p488 = scmp.ne.s32.totalorder %s476, %s477
      %p489 = scmp.eq.s32.totalorder %s47, 1
      %p490 = por %p488, %p489
      %p492 = scmp.ne.s32.totalorder %s477, %s491
      %p493 = scmp.eq.s32.totalorder %s47, 0
      %p494 = por %p492, %p493
      %s496 = sadd.s32 %s495, 1
      %p499 = scmp.eq.s32.totalorder %s41, 1
      %p500 = scmp.ne.s32.totalorder %s495, %s497
      %p501 = scmp.eq.s32.totalorder %s41, 0
      %p502 = por %p500, %p501
      %p503 = scmp.ne.s32.totalorder %s495, %s497
      %p504 = scmp.eq.s32.totalorder %s46, 1
      %p505 = por %p503, %p504
      %p506 = scmp.ne.s32.totalorder %s497, %s498
      %p507 = scmp.eq.s32.totalorder %s46, 0
      %p508 = por %p506, %p507
      %p509 = scmp.ne.s32.totalorder %s497, %s498
      %p510 = scmp.eq.s32.totalorder %s47, 1
      %p511 = por %p509, %p510
      %p513 = scmp.ne.s32.totalorder %s498, %s512
      %p514 = scmp.eq.s32.totalorder %s47, 0
      %p515 = por %p513, %p514
      %s516 = ssub.s32 %s41, %s48
      %p517 = scmp.eq.s32.totalorder %s516, 0
      %s519 = sadd.s32 %s518, 1
      %s520 = scalar_select %p517, %s518, %s519
      %p523 = pneg %p517
      %p524 = scmp.eq.s32.totalorder %s41, 1
      %p525 = por %p523, %p524
      %p526 = scmp.ne.s32.totalorder %s518, %s521
      %p527 = scmp.eq.s32.totalorder %s41, 0
      %p528 = por %p526, %p527
      %p529 = scmp.ne.s32.totalorder %s518, %s521
      %p530 = scmp.eq.s32.totalorder %s46, 1
      %p531 = por %p529, %p530
      %p532 = scmp.ne.s32.totalorder %s521, %s522
      %p533 = scmp.eq.s32.totalorder %s46, 0
      %p534 = por %p532, %p533
      %p535 = scmp.ne.s32.totalorder %s521, %s522
      %p536 = scmp.eq.s32.totalorder %s47, 1
      %p537 = por %p535, %p536
      %p539 = scmp.ne.s32.totalorder %s522, %s538
      %p540 = scmp.eq.s32.totalorder %s47, 0
      %p541 = por %p539, %p540
      %p542 = scmp.le.s32.totalorder 1, %s41
      %p543 = scmp.lt.s32.totalorder %s41, 3
      %p544 = pnand %p542, %p543
      %p545 = pneg %p544
      // Predicated region
      $region9: #{encoder_forward.1} parent=5 // pred_check
        _
      $region10: #{encoder_forward.1} parent=5 // pred_check_branch
        %547 = sbr.rel (%p544) target = $region12
      $region11: #{encoder_forward.1} parent=5 // pred_region
        %s548 = ssub.s32 %s41, 1
        // Predicated region
        $region13: #{encoder_forward.1} parent=11 // pred_check
          %p549 = pneg %p88
        $region14: #{encoder_forward.1} parent=11 // pred_check_branch
          %551 = sbr.rel (%p549) target = $region16
        $region15: #{encoder_forward.1} parent=11 // pred_region
          _
        $region16: #{encoder_forward.1} parent=11 // pred_fallthru
          _
        // Predicated region
        $region17: #{encoder_forward.1} parent=11 // pred_check
          %p552 = pneg %p109
        $region18: #{encoder_forward.1} parent=11 // pred_check_branch
          %554 = sbr.rel (%p552) target = $region20
        $region19: #{encoder_forward.1} parent=11 // pred_region
          %s556 = ssub.s32 128, 128
          %557 = vsyncadd [#allocation3], %s556
          %s559 = sshll.u32 [#allocation2], 4
          %s560 = int_to_ptr.vmem [resolvable:$true] %s559
          %562 = dma.hbm_to_vmem [thread:$0]  %s2, 128, %s560, [#allocation3]
        $region20: #{encoder_forward.1} parent=11 // pred_fallthru
          _
        // Predicated region
        $region21: #{encoder_forward.1} parent=11 // pred_check
          %p563 = pneg %p130
        $region22: #{encoder_forward.1} parent=11 // pred_check_branch
          %565 = sbr.rel (%p563) target = $region24
        $region23: #{encoder_forward.1} parent=11 // pred_region
          %s567 = ssub.s32 16, 16
          %568 = vsyncadd [#allocation6], %s567
          %s570 = sshll.u32 [#allocation5], 4
          %s571 = int_to_ptr.vmem [resolvable:$true] %s570
          %573 = dma.hbm_to_vmem [thread:$0]  %s3, 16, %s571, [#allocation6]
        $region24: #{encoder_forward.1} parent=11 // pred_fallthru
          _
        // Predicated region
        $region25: #{encoder_forward.1} parent=11 // pred_check
          %p574 = pneg %p151
        $region26: #{encoder_forward.1} parent=11 // pred_check_branch
          %576 = sbr.rel (%p574) target = $region28
        $region27: #{encoder_forward.1} parent=11 // pred_region
          %s578 = ssub.s32 1152, 1152
          %579 = vsyncadd [#allocation6], %s578
          %s580 = sshll.u32 [#allocation7], 4
          %s581 = int_to_ptr.vmem [resolvable:$true] %s580
          %586 = dma.hbm_to_vmem [thread:$0]  %s4, 1152, %s581, [#allocation6], 128, 128, 8
        $region28: #{encoder_forward.1} parent=11 // pred_fallthru
          _
        // Predicated region
        $region29: #{encoder_forward.1} parent=11 // pred_check
          %p587 = pneg %p172
        $region30: #{encoder_forward.1} parent=11 // pred_check_branch
          %589 = sbr.rel (%p587) target = $region32
        $region31: #{encoder_forward.1} parent=11 // pred_region
          %s591 = ssub.s32 16, 16
          %592 = vsyncadd [#allocation9], %s591
          %s594 = sshll.u32 [#allocation8], 4
          %s595 = int_to_ptr.vmem [resolvable:$true] %s594
          %597 = dma.hbm_to_vmem [thread:$0]  %s5, 16, %s595, [#allocation9]
        $region32: #{encoder_forward.1} parent=11 // pred_fallthru
          _
        // Predicated region
        $region33: #{encoder_forward.1} parent=11 // pred_check
          %p598 = pneg %p193
        $region34: #{encoder_forward.1} parent=11 // pred_check_branch
          %600 = sbr.rel (%p598) target = $region36
        $region35: #{encoder_forward.1} parent=11 // pred_region
          %s602 = ssub.s32 16, 16
          %603 = vsyncadd [#allocation9], %s602
          %s605 = sshll.u32 [#allocation10], 4
          %s606 = int_to_ptr.vmem [resolvable:$true] %s605
          %608 = dma.hbm_to_vmem [thread:$0]  %s6, 16, %s606, [#allocation9]
        $region36: #{encoder_forward.1} parent=11 // pred_fallthru
          _
        // Predicated region
        $region37: #{encoder_forward.1} parent=11 // pred_check
          %p609 = pneg %p214
        $region38: #{encoder_forward.1} parent=11 // pred_check_branch
          %611 = sbr.rel (%p609) target = $region40
        $region39: #{encoder_forward.1} parent=11 // pred_region
          %s613 = ssub.s32 16, 16
          %614 = vsyncadd [#allocation12], %s613
          %s616 = sshll.u32 [#allocation11], 4
          %s617 = int_to_ptr.vmem [resolvable:$true] %s616
          %619 = dma.hbm_to_vmem [thread:$0]  %s7, 16, %s617, [#allocation12]
        $region40: #{encoder_forward.1} parent=11 // pred_fallthru
          _
        // Predicated region
        $region41: #{encoder_forward.1} parent=11 // pred_check
          %p620 = pneg %p235
        $region42: #{encoder_forward.1} parent=11 // pred_check_branch
          %622 = sbr.rel (%p620) target = $region44
        $region43: #{encoder_forward.1} parent=11 // pred_region
          %s624 = ssub.s32 18432, 18432
          %625 = vsyncadd [#allocation12], %s624
          %s626 = sshll.u32 [#allocation13], 4
          %s627 = int_to_ptr.vmem [resolvable:$true] %s626
          %632 = dma.hbm_to_vmem [thread:$0]  %s8, 18432, %s627, [#allocation12], 128, 128, 8
        $region44: #{encoder_forward.1} parent=11 // pred_fallthru
          _
        // Predicated region
        $region45: #{encoder_forward.1} parent=11 // pred_check
          %p633 = pneg %p256
        $region46: #{encoder_forward.1} parent=11 // pred_check_branch
          %635 = sbr.rel (%p633) target = $region48
        $region47: #{encoder_forward.1} parent=11 // pred_region
          %s637 = ssub.s32 16, 16
          %638 = vsyncadd [#allocation15], %s637
          %s640 = sshll.u32 [#allocation14], 4
          %s641 = int_to_ptr.vmem [resolvable:$true] %s640
          %643 = dma.hbm_to_vmem [thread:$0]  %s9, 16, %s641, [#allocation15]
        $region48: #{encoder_forward.1} parent=11 // pred_fallthru
          _
        // Predicated region
        $region49: #{encoder_forward.1} parent=11 // pred_check
          %p644 = pneg %p277
        $region50: #{encoder_forward.1} parent=11 // pred_check_branch
          %646 = sbr.rel (%p644) target = $region52
        $region51: #{encoder_forward.1} parent=11 // pred_region
          %s648 = ssub.s32 16, 16
          %649 = vsyncadd [#allocation15], %s648
          %s651 = sshll.u32 [#allocation16], 4
          %s652 = int_to_ptr.vmem [resolvable:$true] %s651
          %654 = dma.hbm_to_vmem [thread:$0]  %s10, 16, %s652, [#allocation15]
        $region52: #{encoder_forward.1} parent=11 // pred_fallthru
          _
        // Predicated region
        $region53: #{encoder_forward.1} parent=11 // pred_check
          %p655 = pneg %p298
        $region54: #{encoder_forward.1} parent=11 // pred_check_branch
          %657 = sbr.rel (%p655) target = $region56
        $region55: #{encoder_forward.1} parent=11 // pred_region
          %s659 = ssub.s32 16, 16
          %660 = vsyncadd [#allocation18], %s659
          %s662 = sshll.u32 [#allocation17], 4
          %s663 = int_to_ptr.vmem [resolvable:$true] %s662
          %665 = dma.hbm_to_vmem [thread:$0]  %s11, 16, %s663, [#allocation18]
        $region56: #{encoder_forward.1} parent=11 // pred_fallthru
          _
        // Predicated region
        $region57: #{encoder_forward.1} parent=11 // pred_check
          %p666 = pneg %p319
        $region58: #{encoder_forward.1} parent=11 // pred_check_branch
          %668 = sbr.rel (%p666) target = $region60
        $region59: #{encoder_forward.1} parent=11 // pred_region
          %s670 = ssub.s32 18432, 18432
          %671 = vsyncadd [#allocation18], %s670
          %s672 = sshll.u32 [#allocation19], 4
          %s673 = int_to_ptr.vmem [resolvable:$true] %s672
          %678 = dma.hbm_to_vmem [thread:$0]  %s12, 18432, %s673, [#allocation18], 128, 128, 8
        $region60: #{encoder_forward.1} parent=11 // pred_fallthru
          _
        // Predicated region
        $region61: #{encoder_forward.1} parent=11 // pred_check
          %p679 = pneg %p340
        $region62: #{encoder_forward.1} parent=11 // pred_check_branch
          %681 = sbr.rel (%p679) target = $region64
        $region63: #{encoder_forward.1} parent=11 // pred_region
          %s683 = ssub.s32 16, 16
          %684 = vsyncadd [#allocation21], %s683
          %s686 = sshll.u32 [#allocation20], 4
          %s687 = int_to_ptr.vmem [resolvable:$true] %s686
          %689 = dma.hbm_to_vmem [thread:$0]  %s13, 16, %s687, [#allocation21]
        $region64: #{encoder_forward.1} parent=11 // pred_fallthru
          _
        // Predicated region
        $region65: #{encoder_forward.1} parent=11 // pred_check
          %p690 = pneg %p361
        $region66: #{encoder_forward.1} parent=11 // pred_check_branch
          %692 = sbr.rel (%p690) target = $region68
        $region67: #{encoder_forward.1} parent=11 // pred_region
          %s694 = ssub.s32 16, 16
          %695 = vsyncadd [#allocation21], %s694
          %s697 = sshll.u32 [#allocation22], 4
          %s698 = int_to_ptr.vmem [resolvable:$true] %s697
          %700 = dma.hbm_to_vmem [thread:$0]  %s14, 16, %s698, [#allocation21]
        $region68: #{encoder_forward.1} parent=11 // pred_fallthru
          _
        // Predicated region
        $region69: #{encoder_forward.1} parent=11 // pred_check
          %p701 = pneg %p382
        $region70: #{encoder_forward.1} parent=11 // pred_check_branch
          %703 = sbr.rel (%p701) target = $region72
        $region71: #{encoder_forward.1} parent=11 // pred_region
          %s705 = ssub.s32 16, 16
          %706 = vsyncadd [#allocation24], %s705
          %s708 = sshll.u32 [#allocation23], 4
          %s709 = int_to_ptr.vmem [resolvable:$true] %s708
          %711 = dma.hbm_to_vmem [thread:$0]  %s15, 16, %s709, [#allocation24]
        $region72: #{encoder_forward.1} parent=11 // pred_fallthru
          _
        // Predicated region
        $region73: #{encoder_forward.1} parent=11 // pred_check
          %p712 = pneg %p403
        $region74: #{encoder_forward.1} parent=11 // pred_check_branch
          %714 = sbr.rel (%p712) target = $region76
        $region75: #{encoder_forward.1} parent=11 // pred_region
          _
        $region76: #{encoder_forward.1} parent=11 // pred_fallthru
          _
        // Predicated region
        $region77: #{encoder_forward.1} parent=11 // pred_check
          %p715 = pneg %p424
        $region78: #{encoder_forward.1} parent=11 // pred_check_branch
          %717 = sbr.rel (%p715) target = $region80
        $region79: #{encoder_forward.1} parent=11 // pred_region
          %s719 = ssub.s32 256, 256
          %720 = vsyncadd [#allocation24], %s719
          %s721 = sshll.u32 [#allocation25], 4
          %s722 = int_to_ptr.vmem [resolvable:$true] %s721
          %727 = dma.hbm_to_vmem [thread:$0]  %s17, 256, %s722, [#allocation24], 128, 128, 8
        $region80: #{encoder_forward.1} parent=11 // pred_fallthru
          _
        // Predicated region
        $region81: #{encoder_forward.1} parent=11 // pred_check
          %p728 = pneg %p445
        $region82: #{encoder_forward.1} parent=11 // pred_check_branch
          %730 = sbr.rel (%p728) target = $region84
        $region83: #{encoder_forward.1} parent=11 // pred_region
          %s732 = ssub.s32 65536, 65536
          %733 = vsyncadd [#allocation27], %s732
          %s734 = sshll.u32 [#allocation26], 4
          %s735 = int_to_ptr.vmem [resolvable:$true] %s734
          %740 = dma.hbm_to_vmem [thread:$0]  %s18, 65536, %s735, [#allocation27], 256, 256, 16
        $region84: #{encoder_forward.1} parent=11 // pred_fallthru
          _
        // Predicated region
        $region85: #{encoder_forward.1} parent=11 // pred_check
          %p741 = pneg %p466
        $region86: #{encoder_forward.1} parent=11 // pred_check_branch
          %743 = sbr.rel (%p741) target = $region88
        $region87: #{encoder_forward.1} parent=11 // pred_region
          %s745 = ssub.s32 32, 32
          %746 = vsyncadd [#allocation27], %s745
          %s748 = sshll.u32 [#allocation28], 4
          %s749 = int_to_ptr.vmem [resolvable:$true] %s748
          %751 = dma.hbm_to_vmem [thread:$0]  %s19, 32, %s749, [#allocation27]
        $region88: #{encoder_forward.1} parent=11 // pred_fallthru
          _
        // Predicated region
        $region89: #{encoder_forward.1} parent=11 // pred_check
          %p752 = pneg %p487
        $region90: #{encoder_forward.1} parent=11 // pred_check_branch
          %754 = sbr.rel (%p752) target = $region92
        $region91: #{encoder_forward.1} parent=11 // pred_region
          %s756 = ssub.s32 2048, 2048
          %757 = vsyncadd [#allocation30], %s756
          %s758 = sshll.u32 [#allocation29], 4
          %s759 = int_to_ptr.vmem [resolvable:$true] %s758
          %764 = dma.hbm_to_vmem [thread:$0]  %s20, 2048, %s759, [#allocation30], 128, 128, 8
        $region92: #{encoder_forward.1} parent=11 // pred_fallthru
          _
        // Predicated region
        $region93: #{encoder_forward.1} parent=11 // pred_check
          %p765 = pneg %p508
        $region94: #{encoder_forward.1} parent=11 // pred_check_branch
          %767 = sbr.rel (%p765) target = $region96
        $region95: #{encoder_forward.1} parent=11 // pred_region
          %s769 = ssub.s32 16, 16
          %770 = vsyncadd [#allocation30], %s769
          %s772 = sshll.u32 [#allocation31], 4
          %s773 = int_to_ptr.vmem [resolvable:$true] %s772
          %775 = dma.hbm_to_vmem [thread:$0]  %s21, 16, %s773, [#allocation30]
        $region96: #{encoder_forward.1} parent=11 // pred_fallthru
          _
      $region12: #{encoder_forward.1} parent=5 // pred_fallthru
        _
      %p776 = scmp.lt.s32.totalorder %s41, 2
      // Predicated region
      $region97: #{encoder_forward.1} parent=5 // pred_check
        %p777 = pneg %p776
      $region98: #{encoder_forward.1} parent=5 // pred_check_branch
        %779 = sbr.rel (%p777) target = $region100
      $region99: #{encoder_forward.1} parent=5 // pred_region
        // Predicated region
        $region101: #{encoder_forward.1} parent=99 // pred_check
          %p780 = pneg %p61
        $region102: #{encoder_forward.1} parent=99 // pred_check_branch
          %782 = sbr.rel (%p780) target = $region104
        $region103: #{encoder_forward.1} parent=99 // pred_region
          %p783 = scmp.lt.s32.totalorder %s41, 1
          %s784 = scalar_select %p783, %s41, 1
          %s785 = smul.addr %s784, 2
          %s786 = smul.addr %s785, 8
          %s787 = scalar_lea.vmem %s0, %s786
        $region104: #{encoder_forward.1} parent=99 // pred_fallthru
          _
      $region100: #{encoder_forward.1} parent=5 // pred_fallthru
        _
      %p788 = scmp.le.s32.totalorder 1, %s41
      %p789 = scmp.lt.s32.totalorder %s41, 3
      %p790 = pnand %p788, %p789
      %p791 = pneg %p790
      // Predicated region
      $region105: #{encoder_forward.1} parent=5 // pred_check
        _
      $region106: #{encoder_forward.1} parent=5 // pred_check_branch
        %793 = sbr.rel (%p790) target = $region108
      $region107: #{encoder_forward.1} parent=5 // pred_region
        %s794 = ssub.s32 %s41, 1
        // Predicated region
        $region109: #{encoder_forward.1} parent=107 // pred_check
          %p795 = pneg %p109
        $region110: #{encoder_forward.1} parent=107 // pred_check_branch
          %797 = sbr.rel (%p795) target = $region112
        $region111: #{encoder_forward.1} parent=107 // pred_region
          %798 = dma.done [#allocation3], 128
        $region112: #{encoder_forward.1} parent=107 // pred_fallthru
          _
        // Predicated region
        $region113: #{encoder_forward.1} parent=107 // pred_check
          %p799 = pneg %p130
        $region114: #{encoder_forward.1} parent=107 // pred_check_branch
          %801 = sbr.rel (%p799) target = $region116
        $region115: #{encoder_forward.1} parent=107 // pred_region
          %802 = dma.done [#allocation6], 16
        $region116: #{encoder_forward.1} parent=107 // pred_fallthru
          _
        // Predicated region
        $region117: #{encoder_forward.1} parent=107 // pred_check
          %p803 = pneg %p151
        $region118: #{encoder_forward.1} parent=107 // pred_check_branch
          %805 = sbr.rel (%p803) target = $region120
        $region119: #{encoder_forward.1} parent=107 // pred_region
          %806 = dma.done [#allocation6], 1152
        $region120: #{encoder_forward.1} parent=107 // pred_fallthru
          _
        // Predicated region
        $region121: #{encoder_forward.1} parent=107 // pred_check
          %p807 = pneg %p172
        $region122: #{encoder_forward.1} parent=107 // pred_check_branch
          %809 = sbr.rel (%p807) target = $region124
        $region123: #{encoder_forward.1} parent=107 // pred_region
          %810 = dma.done [#allocation9], 16
        $region124: #{encoder_forward.1} parent=107 // pred_fallthru
          _
        // Predicated region
        $region125: #{encoder_forward.1} parent=107 // pred_check
          %p811 = pneg %p193
        $region126: #{encoder_forward.1} parent=107 // pred_check_branch
          %813 = sbr.rel (%p811) target = $region128
        $region127: #{encoder_forward.1} parent=107 // pred_region
          %814 = dma.done [#allocation9], 16
        $region128: #{encoder_forward.1} parent=107 // pred_fallthru
          _
        // Predicated region
        $region129: #{encoder_forward.1} parent=107 // pred_check
          %p815 = pneg %p214
        $region130: #{encoder_forward.1} parent=107 // pred_check_branch
          %817 = sbr.rel (%p815) target = $region132
        $region131: #{encoder_forward.1} parent=107 // pred_region
          %818 = dma.done [#allocation12], 16
        $region132: #{encoder_forward.1} parent=107 // pred_fallthru
          _
        // Predicated region
        $region133: #{encoder_forward.1} parent=107 // pred_check
          %p819 = pneg %p235
        $region134: #{encoder_forward.1} parent=107 // pred_check_branch
          %821 = sbr.rel (%p819) target = $region136
        $region135: #{encoder_forward.1} parent=107 // pred_region
          %822 = dma.done [#allocation12], 18432
        $region136: #{encoder_forward.1} parent=107 // pred_fallthru
          _
        // Predicated region
        $region137: #{encoder_forward.1} parent=107 // pred_check
          %p823 = pneg %p256
        $region138: #{encoder_forward.1} parent=107 // pred_check_branch
          %825 = sbr.rel (%p823) target = $region140
        $region139: #{encoder_forward.1} parent=107 // pred_region
          %826 = dma.done [#allocation15], 16
        $region140: #{encoder_forward.1} parent=107 // pred_fallthru
          _
        // Predicated region
        $region141: #{encoder_forward.1} parent=107 // pred_check
          %p827 = pneg %p277
        $region142: #{encoder_forward.1} parent=107 // pred_check_branch
          %829 = sbr.rel (%p827) target = $region144
        $region143: #{encoder_forward.1} parent=107 // pred_region
          %830 = dma.done [#allocation15], 16
        $region144: #{encoder_forward.1} parent=107 // pred_fallthru
          _
        // Predicated region
        $region145: #{encoder_forward.1} parent=107 // pred_check
          %p831 = pneg %p298
        $region146: #{encoder_forward.1} parent=107 // pred_check_branch
          %833 = sbr.rel (%p831) target = $region148
        $region147: #{encoder_forward.1} parent=107 // pred_region
          %834 = dma.done [#allocation18], 16
        $region148: #{encoder_forward.1} parent=107 // pred_fallthru
          _
        // Predicated region
        $region149: #{encoder_forward.1} parent=107 // pred_check
          %p835 = pneg %p319
        $region150: #{encoder_forward.1} parent=107 // pred_check_branch
          %837 = sbr.rel (%p835) target = $region152
        $region151: #{encoder_forward.1} parent=107 // pred_region
          %838 = dma.done [#allocation18], 18432
        $region152: #{encoder_forward.1} parent=107 // pred_fallthru
          _
        // Predicated region
        $region153: #{encoder_forward.1} parent=107 // pred_check
          %p839 = pneg %p340
        $region154: #{encoder_forward.1} parent=107 // pred_check_branch
          %841 = sbr.rel (%p839) target = $region156
        $region155: #{encoder_forward.1} parent=107 // pred_region
          %842 = dma.done [#allocation21], 16
        $region156: #{encoder_forward.1} parent=107 // pred_fallthru
          _
        // Predicated region
        $region157: #{encoder_forward.1} parent=107 // pred_check
          %p843 = pneg %p361
        $region158: #{encoder_forward.1} parent=107 // pred_check_branch
          %845 = sbr.rel (%p843) target = $region160
        $region159: #{encoder_forward.1} parent=107 // pred_region
          %846 = dma.done [#allocation21], 16
        $region160: #{encoder_forward.1} parent=107 // pred_fallthru
          _
        // Predicated region
        $region161: #{encoder_forward.1} parent=107 // pred_check
          %p847 = pneg %p382
        $region162: #{encoder_forward.1} parent=107 // pred_check_branch
          %849 = sbr.rel (%p847) target = $region164
        $region163: #{encoder_forward.1} parent=107 // pred_region
          %850 = dma.done [#allocation24], 16
        $region164: #{encoder_forward.1} parent=107 // pred_fallthru
          _
        // Predicated region
        $region165: #{encoder_forward.1} parent=107 // pred_check
          %p851 = pneg %p424
        $region166: #{encoder_forward.1} parent=107 // pred_check_branch
          %853 = sbr.rel (%p851) target = $region168
        $region167: #{encoder_forward.1} parent=107 // pred_region
          %854 = dma.done [#allocation24], 256
        $region168: #{encoder_forward.1} parent=107 // pred_fallthru
          _
        // Predicated region
        $region169: #{encoder_forward.1} parent=107 // pred_check
          %p855 = pneg %p445
        $region170: #{encoder_forward.1} parent=107 // pred_check_branch
          %857 = sbr.rel (%p855) target = $region172
        $region171: #{encoder_forward.1} parent=107 // pred_region
          %858 = dma.done [#allocation27], 65536
        $region172: #{encoder_forward.1} parent=107 // pred_fallthru
          _
        // Predicated region
        $region173: #{encoder_forward.1} parent=107 // pred_check
          %p859 = pneg %p466
        $region174: #{encoder_forward.1} parent=107 // pred_check_branch
          %861 = sbr.rel (%p859) target = $region176
        $region175: #{encoder_forward.1} parent=107 // pred_region
          %862 = dma.done [#allocation27], 32
        $region176: #{encoder_forward.1} parent=107 // pred_fallthru
          _
        // Predicated region
        $region177: #{encoder_forward.1} parent=107 // pred_check
          %p863 = pneg %p487
        $region178: #{encoder_forward.1} parent=107 // pred_check_branch
          %865 = sbr.rel (%p863) target = $region180
        $region179: #{encoder_forward.1} parent=107 // pred_region
          %866 = dma.done [#allocation30], 2048
        $region180: #{encoder_forward.1} parent=107 // pred_fallthru
          _
        // Predicated region
        $region181: #{encoder_forward.1} parent=107 // pred_check
          %p867 = pneg %p508
        $region182: #{encoder_forward.1} parent=107 // pred_check_branch
          %869 = sbr.rel (%p867) target = $region184
        $region183: #{encoder_forward.1} parent=107 // pred_region
          %870 = dma.done [#allocation30], 16
        $region184: #{encoder_forward.1} parent=107 // pred_fallthru
          _
        %p871 = scmp.lt.s32.totalorder %s46, 1
        %s872 = scalar_select %p871, %s46, 1
        %s873 = smul.addr %s872, 2
        %s874 = smul.addr %s873, 8
        %s875 = scalar_lea.vmem %s0, %s874
        %p876 = pneg %p67
        %p877 = pneg %p64
        %p878 = pneg %p88
        %p879 = pneg %p85
        %p880 = pneg %p109
        %p881 = pneg %p106
        %p882 = pneg %p130
        %p883 = pneg %p127
        %p884 = pneg %p151
        %p885 = pneg %p148
        %p886 = pneg %p172
        %p887 = pneg %p169
        %p888 = pneg %p193
        %p889 = pneg %p190
        %p890 = pneg %p214
        %p891 = pneg %p211
        %p892 = pneg %p235
        %p893 = pneg %p232
        %p894 = pneg %p256
        %p895 = pneg %p253
        %p896 = pneg %p277
        %p897 = pneg %p274
        %p898 = pneg %p298
        %p899 = pneg %p295
        %p900 = pneg %p319
        %p901 = pneg %p316
        %p902 = pneg %p340
        %p903 = pneg %p337
        %p904 = pneg %p361
        %p905 = pneg %p358
        %p906 = pneg %p382
        %p907 = pneg %p379
        %p908 = pneg %p403
        %p909 = pneg %p400
        %p910 = pneg %p424
        %p911 = pneg %p421
        %p912 = pneg %p445
        %p913 = pneg %p442
        %p914 = pneg %p466
        %p915 = pneg %p463
        %p916 = pneg %p487
        %p917 = pneg %p484
        %p918 = pneg %p508
        %p919 = pneg %p505
        %p920 = pneg %p534
        %p921 = pneg %p531
        %s922 = sand.u32 %s521, 1
        %s923 = scalar_lea.sflag [#allocation4], %s922
        %s924 = sand.u32 %s521, 1
        %s925 = scalar_lea.vmem [#allocation32], %s924
        %p926 = scmp.lt.s32.totalorder %s46, 1
        %s927 = scalar_select %p926, %s46, 1
        %s928 = smul.addr %s927, 2
        %s929 = smul.addr %s928, 8
        %s930 = scalar_lea.vmem %s0, %s929
        %v931 = vld [vmem:[%s930] sm:$0xff]
        %v932 = vld [vmem:[%s930 + $0x8] sm:$0xff]
        %v933 = vld [vmem:[%s16] sm:$0xff]
        %v934 = vld [vmem:[%s16 + $0x8] sm:$0xff]
        %v935 = vld [vmem:[%s16 + $0x10] sm:$0xff]
        %v936 = vld [vmem:[%s16 + $0x18] sm:$0xff]
        %v937 = vld [vmem:[%s16 + $0x20] sm:$0xff]
        %v938 = vld [vmem:[%s16 + $0x28] sm:$0xff]
        %v939 = vld [vmem:[%s16 + $0x30] sm:$0xff]
        %v940 = vld [vmem:[%s16 + $0x38] sm:$0xff]
        %v941 = vld [vmem:[%s16 + $0x40] sm:$0xff]
        %v942 = vld [vmem:[%s16 + $0x48] sm:$0xff]
        %v943 = vld [vmem:[%s16 + $0x50] sm:$0xff]
        %v944 = vld [vmem:[%s16 + $0x58] sm:$0xff]
        %v945 = vld [vmem:[%s16 + $0x60] sm:$0xff]
        %v946 = vld [vmem:[%s16 + $0x68] sm:$0xff]
        %v947 = vld [vmem:[%s16 + $0x70] sm:$0xff]
        %v948 = vld [vmem:[%s16 + $0x78] sm:$0xff]
        %v949 = vld [vmem:[#allocation25] sm:$0xff]
        %v950 = vld [vmem:[#allocation25 + $0x8] sm:$0xff]
        %v951 = vld [vmem:[#allocation2] sm:$0xff]
        %v952 = vld [vmem:[#allocation5] sm:$0x1]
        %v954 = vlaneseq
        %v955 = vshrl.u32 %v954, 7
        %v956 = vsub.s32 0, %v955
        %v957 = vrot.slane %v952, %v956
        %vm959 = vcmask 64512
        %v961 = vsel %vm959, %v931, 0
        %v964 = vsel %vm959, %v932, 0
        %966 = vmatprep.subr.mxu0 0.0
        %967 = vmatpush1.msra.mxu0 0.0
        %968 = vmatprep.subr.mxu0 0.0
        %969 = vmatpush1.msra.mxu0 0.0
        %970 = vmatprep.subr.mxu0 0.0
        %971 = vmatpush1.msra.mxu0 0.0
        %972 = vmatprep.subr.mxu0 0.0
        %973 = vmatpush1.msra.mxu0 0.0
        %974 = vmatprep.subr.mxu0 0.0
        %975 = vmatpush1.msra.mxu0 0.0
        %976 = vmatprep.subr.mxu0 0.0
        %977 = vmatpush1.msra.mxu0 0.0
        %978 = vmatprep.subr.mxu0 0.0
        %979 = vmatpush1.msra.mxu0 0.0
        %980 = vmatprep.subr.mxu0 0.0
        %981 = vmatpush1.msra.mxu0 0.0
        %982 = vmatprep.subr.mxu0 0.0
        %983 = vmatpush1.msra.mxu0 0.0
        %984 = vmatprep.subr.mxu0 0.0
        %985 = vmatpush1.msra.mxu0 0.0
        %986 = vmatprep.subr.mxu0 0.0
        %987 = vmatpush1.msra.mxu0 0.0
        %988 = vmatprep.subr.mxu0 0.0
        %989 = vmatpush1.msra.mxu0 0.0
        %990 = vmatprep.subr.mxu0 0.0
        %991 = vmatpush1.msra.mxu0 0.0
        %992 = vmatprep.subr.mxu0 0.0
        %993 = vmatpush1.msra.mxu0 0.0
        %994 = vmatprep.subr.mxu0 0.0
        %995 = vmatpush1.msra.mxu0 0.0
        %996 = vmatprep.subr.mxu0 0.0
        %997 = vmatpush1.msra.mxu0 %v951
        %998 = vmatprep.subr.mxu0 0.0
        %999 = vmatpush2.msra.mxu0 0.0
        %1000 = vmatprep.subr.mxu0 0.0
        %1001 = vmatpush2.msra.mxu0 0.0
        %1002 = vmatprep.subr.mxu0 0.0
        %1003 = vmatpush2.msra.mxu0 0.0
        %1004 = vmatprep.subr.mxu0 0.0
        %1005 = vmatpush2.msra.mxu0 0.0
        %1006 = vmatprep.subr.mxu0 0.0
        %1007 = vmatpush2.msra.mxu0 0.0
        %1008 = vmatprep.subr.mxu0 0.0
        %1009 = vmatpush2.msra.mxu0 0.0
        %1010 = vmatprep.subr.mxu0 0.0
        %1011 = vmatpush2.msra.mxu0 0.0
        %1012 = vmatprep.subr.mxu0 0.0
        %1013 = vmatpush2.msra.mxu0 0.0
        %1014 = vmatprep.subr.mxu0 0.0
        %1015 = vmatpush2.msra.mxu0 0.0
        %1016 = vmatprep.subr.mxu0 0.0
        %1017 = vmatpush2.msra.mxu0 0.0
        %1018 = vmatprep.subr.mxu0 0.0
        %1019 = vmatpush2.msra.mxu0 0.0
        %1020 = vmatprep.subr.mxu0 0.0
        %1021 = vmatpush2.msra.mxu0 0.0
        %1022 = vmatprep.subr.mxu0 0.0
        %1023 = vmatpush2.msra.mxu0 0.0
        %1024 = vmatprep.subr.mxu0 0.0
        %1025 = vmatpush2.msra.mxu0 0.0
        %1026 = vmatprep.subr.mxu0 0.0
        %1027 = vmatpush2.msra.mxu0 0.0
        %1028 = vmatprep.subr.mxu0 0.0
        %1029 = vmatpush2.msra.mxu0 0.0
        %1030 = vmatprep.mubr.f32.mxu0 0.0
        %1031 = vmatmul.mubr.f32.gmra.mxu0 %v961
        %v1032 = vpop.f32.mrf.mxu0
        %v1033 = vadd.f32 %v957, %v1032
        %v1034 = vpop.f32.mrf.mxu0
        %1035 = vmatprep.mubr.f32.mxu0 0.0
        %1036 = vmatmul.mubr.f32.gmra.mxu0 %v964
        %v1037 = vpop.f32.mrf.mxu0
        %v1038 = vadd.f32 %v957, %v1037
        %v1039 = vpop.f32.mrf.mxu0
        %1040 = vdwg.mxu0
        %v1041 = vld [vmem:[%s1] sm:$0xff]
        %v1042 = vld [vmem:[%s1 + $0x8] sm:$0xff]
        %vm1043 = vcmask 130048
        %v1045 = vsel %vm1043, %v1041, 0
        %v1048 = vsel %vm1043, %v1042, 0
        %1050 = vmatprep.subr.mxu0 0.0
        %1051 = vmatpush1.msra.mxu0 0.0
        %1052 = vmatprep.subr.mxu0 0.0
        %1053 = vmatpush1.msra.mxu0 0.0
        %1054 = vmatprep.subr.mxu0 0.0
        %1055 = vmatpush1.msra.mxu0 0.0
        %1056 = vmatprep.subr.mxu0 0.0
        %1057 = vmatpush1.msra.mxu0 0.0
        %1058 = vmatprep.subr.mxu0 0.0
        %1059 = vmatpush1.msra.mxu0 0.0
        %1060 = vmatprep.subr.mxu0 0.0
        %1061 = vmatpush1.msra.mxu0 0.0
        %1062 = vmatprep.subr.mxu0 0.0
        %1063 = vmatpush1.msra.mxu0 0.0
        %1064 = vmatprep.subr.mxu0 0.0
        %1065 = vmatpush1.msra.mxu0 0.0
        %1066 = vmatprep.subr.mxu0 0.0
        %1067 = vmatpush1.msra.mxu0 0.0
        %1068 = vmatprep.subr.mxu0 0.0
        %1069 = vmatpush1.msra.mxu0 0.0
        %1070 = vmatprep.subr.mxu0 0.0
        %1071 = vmatpush1.msra.mxu0 0.0
        %1072 = vmatprep.subr.mxu0 0.0
        %1073 = vmatpush1.msra.mxu0 0.0
        %1074 = vmatprep.subr.mxu0 0.0
        %1075 = vmatpush1.msra.mxu0 0.0
        %1076 = vmatprep.subr.mxu0 0.0
        %1077 = vmatpush1.msra.mxu0 0.0
        %1078 = vmatprep.subr.mxu0 0.0
        %1079 = vmatpush1.msra.mxu0 %v932
        %1080 = vmatprep.subr.mxu0 0.0
        %1081 = vmatpush1.msra.mxu0 %v931
        %1082 = vmatprep.subr.mxu0 0.0
        %1083 = vmatpush2.msra.mxu0 0.0
        %1084 = vmatprep.subr.mxu0 0.0
        %1085 = vmatpush2.msra.mxu0 0.0
        %1086 = vmatprep.subr.mxu0 0.0
        %1087 = vmatpush2.msra.mxu0 0.0
        %1088 = vmatprep.subr.mxu0 0.0
        %1089 = vmatpush2.msra.mxu0 0.0
        %1090 = vmatprep.subr.mxu0 0.0
        %1091 = vmatpush2.msra.mxu0 0.0
        %1092 = vmatprep.subr.mxu0 0.0
        %1093 = vmatpush2.msra.mxu0 0.0
        %1094 = vmatprep.subr.mxu0 0.0
        %1095 = vmatpush2.msra.mxu0 0.0
        %1096 = vmatprep.subr.mxu0 0.0
        %1097 = vmatpush2.msra.mxu0 0.0
        %1098 = vmatprep.subr.mxu0 0.0
        %1099 = vmatpush2.msra.mxu0 0.0
        %1100 = vmatprep.subr.mxu0 0.0
        %1101 = vmatpush2.msra.mxu0 0.0
        %1102 = vmatprep.subr.mxu0 0.0
        %1103 = vmatpush2.msra.mxu0 0.0
        %1104 = vmatprep.subr.mxu0 0.0
        %1105 = vmatpush2.msra.mxu0 0.0
        %1106 = vmatprep.subr.mxu0 0.0
        %1107 = vmatpush2.msra.mxu0 0.0
        %1108 = vmatprep.subr.mxu0 0.0
        %1109 = vmatpush2.msra.mxu0 0.0
        %1110 = vmatprep.subr.mxu0 0.0
        %1111 = vmatpush2.msra.mxu0 0.0
        %1112 = vmatprep.subr.mxu0 0.0
        %1113 = vmatpush2.msra.mxu0 0.0
        %1114 = vmatprep.mubr.f32.mxu0 0.0
        %1115 = vmatmul.mubr.f32.gmra.mxu0 %v1045
        %v1116 = vpop.f32.mrf.mxu0
        %v1117 = vadd.f32 0.0, %v1116
        %v1118 = vpop.f32.mrf.mxu0
        %1119 = vmatprep.mubr.f32.mxu0 0.0
        %1120 = vmatmul.mubr.f32.gmra.mxu0 %v1048
        %v1121 = vpop.f32.mrf.mxu0
        %v1122 = vadd.f32 0.0, %v1121
        %v1123 = vpop.f32.mrf.mxu0
        %1124 = vdwg.mxu0
        %v1125 = vld [vmem:[#allocation7] sm:$0xff]
        %v1126 = vld [vmem:[%s1 + $0x10] sm:$0xff]
        %v1127 = vld [vmem:[%s1 + $0x18] sm:$0xff]
        %v1129 = vsel %vm1043, %v1126, 0
        %v1132 = vsel %vm1043, %v1127, 0
        %1134 = vmatprep.subr.mxu0 0.0
        %1135 = vmatpush1.msra.mxu0 0.0
        %1136 = vmatprep.subr.mxu0 0.0
        %1137 = vmatpush1.msra.mxu0 0.0
        %1138 = vmatprep.subr.mxu0 0.0
        %1139 = vmatpush1.msra.mxu0 0.0
        %1140 = vmatprep.subr.mxu0 0.0
        %1141 = vmatpush1.msra.mxu0 0.0
        %1142 = vmatprep.subr.mxu0 0.0
        %1143 = vmatpush1.msra.mxu0 0.0
        %1144 = vmatprep.subr.mxu0 0.0
        %1145 = vmatpush1.msra.mxu0 0.0
        %1146 = vmatprep.subr.mxu0 0.0
        %1147 = vmatpush1.msra.mxu0 0.0
        %1148 = vmatprep.subr.mxu0 0.0
        %1149 = vmatpush1.msra.mxu0 0.0
        %1150 = vmatprep.subr.mxu0 0.0
        %1151 = vmatpush1.msra.mxu0 0.0
        %1152 = vmatprep.subr.mxu0 0.0
        %1153 = vmatpush1.msra.mxu0 0.0
        %1154 = vmatprep.subr.mxu0 0.0
        %1155 = vmatpush1.msra.mxu0 0.0
        %1156 = vmatprep.subr.mxu0 0.0
        %1157 = vmatpush1.msra.mxu0 0.0
        %1158 = vmatprep.subr.mxu0 0.0
        %1159 = vmatpush1.msra.mxu0 0.0
        %1160 = vmatprep.subr.mxu0 0.0
        %1161 = vmatpush1.msra.mxu0 0.0
        %1162 = vmatprep.subr.mxu0 0.0
        %1163 = vmatpush1.msra.mxu0 %v932
        %1164 = vmatprep.subr.mxu0 0.0
        %1165 = vmatpush1.msra.mxu0 %v931
        %1166 = vmatprep.subr.mxu0 0.0
        %1167 = vmatpush2.msra.mxu0 0.0
        %1168 = vmatprep.subr.mxu0 0.0
        %1169 = vmatpush2.msra.mxu0 0.0
        %1170 = vmatprep.subr.mxu0 0.0
        %1171 = vmatpush2.msra.mxu0 0.0
        %1172 = vmatprep.subr.mxu0 0.0
        %1173 = vmatpush2.msra.mxu0 0.0
        %1174 = vmatprep.subr.mxu0 0.0
        %1175 = vmatpush2.msra.mxu0 0.0
        %1176 = vmatprep.subr.mxu0 0.0
        %1177 = vmatpush2.msra.mxu0 0.0
        %1178 = vmatprep.subr.mxu0 0.0
        %1179 = vmatpush2.msra.mxu0 0.0
        %1180 = vmatprep.subr.mxu0 0.0
        %1181 = vmatpush2.msra.mxu0 0.0
        %1182 = vmatprep.subr.mxu0 0.0
        %1183 = vmatpush2.msra.mxu0 0.0
        %1184 = vmatprep.subr.mxu0 0.0
        %1185 = vmatpush2.msra.mxu0 0.0
        %1186 = vmatprep.subr.mxu0 0.0
        %1187 = vmatpush2.msra.mxu0 0.0
        %1188 = vmatprep.subr.mxu0 0.0
        %1189 = vmatpush2.msra.mxu0 0.0
        %1190 = vmatprep.subr.mxu0 0.0
        %1191 = vmatpush2.msra.mxu0 0.0
        %1192 = vmatprep.subr.mxu0 0.0
        %1193 = vmatpush2.msra.mxu0 0.0
        %1194 = vmatprep.subr.mxu0 0.0
        %1195 = vmatpush2.msra.mxu0 0.0
        %1196 = vmatprep.subr.mxu0 0.0
        %1197 = vmatpush2.msra.mxu0 0.0
        %1198 = vmatprep.mubr.f32.mxu0 0.0
        %1199 = vmatmul.mubr.f32.gmra.mxu0 %v1129
        %v1200 = vpop.f32.mrf.mxu0
        %v1201 = vadd.f32 0.0, %v1200
        %v1202 = vpop.f32.mrf.mxu0
        %1203 = vmatprep.mubr.f32.mxu0 0.0
        %1204 = vmatmul.mubr.f32.gmra.mxu0 %v1132
        %v1205 = vpop.f32.mrf.mxu0
        %v1206 = vadd.f32 0.0, %v1205
        %v1207 = vpop.f32.mrf.mxu0
        %1208 = vdwg.mxu0
        %v1209 = vld [vmem:[#allocation7 + $0x8] sm:$0xff]
        %v1211 = vsel %vm959, %v1201, 0
        %v1214 = vsel %vm959, %v1206, 0
        %1216 = vmatprep.subr.mxu0 0.0
        %1217 = vmatpush1.msra.mxu0 0.0
        %1218 = vmatprep.subr.mxu0 0.0
        %1219 = vmatpush1.msra.mxu0 0.0
        %1220 = vmatprep.subr.mxu0 0.0
        %1221 = vmatpush1.msra.mxu0 0.0
        %1222 = vmatprep.subr.mxu0 0.0
        %1223 = vmatpush1.msra.mxu0 0.0
        %1224 = vmatprep.subr.mxu0 0.0
        %1225 = vmatpush1.msra.mxu0 0.0
        %1226 = vmatprep.subr.mxu0 0.0
        %1227 = vmatpush1.msra.mxu0 0.0
        %1228 = vmatprep.subr.mxu0 0.0
        %1229 = vmatpush1.msra.mxu0 0.0
        %1230 = vmatprep.subr.mxu0 0.0
        %1231 = vmatpush1.msra.mxu0 0.0
        %1232 = vmatprep.subr.mxu0 0.0
        %1233 = vmatpush1.msra.mxu0 0.0
        %1234 = vmatprep.subr.mxu0 0.0
        %1235 = vmatpush1.msra.mxu0 0.0
        %1236 = vmatprep.subr.mxu0 0.0
        %1237 = vmatpush1.msra.mxu0 0.0
        %1238 = vmatprep.subr.mxu0 0.0
        %1239 = vmatpush1.msra.mxu0 0.0
        %1240 = vmatprep.subr.mxu0 0.0
        %1241 = vmatpush1.msra.mxu0 0.0
        %1242 = vmatprep.subr.mxu0 0.0
        %1243 = vmatpush1.msra.mxu0 0.0
        %1244 = vmatprep.subr.mxu0 0.0
        %1245 = vmatpush1.msra.mxu0 0.0
        %1246 = vmatprep.subr.mxu0 0.0
        %1247 = vmatpush1.msra.mxu0 %v1209
        %1248 = vmatprep.subr.mxu0 0.0
        %1249 = vmatpush2.msra.mxu0 0.0
        %1250 = vmatprep.subr.mxu0 0.0
        %1251 = vmatpush2.msra.mxu0 0.0
        %1252 = vmatprep.subr.mxu0 0.0
        %1253 = vmatpush2.msra.mxu0 0.0
        %1254 = vmatprep.subr.mxu0 0.0
        %1255 = vmatpush2.msra.mxu0 0.0
        %1256 = vmatprep.subr.mxu0 0.0
        %1257 = vmatpush2.msra.mxu0 0.0
        %1258 = vmatprep.subr.mxu0 0.0
        %1259 = vmatpush2.msra.mxu0 0.0
        %1260 = vmatprep.subr.mxu0 0.0
        %1261 = vmatpush2.msra.mxu0 0.0
        %1262 = vmatprep.subr.mxu0 0.0
        %1263 = vmatpush2.msra.mxu0 0.0
        %1264 = vmatprep.subr.mxu0 0.0
        %1265 = vmatpush2.msra.mxu0 0.0
        %1266 = vmatprep.subr.mxu0 0.0
        %1267 = vmatpush2.msra.mxu0 0.0
        %1268 = vmatprep.subr.mxu0 0.0
        %1269 = vmatpush2.msra.mxu0 0.0
        %1270 = vmatprep.subr.mxu0 0.0
        %1271 = vmatpush2.msra.mxu0 0.0
        %1272 = vmatprep.subr.mxu0 0.0
        %1273 = vmatpush2.msra.mxu0 0.0
        %1274 = vmatprep.subr.mxu0 0.0
        %1275 = vmatpush2.msra.mxu0 0.0
        %1276 = vmatprep.subr.mxu0 0.0
        %1277 = vmatpush2.msra.mxu0 0.0
        %1278 = vmatprep.subr.mxu0 0.0
        %1279 = vmatpush2.msra.mxu0 0.0
        %1280 = vmatprep.mubr.f32.mxu0 0.0
        %1281 = vmatmul.mubr.f32.gmra.mxu0 %v1211
        %v1282 = vpop.f32.mrf.mxu0
        %v1283 = vadd.f32 0.0, %v1282
        %v1284 = vpop.f32.mrf.mxu0
        %1285 = vmatprep.mubr.f32.mxu0 0.0
        %1286 = vmatmul.mubr.f32.gmra.mxu0 %v1214
        %v1287 = vpop.f32.mrf.mxu0
        %v1288 = vadd.f32 0.0, %v1287
        %v1289 = vpop.f32.mrf.mxu0
        %1290 = vdwg.mxu0
        %v1292 = vsel %vm959, %v1117, 0
        %v1295 = vsel %vm959, %v1122, 0
        %1297 = vmatprep.subr.mxu0 0.0
        %1298 = vmatpush1.msra.mxu0 0.0
        %1299 = vmatprep.subr.mxu0 0.0
        %1300 = vmatpush1.msra.mxu0 0.0
        %1301 = vmatprep.subr.mxu0 0.0
        %1302 = vmatpush1.msra.mxu0 0.0
        %1303 = vmatprep.subr.mxu0 0.0
        %1304 = vmatpush1.msra.mxu0 0.0
        %1305 = vmatprep.subr.mxu0 0.0
        %1306 = vmatpush1.msra.mxu0 0.0
        %1307 = vmatprep.subr.mxu0 0.0
        %1308 = vmatpush1.msra.mxu0 0.0
        %1309 = vmatprep.subr.mxu0 0.0
        %1310 = vmatpush1.msra.mxu0 0.0
        %1311 = vmatprep.subr.mxu0 0.0
        %1312 = vmatpush1.msra.mxu0 0.0
        %1313 = vmatprep.subr.mxu0 0.0
        %1314 = vmatpush1.msra.mxu0 0.0
        %1315 = vmatprep.subr.mxu0 0.0
        %1316 = vmatpush1.msra.mxu0 0.0
        %1317 = vmatprep.subr.mxu0 0.0
        %1318 = vmatpush1.msra.mxu0 0.0
        %1319 = vmatprep.subr.mxu0 0.0
        %1320 = vmatpush1.msra.mxu0 0.0
        %1321 = vmatprep.subr.mxu0 0.0
        %1322 = vmatpush1.msra.mxu0 0.0
        %1323 = vmatprep.subr.mxu0 0.0
        %1324 = vmatpush1.msra.mxu0 0.0
        %1325 = vmatprep.subr.mxu0 0.0
        %1326 = vmatpush1.msra.mxu0 0.0
        %1327 = vmatprep.subr.mxu0 0.0
        %1328 = vmatpush1.msra.mxu0 %v1125
        %1329 = vmatprep.subr.mxu0 0.0
        %1330 = vmatpush2.msra.mxu0 0.0
        %1331 = vmatprep.subr.mxu0 0.0
        %1332 = vmatpush2.msra.mxu0 0.0
        %1333 = vmatprep.subr.mxu0 0.0
        %1334 = vmatpush2.msra.mxu0 0.0
        %1335 = vmatprep.subr.mxu0 0.0
        %1336 = vmatpush2.msra.mxu0 0.0
        %1337 = vmatprep.subr.mxu0 0.0
        %1338 = vmatpush2.msra.mxu0 0.0
        %1339 = vmatprep.subr.mxu0 0.0
        %1340 = vmatpush2.msra.mxu0 0.0
        %1341 = vmatprep.subr.mxu0 0.0
        %1342 = vmatpush2.msra.mxu0 0.0
        %1343 = vmatprep.subr.mxu0 0.0
        %1344 = vmatpush2.msra.mxu0 0.0
        %1345 = vmatprep.subr.mxu0 0.0
        %1346 = vmatpush2.msra.mxu0 0.0
        %1347 = vmatprep.subr.mxu0 0.0
        %1348 = vmatpush2.msra.mxu0 0.0
        %1349 = vmatprep.subr.mxu0 0.0
        %1350 = vmatpush2.msra.mxu0 0.0
        %1351 = vmatprep.subr.mxu0 0.0
        %1352 = vmatpush2.msra.mxu0 0.0
        %1353 = vmatprep.subr.mxu0 0.0
        %1354 = vmatpush2.msra.mxu0 0.0
        %1355 = vmatprep.subr.mxu0 0.0
        %1356 = vmatpush2.msra.mxu0 0.0
        %1357 = vmatprep.subr.mxu0 0.0
        %1358 = vmatpush2.msra.mxu0 0.0
        %1359 = vmatprep.subr.mxu0 0.0
        %1360 = vmatpush2.msra.mxu0 0.0
        %1361 = vmatprep.mubr.f32.mxu0 0.0
        %1362 = vmatmul.mubr.f32.gmra.mxu0 %v1292
        %v1363 = vpop.f32.mrf.mxu0
        %v1364 = vadd.f32 %v1283, %v1363
        %v1365 = vpop.f32.mrf.mxu0
        %1366 = vmatprep.mubr.f32.mxu0 0.0
        %1367 = vmatmul.mubr.f32.gmra.mxu0 %v1295
        %v1368 = vpop.f32.mrf.mxu0
        %v1369 = vadd.f32 %v1288, %v1368
        %v1370 = vpop.f32.mrf.mxu0
        %1371 = vdwg.mxu0
        %v1372 = vld [vmem:[%s1 + $0x20] sm:$0xff]
        %v1373 = vld [vmem:[%s1 + $0x28] sm:$0xff]
        %v1375 = vsel %vm1043, %v1372, 0
        %v1378 = vsel %vm1043, %v1373, 0
        %1380 = vmatprep.subr.mxu0 0.0
        %1381 = vmatpush1.msra.mxu0 0.0
        %1382 = vmatprep.subr.mxu0 0.0
        %1383 = vmatpush1.msra.mxu0 0.0
        %1384 = vmatprep.subr.mxu0 0.0
        %1385 = vmatpush1.msra.mxu0 0.0
        %1386 = vmatprep.subr.mxu0 0.0
        %1387 = vmatpush1.msra.mxu0 0.0
        %1388 = vmatprep.subr.mxu0 0.0
        %1389 = vmatpush1.msra.mxu0 0.0
        %1390 = vmatprep.subr.mxu0 0.0
        %1391 = vmatpush1.msra.mxu0 0.0
        %1392 = vmatprep.subr.mxu0 0.0
        %1393 = vmatpush1.msra.mxu0 0.0
        %1394 = vmatprep.subr.mxu0 0.0
        %1395 = vmatpush1.msra.mxu0 0.0
        %1396 = vmatprep.subr.mxu0 0.0
        %1397 = vmatpush1.msra.mxu0 0.0
        %1398 = vmatprep.subr.mxu0 0.0
        %1399 = vmatpush1.msra.mxu0 0.0
        %1400 = vmatprep.subr.mxu0 0.0
        %1401 = vmatpush1.msra.mxu0 0.0
        %1402 = vmatprep.subr.mxu0 0.0
        %1403 = vmatpush1.msra.mxu0 0.0
        %1404 = vmatprep.subr.mxu0 0.0
        %1405 = vmatpush1.msra.mxu0 0.0
        %1406 = vmatprep.subr.mxu0 0.0
        %1407 = vmatpush1.msra.mxu0 0.0
        %1408 = vmatprep.subr.mxu0 0.0
        %1409 = vmatpush1.msra.mxu0 %v932
        %1410 = vmatprep.subr.mxu0 0.0
        %1411 = vmatpush1.msra.mxu0 %v931
        %1412 = vmatprep.subr.mxu0 0.0
        %1413 = vmatpush2.msra.mxu0 0.0
        %1414 = vmatprep.subr.mxu0 0.0
        %1415 = vmatpush2.msra.mxu0 0.0
        %1416 = vmatprep.subr.mxu0 0.0
        %1417 = vmatpush2.msra.mxu0 0.0
        %1418 = vmatprep.subr.mxu0 0.0
        %1419 = vmatpush2.msra.mxu0 0.0
        %1420 = vmatprep.subr.mxu0 0.0
        %1421 = vmatpush2.msra.mxu0 0.0
        %1422 = vmatprep.subr.mxu0 0.0
        %1423 = vmatpush2.msra.mxu0 0.0
        %1424 = vmatprep.subr.mxu0 0.0
        %1425 = vmatpush2.msra.mxu0 0.0
        %1426 = vmatprep.subr.mxu0 0.0
        %1427 = vmatpush2.msra.mxu0 0.0
        %1428 = vmatprep.subr.mxu0 0.0
        %1429 = vmatpush2.msra.mxu0 0.0
        %1430 = vmatprep.subr.mxu0 0.0
        %1431 = vmatpush2.msra.mxu0 0.0
        %1432 = vmatprep.subr.mxu0 0.0
        %1433 = vmatpush2.msra.mxu0 0.0
        %1434 = vmatprep.subr.mxu0 0.0
        %1435 = vmatpush2.msra.mxu0 0.0
        %1436 = vmatprep.subr.mxu0 0.0
        %1437 = vmatpush2.msra.mxu0 0.0
        %1438 = vmatprep.subr.mxu0 0.0
        %1439 = vmatpush2.msra.mxu0 0.0
        %1440 = vmatprep.subr.mxu0 0.0
        %1441 = vmatpush2.msra.mxu0 0.0
        %1442 = vmatprep.subr.mxu0 0.0
        %1443 = vmatpush2.msra.mxu0 0.0
        %1444 = vmatprep.mubr.f32.mxu0 0.0
        %1445 = vmatmul.mubr.f32.gmra.mxu0 %v1375
        %v1446 = vpop.f32.mrf.mxu0
        %v1447 = vadd.f32 0.0, %v1446
        %v1448 = vpop.f32.mrf.mxu0
        %1449 = vmatprep.mubr.f32.mxu0 0.0
        %1450 = vmatmul.mubr.f32.gmra.mxu0 %v1378
        %v1451 = vpop.f32.mrf.mxu0
        %v1452 = vadd.f32 0.0, %v1451
        %v1453 = vpop.f32.mrf.mxu0
        %1454 = vdwg.mxu0
        %v1455 = vld [vmem:[#allocation7 + $0x10] sm:$0xff]
        %v1457 = vsel %vm959, %v1447, 0
        %v1460 = vsel %vm959, %v1452, 0
        %1462 = vmatprep.subr.mxu0 0.0
        %1463 = vmatpush1.msra.mxu0 0.0
        %1464 = vmatprep.subr.mxu0 0.0
        %1465 = vmatpush1.msra.mxu0 0.0
        %1466 = vmatprep.subr.mxu0 0.0
        %1467 = vmatpush1.msra.mxu0 0.0
        %1468 = vmatprep.subr.mxu0 0.0
        %1469 = vmatpush1.msra.mxu0 0.0
        %1470 = vmatprep.subr.mxu0 0.0
        %1471 = vmatpush1.msra.mxu0 0.0
        %1472 = vmatprep.subr.mxu0 0.0
        %1473 = vmatpush1.msra.mxu0 0.0
        %1474 = vmatprep.subr.mxu0 0.0
        %1475 = vmatpush1.msra.mxu0 0.0
        %1476 = vmatprep.subr.mxu0 0.0
        %1477 = vmatpush1.msra.mxu0 0.0
        %1478 = vmatprep.subr.mxu0 0.0
        %1479 = vmatpush1.msra.mxu0 0.0
        %1480 = vmatprep.subr.mxu0 0.0
        %1481 = vmatpush1.msra.mxu0 0.0
        %1482 = vmatprep.subr.mxu0 0.0
        %1483 = vmatpush1.msra.mxu0 0.0
        %1484 = vmatprep.subr.mxu0 0.0
        %1485 = vmatpush1.msra.mxu0 0.0
        %1486 = vmatprep.subr.mxu0 0.0
        %1487 = vmatpush1.msra.mxu0 0.0
        %1488 = vmatprep.subr.mxu0 0.0
        %1489 = vmatpush1.msra.mxu0 0.0
        %1490 = vmatprep.subr.mxu0 0.0
        %1491 = vmatpush1.msra.mxu0 0.0
        %1492 = vmatprep.subr.mxu0 0.0
        %1493 = vmatpush1.msra.mxu0 %v1455
        %1494 = vmatprep.subr.mxu0 0.0
        %1495 = vmatpush2.msra.mxu0 0.0
        %1496 = vmatprep.subr.mxu0 0.0
        %1497 = vmatpush2.msra.mxu0 0.0
        %1498 = vmatprep.subr.mxu0 0.0
        %1499 = vmatpush2.msra.mxu0 0.0
        %1500 = vmatprep.subr.mxu0 0.0
        %1501 = vmatpush2.msra.mxu0 0.0
        %1502 = vmatprep.subr.mxu0 0.0
        %1503 = vmatpush2.msra.mxu0 0.0
        %1504 = vmatprep.subr.mxu0 0.0
        %1505 = vmatpush2.msra.mxu0 0.0
        %1506 = vmatprep.subr.mxu0 0.0
        %1507 = vmatpush2.msra.mxu0 0.0
        %1508 = vmatprep.subr.mxu0 0.0
        %1509 = vmatpush2.msra.mxu0 0.0
        %1510 = vmatprep.subr.mxu0 0.0
        %1511 = vmatpush2.msra.mxu0 0.0
        %1512 = vmatprep.subr.mxu0 0.0
        %1513 = vmatpush2.msra.mxu0 0.0
        %1514 = vmatprep.subr.mxu0 0.0
        %1515 = vmatpush2.msra.mxu0 0.0
        %1516 = vmatprep.subr.mxu0 0.0
        %1517 = vmatpush2.msra.mxu0 0.0
        %1518 = vmatprep.subr.mxu0 0.0
        %1519 = vmatpush2.msra.mxu0 0.0
        %1520 = vmatprep.subr.mxu0 0.0
        %1521 = vmatpush2.msra.mxu0 0.0
        %1522 = vmatprep.subr.mxu0 0.0
        %1523 = vmatpush2.msra.mxu0 0.0
        %1524 = vmatprep.subr.mxu0 0.0
        %1525 = vmatpush2.msra.mxu0 0.0
        %1526 = vmatprep.mubr.f32.mxu0 0.0
        %1527 = vmatmul.mubr.f32.gmra.mxu0 %v1457
        %v1528 = vpop.f32.mrf.mxu0
        %v1529 = vadd.f32 0.0, %v1528
        %v1530 = vpop.f32.mrf.mxu0
        %1531 = vmatprep.mubr.f32.mxu0 0.0
        %1532 = vmatmul.mubr.f32.gmra.mxu0 %v1460
        %v1533 = vpop.f32.mrf.mxu0
        %v1534 = vadd.f32 0.0, %v1533
        %v1535 = vpop.f32.mrf.mxu0
        %1536 = vdwg.mxu0
        %v1537 = vadd.f32 %v1364, %v1529
        %v1538 = vadd.f32 %v1369, %v1534
        %v1539 = vld [vmem:[%s1 + $0x30] sm:$0xff]
        %v1540 = vld [vmem:[%s1 + $0x38] sm:$0xff]
        %v1542 = vsel %vm1043, %v1539, 0
        %v1545 = vsel %vm1043, %v1540, 0
        %1547 = vmatprep.subr.mxu0 0.0
        %1548 = vmatpush1.msra.mxu0 0.0
        %1549 = vmatprep.subr.mxu0 0.0
        %1550 = vmatpush1.msra.mxu0 0.0
        %1551 = vmatprep.subr.mxu0 0.0
        %1552 = vmatpush1.msra.mxu0 0.0
        %1553 = vmatprep.subr.mxu0 0.0
        %1554 = vmatpush1.msra.mxu0 0.0
        %1555 = vmatprep.subr.mxu0 0.0
        %1556 = vmatpush1.msra.mxu0 0.0
        %1557 = vmatprep.subr.mxu0 0.0
        %1558 = vmatpush1.msra.mxu0 0.0
        %1559 = vmatprep.subr.mxu0 0.0
        %1560 = vmatpush1.msra.mxu0 0.0
        %1561 = vmatprep.subr.mxu0 0.0
        %1562 = vmatpush1.msra.mxu0 0.0
        %1563 = vmatprep.subr.mxu0 0.0
        %1564 = vmatpush1.msra.mxu0 0.0
        %1565 = vmatprep.subr.mxu0 0.0
        %1566 = vmatpush1.msra.mxu0 0.0
        %1567 = vmatprep.subr.mxu0 0.0
        %1568 = vmatpush1.msra.mxu0 0.0
        %1569 = vmatprep.subr.mxu0 0.0
        %1570 = vmatpush1.msra.mxu0 0.0
        %1571 = vmatprep.subr.mxu0 0.0
        %1572 = vmatpush1.msra.mxu0 0.0
        %1573 = vmatprep.subr.mxu0 0.0
        %1574 = vmatpush1.msra.mxu0 0.0
        %1575 = vmatprep.subr.mxu0 0.0
        %1576 = vmatpush1.msra.mxu0 %v932
        %1577 = vmatprep.subr.mxu0 0.0
        %1578 = vmatpush1.msra.mxu0 %v931
        %1579 = vmatprep.subr.mxu0 0.0
        %1580 = vmatpush2.msra.mxu0 0.0
        %1581 = vmatprep.subr.mxu0 0.0
        %1582 = vmatpush2.msra.mxu0 0.0
        %1583 = vmatprep.subr.mxu0 0.0
        %1584 = vmatpush2.msra.mxu0 0.0
        %1585 = vmatprep.subr.mxu0 0.0
        %1586 = vmatpush2.msra.mxu0 0.0
        %1587 = vmatprep.subr.mxu0 0.0
        %1588 = vmatpush2.msra.mxu0 0.0
        %1589 = vmatprep.subr.mxu0 0.0
        %1590 = vmatpush2.msra.mxu0 0.0
        %1591 = vmatprep.subr.mxu0 0.0
        %1592 = vmatpush2.msra.mxu0 0.0
        %1593 = vmatprep.subr.mxu0 0.0
        %1594 = vmatpush2.msra.mxu0 0.0
        %1595 = vmatprep.subr.mxu0 0.0
        %1596 = vmatpush2.msra.mxu0 0.0
        %1597 = vmatprep.subr.mxu0 0.0
        %1598 = vmatpush2.msra.mxu0 0.0
        %1599 = vmatprep.subr.mxu0 0.0
        %1600 = vmatpush2.msra.mxu0 0.0
        %1601 = vmatprep.subr.mxu0 0.0
        %1602 = vmatpush2.msra.mxu0 0.0
        %1603 = vmatprep.subr.mxu0 0.0
        %1604 = vmatpush2.msra.mxu0 0.0
        %1605 = vmatprep.subr.mxu0 0.0
        %1606 = vmatpush2.msra.mxu0 0.0
        %1607 = vmatprep.subr.mxu0 0.0
        %1608 = vmatpush2.msra.mxu0 0.0
        %1609 = vmatprep.subr.mxu0 0.0
        %1610 = vmatpush2.msra.mxu0 0.0
        %1611 = vmatprep.mubr.f32.mxu0 0.0
        %1612 = vmatmul.mubr.f32.gmra.mxu0 %v1542
        %v1613 = vpop.f32.mrf.mxu0
        %v1614 = vadd.f32 0.0, %v1613
        %v1615 = vpop.f32.mrf.mxu0
        %1616 = vmatprep.mubr.f32.mxu0 0.0
        %1617 = vmatmul.mubr.f32.gmra.mxu0 %v1545
        %v1618 = vpop.f32.mrf.mxu0
        %v1619 = vadd.f32 0.0, %v1618
        %v1620 = vpop.f32.mrf.mxu0
        %1621 = vdwg.mxu0
        %v1622 = vld [vmem:[#allocation7 + $0x18] sm:$0xff]
        %v1624 = vsel %vm959, %v1614, 0
        %v1627 = vsel %vm959, %v1619, 0
        %1629 = vmatprep.subr.mxu0 0.0
        %1630 = vmatpush1.msra.mxu0 0.0
        %1631 = vmatprep.subr.mxu0 0.0
        %1632 = vmatpush1.msra.mxu0 0.0
        %1633 = vmatprep.subr.mxu0 0.0
        %1634 = vmatpush1.msra.mxu0 0.0
        %1635 = vmatprep.subr.mxu0 0.0
        %1636 = vmatpush1.msra.mxu0 0.0
        %1637 = vmatprep.subr.mxu0 0.0
        %1638 = vmatpush1.msra.mxu0 0.0
        %1639 = vmatprep.subr.mxu0 0.0
        %1640 = vmatpush1.msra.mxu0 0.0
        %1641 = vmatprep.subr.mxu0 0.0
        %1642 = vmatpush1.msra.mxu0 0.0
        %1643 = vmatprep.subr.mxu0 0.0
        %1644 = vmatpush1.msra.mxu0 0.0
        %1645 = vmatprep.subr.mxu0 0.0
        %1646 = vmatpush1.msra.mxu0 0.0
        %1647 = vmatprep.subr.mxu0 0.0
        %1648 = vmatpush1.msra.mxu0 0.0
        %1649 = vmatprep.subr.mxu0 0.0
        %1650 = vmatpush1.msra.mxu0 0.0
        %1651 = vmatprep.subr.mxu0 0.0
        %1652 = vmatpush1.msra.mxu0 0.0
        %1653 = vmatprep.subr.mxu0 0.0
        %1654 = vmatpush1.msra.mxu0 0.0
        %1655 = vmatprep.subr.mxu0 0.0
        %1656 = vmatpush1.msra.mxu0 0.0
        %1657 = vmatprep.subr.mxu0 0.0
        %1658 = vmatpush1.msra.mxu0 0.0
        %1659 = vmatprep.subr.mxu0 0.0
        %1660 = vmatpush1.msra.mxu0 %v1622
        %1661 = vmatprep.subr.mxu0 0.0
        %1662 = vmatpush2.msra.mxu0 0.0
        %1663 = vmatprep.subr.mxu0 0.0
        %1664 = vmatpush2.msra.mxu0 0.0
        %1665 = vmatprep.subr.mxu0 0.0
        %1666 = vmatpush2.msra.mxu0 0.0
        %1667 = vmatprep.subr.mxu0 0.0
        %1668 = vmatpush2.msra.mxu0 0.0
        %1669 = vmatprep.subr.mxu0 0.0
        %1670 = vmatpush2.msra.mxu0 0.0
        %1671 = vmatprep.subr.mxu0 0.0
        %1672 = vmatpush2.msra.mxu0 0.0
        %1673 = vmatprep.subr.mxu0 0.0
        %1674 = vmatpush2.msra.mxu0 0.0
        %1675 = vmatprep.subr.mxu0 0.0
        %1676 = vmatpush2.msra.mxu0 0.0
        %1677 = vmatprep.subr.mxu0 0.0
        %1678 = vmatpush2.msra.mxu0 0.0
        %1679 = vmatprep.subr.mxu0 0.0
        %1680 = vmatpush2.msra.mxu0 0.0
        %1681 = vmatprep.subr.mxu0 0.0
        %1682 = vmatpush2.msra.mxu0 0.0
        %1683 = vmatprep.subr.mxu0 0.0
        %1684 = vmatpush2.msra.mxu0 0.0
        %1685 = vmatprep.subr.mxu0 0.0
        %1686 = vmatpush2.msra.mxu0 0.0
        %1687 = vmatprep.subr.mxu0 0.0
        %1688 = vmatpush2.msra.mxu0 0.0
        %1689 = vmatprep.subr.mxu0 0.0
        %1690 = vmatpush2.msra.mxu0 0.0
        %1691 = vmatprep.subr.mxu0 0.0
        %1692 = vmatpush2.msra.mxu0 0.0
        %1693 = vmatprep.mubr.f32.mxu0 0.0
        %1694 = vmatmul.mubr.f32.gmra.mxu0 %v1624
        %v1695 = vpop.f32.mrf.mxu0
        %v1696 = vadd.f32 0.0, %v1695
        %v1697 = vpop.f32.mrf.mxu0
        %1698 = vmatprep.mubr.f32.mxu0 0.0
        %1699 = vmatmul.mubr.f32.gmra.mxu0 %v1627
        %v1700 = vpop.f32.mrf.mxu0
        %v1701 = vadd.f32 0.0, %v1700
        %v1702 = vpop.f32.mrf.mxu0
        %1703 = vdwg.mxu0
        %v1704 = vadd.f32 %v1537, %v1696
        %v1705 = vadd.f32 %v1538, %v1701
        %v1706 = vld [vmem:[%s1 + $0x40] sm:$0xff]
        %v1707 = vld [vmem:[%s1 + $0x48] sm:$0xff]
        %v1709 = vsel %vm1043, %v1706, 0
        %v1712 = vsel %vm1043, %v1707, 0
        %1714 = vmatprep.subr.mxu0 0.0
        %1715 = vmatpush1.msra.mxu0 0.0
        %1716 = vmatprep.subr.mxu0 0.0
        %1717 = vmatpush1.msra.mxu0 0.0
        %1718 = vmatprep.subr.mxu0 0.0
        %1719 = vmatpush1.msra.mxu0 0.0
        %1720 = vmatprep.subr.mxu0 0.0
        %1721 = vmatpush1.msra.mxu0 0.0
        %1722 = vmatprep.subr.mxu0 0.0
        %1723 = vmatpush1.msra.mxu0 0.0
        %1724 = vmatprep.subr.mxu0 0.0
        %1725 = vmatpush1.msra.mxu0 0.0
        %1726 = vmatprep.subr.mxu0 0.0
        %1727 = vmatpush1.msra.mxu0 0.0
        %1728 = vmatprep.subr.mxu0 0.0
        %1729 = vmatpush1.msra.mxu0 0.0
        %1730 = vmatprep.subr.mxu0 0.0
        %1731 = vmatpush1.msra.mxu0 0.0
        %1732 = vmatprep.subr.mxu0 0.0
        %1733 = vmatpush1.msra.mxu0 0.0
        %1734 = vmatprep.subr.mxu0 0.0
        %1735 = vmatpush1.msra.mxu0 0.0
        %1736 = vmatprep.subr.mxu0 0.0
        %1737 = vmatpush1.msra.mxu0 0.0
        %1738 = vmatprep.subr.mxu0 0.0
        %1739 = vmatpush1.msra.mxu0 0.0
        %1740 = vmatprep.subr.mxu0 0.0
        %1741 = vmatpush1.msra.mxu0 0.0
        %1742 = vmatprep.subr.mxu0 0.0
        %1743 = vmatpush1.msra.mxu0 %v932
        %1744 = vmatprep.subr.mxu0 0.0
        %1745 = vmatpush1.msra.mxu0 %v931
        %1746 = vmatprep.subr.mxu0 0.0
        %1747 = vmatpush2.msra.mxu0 0.0
        %1748 = vmatprep.subr.mxu0 0.0
        %1749 = vmatpush2.msra.mxu0 0.0
        %1750 = vmatprep.subr.mxu0 0.0
        %1751 = vmatpush2.msra.mxu0 0.0
        %1752 = vmatprep.subr.mxu0 0.0
        %1753 = vmatpush2.msra.mxu0 0.0
        %1754 = vmatprep.subr.mxu0 0.0
        %1755 = vmatpush2.msra.mxu0 0.0
        %1756 = vmatprep.subr.mxu0 0.0
        %1757 = vmatpush2.msra.mxu0 0.0
        %1758 = vmatprep.subr.mxu0 0.0
        %1759 = vmatpush2.msra.mxu0 0.0
        %1760 = vmatprep.subr.mxu0 0.0
        %1761 = vmatpush2.msra.mxu0 0.0
        %1762 = vmatprep.subr.mxu0 0.0
        %1763 = vmatpush2.msra.mxu0 0.0
        %1764 = vmatprep.subr.mxu0 0.0
        %1765 = vmatpush2.msra.mxu0 0.0
        %1766 = vmatprep.subr.mxu0 0.0
        %1767 = vmatpush2.msra.mxu0 0.0
        %1768 = vmatprep.subr.mxu0 0.0
        %1769 = vmatpush2.msra.mxu0 0.0
        %1770 = vmatprep.subr.mxu0 0.0
        %1771 = vmatpush2.msra.mxu0 0.0
        %1772 = vmatprep.subr.mxu0 0.0
        %1773 = vmatpush2.msra.mxu0 0.0
        %1774 = vmatprep.subr.mxu0 0.0
        %1775 = vmatpush2.msra.mxu0 0.0
        %1776 = vmatprep.subr.mxu0 0.0
        %1777 = vmatpush2.msra.mxu0 0.0
        %1778 = vmatprep.mubr.f32.mxu0 0.0
        %1779 = vmatmul.mubr.f32.gmra.mxu0 %v1709
        %v1780 = vpop.f32.mrf.mxu0
        %v1781 = vadd.f32 0.0, %v1780
        %v1782 = vpop.f32.mrf.mxu0
        %1783 = vmatprep.mubr.f32.mxu0 0.0
        %1784 = vmatmul.mubr.f32.gmra.mxu0 %v1712
        %v1785 = vpop.f32.mrf.mxu0
        %v1786 = vadd.f32 0.0, %v1785
        %v1787 = vpop.f32.mrf.mxu0
        %1788 = vdwg.mxu0
        %v1789 = vld [vmem:[#allocation7 + $0x20] sm:$0xff]
        %v1791 = vsel %vm959, %v1781, 0
        %v1794 = vsel %vm959, %v1786, 0
        %1796 = vmatprep.subr.mxu0 0.0
        %1797 = vmatpush1.msra.mxu0 0.0
        %1798 = vmatprep.subr.mxu0 0.0
        %1799 = vmatpush1.msra.mxu0 0.0
        %1800 = vmatprep.subr.mxu0 0.0
        %1801 = vmatpush1.msra.mxu0 0.0
        %1802 = vmatprep.subr.mxu0 0.0
        %1803 = vmatpush1.msra.mxu0 0.0
        %1804 = vmatprep.subr.mxu0 0.0
        %1805 = vmatpush1.msra.mxu0 0.0
        %1806 = vmatprep.subr.mxu0 0.0
        %1807 = vmatpush1.msra.mxu0 0.0
        %1808 = vmatprep.subr.mxu0 0.0
        %1809 = vmatpush1.msra.mxu0 0.0
        %1810 = vmatprep.subr.mxu0 0.0
        %1811 = vmatpush1.msra.mxu0 0.0
        %1812 = vmatprep.subr.mxu0 0.0
        %1813 = vmatpush1.msra.mxu0 0.0
        %1814 = vmatprep.subr.mxu0 0.0
        %1815 = vmatpush1.msra.mxu0 0.0
        %1816 = vmatprep.subr.mxu0 0.0
        %1817 = vmatpush1.msra.mxu0 0.0
        %1818 = vmatprep.subr.mxu0 0.0
        %1819 = vmatpush1.msra.mxu0 0.0
        %1820 = vmatprep.subr.mxu0 0.0
        %1821 = vmatpush1.msra.mxu0 0.0
        %1822 = vmatprep.subr.mxu0 0.0
        %1823 = vmatpush1.msra.mxu0 0.0
        %1824 = vmatprep.subr.mxu0 0.0
        %1825 = vmatpush1.msra.mxu0 0.0
        %1826 = vmatprep.subr.mxu0 0.0
        %1827 = vmatpush1.msra.mxu0 %v1789
        %1828 = vmatprep.subr.mxu0 0.0
        %1829 = vmatpush2.msra.mxu0 0.0
        %1830 = vmatprep.subr.mxu0 0.0
        %1831 = vmatpush2.msra.mxu0 0.0
        %1832 = vmatprep.subr.mxu0 0.0
        %1833 = vmatpush2.msra.mxu0 0.0
        %1834 = vmatprep.subr.mxu0 0.0
        %1835 = vmatpush2.msra.mxu0 0.0
        %1836 = vmatprep.subr.mxu0 0.0
        %1837 = vmatpush2.msra.mxu0 0.0
        %1838 = vmatprep.subr.mxu0 0.0
        %1839 = vmatpush2.msra.mxu0 0.0
        %1840 = vmatprep.subr.mxu0 0.0
        %1841 = vmatpush2.msra.mxu0 0.0
        %1842 = vmatprep.subr.mxu0 0.0
        %1843 = vmatpush2.msra.mxu0 0.0
        %1844 = vmatprep.subr.mxu0 0.0
        %1845 = vmatpush2.msra.mxu0 0.0
        %1846 = vmatprep.subr.mxu0 0.0
        %1847 = vmatpush2.msra.mxu0 0.0
        %1848 = vmatprep.subr.mxu0 0.0
        %1849 = vmatpush2.msra.mxu0 0.0
        %1850 = vmatprep.subr.mxu0 0.0
        %1851 = vmatpush2.msra.mxu0 0.0
        %1852 = vmatprep.subr.mxu0 0.0
        %1853 = vmatpush2.msra.mxu0 0.0
        %1854 = vmatprep.subr.mxu0 0.0
        %1855 = vmatpush2.msra.mxu0 0.0
        %1856 = vmatprep.subr.mxu0 0.0
        %1857 = vmatpush2.msra.mxu0 0.0
        %1858 = vmatprep.subr.mxu0 0.0
        %1859 = vmatpush2.msra.mxu0 0.0
        %1860 = vmatprep.mubr.f32.mxu0 0.0
        %1861 = vmatmul.mubr.f32.gmra.mxu0 %v1791
        %v1862 = vpop.f32.mrf.mxu0
        %v1863 = vadd.f32 0.0, %v1862
        %v1864 = vpop.f32.mrf.mxu0
        %1865 = vmatprep.mubr.f32.mxu0 0.0
        %1866 = vmatmul.mubr.f32.gmra.mxu0 %v1794
        %v1867 = vpop.f32.mrf.mxu0
        %v1868 = vadd.f32 0.0, %v1867
        %v1869 = vpop.f32.mrf.mxu0
        %1870 = vdwg.mxu0
        %v1871 = vadd.f32 %v1704, %v1863
        %v1872 = vadd.f32 %v1705, %v1868
        %v1873 = vld [vmem:[%s1 + $0x50] sm:$0xff]
        %v1874 = vld [vmem:[%s1 + $0x58] sm:$0xff]
        %v1876 = vsel %vm1043, %v1873, 0
        %v1879 = vsel %vm1043, %v1874, 0
        %1881 = vmatprep.subr.mxu0 0.0
        %1882 = vmatpush1.msra.mxu0 0.0
        %1883 = vmatprep.subr.mxu0 0.0
        %1884 = vmatpush1.msra.mxu0 0.0
        %1885 = vmatprep.subr.mxu0 0.0
        %1886 = vmatpush1.msra.mxu0 0.0
        %1887 = vmatprep.subr.mxu0 0.0
        %1888 = vmatpush1.msra.mxu0 0.0
        %1889 = vmatprep.subr.mxu0 0.0
        %1890 = vmatpush1.msra.mxu0 0.0
        %1891 = vmatprep.subr.mxu0 0.0
        %1892 = vmatpush1.msra.mxu0 0.0
        %1893 = vmatprep.subr.mxu0 0.0
        %1894 = vmatpush1.msra.mxu0 0.0
        %1895 = vmatprep.subr.mxu0 0.0
        %1896 = vmatpush1.msra.mxu0 0.0
        %1897 = vmatprep.subr.mxu0 0.0
        %1898 = vmatpush1.msra.mxu0 0.0
        %1899 = vmatprep.subr.mxu0 0.0
        %1900 = vmatpush1.msra.mxu0 0.0
        %1901 = vmatprep.subr.mxu0 0.0
        %1902 = vmatpush1.msra.mxu0 0.0
        %1903 = vmatprep.subr.mxu0 0.0
        %1904 = vmatpush1.msra.mxu0 0.0
        %1905 = vmatprep.subr.mxu0 0.0
        %1906 = vmatpush1.msra.mxu0 0.0
        %1907 = vmatprep.subr.mxu0 0.0
        %1908 = vmatpush1.msra.mxu0 0.0
        %1909 = vmatprep.subr.mxu0 0.0
        %1910 = vmatpush1.msra.mxu0 %v932
        %1911 = vmatprep.subr.mxu0 0.0
        %1912 = vmatpush1.msra.mxu0 %v931
        %1913 = vmatprep.subr.mxu0 0.0
        %1914 = vmatpush2.msra.mxu0 0.0
        %1915 = vmatprep.subr.mxu0 0.0
        %1916 = vmatpush2.msra.mxu0 0.0
        %1917 = vmatprep.subr.mxu0 0.0
        %1918 = vmatpush2.msra.mxu0 0.0
        %1919 = vmatprep.subr.mxu0 0.0
        %1920 = vmatpush2.msra.mxu0 0.0
        %1921 = vmatprep.subr.mxu0 0.0
        %1922 = vmatpush2.msra.mxu0 0.0
        %1923 = vmatprep.subr.mxu0 0.0
        %1924 = vmatpush2.msra.mxu0 0.0
        %1925 = vmatprep.subr.mxu0 0.0
        %1926 = vmatpush2.msra.mxu0 0.0
        %1927 = vmatprep.subr.mxu0 0.0
        %1928 = vmatpush2.msra.mxu0 0.0
        %1929 = vmatprep.subr.mxu0 0.0
        %1930 = vmatpush2.msra.mxu0 0.0
        %1931 = vmatprep.subr.mxu0 0.0
        %1932 = vmatpush2.msra.mxu0 0.0
        %1933 = vmatprep.subr.mxu0 0.0
        %1934 = vmatpush2.msra.mxu0 0.0
        %1935 = vmatprep.subr.mxu0 0.0
        %1936 = vmatpush2.msra.mxu0 0.0
        %1937 = vmatprep.subr.mxu0 0.0
        %1938 = vmatpush2.msra.mxu0 0.0
        %1939 = vmatprep.subr.mxu0 0.0
        %1940 = vmatpush2.msra.mxu0 0.0
        %1941 = vmatprep.subr.mxu0 0.0
        %1942 = vmatpush2.msra.mxu0 0.0
        %1943 = vmatprep.subr.mxu0 0.0
        %1944 = vmatpush2.msra.mxu0 0.0
        %1945 = vmatprep.mubr.f32.mxu0 0.0
        %1946 = vmatmul.mubr.f32.gmra.mxu0 %v1876
        %v1947 = vpop.f32.mrf.mxu0
        %v1948 = vadd.f32 0.0, %v1947
        %v1949 = vpop.f32.mrf.mxu0
        %1950 = vmatprep.mubr.f32.mxu0 0.0
        %1951 = vmatmul.mubr.f32.gmra.mxu0 %v1879
        %v1952 = vpop.f32.mrf.mxu0
        %v1953 = vadd.f32 0.0, %v1952
        %v1954 = vpop.f32.mrf.mxu0
        %1955 = vdwg.mxu0
        %v1956 = vld [vmem:[#allocation7 + $0x28] sm:$0xff]
        %v1958 = vsel %vm959, %v1948, 0
        %v1961 = vsel %vm959, %v1953, 0
        %1963 = vmatprep.subr.mxu0 0.0
        %1964 = vmatpush1.msra.mxu0 0.0
        %1965 = vmatprep.subr.mxu0 0.0
        %1966 = vmatpush1.msra.mxu0 0.0
        %1967 = vmatprep.subr.mxu0 0.0
        %1968 = vmatpush1.msra.mxu0 0.0
        %1969 = vmatprep.subr.mxu0 0.0
        %1970 = vmatpush1.msra.mxu0 0.0
        %1971 = vmatprep.subr.mxu0 0.0
        %1972 = vmatpush1.msra.mxu0 0.0
        %1973 = vmatprep.subr.mxu0 0.0
        %1974 = vmatpush1.msra.mxu0 0.0
        %1975 = vmatprep.subr.mxu0 0.0
        %1976 = vmatpush1.msra.mxu0 0.0
        %1977 = vmatprep.subr.mxu0 0.0
        %1978 = vmatpush1.msra.mxu0 0.0
        %1979 = vmatprep.subr.mxu0 0.0
        %1980 = vmatpush1.msra.mxu0 0.0
        %1981 = vmatprep.subr.mxu0 0.0
        %1982 = vmatpush1.msra.mxu0 0.0
        %1983 = vmatprep.subr.mxu0 0.0
        %1984 = vmatpush1.msra.mxu0 0.0
        %1985 = vmatprep.subr.mxu0 0.0
        %1986 = vmatpush1.msra.mxu0 0.0
        %1987 = vmatprep.subr.mxu0 0.0
        %1988 = vmatpush1.msra.mxu0 0.0
        %1989 = vmatprep.subr.mxu0 0.0
        %1990 = vmatpush1.msra.mxu0 0.0
        %1991 = vmatprep.subr.mxu0 0.0
        %1992 = vmatpush1.msra.mxu0 0.0
        %1993 = vmatprep.subr.mxu0 0.0
        %1994 = vmatpush1.msra.mxu0 %v1956
        %1995 = vmatprep.subr.mxu0 0.0
        %1996 = vmatpush2.msra.mxu0 0.0
        %1997 = vmatprep.subr.mxu0 0.0
        %1998 = vmatpush2.msra.mxu0 0.0
        %1999 = vmatprep.subr.mxu0 0.0
        %2000 = vmatpush2.msra.mxu0 0.0
        %2001 = vmatprep.subr.mxu0 0.0
        %2002 = vmatpush2.msra.mxu0 0.0
        %2003 = vmatprep.subr.mxu0 0.0
        %2004 = vmatpush2.msra.mxu0 0.0
        %2005 = vmatprep.subr.mxu0 0.0
        %2006 = vmatpush2.msra.mxu0 0.0
        %2007 = vmatprep.subr.mxu0 0.0
        %2008 = vmatpush2.msra.mxu0 0.0
        %2009 = vmatprep.subr.mxu0 0.0
        %2010 = vmatpush2.msra.mxu0 0.0
        %2011 = vmatprep.subr.mxu0 0.0
        %2012 = vmatpush2.msra.mxu0 0.0
        %2013 = vmatprep.subr.mxu0 0.0
        %2014 = vmatpush2.msra.mxu0 0.0
        %2015 = vmatprep.subr.mxu0 0.0
        %2016 = vmatpush2.msra.mxu0 0.0
        %2017 = vmatprep.subr.mxu0 0.0
        %2018 = vmatpush2.msra.mxu0 0.0
        %2019 = vmatprep.subr.mxu0 0.0
        %2020 = vmatpush2.msra.mxu0 0.0
        %2021 = vmatprep.subr.mxu0 0.0
        %2022 = vmatpush2.msra.mxu0 0.0
        %2023 = vmatprep.subr.mxu0 0.0
        %2024 = vmatpush2.msra.mxu0 0.0
        %2025 = vmatprep.subr.mxu0 0.0
        %2026 = vmatpush2.msra.mxu0 0.0
        %2027 = vmatprep.mubr.f32.mxu0 0.0
        %2028 = vmatmul.mubr.f32.gmra.mxu0 %v1958
        %v2029 = vpop.f32.mrf.mxu0
        %v2030 = vadd.f32 0.0, %v2029
        %v2031 = vpop.f32.mrf.mxu0
        %2032 = vmatprep.mubr.f32.mxu0 0.0
        %2033 = vmatmul.mubr.f32.gmra.mxu0 %v1961
        %v2034 = vpop.f32.mrf.mxu0
        %v2035 = vadd.f32 0.0, %v2034
        %v2036 = vpop.f32.mrf.mxu0
        %2037 = vdwg.mxu0
        %v2038 = vadd.f32 %v1871, %v2030
        %v2039 = vadd.f32 %v1872, %v2035
        %v2040 = vld [vmem:[%s1 + $0x60] sm:$0xff]
        %v2041 = vld [vmem:[%s1 + $0x68] sm:$0xff]
        %v2043 = vsel %vm1043, %v2040, 0
        %v2046 = vsel %vm1043, %v2041, 0
        %2048 = vmatprep.subr.mxu0 0.0
        %2049 = vmatpush1.msra.mxu0 0.0
        %2050 = vmatprep.subr.mxu0 0.0
        %2051 = vmatpush1.msra.mxu0 0.0
        %2052 = vmatprep.subr.mxu0 0.0
        %2053 = vmatpush1.msra.mxu0 0.0
        %2054 = vmatprep.subr.mxu0 0.0
        %2055 = vmatpush1.msra.mxu0 0.0
        %2056 = vmatprep.subr.mxu0 0.0
        %2057 = vmatpush1.msra.mxu0 0.0
        %2058 = vmatprep.subr.mxu0 0.0
        %2059 = vmatpush1.msra.mxu0 0.0
        %2060 = vmatprep.subr.mxu0 0.0
        %2061 = vmatpush1.msra.mxu0 0.0
        %2062 = vmatprep.subr.mxu0 0.0
        %2063 = vmatpush1.msra.mxu0 0.0
        %2064 = vmatprep.subr.mxu0 0.0
        %2065 = vmatpush1.msra.mxu0 0.0
        %2066 = vmatprep.subr.mxu0 0.0
        %2067 = vmatpush1.msra.mxu0 0.0
        %2068 = vmatprep.subr.mxu0 0.0
        %2069 = vmatpush1.msra.mxu0 0.0
        %2070 = vmatprep.subr.mxu0 0.0
        %2071 = vmatpush1.msra.mxu0 0.0
        %2072 = vmatprep.subr.mxu0 0.0
        %2073 = vmatpush1.msra.mxu0 0.0
        %2074 = vmatprep.subr.mxu0 0.0
        %2075 = vmatpush1.msra.mxu0 0.0
        %2076 = vmatprep.subr.mxu0 0.0
        %2077 = vmatpush1.msra.mxu0 %v932
        %2078 = vmatprep.subr.mxu0 0.0
        %2079 = vmatpush1.msra.mxu0 %v931
        %2080 = vmatprep.subr.mxu0 0.0
        %2081 = vmatpush2.msra.mxu0 0.0
        %2082 = vmatprep.subr.mxu0 0.0
        %2083 = vmatpush2.msra.mxu0 0.0
        %2084 = vmatprep.subr.mxu0 0.0
        %2085 = vmatpush2.msra.mxu0 0.0
        %2086 = vmatprep.subr.mxu0 0.0
        %2087 = vmatpush2.msra.mxu0 0.0
        %2088 = vmatprep.subr.mxu0 0.0
        %2089 = vmatpush2.msra.mxu0 0.0
        %2090 = vmatprep.subr.mxu0 0.0
        %2091 = vmatpush2.msra.mxu0 0.0
        %2092 = vmatprep.subr.mxu0 0.0
        %2093 = vmatpush2.msra.mxu0 0.0
        %2094 = vmatprep.subr.mxu0 0.0
        %2095 = vmatpush2.msra.mxu0 0.0
        %2096 = vmatprep.subr.mxu0 0.0
        %2097 = vmatpush2.msra.mxu0 0.0
        %2098 = vmatprep.subr.mxu0 0.0
        %2099 = vmatpush2.msra.mxu0 0.0
        %2100 = vmatprep.subr.mxu0 0.0
        %2101 = vmatpush2.msra.mxu0 0.0
        %2102 = vmatprep.subr.mxu0 0.0
        %2103 = vmatpush2.msra.mxu0 0.0
        %2104 = vmatprep.subr.mxu0 0.0
        %2105 = vmatpush2.msra.mxu0 0.0
        %2106 = vmatprep.subr.mxu0 0.0
        %2107 = vmatpush2.msra.mxu0 0.0
        %2108 = vmatprep.subr.mxu0 0.0
        %2109 = vmatpush2.msra.mxu0 0.0
        %2110 = vmatprep.subr.mxu0 0.0
        %2111 = vmatpush2.msra.mxu0 0.0
        %2112 = vmatprep.mubr.f32.mxu0 0.0
        %2113 = vmatmul.mubr.f32.gmra.mxu0 %v2043
        %v2114 = vpop.f32.mrf.mxu0
        %v2115 = vadd.f32 0.0, %v2114
        %v2116 = vpop.f32.mrf.mxu0
        %2117 = vmatprep.mubr.f32.mxu0 0.0
        %2118 = vmatmul.mubr.f32.gmra.mxu0 %v2046
        %v2119 = vpop.f32.mrf.mxu0
        %v2120 = vadd.f32 0.0, %v2119
        %v2121 = vpop.f32.mrf.mxu0
        %2122 = vdwg.mxu0
        %v2123 = vld [vmem:[#allocation7 + $0x30] sm:$0xff]
        %v2125 = vsel %vm959, %v2115, 0
        %v2128 = vsel %vm959, %v2120, 0
        %2130 = vmatprep.subr.mxu0 0.0
        %2131 = vmatpush1.msra.mxu0 0.0
        %2132 = vmatprep.subr.mxu0 0.0
        %2133 = vmatpush1.msra.mxu0 0.0
        %2134 = vmatprep.subr.mxu0 0.0
        %2135 = vmatpush1.msra.mxu0 0.0
        %2136 = vmatprep.subr.mxu0 0.0
        %2137 = vmatpush1.msra.mxu0 0.0
        %2138 = vmatprep.subr.mxu0 0.0
        %2139 = vmatpush1.msra.mxu0 0.0
        %2140 = vmatprep.subr.mxu0 0.0
        %2141 = vmatpush1.msra.mxu0 0.0
        %2142 = vmatprep.subr.mxu0 0.0
        %2143 = vmatpush1.msra.mxu0 0.0
        %2144 = vmatprep.subr.mxu0 0.0
        %2145 = vmatpush1.msra.mxu0 0.0
        %2146 = vmatprep.subr.mxu0 0.0
        %2147 = vmatpush1.msra.mxu0 0.0
        %2148 = vmatprep.subr.mxu0 0.0
        %2149 = vmatpush1.msra.mxu0 0.0
        %2150 = vmatprep.subr.mxu0 0.0
        %2151 = vmatpush1.msra.mxu0 0.0
        %2152 = vmatprep.subr.mxu0 0.0
        %2153 = vmatpush1.msra.mxu0 0.0
        %2154 = vmatprep.subr.mxu0 0.0
        %2155 = vmatpush1.msra.mxu0 0.0
        %2156 = vmatprep.subr.mxu0 0.0
        %2157 = vmatpush1.msra.mxu0 0.0
        %2158 = vmatprep.subr.mxu0 0.0
        %2159 = vmatpush1.msra.mxu0 0.0
        %2160 = vmatprep.subr.mxu0 0.0
        %2161 = vmatpush1.msra.mxu0 %v2123
        %2162 = vmatprep.subr.mxu0 0.0
        %2163 = vmatpush2.msra.mxu0 0.0
        %2164 = vmatprep.subr.mxu0 0.0
        %2165 = vmatpush2.msra.mxu0 0.0
        %2166 = vmatprep.subr.mxu0 0.0
        %2167 = vmatpush2.msra.mxu0 0.0
        %2168 = vmatprep.subr.mxu0 0.0
        %2169 = vmatpush2.msra.mxu0 0.0
        %2170 = vmatprep.subr.mxu0 0.0
        %2171 = vmatpush2.msra.mxu0 0.0
        %2172 = vmatprep.subr.mxu0 0.0
        %2173 = vmatpush2.msra.mxu0 0.0
        %2174 = vmatprep.subr.mxu0 0.0
        %2175 = vmatpush2.msra.mxu0 0.0
        %2176 = vmatprep.subr.mxu0 0.0
        %2177 = vmatpush2.msra.mxu0 0.0
        %2178 = vmatprep.subr.mxu0 0.0
        %2179 = vmatpush2.msra.mxu0 0.0
        %2180 = vmatprep.subr.mxu0 0.0
        %2181 = vmatpush2.msra.mxu0 0.0
        %2182 = vmatprep.subr.mxu0 0.0
        %2183 = vmatpush2.msra.mxu0 0.0
        %2184 = vmatprep.subr.mxu0 0.0
        %2185 = vmatpush2.msra.mxu0 0.0
        %2186 = vmatprep.subr.mxu0 0.0
        %2187 = vmatpush2.msra.mxu0 0.0
        %2188 = vmatprep.subr.mxu0 0.0
        %2189 = vmatpush2.msra.mxu0 0.0
        %2190 = vmatprep.subr.mxu0 0.0
        %2191 = vmatpush2.msra.mxu0 0.0
        %2192 = vmatprep.subr.mxu0 0.0
        %2193 = vmatpush2.msra.mxu0 0.0
        %2194 = vmatprep.mubr.f32.mxu0 0.0
        %2195 = vmatmul.mubr.f32.gmra.mxu0 %v2125
        %v2196 = vpop.f32.mrf.mxu0
        %v2197 = vadd.f32 0.0, %v2196
        %v2198 = vpop.f32.mrf.mxu0
        %2199 = vmatprep.mubr.f32.mxu0 0.0
        %2200 = vmatmul.mubr.f32.gmra.mxu0 %v2128
        %v2201 = vpop.f32.mrf.mxu0
        %v2202 = vadd.f32 0.0, %v2201
        %v2203 = vpop.f32.mrf.mxu0
        %2204 = vdwg.mxu0
        %v2205 = vadd.f32 %v2038, %v2197
        %v2206 = vadd.f32 %v2039, %v2202
        %v2207 = vld [vmem:[%s1 + $0x70] sm:$0xff]
        %v2208 = vld [vmem:[%s1 + $0x78] sm:$0xff]
        %v2210 = vsel %vm1043, %v2207, 0
        %v2213 = vsel %vm1043, %v2208, 0
        %2215 = vmatprep.subr.mxu0 0.0
        %2216 = vmatpush1.msra.mxu0 0.0
        %2217 = vmatprep.subr.mxu0 0.0
        %2218 = vmatpush1.msra.mxu0 0.0
        %2219 = vmatprep.subr.mxu0 0.0
        %2220 = vmatpush1.msra.mxu0 0.0
        %2221 = vmatprep.subr.mxu0 0.0
        %2222 = vmatpush1.msra.mxu0 0.0
        %2223 = vmatprep.subr.mxu0 0.0
        %2224 = vmatpush1.msra.mxu0 0.0
        %2225 = vmatprep.subr.mxu0 0.0
        %2226 = vmatpush1.msra.mxu0 0.0
        %2227 = vmatprep.subr.mxu0 0.0
        %2228 = vmatpush1.msra.mxu0 0.0
        %2229 = vmatprep.subr.mxu0 0.0
        %2230 = vmatpush1.msra.mxu0 0.0
        %2231 = vmatprep.subr.mxu0 0.0
        %2232 = vmatpush1.msra.mxu0 0.0
        %2233 = vmatprep.subr.mxu0 0.0
        %2234 = vmatpush1.msra.mxu0 0.0
        %2235 = vmatprep.subr.mxu0 0.0
        %2236 = vmatpush1.msra.mxu0 0.0
        %2237 = vmatprep.subr.mxu0 0.0
        %2238 = vmatpush1.msra.mxu0 0.0
        %2239 = vmatprep.subr.mxu0 0.0
        %2240 = vmatpush1.msra.mxu0 0.0
        %2241 = vmatprep.subr.mxu0 0.0
        %2242 = vmatpush1.msra.mxu0 0.0
        %2243 = vmatprep.subr.mxu0 0.0
        %2244 = vmatpush1.msra.mxu0 %v932
        %2245 = vmatprep.subr.mxu0 0.0
        %2246 = vmatpush1.msra.mxu0 %v931
        %2247 = vmatprep.subr.mxu0 0.0
        %2248 = vmatpush2.msra.mxu0 0.0
        %2249 = vmatprep.subr.mxu0 0.0
        %2250 = vmatpush2.msra.mxu0 0.0
        %2251 = vmatprep.subr.mxu0 0.0
        %2252 = vmatpush2.msra.mxu0 0.0
        %2253 = vmatprep.subr.mxu0 0.0
        %2254 = vmatpush2.msra.mxu0 0.0
        %2255 = vmatprep.subr.mxu0 0.0
        %2256 = vmatpush2.msra.mxu0 0.0
        %2257 = vmatprep.subr.mxu0 0.0
        %2258 = vmatpush2.msra.mxu0 0.0
        %2259 = vmatprep.subr.mxu0 0.0
        %2260 = vmatpush2.msra.mxu0 0.0
        %2261 = vmatprep.subr.mxu0 0.0
        %2262 = vmatpush2.msra.mxu0 0.0
        %2263 = vmatprep.subr.mxu0 0.0
        %2264 = vmatpush2.msra.mxu0 0.0
        %2265 = vmatprep.subr.mxu0 0.0
        %2266 = vmatpush2.msra.mxu0 0.0
        %2267 = vmatprep.subr.mxu0 0.0
        %2268 = vmatpush2.msra.mxu0 0.0
        %2269 = vmatprep.subr.mxu0 0.0
        %2270 = vmatpush2.msra.mxu0 0.0
        %2271 = vmatprep.subr.mxu0 0.0
        %2272 = vmatpush2.msra.mxu0 0.0
        %2273 = vmatprep.subr.mxu0 0.0
        %2274 = vmatpush2.msra.mxu0 0.0
        %2275 = vmatprep.subr.mxu0 0.0
        %2276 = vmatpush2.msra.mxu0 0.0
        %2277 = vmatprep.subr.mxu0 0.0
        %2278 = vmatpush2.msra.mxu0 0.0
        %2279 = vmatprep.mubr.f32.mxu0 0.0
        %2280 = vmatmul.mubr.f32.gmra.mxu0 %v2210
        %v2281 = vpop.f32.mrf.mxu0
        %v2282 = vadd.f32 0.0, %v2281
        %v2283 = vpop.f32.mrf.mxu0
        %2284 = vmatprep.mubr.f32.mxu0 0.0
        %2285 = vmatmul.mubr.f32.gmra.mxu0 %v2213
        %v2286 = vpop.f32.mrf.mxu0
        %v2287 = vadd.f32 0.0, %v2286
        %v2288 = vpop.f32.mrf.mxu0
        %2289 = vdwg.mxu0
        %v2290 = vld [vmem:[#allocation7 + $0x38] sm:$0xff]
        %v2292 = vsel %vm959, %v2282, 0
        %v2295 = vsel %vm959, %v2287, 0
        %2297 = vmatprep.subr.mxu0 0.0
        %2298 = vmatpush1.msra.mxu0 0.0
        %2299 = vmatprep.subr.mxu0 0.0
        %2300 = vmatpush1.msra.mxu0 0.0
        %2301 = vmatprep.subr.mxu0 0.0
        %2302 = vmatpush1.msra.mxu0 0.0
        %2303 = vmatprep.subr.mxu0 0.0
        %2304 = vmatpush1.msra.mxu0 0.0
        %2305 = vmatprep.subr.mxu0 0.0
        %2306 = vmatpush1.msra.mxu0 0.0
        %2307 = vmatprep.subr.mxu0 0.0
        %2308 = vmatpush1.msra.mxu0 0.0
        %2309 = vmatprep.subr.mxu0 0.0
        %2310 = vmatpush1.msra.mxu0 0.0
        %2311 = vmatprep.subr.mxu0 0.0
        %2312 = vmatpush1.msra.mxu0 0.0
        %2313 = vmatprep.subr.mxu0 0.0
        %2314 = vmatpush1.msra.mxu0 0.0
        %2315 = vmatprep.subr.mxu0 0.0
        %2316 = vmatpush1.msra.mxu0 0.0
        %2317 = vmatprep.subr.mxu0 0.0
        %2318 = vmatpush1.msra.mxu0 0.0
        %2319 = vmatprep.subr.mxu0 0.0
        %2320 = vmatpush1.msra.mxu0 0.0
        %2321 = vmatprep.subr.mxu0 0.0
        %2322 = vmatpush1.msra.mxu0 0.0
        %2323 = vmatprep.subr.mxu0 0.0
        %2324 = vmatpush1.msra.mxu0 0.0
        %2325 = vmatprep.subr.mxu0 0.0
        %2326 = vmatpush1.msra.mxu0 0.0
        %2327 = vmatprep.subr.mxu0 0.0
        %2328 = vmatpush1.msra.mxu0 %v2290
        %2329 = vmatprep.subr.mxu0 0.0
        %2330 = vmatpush2.msra.mxu0 0.0
        %2331 = vmatprep.subr.mxu0 0.0
        %2332 = vmatpush2.msra.mxu0 0.0
        %2333 = vmatprep.subr.mxu0 0.0
        %2334 = vmatpush2.msra.mxu0 0.0
        %2335 = vmatprep.subr.mxu0 0.0
        %2336 = vmatpush2.msra.mxu0 0.0
        %2337 = vmatprep.subr.mxu0 0.0
        %2338 = vmatpush2.msra.mxu0 0.0
        %2339 = vmatprep.subr.mxu0 0.0
        %2340 = vmatpush2.msra.mxu0 0.0
        %2341 = vmatprep.subr.mxu0 0.0
        %2342 = vmatpush2.msra.mxu0 0.0
        %2343 = vmatprep.subr.mxu0 0.0
        %2344 = vmatpush2.msra.mxu0 0.0
        %2345 = vmatprep.subr.mxu0 0.0
        %2346 = vmatpush2.msra.mxu0 0.0
        %2347 = vmatprep.subr.mxu0 0.0
        %2348 = vmatpush2.msra.mxu0 0.0
        %2349 = vmatprep.subr.mxu0 0.0
        %2350 = vmatpush2.msra.mxu0 0.0
        %2351 = vmatprep.subr.mxu0 0.0
        %2352 = vmatpush2.msra.mxu0 0.0
        %2353 = vmatprep.subr.mxu0 0.0
        %2354 = vmatpush2.msra.mxu0 0.0
        %2355 = vmatprep.subr.mxu0 0.0
        %2356 = vmatpush2.msra.mxu0 0.0
        %2357 = vmatprep.subr.mxu0 0.0
        %2358 = vmatpush2.msra.mxu0 0.0
        %2359 = vmatprep.subr.mxu0 0.0
        %2360 = vmatpush2.msra.mxu0 0.0
        %2361 = vmatprep.mubr.f32.mxu0 0.0
        %2362 = vmatmul.mubr.f32.gmra.mxu0 %v2292
        %v2363 = vpop.f32.mrf.mxu0
        %v2364 = vadd.f32 0.0, %v2363
        %v2365 = vpop.f32.mrf.mxu0
        %2366 = vmatprep.mubr.f32.mxu0 0.0
        %2367 = vmatmul.mubr.f32.gmra.mxu0 %v2295
        %v2368 = vpop.f32.mrf.mxu0
        %v2369 = vadd.f32 0.0, %v2368
        %v2370 = vpop.f32.mrf.mxu0
        %2371 = vdwg.mxu0
        %v2372 = vadd.f32 %v2205, %v2364
        %v2373 = vadd.f32 %v2206, %v2369
        %v2374 = vld [vmem:[%s1 + $0x80] sm:$0xff]
        %v2375 = vld [vmem:[%s1 + $0x88] sm:$0xff]
        %v2377 = vsel %vm1043, %v2374, 0
        %v2380 = vsel %vm1043, %v2375, 0
        %2382 = vmatprep.subr.mxu0 0.0
        %2383 = vmatpush1.msra.mxu0 0.0
        %2384 = vmatprep.subr.mxu0 0.0
        %2385 = vmatpush1.msra.mxu0 0.0
        %2386 = vmatprep.subr.mxu0 0.0
        %2387 = vmatpush1.msra.mxu0 0.0
        %2388 = vmatprep.subr.mxu0 0.0
        %2389 = vmatpush1.msra.mxu0 0.0
        %2390 = vmatprep.subr.mxu0 0.0
        %2391 = vmatpush1.msra.mxu0 0.0
        %2392 = vmatprep.subr.mxu0 0.0
        %2393 = vmatpush1.msra.mxu0 0.0
        %2394 = vmatprep.subr.mxu0 0.0
        %2395 = vmatpush1.msra.mxu0 0.0
        %2396 = vmatprep.subr.mxu0 0.0
        %2397 = vmatpush1.msra.mxu0 0.0
        %2398 = vmatprep.subr.mxu0 0.0
        %2399 = vmatpush1.msra.mxu0 0.0
        %2400 = vmatprep.subr.mxu0 0.0
        %2401 = vmatpush1.msra.mxu0 0.0
        %2402 = vmatprep.subr.mxu0 0.0
        %2403 = vmatpush1.msra.mxu0 0.0
        %2404 = vmatprep.subr.mxu0 0.0
        %2405 = vmatpush1.msra.mxu0 0.0
        %2406 = vmatprep.subr.mxu0 0.0
        %2407 = vmatpush1.msra.mxu0 0.0
        %2408 = vmatprep.subr.mxu0 0.0
        %2409 = vmatpush1.msra.mxu0 0.0
        %2410 = vmatprep.subr.mxu0 0.0
        %2411 = vmatpush1.msra.mxu0 %v932
        %2412 = vmatprep.subr.mxu0 0.0
        %2413 = vmatpush1.msra.mxu0 %v931
        %2414 = vmatprep.subr.mxu0 0.0
        %2415 = vmatpush2.msra.mxu0 0.0
        %2416 = vmatprep.subr.mxu0 0.0
        %2417 = vmatpush2.msra.mxu0 0.0
        %2418 = vmatprep.subr.mxu0 0.0
        %2419 = vmatpush2.msra.mxu0 0.0
        %2420 = vmatprep.subr.mxu0 0.0
        %2421 = vmatpush2.msra.mxu0 0.0
        %2422 = vmatprep.subr.mxu0 0.0
        %2423 = vmatpush2.msra.mxu0 0.0
        %2424 = vmatprep.subr.mxu0 0.0
        %2425 = vmatpush2.msra.mxu0 0.0
        %2426 = vmatprep.subr.mxu0 0.0
        %2427 = vmatpush2.msra.mxu0 0.0
        %2428 = vmatprep.subr.mxu0 0.0
        %2429 = vmatpush2.msra.mxu0 0.0
        %2430 = vmatprep.subr.mxu0 0.0
        %2431 = vmatpush2.msra.mxu0 0.0
        %2432 = vmatprep.subr.mxu0 0.0
        %2433 = vmatpush2.msra.mxu0 0.0
        %2434 = vmatprep.subr.mxu0 0.0
        %2435 = vmatpush2.msra.mxu0 0.0
        %2436 = vmatprep.subr.mxu0 0.0
        %2437 = vmatpush2.msra.mxu0 0.0
        %2438 = vmatprep.subr.mxu0 0.0
        %2439 = vmatpush2.msra.mxu0 0.0
        %2440 = vmatprep.subr.mxu0 0.0
        %2441 = vmatpush2.msra.mxu0 0.0
        %2442 = vmatprep.subr.mxu0 0.0
        %2443 = vmatpush2.msra.mxu0 0.0
        %2444 = vmatprep.subr.mxu0 0.0
        %2445 = vmatpush2.msra.mxu0 0.0
        %2446 = vmatprep.mubr.f32.mxu0 0.0
        %2447 = vmatmul.mubr.f32.gmra.mxu0 %v2377
        %v2448 = vpop.f32.mrf.mxu0
        %v2449 = vadd.f32 0.0, %v2448
        %v2450 = vpop.f32.mrf.mxu0
        %2451 = vmatprep.mubr.f32.mxu0 0.0
        %2452 = vmatmul.mubr.f32.gmra.mxu0 %v2380
        %v2453 = vpop.f32.mrf.mxu0
        %v2454 = vadd.f32 0.0, %v2453
        %v2455 = vpop.f32.mrf.mxu0
        %2456 = vdwg.mxu0
        %v2457 = vld [vmem:[#allocation7 + $0x40] sm:$0xff]
        %v2459 = vsel %vm959, %v2449, 0
        %v2462 = vsel %vm959, %v2454, 0
        %2464 = vmatprep.subr.mxu0 0.0
        %2465 = vmatpush1.msra.mxu0 0.0
        %2466 = vmatprep.subr.mxu0 0.0
        %2467 = vmatpush1.msra.mxu0 0.0
        %2468 = vmatprep.subr.mxu0 0.0
        %2469 = vmatpush1.msra.mxu0 0.0
        %2470 = vmatprep.subr.mxu0 0.0
        %2471 = vmatpush1.msra.mxu0 0.0
        %2472 = vmatprep.subr.mxu0 0.0
        %2473 = vmatpush1.msra.mxu0 0.0
        %2474 = vmatprep.subr.mxu0 0.0
        %2475 = vmatpush1.msra.mxu0 0.0
        %2476 = vmatprep.subr.mxu0 0.0
        %2477 = vmatpush1.msra.mxu0 0.0
        %2478 = vmatprep.subr.mxu0 0.0
        %2479 = vmatpush1.msra.mxu0 0.0
        %2480 = vmatprep.subr.mxu0 0.0
        %2481 = vmatpush1.msra.mxu0 0.0
        %2482 = vmatprep.subr.mxu0 0.0
        %2483 = vmatpush1.msra.mxu0 0.0
        %2484 = vmatprep.subr.mxu0 0.0
        %2485 = vmatpush1.msra.mxu0 0.0
        %2486 = vmatprep.subr.mxu0 0.0
        %2487 = vmatpush1.msra.mxu0 0.0
        %2488 = vmatprep.subr.mxu0 0.0
        %2489 = vmatpush1.msra.mxu0 0.0
        %2490 = vmatprep.subr.mxu0 0.0
        %2491 = vmatpush1.msra.mxu0 0.0
        %2492 = vmatprep.subr.mxu0 0.0
        %2493 = vmatpush1.msra.mxu0 0.0
        %2494 = vmatprep.subr.mxu0 0.0
        %2495 = vmatpush1.msra.mxu0 %v2457
        %2496 = vmatprep.subr.mxu0 0.0
        %2497 = vmatpush2.msra.mxu0 0.0
        %2498 = vmatprep.subr.mxu0 0.0
        %2499 = vmatpush2.msra.mxu0 0.0
        %2500 = vmatprep.subr.mxu0 0.0
        %2501 = vmatpush2.msra.mxu0 0.0
        %2502 = vmatprep.subr.mxu0 0.0
        %2503 = vmatpush2.msra.mxu0 0.0
        %2504 = vmatprep.subr.mxu0 0.0
        %2505 = vmatpush2.msra.mxu0 0.0
        %2506 = vmatprep.subr.mxu0 0.0
        %2507 = vmatpush2.msra.mxu0 0.0
        %2508 = vmatprep.subr.mxu0 0.0
        %2509 = vmatpush2.msra.mxu0 0.0
        %2510 = vmatprep.subr.mxu0 0.0
        %2511 = vmatpush2.msra.mxu0 0.0
        %2512 = vmatprep.subr.mxu0 0.0
        %2513 = vmatpush2.msra.mxu0 0.0
        %2514 = vmatprep.subr.mxu0 0.0
        %2515 = vmatpush2.msra.mxu0 0.0
        %2516 = vmatprep.subr.mxu0 0.0
        %2517 = vmatpush2.msra.mxu0 0.0
        %2518 = vmatprep.subr.mxu0 0.0
        %2519 = vmatpush2.msra.mxu0 0.0
        %2520 = vmatprep.subr.mxu0 0.0
        %2521 = vmatpush2.msra.mxu0 0.0
        %2522 = vmatprep.subr.mxu0 0.0
        %2523 = vmatpush2.msra.mxu0 0.0
        %2524 = vmatprep.subr.mxu0 0.0
        %2525 = vmatpush2.msra.mxu0 0.0
        %2526 = vmatprep.subr.mxu0 0.0
        %2527 = vmatpush2.msra.mxu0 0.0
        %2528 = vmatprep.mubr.f32.mxu0 0.0
        %2529 = vmatmul.mubr.f32.gmra.mxu0 %v2459
        %v2530 = vpop.f32.mrf.mxu0
        %v2531 = vadd.f32 0.0, %v2530
        %v2532 = vpop.f32.mrf.mxu0
        %2533 = vmatprep.mubr.f32.mxu0 0.0
        %2534 = vmatmul.mubr.f32.gmra.mxu0 %v2462
        %v2535 = vpop.f32.mrf.mxu0
        %v2536 = vadd.f32 0.0, %v2535
        %v2537 = vpop.f32.mrf.mxu0
        %2538 = vdwg.mxu0
        %v2539 = vadd.f32 %v2372, %v2531
        %v2540 = vadd.f32 %v2373, %v2536
        %v2541 = vld [vmem:[#allocation8] sm:$0x1]
        %v2543 = vlaneseq
        %v2544 = vshrl.u32 %v2543, 7
        %v2545 = vsub.s32 0, %v2544
        %v2546 = vrot.slane %v2541, %v2545
        %v2548 = vadd.f32 %v2539, %v2546
        %v2549 = vadd.f32 %v2540, %v2546
        %v2550 = vmul.f32 %v2548, 0.5
        %v2551 = vmul.f32 %v2549, 0.5
        %v2552 = vmul.f32 %v2548, 0.70710677
        %v2553 = vmul.f32 %v2549, 0.70710677
        %v2554 = verf.f32.pop %v2552
        %v2555 = verf.f32.pop %v2553
        %v2556 = vadd.f32 %v2554, 1.0
        %v2557 = vadd.f32 %v2555, 1.0
        %v2558 = vmul.f32 %v2550, %v2556
        %v2559 = vmul.f32 %v2551, %v2557
        %v2560 = vadd.f32 %v2558, %v2559
        %v2561 = vrot.slane %v2560, 4
        %v2562 = vadd.f32 %v2560, %v2561
        %v2563 = vrot.slane %v2562, 2
        %v2564 = vadd.f32 %v2562, %v2563
        %v2565 = vrot.slane %v2564, 1
        %v2566 = vadd.f32 %v2564, %v2565
        %2567 = vmatprep.subr.mxu0 0.0
        %2568 = vmatpush1.msra.mxu0 %v948
        %2569 = vmatprep.subr.mxu0 0.0
        %2570 = vmatpush1.msra.mxu0 %v947
        %2571 = vmatprep.subr.mxu0 0.0
        %2572 = vmatpush1.msra.mxu0 %v946
        %2573 = vmatprep.subr.mxu0 0.0
        %2574 = vmatpush1.msra.mxu0 %v945
        %2575 = vmatprep.subr.mxu0 0.0
        %2576 = vmatpush1.msra.mxu0 %v944
        %2577 = vmatprep.subr.mxu0 0.0
        %2578 = vmatpush1.msra.mxu0 %v943
        %2579 = vmatprep.subr.mxu0 0.0
        %2580 = vmatpush1.msra.mxu0 %v942
        %2581 = vmatprep.subr.mxu0 0.0
        %2582 = vmatpush1.msra.mxu0 %v941
        %2583 = vmatprep.subr.mxu0 0.0
        %2584 = vmatpush1.msra.mxu0 %v940
        %2585 = vmatprep.subr.mxu0 0.0
        %2586 = vmatpush1.msra.mxu0 %v939
        %2587 = vmatprep.subr.mxu0 0.0
        %2588 = vmatpush1.msra.mxu0 %v938
        %2589 = vmatprep.subr.mxu0 0.0
        %2590 = vmatpush1.msra.mxu0 %v937
        %2591 = vmatprep.subr.mxu0 0.0
        %2592 = vmatpush1.msra.mxu0 %v936
        %2593 = vmatprep.subr.mxu0 0.0
        %2594 = vmatpush1.msra.mxu0 %v935
        %2595 = vmatprep.subr.mxu0 0.0
        %2596 = vmatpush1.msra.mxu0 %v934
        %2597 = vmatprep.subr.mxu0 0.0
        %2598 = vmatpush1.msra.mxu0 %v933
        %2599 = vmatprep.subr.mxu0 0.0
        %2600 = vmatpush2.msra.mxu0 0.0
        %2601 = vmatprep.subr.mxu0 0.0
        %2602 = vmatpush2.msra.mxu0 0.0
        %2603 = vmatprep.subr.mxu0 0.0
        %2604 = vmatpush2.msra.mxu0 0.0
        %2605 = vmatprep.subr.mxu0 0.0
        %2606 = vmatpush2.msra.mxu0 0.0
        %2607 = vmatprep.subr.mxu0 0.0
        %2608 = vmatpush2.msra.mxu0 0.0
        %2609 = vmatprep.subr.mxu0 0.0
        %2610 = vmatpush2.msra.mxu0 0.0
        %2611 = vmatprep.subr.mxu0 0.0
        %2612 = vmatpush2.msra.mxu0 0.0
        %2613 = vmatprep.subr.mxu0 0.0
        %2614 = vmatpush2.msra.mxu0 0.0
        %2615 = vmatprep.subr.mxu0 0.0
        %2616 = vmatpush2.msra.mxu0 0.0
        %2617 = vmatprep.subr.mxu0 0.0
        %2618 = vmatpush2.msra.mxu0 0.0
        %2619 = vmatprep.subr.mxu0 0.0
        %2620 = vmatpush2.msra.mxu0 0.0
        %2621 = vmatprep.subr.mxu0 0.0
        %2622 = vmatpush2.msra.mxu0 0.0
        %2623 = vmatprep.subr.mxu0 0.0
        %2624 = vmatpush2.msra.mxu0 0.0
        %2625 = vmatprep.subr.mxu0 0.0
        %2626 = vmatpush2.msra.mxu0 0.0
        %2627 = vmatprep.subr.mxu0 0.0
        %2628 = vmatpush2.msra.mxu0 0.0
        %2629 = vmatprep.subr.mxu0 0.0
        %2630 = vmatpush2.msra.mxu0 0.0
        %2631 = vmatprep.mubr.f32.mxu0 0.0
        %2632 = vmatmul.mubr.f32.gmra.mxu0 %v2566
        %v2633 = vpop.f32.mrf.mxu0
        %v2634 = vadd.f32 0.0, %v2633
        %v2635 = vpop.f32.mrf.mxu0
        %2636 = vdwg.mxu0
        %v2637 = vrcp.pop 128.0
        %v2638 = vmul.f32 %v2634, %v2637
        %v2640 = vsel %vm1043, %v2638, 0
        %2642 = vmatprep.subr.mxu0 0.0
        %2643 = vmatpush1.msra.mxu0 0.0
        %2644 = vmatprep.subr.mxu0 0.0
        %2645 = vmatpush1.msra.mxu0 0.0
        %2646 = vmatprep.subr.mxu0 0.0
        %2647 = vmatpush1.msra.mxu0 0.0
        %2648 = vmatprep.subr.mxu0 0.0
        %2649 = vmatpush1.msra.mxu0 0.0
        %2650 = vmatprep.subr.mxu0 0.0
        %2651 = vmatpush1.msra.mxu0 0.0
        %2652 = vmatprep.subr.mxu0 0.0
        %2653 = vmatpush1.msra.mxu0 0.0
        %2654 = vmatprep.subr.mxu0 0.0
        %2655 = vmatpush1.msra.mxu0 0.0
        %2656 = vmatprep.subr.mxu0 0.0
        %2657 = vmatpush1.msra.mxu0 0.0
        %2658 = vmatprep.subr.mxu0 0.0
        %2659 = vmatpush1.msra.mxu0 0.0
        %2660 = vmatprep.subr.mxu0 0.0
        %2661 = vmatpush1.msra.mxu0 0.0
        %2662 = vmatprep.subr.mxu0 0.0
        %2663 = vmatpush1.msra.mxu0 0.0
        %2664 = vmatprep.subr.mxu0 0.0
        %2665 = vmatpush1.msra.mxu0 0.0
        %2666 = vmatprep.subr.mxu0 0.0
        %2667 = vmatpush1.msra.mxu0 0.0
        %2668 = vmatprep.subr.mxu0 0.0
        %2669 = vmatpush1.msra.mxu0 0.0
        %2670 = vmatprep.subr.mxu0 0.0
        %2671 = vmatpush1.msra.mxu0 %v950
        %2672 = vmatprep.subr.mxu0 0.0
        %2673 = vmatpush1.msra.mxu0 %v949
        %2674 = vmatprep.subr.mxu0 0.0
        %2675 = vmatpush2.msra.mxu0 0.0
        %2676 = vmatprep.subr.mxu0 0.0
        %2677 = vmatpush2.msra.mxu0 0.0
        %2678 = vmatprep.subr.mxu0 0.0
        %2679 = vmatpush2.msra.mxu0 0.0
        %2680 = vmatprep.subr.mxu0 0.0
        %2681 = vmatpush2.msra.mxu0 0.0
        %2682 = vmatprep.subr.mxu0 0.0
        %2683 = vmatpush2.msra.mxu0 0.0
        %2684 = vmatprep.subr.mxu0 0.0
        %2685 = vmatpush2.msra.mxu0 0.0
        %2686 = vmatprep.subr.mxu0 0.0
        %2687 = vmatpush2.msra.mxu0 0.0
        %2688 = vmatprep.subr.mxu0 0.0
        %2689 = vmatpush2.msra.mxu0 0.0
        %2690 = vmatprep.subr.mxu0 0.0
        %2691 = vmatpush2.msra.mxu0 0.0
        %2692 = vmatprep.subr.mxu0 0.0
        %2693 = vmatpush2.msra.mxu0 0.0
        %2694 = vmatprep.subr.mxu0 0.0
        %2695 = vmatpush2.msra.mxu0 0.0
        %2696 = vmatprep.subr.mxu0 0.0
        %2697 = vmatpush2.msra.mxu0 0.0
        %2698 = vmatprep.subr.mxu0 0.0
        %2699 = vmatpush2.msra.mxu0 0.0
        %2700 = vmatprep.subr.mxu0 0.0
        %2701 = vmatpush2.msra.mxu0 0.0
        %2702 = vmatprep.subr.mxu0 0.0
        %2703 = vmatpush2.msra.mxu0 0.0
        %2704 = vmatprep.subr.mxu0 0.0
        %2705 = vmatpush2.msra.mxu0 0.0
        %2706 = vmatprep.mubr.f32.mxu0 0.0
        %2707 = vmatmul.mubr.f32.gmra.mxu0 %v2640
        %v2708 = vpop.f32.mrf.mxu0
        %v2709 = vadd.f32 0.0, %v2708
        %v2710 = vpop.f32.mrf.mxu0
        %2711 = vdwg.mxu0
        %v2712 = vlaneseq
        %v2713 = vshrl.u32 %v2712, 7
        %v2714 = vsub.s32 0, %v2713
        %v2715 = vrot.slane %v2709, %v2714
        %v2716 = vsub.f32 %v2558, %v2715
        %v2717 = vsub.f32 %v2559, %v2715
        %v2718 = vmul.f32 %v2716, %v2716
        %v2719 = vmul.f32 %v2717, %v2717
        %v2720 = vadd.f32 %v2718, %v2719
        %v2721 = vrot.slane %v2720, 4
        %v2722 = vadd.f32 %v2720, %v2721
        %v2723 = vrot.slane %v2722, 2
        %v2724 = vadd.f32 %v2722, %v2723
        %v2725 = vrot.slane %v2724, 1
        %v2726 = vadd.f32 %v2724, %v2725
        %2727 = vmatprep.subr.mxu0 0.0
        %2728 = vmatpush1.msra.mxu0 %v948
        %2729 = vmatprep.subr.mxu0 0.0
        %2730 = vmatpush1.msra.mxu0 %v947
        %2731 = vmatprep.subr.mxu0 0.0
        %2732 = vmatpush1.msra.mxu0 %v946
        %2733 = vmatprep.subr.mxu0 0.0
        %2734 = vmatpush1.msra.mxu0 %v945
        %2735 = vmatprep.subr.mxu0 0.0
        %2736 = vmatpush1.msra.mxu0 %v944
        %2737 = vmatprep.subr.mxu0 0.0
        %2738 = vmatpush1.msra.mxu0 %v943
        %2739 = vmatprep.subr.mxu0 0.0
        %2740 = vmatpush1.msra.mxu0 %v942
        %2741 = vmatprep.subr.mxu0 0.0
        %2742 = vmatpush1.msra.mxu0 %v941
        %2743 = vmatprep.subr.mxu0 0.0
        %2744 = vmatpush1.msra.mxu0 %v940
        %2745 = vmatprep.subr.mxu0 0.0
        %2746 = vmatpush1.msra.mxu0 %v939
        %2747 = vmatprep.subr.mxu0 0.0
        %2748 = vmatpush1.msra.mxu0 %v938
        %2749 = vmatprep.subr.mxu0 0.0
        %2750 = vmatpush1.msra.mxu0 %v937
        %2751 = vmatprep.subr.mxu0 0.0
        %2752 = vmatpush1.msra.mxu0 %v936
        %2753 = vmatprep.subr.mxu0 0.0
        %2754 = vmatpush1.msra.mxu0 %v935
        %2755 = vmatprep.subr.mxu0 0.0
        %2756 = vmatpush1.msra.mxu0 %v934
        %2757 = vmatprep.subr.mxu0 0.0
        %2758 = vmatpush1.msra.mxu0 %v933
        %2759 = vmatprep.subr.mxu0 0.0
        %2760 = vmatpush2.msra.mxu0 0.0
        %2761 = vmatprep.subr.mxu0 0.0
        %2762 = vmatpush2.msra.mxu0 0.0
        %2763 = vmatprep.subr.mxu0 0.0
        %2764 = vmatpush2.msra.mxu0 0.0
        %2765 = vmatprep.subr.mxu0 0.0
        %2766 = vmatpush2.msra.mxu0 0.0
        %2767 = vmatprep.subr.mxu0 0.0
        %2768 = vmatpush2.msra.mxu0 0.0
        %2769 = vmatprep.subr.mxu0 0.0
        %2770 = vmatpush2.msra.mxu0 0.0
        %2771 = vmatprep.subr.mxu0 0.0
        %2772 = vmatpush2.msra.mxu0 0.0
        %2773 = vmatprep.subr.mxu0 0.0
        %2774 = vmatpush2.msra.mxu0 0.0
        %2775 = vmatprep.subr.mxu0 0.0
        %2776 = vmatpush2.msra.mxu0 0.0
        %2777 = vmatprep.subr.mxu0 0.0
        %2778 = vmatpush2.msra.mxu0 0.0
        %2779 = vmatprep.subr.mxu0 0.0
        %2780 = vmatpush2.msra.mxu0 0.0
        %2781 = vmatprep.subr.mxu0 0.0
        %2782 = vmatpush2.msra.mxu0 0.0
        %2783 = vmatprep.subr.mxu0 0.0
        %2784 = vmatpush2.msra.mxu0 0.0
        %2785 = vmatprep.subr.mxu0 0.0
        %2786 = vmatpush2.msra.mxu0 0.0
        %2787 = vmatprep.subr.mxu0 0.0
        %2788 = vmatpush2.msra.mxu0 0.0
        %2789 = vmatprep.subr.mxu0 0.0
        %2790 = vmatpush2.msra.mxu0 0.0
        %2791 = vmatprep.mubr.f32.mxu0 0.0
        %2792 = vmatmul.mubr.f32.gmra.mxu0 %v2726
        %v2793 = vpop.f32.mrf.mxu0
        %v2794 = vadd.f32 0.0, %v2793
        %v2795 = vpop.f32.mrf.mxu0
        %2796 = vdwg.mxu0
        %v2797 = vmul.f32 %v2794, %v2637
        %v2798 = vadd.f32 %v2797, 1e-05
        %v2799 = vrsqrt.pop %v2798
        %v2801 = vsel %vm1043, %v2799, 0
        %2803 = vmatprep.subr.mxu0 0.0
        %2804 = vmatpush1.msra.mxu0 0.0
        %2805 = vmatprep.subr.mxu0 0.0
        %2806 = vmatpush1.msra.mxu0 0.0
        %2807 = vmatprep.subr.mxu0 0.0
        %2808 = vmatpush1.msra.mxu0 0.0
        %2809 = vmatprep.subr.mxu0 0.0
        %2810 = vmatpush1.msra.mxu0 0.0
        %2811 = vmatprep.subr.mxu0 0.0
        %2812 = vmatpush1.msra.mxu0 0.0
        %2813 = vmatprep.subr.mxu0 0.0
        %2814 = vmatpush1.msra.mxu0 0.0
        %2815 = vmatprep.subr.mxu0 0.0
        %2816 = vmatpush1.msra.mxu0 0.0
        %2817 = vmatprep.subr.mxu0 0.0
        %2818 = vmatpush1.msra.mxu0 0.0
        %2819 = vmatprep.subr.mxu0 0.0
        %2820 = vmatpush1.msra.mxu0 0.0
        %2821 = vmatprep.subr.mxu0 0.0
        %2822 = vmatpush1.msra.mxu0 0.0
        %2823 = vmatprep.subr.mxu0 0.0
        %2824 = vmatpush1.msra.mxu0 0.0
        %2825 = vmatprep.subr.mxu0 0.0
        %2826 = vmatpush1.msra.mxu0 0.0
        %2827 = vmatprep.subr.mxu0 0.0
        %2828 = vmatpush1.msra.mxu0 0.0
        %2829 = vmatprep.subr.mxu0 0.0
        %2830 = vmatpush1.msra.mxu0 0.0
        %2831 = vmatprep.subr.mxu0 0.0
        %2832 = vmatpush1.msra.mxu0 %v950
        %2833 = vmatprep.subr.mxu0 0.0
        %2834 = vmatpush1.msra.mxu0 %v949
        %2835 = vmatprep.subr.mxu0 0.0
        %2836 = vmatpush2.msra.mxu0 0.0
        %2837 = vmatprep.subr.mxu0 0.0
        %2838 = vmatpush2.msra.mxu0 0.0
        %2839 = vmatprep.subr.mxu0 0.0
        %2840 = vmatpush2.msra.mxu0 0.0
        %2841 = vmatprep.subr.mxu0 0.0
        %2842 = vmatpush2.msra.mxu0 0.0
        %2843 = vmatprep.subr.mxu0 0.0
        %2844 = vmatpush2.msra.mxu0 0.0
        %2845 = vmatprep.subr.mxu0 0.0
        %2846 = vmatpush2.msra.mxu0 0.0
        %2847 = vmatprep.subr.mxu0 0.0
        %2848 = vmatpush2.msra.mxu0 0.0
        %2849 = vmatprep.subr.mxu0 0.0
        %2850 = vmatpush2.msra.mxu0 0.0
        %2851 = vmatprep.subr.mxu0 0.0
        %2852 = vmatpush2.msra.mxu0 0.0
        %2853 = vmatprep.subr.mxu0 0.0
        %2854 = vmatpush2.msra.mxu0 0.0
        %2855 = vmatprep.subr.mxu0 0.0
        %2856 = vmatpush2.msra.mxu0 0.0
        %2857 = vmatprep.subr.mxu0 0.0
        %2858 = vmatpush2.msra.mxu0 0.0
        %2859 = vmatprep.subr.mxu0 0.0
        %2860 = vmatpush2.msra.mxu0 0.0
        %2861 = vmatprep.subr.mxu0 0.0
        %2862 = vmatpush2.msra.mxu0 0.0
        %2863 = vmatprep.subr.mxu0 0.0
        %2864 = vmatpush2.msra.mxu0 0.0
        %2865 = vmatprep.subr.mxu0 0.0
        %2866 = vmatpush2.msra.mxu0 0.0
        %2867 = vmatprep.mubr.f32.mxu0 0.0
        %2868 = vmatmul.mubr.f32.gmra.mxu0 %v2801
        %v2869 = vpop.f32.mrf.mxu0
        %v2870 = vadd.f32 0.0, %v2869
        %v2871 = vpop.f32.mrf.mxu0
        %2872 = vdwg.mxu0
        %v2873 = vlaneseq
        %v2874 = vshrl.u32 %v2873, 7
        %v2875 = vsub.s32 0, %v2874
        %v2876 = vrot.slane %v2870, %v2875
        %v2877 = vmul.f32 %v2716, %v2876
        %v2878 = vmul.f32 %v2717, %v2876
        %v2879 = vld [vmem:[#allocation10] sm:$0x1]
        %v2881 = vlaneseq
        %v2882 = vshrl.u32 %v2881, 7
        %v2883 = vsub.s32 0, %v2882
        %v2884 = vrot.slane %v2879, %v2883
        %v2886 = vmul.f32 %v2877, %v2884
        %v2887 = vmul.f32 %v2878, %v2884
        %v2888 = vld [vmem:[#allocation11] sm:$0x1]
        %v2890 = vlaneseq
        %v2891 = vshrl.u32 %v2890, 7
        %v2892 = vsub.s32 0, %v2891
        %v2893 = vrot.slane %v2888, %v2892
        %v2895 = vadd.f32 %v2886, %v2893
        %v2896 = vadd.f32 %v2887, %v2893
        %2897 = vmatprep.subr.mxu0 0.0
        %2898 = vmatpush1.msra.mxu0 0.0
        %2899 = vmatprep.subr.mxu0 0.0
        %2900 = vmatpush1.msra.mxu0 0.0
        %2901 = vmatprep.subr.mxu0 0.0
        %2902 = vmatpush1.msra.mxu0 0.0
        %2903 = vmatprep.subr.mxu0 0.0
        %2904 = vmatpush1.msra.mxu0 0.0
        %2905 = vmatprep.subr.mxu0 0.0
        %2906 = vmatpush1.msra.mxu0 0.0
        %2907 = vmatprep.subr.mxu0 0.0
        %2908 = vmatpush1.msra.mxu0 0.0
        %2909 = vmatprep.subr.mxu0 0.0
        %2910 = vmatpush1.msra.mxu0 0.0
        %2911 = vmatprep.subr.mxu0 0.0
        %2912 = vmatpush1.msra.mxu0 0.0
        %2913 = vmatprep.subr.mxu0 0.0
        %2914 = vmatpush1.msra.mxu0 0.0
        %2915 = vmatprep.subr.mxu0 0.0
        %2916 = vmatpush1.msra.mxu0 0.0
        %2917 = vmatprep.subr.mxu0 0.0
        %2918 = vmatpush1.msra.mxu0 0.0
        %2919 = vmatprep.subr.mxu0 0.0
        %2920 = vmatpush1.msra.mxu0 0.0
        %2921 = vmatprep.subr.mxu0 0.0
        %2922 = vmatpush1.msra.mxu0 0.0
        %2923 = vmatprep.subr.mxu0 0.0
        %2924 = vmatpush1.msra.mxu0 0.0
        %2925 = vmatprep.subr.mxu0 0.0
        %2926 = vmatpush1.msra.mxu0 %v2896
        %2927 = vmatprep.subr.mxu0 0.0
        %2928 = vmatpush1.msra.mxu0 %v2895
        %2929 = vmatprep.subr.mxu0 0.0
        %2930 = vmatpush2.msra.mxu0 0.0
        %2931 = vmatprep.subr.mxu0 0.0
        %2932 = vmatpush2.msra.mxu0 0.0
        %2933 = vmatprep.subr.mxu0 0.0
        %2934 = vmatpush2.msra.mxu0 0.0
        %2935 = vmatprep.subr.mxu0 0.0
        %2936 = vmatpush2.msra.mxu0 0.0
        %2937 = vmatprep.subr.mxu0 0.0
        %2938 = vmatpush2.msra.mxu0 0.0
        %2939 = vmatprep.subr.mxu0 0.0
        %2940 = vmatpush2.msra.mxu0 0.0
        %2941 = vmatprep.subr.mxu0 0.0
        %2942 = vmatpush2.msra.mxu0 0.0
        %2943 = vmatprep.subr.mxu0 0.0
        %2944 = vmatpush2.msra.mxu0 0.0
        %2945 = vmatprep.subr.mxu0 0.0
        %2946 = vmatpush2.msra.mxu0 0.0
        %2947 = vmatprep.subr.mxu0 0.0
        %2948 = vmatpush2.msra.mxu0 0.0
        %2949 = vmatprep.subr.mxu0 0.0
        %2950 = vmatpush2.msra.mxu0 0.0
        %2951 = vmatprep.subr.mxu0 0.0
        %2952 = vmatpush2.msra.mxu0 0.0
        %2953 = vmatprep.subr.mxu0 0.0
        %2954 = vmatpush2.msra.mxu0 0.0
        %2955 = vmatprep.subr.mxu0 0.0
        %2956 = vmatpush2.msra.mxu0 0.0
        %2957 = vmatprep.subr.mxu0 0.0
        %2958 = vmatpush2.msra.mxu0 0.0
        %2959 = vmatprep.subr.mxu0 0.0
        %2960 = vmatpush2.msra.mxu0 0.0
        %2961 = vmatprep.mubr.f32.mxu0 0.0
        %2962 = vmatmul.mubr.f32.gmra.mxu0 %v1045
        %v2963 = vpop.f32.mrf.mxu0
        %v2964 = vadd.f32 0.0, %v2963
        %v2965 = vpop.f32.mrf.mxu0
        %2966 = vmatprep.mubr.f32.mxu0 0.0
        %2967 = vmatmul.mubr.f32.gmra.mxu0 %v1048
        %v2968 = vpop.f32.mrf.mxu0
        %v2969 = vadd.f32 0.0, %v2968
        %v2970 = vpop.f32.mrf.mxu0
        %2971 = vdwg.mxu0
        %v2972 = vld [vmem:[#allocation13] sm:$0xff]
        %v2973 = vld [vmem:[#allocation13 + $0x8] sm:$0xff]
        %v2974 = vld [vmem:[#allocation13 + $0x10] sm:$0xff]
        %v2975 = vld [vmem:[#allocation13 + $0x18] sm:$0xff]
        %v2976 = vld [vmem:[#allocation13 + $0x20] sm:$0xff]
        %v2977 = vld [vmem:[#allocation13 + $0x28] sm:$0xff]
        %v2978 = vld [vmem:[#allocation13 + $0x30] sm:$0xff]
        %v2979 = vld [vmem:[#allocation13 + $0x38] sm:$0xff]
        %v2980 = vld [vmem:[#allocation13 + $0x40] sm:$0xff]
        %v2981 = vld [vmem:[#allocation13 + $0x48] sm:$0xff]
        %v2982 = vld [vmem:[#allocation13 + $0x50] sm:$0xff]
        %v2983 = vld [vmem:[#allocation13 + $0x58] sm:$0xff]
        %v2984 = vld [vmem:[#allocation13 + $0x60] sm:$0xff]
        %v2985 = vld [vmem:[#allocation13 + $0x68] sm:$0xff]
        %v2986 = vld [vmem:[#allocation13 + $0x70] sm:$0xff]
        %v2987 = vld [vmem:[#allocation13 + $0x78] sm:$0xff]
        %2988 = vmatprep.subr.mxu0 0.0
        %2989 = vmatpush1.msra.mxu0 0.0
        %2990 = vmatprep.subr.mxu0 0.0
        %2991 = vmatpush1.msra.mxu0 0.0
        %2992 = vmatprep.subr.mxu0 0.0
        %2993 = vmatpush1.msra.mxu0 0.0
        %2994 = vmatprep.subr.mxu0 0.0
        %2995 = vmatpush1.msra.mxu0 0.0
        %2996 = vmatprep.subr.mxu0 0.0
        %2997 = vmatpush1.msra.mxu0 0.0
        %2998 = vmatprep.subr.mxu0 0.0
        %2999 = vmatpush1.msra.mxu0 0.0
        %3000 = vmatprep.subr.mxu0 0.0
        %3001 = vmatpush1.msra.mxu0 0.0
        %3002 = vmatprep.subr.mxu0 0.0
        %3003 = vmatpush1.msra.mxu0 0.0
        %3004 = vmatprep.subr.mxu0 0.0
        %3005 = vmatpush1.msra.mxu0 0.0
        %3006 = vmatprep.subr.mxu0 0.0
        %3007 = vmatpush1.msra.mxu0 0.0
        %3008 = vmatprep.subr.mxu0 0.0
        %3009 = vmatpush1.msra.mxu0 0.0
        %3010 = vmatprep.subr.mxu0 0.0
        %3011 = vmatpush1.msra.mxu0 0.0
        %3012 = vmatprep.subr.mxu0 0.0
        %3013 = vmatpush1.msra.mxu0 0.0
        %3014 = vmatprep.subr.mxu0 0.0
        %3015 = vmatpush1.msra.mxu0 0.0
        %3016 = vmatprep.subr.mxu0 0.0
        %3017 = vmatpush1.msra.mxu0 %v2896
        %3018 = vmatprep.subr.mxu0 0.0
        %3019 = vmatpush1.msra.mxu0 %v2895
        %3020 = vmatprep.subr.mxu0 0.0
        %3021 = vmatpush2.msra.mxu0 0.0
        %3022 = vmatprep.subr.mxu0 0.0
        %3023 = vmatpush2.msra.mxu0 0.0
        %3024 = vmatprep.subr.mxu0 0.0
        %3025 = vmatpush2.msra.mxu0 0.0
        %3026 = vmatprep.subr.mxu0 0.0
        %3027 = vmatpush2.msra.mxu0 0.0
        %3028 = vmatprep.subr.mxu0 0.0
        %3029 = vmatpush2.msra.mxu0 0.0
        %3030 = vmatprep.subr.mxu0 0.0
        %3031 = vmatpush2.msra.mxu0 0.0
        %3032 = vmatprep.subr.mxu0 0.0
        %3033 = vmatpush2.msra.mxu0 0.0
        %3034 = vmatprep.subr.mxu0 0.0
        %3035 = vmatpush2.msra.mxu0 0.0
        %3036 = vmatprep.subr.mxu0 0.0
        %3037 = vmatpush2.msra.mxu0 0.0
        %3038 = vmatprep.subr.mxu0 0.0
        %3039 = vmatpush2.msra.mxu0 0.0
        %3040 = vmatprep.subr.mxu0 0.0
        %3041 = vmatpush2.msra.mxu0 0.0
        %3042 = vmatprep.subr.mxu0 0.0
        %3043 = vmatpush2.msra.mxu0 0.0
        %3044 = vmatprep.subr.mxu0 0.0
        %3045 = vmatpush2.msra.mxu0 0.0
        %3046 = vmatprep.subr.mxu0 0.0
        %3047 = vmatpush2.msra.mxu0 0.0
        %3048 = vmatprep.subr.mxu0 0.0
        %3049 = vmatpush2.msra.mxu0 0.0
        %3050 = vmatprep.subr.mxu0 0.0
        %3051 = vmatpush2.msra.mxu0 0.0
        %3052 = vmatprep.mubr.f32.mxu0 0.0
        %3053 = vmatmul.mubr.f32.gmra.mxu0 %v1129
        %v3054 = vpop.f32.mrf.mxu0
        %v3055 = vadd.f32 0.0, %v3054
        %v3056 = vpop.f32.mrf.mxu0
        %3057 = vmatprep.mubr.f32.mxu0 0.0
        %3058 = vmatmul.mubr.f32.gmra.mxu0 %v1132
        %v3059 = vpop.f32.mrf.mxu0
        %v3060 = vadd.f32 0.0, %v3059
        %v3061 = vpop.f32.mrf.mxu0
        %3062 = vdwg.mxu0
        %v3063 = vld [vmem:[#allocation13 + $0x80] sm:$0xff]
        %v3064 = vld [vmem:[#allocation13 + $0x88] sm:$0xff]
        %v3065 = vld [vmem:[#allocation13 + $0x90] sm:$0xff]
        %v3066 = vld [vmem:[#allocation13 + $0x98] sm:$0xff]
        %v3067 = vld [vmem:[#allocation13 + $0xa0] sm:$0xff]
        %v3068 = vld [vmem:[#allocation13 + $0xa8] sm:$0xff]
        %v3069 = vld [vmem:[#allocation13 + $0xb0] sm:$0xff]
        %v3070 = vld [vmem:[#allocation13 + $0xb8] sm:$0xff]
        %v3071 = vld [vmem:[#allocation13 + $0xc0] sm:$0xff]
        %v3072 = vld [vmem:[#allocation13 + $0xc8] sm:$0xff]
        %v3073 = vld [vmem:[#allocation13 + $0xd0] sm:$0xff]
        %v3074 = vld [vmem:[#allocation13 + $0xd8] sm:$0xff]
        %v3075 = vld [vmem:[#allocation13 + $0xe0] sm:$0xff]
        %v3076 = vld [vmem:[#allocation13 + $0xe8] sm:$0xff]
        %v3077 = vld [vmem:[#allocation13 + $0xf0] sm:$0xff]
        %v3078 = vld [vmem:[#allocation13 + $0xf8] sm:$0xff]
        %3079 = vmatprep.subr.mxu0 0.0
        %3080 = vmatpush1.msra.mxu0 %v3078
        %3081 = vmatprep.subr.mxu0 0.0
        %3082 = vmatpush1.msra.mxu0 %v3077
        %3083 = vmatprep.subr.mxu0 0.0
        %3084 = vmatpush1.msra.mxu0 %v3076
        %3085 = vmatprep.subr.mxu0 0.0
        %3086 = vmatpush1.msra.mxu0 %v3075
        %3087 = vmatprep.subr.mxu0 0.0
        %3088 = vmatpush1.msra.mxu0 %v3074
        %3089 = vmatprep.subr.mxu0 0.0
        %3090 = vmatpush1.msra.mxu0 %v3073
        %3091 = vmatprep.subr.mxu0 0.0
        %3092 = vmatpush1.msra.mxu0 %v3072
        %3093 = vmatprep.subr.mxu0 0.0
        %3094 = vmatpush1.msra.mxu0 %v3071
        %3095 = vmatprep.subr.mxu0 0.0
        %3096 = vmatpush1.msra.mxu0 %v3070
        %3097 = vmatprep.subr.mxu0 0.0
        %3098 = vmatpush1.msra.mxu0 %v3069
        %3099 = vmatprep.subr.mxu0 0.0
        %3100 = vmatpush1.msra.mxu0 %v3068
        %3101 = vmatprep.subr.mxu0 0.0
        %3102 = vmatpush1.msra.mxu0 %v3067
        %3103 = vmatprep.subr.mxu0 0.0
        %3104 = vmatpush1.msra.mxu0 %v3066
        %3105 = vmatprep.subr.mxu0 0.0
        %3106 = vmatpush1.msra.mxu0 %v3065
        %3107 = vmatprep.subr.mxu0 0.0
        %3108 = vmatpush1.msra.mxu0 %v3064
        %3109 = vmatprep.subr.mxu0 0.0
        %3110 = vmatpush1.msra.mxu0 %v3063
        %3111 = vmatprep.subr.mxu0 0.0
        %3112 = vmatpush2.msra.mxu0 0.0
        %3113 = vmatprep.subr.mxu0 0.0
        %3114 = vmatpush2.msra.mxu0 0.0
        %3115 = vmatprep.subr.mxu0 0.0
        %3116 = vmatpush2.msra.mxu0 0.0
        %3117 = vmatprep.subr.mxu0 0.0
        %3118 = vmatpush2.msra.mxu0 0.0
        %3119 = vmatprep.subr.mxu0 0.0
        %3120 = vmatpush2.msra.mxu0 0.0
        %3121 = vmatprep.subr.mxu0 0.0
        %3122 = vmatpush2.msra.mxu0 0.0
        %3123 = vmatprep.subr.mxu0 0.0
        %3124 = vmatpush2.msra.mxu0 0.0
        %3125 = vmatprep.subr.mxu0 0.0
        %3126 = vmatpush2.msra.mxu0 0.0
        %3127 = vmatprep.subr.mxu0 0.0
        %3128 = vmatpush2.msra.mxu0 0.0
        %3129 = vmatprep.subr.mxu0 0.0
        %3130 = vmatpush2.msra.mxu0 0.0
        %3131 = vmatprep.subr.mxu0 0.0
        %3132 = vmatpush2.msra.mxu0 0.0
        %3133 = vmatprep.subr.mxu0 0.0
        %3134 = vmatpush2.msra.mxu0 0.0
        %3135 = vmatprep.subr.mxu0 0.0
        %3136 = vmatpush2.msra.mxu0 0.0
        %3137 = vmatprep.subr.mxu0 0.0
        %3138 = vmatpush2.msra.mxu0 0.0
        %3139 = vmatprep.subr.mxu0 0.0
        %3140 = vmatpush2.msra.mxu0 0.0
        %3141 = vmatprep.subr.mxu0 0.0
        %3142 = vmatpush2.msra.mxu0 0.0
        %3143 = vmatprep.mubr.f32.mxu0 0.0
        %3144 = vmatmul.mubr.f32.gmra.mxu0 %v3055
        %v3145 = vpop.f32.mrf.mxu0
        %v3146 = vadd.f32 0.0, %v3145
        %v3147 = vpop.f32.mrf.mxu0
        %3148 = vmatprep.mubr.f32.mxu0 0.0
        %3149 = vmatmul.mubr.f32.gmra.mxu0 %v3060
        %v3150 = vpop.f32.mrf.mxu0
        %v3151 = vadd.f32 0.0, %v3150
        %v3152 = vpop.f32.mrf.mxu0
        %3153 = vdwg.mxu0
        %3154 = vmatprep.subr.mxu0 0.0
        %3155 = vmatpush1.msra.mxu0 %v2987
        %3156 = vmatprep.subr.mxu0 0.0
        %3157 = vmatpush1.msra.mxu0 %v2986
        %3158 = vmatprep.subr.mxu0 0.0
        %3159 = vmatpush1.msra.mxu0 %v2985
        %3160 = vmatprep.subr.mxu0 0.0
        %3161 = vmatpush1.msra.mxu0 %v2984
        %3162 = vmatprep.subr.mxu0 0.0
        %3163 = vmatpush1.msra.mxu0 %v2983
        %3164 = vmatprep.subr.mxu0 0.0
        %3165 = vmatpush1.msra.mxu0 %v2982
        %3166 = vmatprep.subr.mxu0 0.0
        %3167 = vmatpush1.msra.mxu0 %v2981
        %3168 = vmatprep.subr.mxu0 0.0
        %3169 = vmatpush1.msra.mxu0 %v2980
        %3170 = vmatprep.subr.mxu0 0.0
        %3171 = vmatpush1.msra.mxu0 %v2979
        %3172 = vmatprep.subr.mxu0 0.0
        %3173 = vmatpush1.msra.mxu0 %v2978
        %3174 = vmatprep.subr.mxu0 0.0
        %3175 = vmatpush1.msra.mxu0 %v2977
        %3176 = vmatprep.subr.mxu0 0.0
        %3177 = vmatpush1.msra.mxu0 %v2976
        %3178 = vmatprep.subr.mxu0 0.0
        %3179 = vmatpush1.msra.mxu0 %v2975
        %3180 = vmatprep.subr.mxu0 0.0
        %3181 = vmatpush1.msra.mxu0 %v2974
        %3182 = vmatprep.subr.mxu0 0.0
        %3183 = vmatpush1.msra.mxu0 %v2973
        %3184 = vmatprep.subr.mxu0 0.0
        %3185 = vmatpush1.msra.mxu0 %v2972
        %3186 = vmatprep.subr.mxu0 0.0
        %3187 = vmatpush2.msra.mxu0 0.0
        %3188 = vmatprep.subr.mxu0 0.0
        %3189 = vmatpush2.msra.mxu0 0.0
        %3190 = vmatprep.subr.mxu0 0.0
        %3191 = vmatpush2.msra.mxu0 0.0
        %3192 = vmatprep.subr.mxu0 0.0
        %3193 = vmatpush2.msra.mxu0 0.0
        %3194 = vmatprep.subr.mxu0 0.0
        %3195 = vmatpush2.msra.mxu0 0.0
        %3196 = vmatprep.subr.mxu0 0.0
        %3197 = vmatpush2.msra.mxu0 0.0
        %3198 = vmatprep.subr.mxu0 0.0
        %3199 = vmatpush2.msra.mxu0 0.0
        %3200 = vmatprep.subr.mxu0 0.0
        %3201 = vmatpush2.msra.mxu0 0.0
        %3202 = vmatprep.subr.mxu0 0.0
        %3203 = vmatpush2.msra.mxu0 0.0
        %3204 = vmatprep.subr.mxu0 0.0
        %3205 = vmatpush2.msra.mxu0 0.0
        %3206 = vmatprep.subr.mxu0 0.0
        %3207 = vmatpush2.msra.mxu0 0.0
        %3208 = vmatprep.subr.mxu0 0.0
        %3209 = vmatpush2.msra.mxu0 0.0
        %3210 = vmatprep.subr.mxu0 0.0
        %3211 = vmatpush2.msra.mxu0 0.0
        %3212 = vmatprep.subr.mxu0 0.0
        %3213 = vmatpush2.msra.mxu0 0.0
        %3214 = vmatprep.subr.mxu0 0.0
        %3215 = vmatpush2.msra.mxu0 0.0
        %3216 = vmatprep.subr.mxu0 0.0
        %3217 = vmatpush2.msra.mxu0 0.0
        %3218 = vmatprep.mubr.f32.mxu0 0.0
        %3219 = vmatmul.mubr.f32.gmra.mxu0 %v2964
        %v3220 = vpop.f32.mrf.mxu0
        %v3221 = vadd.f32 %v3146, %v3220
        %v3222 = vpop.f32.mrf.mxu0
        %3223 = vmatprep.mubr.f32.mxu0 0.0
        %3224 = vmatmul.mubr.f32.gmra.mxu0 %v2969
        %v3225 = vpop.f32.mrf.mxu0
        %v3226 = vadd.f32 %v3151, %v3225
        %v3227 = vpop.f32.mrf.mxu0
        %3228 = vdwg.mxu0
        %3229 = vmatprep.subr.mxu0 0.0
        %3230 = vmatpush1.msra.mxu0 0.0
        %3231 = vmatprep.subr.mxu0 0.0
        %3232 = vmatpush1.msra.mxu0 0.0
        %3233 = vmatprep.subr.mxu0 0.0
        %3234 = vmatpush1.msra.mxu0 0.0
        %3235 = vmatprep.subr.mxu0 0.0
        %3236 = vmatpush1.msra.mxu0 0.0
        %3237 = vmatprep.subr.mxu0 0.0
        %3238 = vmatpush1.msra.mxu0 0.0
        %3239 = vmatprep.subr.mxu0 0.0
        %3240 = vmatpush1.msra.mxu0 0.0
        %3241 = vmatprep.subr.mxu0 0.0
        %3242 = vmatpush1.msra.mxu0 0.0
        %3243 = vmatprep.subr.mxu0 0.0
        %3244 = vmatpush1.msra.mxu0 0.0
        %3245 = vmatprep.subr.mxu0 0.0
        %3246 = vmatpush1.msra.mxu0 0.0
        %3247 = vmatprep.subr.mxu0 0.0
        %3248 = vmatpush1.msra.mxu0 0.0
        %3249 = vmatprep.subr.mxu0 0.0
        %3250 = vmatpush1.msra.mxu0 0.0
        %3251 = vmatprep.subr.mxu0 0.0
        %3252 = vmatpush1.msra.mxu0 0.0
        %3253 = vmatprep.subr.mxu0 0.0
        %3254 = vmatpush1.msra.mxu0 0.0
        %3255 = vmatprep.subr.mxu0 0.0
        %3256 = vmatpush1.msra.mxu0 0.0
        %3257 = vmatprep.subr.mxu0 0.0
        %3258 = vmatpush1.msra.mxu0 %v2896
        %3259 = vmatprep.subr.mxu0 0.0
        %3260 = vmatpush1.msra.mxu0 %v2895
        %3261 = vmatprep.subr.mxu0 0.0
        %3262 = vmatpush2.msra.mxu0 0.0
        %3263 = vmatprep.subr.mxu0 0.0
        %3264 = vmatpush2.msra.mxu0 0.0
        %3265 = vmatprep.subr.mxu0 0.0
        %3266 = vmatpush2.msra.mxu0 0.0
        %3267 = vmatprep.subr.mxu0 0.0
        %3268 = vmatpush2.msra.mxu0 0.0
        %3269 = vmatprep.subr.mxu0 0.0
        %3270 = vmatpush2.msra.mxu0 0.0
        %3271 = vmatprep.subr.mxu0 0.0
        %3272 = vmatpush2.msra.mxu0 0.0
        %3273 = vmatprep.subr.mxu0 0.0
        %3274 = vmatpush2.msra.mxu0 0.0
        %3275 = vmatprep.subr.mxu0 0.0
        %3276 = vmatpush2.msra.mxu0 0.0
        %3277 = vmatprep.subr.mxu0 0.0
        %3278 = vmatpush2.msra.mxu0 0.0
        %3279 = vmatprep.subr.mxu0 0.0
        %3280 = vmatpush2.msra.mxu0 0.0
        %3281 = vmatprep.subr.mxu0 0.0
        %3282 = vmatpush2.msra.mxu0 0.0
        %3283 = vmatprep.subr.mxu0 0.0
        %3284 = vmatpush2.msra.mxu0 0.0
        %3285 = vmatprep.subr.mxu0 0.0
        %3286 = vmatpush2.msra.mxu0 0.0
        %3287 = vmatprep.subr.mxu0 0.0
        %3288 = vmatpush2.msra.mxu0 0.0
        %3289 = vmatprep.subr.mxu0 0.0
        %3290 = vmatpush2.msra.mxu0 0.0
        %3291 = vmatprep.subr.mxu0 0.0
        %3292 = vmatpush2.msra.mxu0 0.0
        %3293 = vmatprep.mubr.f32.mxu0 0.0
        %3294 = vmatmul.mubr.f32.gmra.mxu0 %v1375
        %v3295 = vpop.f32.mrf.mxu0
        %v3296 = vadd.f32 0.0, %v3295
        %v3297 = vpop.f32.mrf.mxu0
        %3298 = vmatprep.mubr.f32.mxu0 0.0
        %3299 = vmatmul.mubr.f32.gmra.mxu0 %v1378
        %v3300 = vpop.f32.mrf.mxu0
        %v3301 = vadd.f32 0.0, %v3300
        %v3302 = vpop.f32.mrf.mxu0
        %3303 = vdwg.mxu0
        %v3304 = vld [vmem:[#allocation13 + $0x100] sm:$0xff]
        %v3305 = vld [vmem:[#allocation13 + $0x108] sm:$0xff]
        %v3306 = vld [vmem:[#allocation13 + $0x110] sm:$0xff]
        %v3307 = vld [vmem:[#allocation13 + $0x118] sm:$0xff]
        %v3308 = vld [vmem:[#allocation13 + $0x120] sm:$0xff]
        %v3309 = vld [vmem:[#allocation13 + $0x128] sm:$0xff]
        %v3310 = vld [vmem:[#allocation13 + $0x130] sm:$0xff]
        %v3311 = vld [vmem:[#allocation13 + $0x138] sm:$0xff]
        %v3312 = vld [vmem:[#allocation13 + $0x140] sm:$0xff]
        %v3313 = vld [vmem:[#allocation13 + $0x148] sm:$0xff]
        %v3314 = vld [vmem:[#allocation13 + $0x150] sm:$0xff]
        %v3315 = vld [vmem:[#allocation13 + $0x158] sm:$0xff]
        %v3316 = vld [vmem:[#allocation13 + $0x160] sm:$0xff]
        %v3317 = vld [vmem:[#allocation13 + $0x168] sm:$0xff]
        %v3318 = vld [vmem:[#allocation13 + $0x170] sm:$0xff]
        %v3319 = vld [vmem:[#allocation13 + $0x178] sm:$0xff]
        %3320 = vmatprep.subr.mxu0 0.0
        %3321 = vmatpush1.msra.mxu0 %v3319
        %3322 = vmatprep.subr.mxu0 0.0
        %3323 = vmatpush1.msra.mxu0 %v3318
        %3324 = vmatprep.subr.mxu0 0.0
        %3325 = vmatpush1.msra.mxu0 %v3317
        %3326 = vmatprep.subr.mxu0 0.0
        %3327 = vmatpush1.msra.mxu0 %v3316
        %3328 = vmatprep.subr.mxu0 0.0
        %3329 = vmatpush1.msra.mxu0 %v3315
        %3330 = vmatprep.subr.mxu0 0.0
        %3331 = vmatpush1.msra.mxu0 %v3314
        %3332 = vmatprep.subr.mxu0 0.0
        %3333 = vmatpush1.msra.mxu0 %v3313
        %3334 = vmatprep.subr.mxu0 0.0
        %3335 = vmatpush1.msra.mxu0 %v3312
        %3336 = vmatprep.subr.mxu0 0.0
        %3337 = vmatpush1.msra.mxu0 %v3311
        %3338 = vmatprep.subr.mxu0 0.0
        %3339 = vmatpush1.msra.mxu0 %v3310
        %3340 = vmatprep.subr.mxu0 0.0
        %3341 = vmatpush1.msra.mxu0 %v3309
        %3342 = vmatprep.subr.mxu0 0.0
        %3343 = vmatpush1.msra.mxu0 %v3308
        %3344 = vmatprep.subr.mxu0 0.0
        %3345 = vmatpush1.msra.mxu0 %v3307
        %3346 = vmatprep.subr.mxu0 0.0
        %3347 = vmatpush1.msra.mxu0 %v3306
        %3348 = vmatprep.subr.mxu0 0.0
        %3349 = vmatpush1.msra.mxu0 %v3305
        %3350 = vmatprep.subr.mxu0 0.0
        %3351 = vmatpush1.msra.mxu0 %v3304
        %3352 = vmatprep.subr.mxu0 0.0
        %3353 = vmatpush2.msra.mxu0 0.0
        %3354 = vmatprep.subr.mxu0 0.0
        %3355 = vmatpush2.msra.mxu0 0.0
        %3356 = vmatprep.subr.mxu0 0.0
        %3357 = vmatpush2.msra.mxu0 0.0
        %3358 = vmatprep.subr.mxu0 0.0
        %3359 = vmatpush2.msra.mxu0 0.0
        %3360 = vmatprep.subr.mxu0 0.0
        %3361 = vmatpush2.msra.mxu0 0.0
        %3362 = vmatprep.subr.mxu0 0.0
        %3363 = vmatpush2.msra.mxu0 0.0
        %3364 = vmatprep.subr.mxu0 0.0
        %3365 = vmatpush2.msra.mxu0 0.0
        %3366 = vmatprep.subr.mxu0 0.0
        %3367 = vmatpush2.msra.mxu0 0.0
        %3368 = vmatprep.subr.mxu0 0.0
        %3369 = vmatpush2.msra.mxu0 0.0
        %3370 = vmatprep.subr.mxu0 0.0
        %3371 = vmatpush2.msra.mxu0 0.0
        %3372 = vmatprep.subr.mxu0 0.0
        %3373 = vmatpush2.msra.mxu0 0.0
        %3374 = vmatprep.subr.mxu0 0.0
        %3375 = vmatpush2.msra.mxu0 0.0
        %3376 = vmatprep.subr.mxu0 0.0
        %3377 = vmatpush2.msra.mxu0 0.0
        %3378 = vmatprep.subr.mxu0 0.0
        %3379 = vmatpush2.msra.mxu0 0.0
        %3380 = vmatprep.subr.mxu0 0.0
        %3381 = vmatpush2.msra.mxu0 0.0
        %3382 = vmatprep.subr.mxu0 0.0
        %3383 = vmatpush2.msra.mxu0 0.0
        %3384 = vmatprep.mubr.f32.mxu0 0.0
        %3385 = vmatmul.mubr.f32.gmra.mxu0 %v3296
        %v3386 = vpop.f32.mrf.mxu0
        %v3387 = vadd.f32 0.0, %v3386
        %v3388 = vpop.f32.mrf.mxu0
        %3389 = vmatprep.mubr.f32.mxu0 0.0
        %3390 = vmatmul.mubr.f32.gmra.mxu0 %v3301
        %v3391 = vpop.f32.mrf.mxu0
        %v3392 = vadd.f32 0.0, %v3391
        %v3393 = vpop.f32.mrf.mxu0
        %3394 = vdwg.mxu0
        %v3395 = vadd.f32 %v3221, %v3387
        %v3396 = vadd.f32 %v3226, %v3392
        %3397 = vmatprep.subr.mxu0 0.0
        %3398 = vmatpush1.msra.mxu0 0.0
        %3399 = vmatprep.subr.mxu0 0.0
        %3400 = vmatpush1.msra.mxu0 0.0
        %3401 = vmatprep.subr.mxu0 0.0
        %3402 = vmatpush1.msra.mxu0 0.0
        %3403 = vmatprep.subr.mxu0 0.0
        %3404 = vmatpush1.msra.mxu0 0.0
        %3405 = vmatprep.subr.mxu0 0.0
        %3406 = vmatpush1.msra.mxu0 0.0
        %3407 = vmatprep.subr.mxu0 0.0
        %3408 = vmatpush1.msra.mxu0 0.0
        %3409 = vmatprep.subr.mxu0 0.0
        %3410 = vmatpush1.msra.mxu0 0.0
        %3411 = vmatprep.subr.mxu0 0.0
        %3412 = vmatpush1.msra.mxu0 0.0
        %3413 = vmatprep.subr.mxu0 0.0
        %3414 = vmatpush1.msra.mxu0 0.0
        %3415 = vmatprep.subr.mxu0 0.0
        %3416 = vmatpush1.msra.mxu0 0.0
        %3417 = vmatprep.subr.mxu0 0.0
        %3418 = vmatpush1.msra.mxu0 0.0
        %3419 = vmatprep.subr.mxu0 0.0
        %3420 = vmatpush1.msra.mxu0 0.0
        %3421 = vmatprep.subr.mxu0 0.0
        %3422 = vmatpush1.msra.mxu0 0.0
        %3423 = vmatprep.subr.mxu0 0.0
        %3424 = vmatpush1.msra.mxu0 0.0
        %3425 = vmatprep.subr.mxu0 0.0
        %3426 = vmatpush1.msra.mxu0 %v2896
        %3427 = vmatprep.subr.mxu0 0.0
        %3428 = vmatpush1.msra.mxu0 %v2895
        %3429 = vmatprep.subr.mxu0 0.0
        %3430 = vmatpush2.msra.mxu0 0.0
        %3431 = vmatprep.subr.mxu0 0.0
        %3432 = vmatpush2.msra.mxu0 0.0
        %3433 = vmatprep.subr.mxu0 0.0
        %3434 = vmatpush2.msra.mxu0 0.0
        %3435 = vmatprep.subr.mxu0 0.0
        %3436 = vmatpush2.msra.mxu0 0.0
        %3437 = vmatprep.subr.mxu0 0.0
        %3438 = vmatpush2.msra.mxu0 0.0
        %3439 = vmatprep.subr.mxu0 0.0
        %3440 = vmatpush2.msra.mxu0 0.0
        %3441 = vmatprep.subr.mxu0 0.0
        %3442 = vmatpush2.msra.mxu0 0.0
        %3443 = vmatprep.subr.mxu0 0.0
        %3444 = vmatpush2.msra.mxu0 0.0
        %3445 = vmatprep.subr.mxu0 0.0
        %3446 = vmatpush2.msra.mxu0 0.0
        %3447 = vmatprep.subr.mxu0 0.0
        %3448 = vmatpush2.msra.mxu0 0.0
        %3449 = vmatprep.subr.mxu0 0.0
        %3450 = vmatpush2.msra.mxu0 0.0
        %3451 = vmatprep.subr.mxu0 0.0
        %3452 = vmatpush2.msra.mxu0 0.0
        %3453 = vmatprep.subr.mxu0 0.0
        %3454 = vmatpush2.msra.mxu0 0.0
        %3455 = vmatprep.subr.mxu0 0.0
        %3456 = vmatpush2.msra.mxu0 0.0
        %3457 = vmatprep.subr.mxu0 0.0
        %3458 = vmatpush2.msra.mxu0 0.0
        %3459 = vmatprep.subr.mxu0 0.0
        %3460 = vmatpush2.msra.mxu0 0.0
        %3461 = vmatprep.mubr.f32.mxu0 0.0
        %3462 = vmatmul.mubr.f32.gmra.mxu0 %v1542
        %v3463 = vpop.f32.mrf.mxu0
        %v3464 = vadd.f32 0.0, %v3463
        %v3465 = vpop.f32.mrf.mxu0
        %3466 = vmatprep.mubr.f32.mxu0 0.0
        %3467 = vmatmul.mubr.f32.gmra.mxu0 %v1545
        %v3468 = vpop.f32.mrf.mxu0
        %v3469 = vadd.f32 0.0, %v3468
        %v3470 = vpop.f32.mrf.mxu0
        %3471 = vdwg.mxu0
        %v3472 = vld [vmem:[#allocation13 + $0x180] sm:$0xff]
        %v3473 = vld [vmem:[#allocation13 + $0x188] sm:$0xff]
        %v3474 = vld [vmem:[#allocation13 + $0x190] sm:$0xff]
        %v3475 = vld [vmem:[#allocation13 + $0x198] sm:$0xff]
        %v3476 = vld [vmem:[#allocation13 + $0x1a0] sm:$0xff]
        %v3477 = vld [vmem:[#allocation13 + $0x1a8] sm:$0xff]
        %v3478 = vld [vmem:[#allocation13 + $0x1b0] sm:$0xff]
        %v3479 = vld [vmem:[#allocation13 + $0x1b8] sm:$0xff]
        %v3480 = vld [vmem:[#allocation13 + $0x1c0] sm:$0xff]
        %v3481 = vld [vmem:[#allocation13 + $0x1c8] sm:$0xff]
        %v3482 = vld [vmem:[#allocation13 + $0x1d0] sm:$0xff]
        %v3483 = vld [vmem:[#allocation13 + $0x1d8] sm:$0xff]
        %v3484 = vld [vmem:[#allocation13 + $0x1e0] sm:$0xff]
        %v3485 = vld [vmem:[#allocation13 + $0x1e8] sm:$0xff]
        %v3486 = vld [vmem:[#allocation13 + $0x1f0] sm:$0xff]
        %v3487 = vld [vmem:[#allocation13 + $0x1f8] sm:$0xff]
        %3488 = vmatprep.subr.mxu0 0.0
        %3489 = vmatpush1.msra.mxu0 %v3487
        %3490 = vmatprep.subr.mxu0 0.0
        %3491 = vmatpush1.msra.mxu0 %v3486
        %3492 = vmatprep.subr.mxu0 0.0
        %3493 = vmatpush1.msra.mxu0 %v3485
        %3494 = vmatprep.subr.mxu0 0.0
        %3495 = vmatpush1.msra.mxu0 %v3484
        %3496 = vmatprep.subr.mxu0 0.0
        %3497 = vmatpush1.msra.mxu0 %v3483
        %3498 = vmatprep.subr.mxu0 0.0
        %3499 = vmatpush1.msra.mxu0 %v3482
        %3500 = vmatprep.subr.mxu0 0.0
        %3501 = vmatpush1.msra.mxu0 %v3481
        %3502 = vmatprep.subr.mxu0 0.0
        %3503 = vmatpush1.msra.mxu0 %v3480
        %3504 = vmatprep.subr.mxu0 0.0
        %3505 = vmatpush1.msra.mxu0 %v3479
        %3506 = vmatprep.subr.mxu0 0.0
        %3507 = vmatpush1.msra.mxu0 %v3478
        %3508 = vmatprep.subr.mxu0 0.0
        %3509 = vmatpush1.msra.mxu0 %v3477
        %3510 = vmatprep.subr.mxu0 0.0
        %3511 = vmatpush1.msra.mxu0 %v3476
        %3512 = vmatprep.subr.mxu0 0.0
        %3513 = vmatpush1.msra.mxu0 %v3475
        %3514 = vmatprep.subr.mxu0 0.0
        %3515 = vmatpush1.msra.mxu0 %v3474
        %3516 = vmatprep.subr.mxu0 0.0
        %3517 = vmatpush1.msra.mxu0 %v3473
        %3518 = vmatprep.subr.mxu0 0.0
        %3519 = vmatpush1.msra.mxu0 %v3472
        %3520 = vmatprep.subr.mxu0 0.0
        %3521 = vmatpush2.msra.mxu0 0.0
        %3522 = vmatprep.subr.mxu0 0.0
        %3523 = vmatpush2.msra.mxu0 0.0
        %3524 = vmatprep.subr.mxu0 0.0
        %3525 = vmatpush2.msra.mxu0 0.0
        %3526 = vmatprep.subr.mxu0 0.0
        %3527 = vmatpush2.msra.mxu0 0.0
        %3528 = vmatprep.subr.mxu0 0.0
        %3529 = vmatpush2.msra.mxu0 0.0
        %3530 = vmatprep.subr.mxu0 0.0
        %3531 = vmatpush2.msra.mxu0 0.0
        %3532 = vmatprep.subr.mxu0 0.0
        %3533 = vmatpush2.msra.mxu0 0.0
        %3534 = vmatprep.subr.mxu0 0.0
        %3535 = vmatpush2.msra.mxu0 0.0
        %3536 = vmatprep.subr.mxu0 0.0
        %3537 = vmatpush2.msra.mxu0 0.0
        %3538 = vmatprep.subr.mxu0 0.0
        %3539 = vmatpush2.msra.mxu0 0.0
        %3540 = vmatprep.subr.mxu0 0.0
        %3541 = vmatpush2.msra.mxu0 0.0
        %3542 = vmatprep.subr.mxu0 0.0
        %3543 = vmatpush2.msra.mxu0 0.0
        %3544 = vmatprep.subr.mxu0 0.0
        %3545 = vmatpush2.msra.mxu0 0.0
        %3546 = vmatprep.subr.mxu0 0.0
        %3547 = vmatpush2.msra.mxu0 0.0
        %3548 = vmatprep.subr.mxu0 0.0
        %3549 = vmatpush2.msra.mxu0 0.0
        %3550 = vmatprep.subr.mxu0 0.0
        %3551 = vmatpush2.msra.mxu0 0.0
        %3552 = vmatprep.mubr.f32.mxu0 0.0
        %3553 = vmatmul.mubr.f32.gmra.mxu0 %v3464
        %v3554 = vpop.f32.mrf.mxu0
        %v3555 = vadd.f32 0.0, %v3554
        %v3556 = vpop.f32.mrf.mxu0
        %3557 = vmatprep.mubr.f32.mxu0 0.0
        %3558 = vmatmul.mubr.f32.gmra.mxu0 %v3469
        %v3559 = vpop.f32.mrf.mxu0
        %v3560 = vadd.f32 0.0, %v3559
        %v3561 = vpop.f32.mrf.mxu0
        %3562 = vdwg.mxu0
        %v3563 = vadd.f32 %v3395, %v3555
        %v3564 = vadd.f32 %v3396, %v3560
        %3565 = vmatprep.subr.mxu0 0.0
        %3566 = vmatpush1.msra.mxu0 0.0
        %3567 = vmatprep.subr.mxu0 0.0
        %3568 = vmatpush1.msra.mxu0 0.0
        %3569 = vmatprep.subr.mxu0 0.0
        %3570 = vmatpush1.msra.mxu0 0.0
        %3571 = vmatprep.subr.mxu0 0.0
        %3572 = vmatpush1.msra.mxu0 0.0
        %3573 = vmatprep.subr.mxu0 0.0
        %3574 = vmatpush1.msra.mxu0 0.0
        %3575 = vmatprep.subr.mxu0 0.0
        %3576 = vmatpush1.msra.mxu0 0.0
        %3577 = vmatprep.subr.mxu0 0.0
        %3578 = vmatpush1.msra.mxu0 0.0
        %3579 = vmatprep.subr.mxu0 0.0
        %3580 = vmatpush1.msra.mxu0 0.0
        %3581 = vmatprep.subr.mxu0 0.0
        %3582 = vmatpush1.msra.mxu0 0.0
        %3583 = vmatprep.subr.mxu0 0.0
        %3584 = vmatpush1.msra.mxu0 0.0
        %3585 = vmatprep.subr.mxu0 0.0
        %3586 = vmatpush1.msra.mxu0 0.0
        %3587 = vmatprep.subr.mxu0 0.0
        %3588 = vmatpush1.msra.mxu0 0.0
        %3589 = vmatprep.subr.mxu0 0.0
        %3590 = vmatpush1.msra.mxu0 0.0
        %3591 = vmatprep.subr.mxu0 0.0
        %3592 = vmatpush1.msra.mxu0 0.0
        %3593 = vmatprep.subr.mxu0 0.0
        %3594 = vmatpush1.msra.mxu0 %v2896
        %3595 = vmatprep.subr.mxu0 0.0
        %3596 = vmatpush1.msra.mxu0 %v2895
        %3597 = vmatprep.subr.mxu0 0.0
        %3598 = vmatpush2.msra.mxu0 0.0
        %3599 = vmatprep.subr.mxu0 0.0
        %3600 = vmatpush2.msra.mxu0 0.0
        %3601 = vmatprep.subr.mxu0 0.0
        %3602 = vmatpush2.msra.mxu0 0.0
        %3603 = vmatprep.subr.mxu0 0.0
        %3604 = vmatpush2.msra.mxu0 0.0
        %3605 = vmatprep.subr.mxu0 0.0
        %3606 = vmatpush2.msra.mxu0 0.0
        %3607 = vmatprep.subr.mxu0 0.0
        %3608 = vmatpush2.msra.mxu0 0.0
        %3609 = vmatprep.subr.mxu0 0.0
        %3610 = vmatpush2.msra.mxu0 0.0
        %3611 = vmatprep.subr.mxu0 0.0
        %3612 = vmatpush2.msra.mxu0 0.0
        %3613 = vmatprep.subr.mxu0 0.0
        %3614 = vmatpush2.msra.mxu0 0.0
        %3615 = vmatprep.subr.mxu0 0.0
        %3616 = vmatpush2.msra.mxu0 0.0
        %3617 = vmatprep.subr.mxu0 0.0
        %3618 = vmatpush2.msra.mxu0 0.0
        %3619 = vmatprep.subr.mxu0 0.0
        %3620 = vmatpush2.msra.mxu0 0.0
        %3621 = vmatprep.subr.mxu0 0.0
        %3622 = vmatpush2.msra.mxu0 0.0
        %3623 = vmatprep.subr.mxu0 0.0
        %3624 = vmatpush2.msra.mxu0 0.0
        %3625 = vmatprep.subr.mxu0 0.0
        %3626 = vmatpush2.msra.mxu0 0.0
        %3627 = vmatprep.subr.mxu0 0.0
        %3628 = vmatpush2.msra.mxu0 0.0
        %3629 = vmatprep.mubr.f32.mxu0 0.0
        %3630 = vmatmul.mubr.f32.gmra.mxu0 %v1709
        %v3631 = vpop.f32.mrf.mxu0
        %v3632 = vadd.f32 0.0, %v3631
        %v3633 = vpop.f32.mrf.mxu0
        %3634 = vmatprep.mubr.f32.mxu0 0.0
        %3635 = vmatmul.mubr.f32.gmra.mxu0 %v1712
        %v3636 = vpop.f32.mrf.mxu0
        %v3637 = vadd.f32 0.0, %v3636
        %v3638 = vpop.f32.mrf.mxu0
        %3639 = vdwg.mxu0
        %v3640 = vld [vmem:[#allocation13 + $0x200] sm:$0xff]
        %v3641 = vld [vmem:[#allocation13 + $0x208] sm:$0xff]
        %v3642 = vld [vmem:[#allocation13 + $0x210] sm:$0xff]
        %v3643 = vld [vmem:[#allocation13 + $0x218] sm:$0xff]
        %v3644 = vld [vmem:[#allocation13 + $0x220] sm:$0xff]
        %v3645 = vld [vmem:[#allocation13 + $0x228] sm:$0xff]
        %v3646 = vld [vmem:[#allocation13 + $0x230] sm:$0xff]
        %v3647 = vld [vmem:[#allocation13 + $0x238] sm:$0xff]
        %v3648 = vld [vmem:[#allocation13 + $0x240] sm:$0xff]
        %v3649 = vld [vmem:[#allocation13 + $0x248] sm:$0xff]
        %v3650 = vld [vmem:[#allocation13 + $0x250] sm:$0xff]
        %v3651 = vld [vmem:[#allocation13 + $0x258] sm:$0xff]
        %v3652 = vld [vmem:[#allocation13 + $0x260] sm:$0xff]
        %v3653 = vld [vmem:[#allocation13 + $0x268] sm:$0xff]
        %v3654 = vld [vmem:[#allocation13 + $0x270] sm:$0xff]
        %v3655 = vld [vmem:[#allocation13 + $0x278] sm:$0xff]
        %3656 = vmatprep.subr.mxu0 0.0
        %3657 = vmatpush1.msra.mxu0 %v3655
        %3658 = vmatprep.subr.mxu0 0.0
        %3659 = vmatpush1.msra.mxu0 %v3654
        %3660 = vmatprep.subr.mxu0 0.0
        %3661 = vmatpush1.msra.mxu0 %v3653
        %3662 = vmatprep.subr.mxu0 0.0
        %3663 = vmatpush1.msra.mxu0 %v3652
        %3664 = vmatprep.subr.mxu0 0.0
        %3665 = vmatpush1.msra.mxu0 %v3651
        %3666 = vmatprep.subr.mxu0 0.0
        %3667 = vmatpush1.msra.mxu0 %v3650
        %3668 = vmatprep.subr.mxu0 0.0
        %3669 = vmatpush1.msra.mxu0 %v3649
        %3670 = vmatprep.subr.mxu0 0.0
        %3671 = vmatpush1.msra.mxu0 %v3648
        %3672 = vmatprep.subr.mxu0 0.0
        %3673 = vmatpush1.msra.mxu0 %v3647
        %3674 = vmatprep.subr.mxu0 0.0
        %3675 = vmatpush1.msra.mxu0 %v3646
        %3676 = vmatprep.subr.mxu0 0.0
        %3677 = vmatpush1.msra.mxu0 %v3645
        %3678 = vmatprep.subr.mxu0 0.0
        %3679 = vmatpush1.msra.mxu0 %v3644
        %3680 = vmatprep.subr.mxu0 0.0
        %3681 = vmatpush1.msra.mxu0 %v3643
        %3682 = vmatprep.subr.mxu0 0.0
        %3683 = vmatpush1.msra.mxu0 %v3642
        %3684 = vmatprep.subr.mxu0 0.0
        %3685 = vmatpush1.msra.mxu0 %v3641
        %3686 = vmatprep.subr.mxu0 0.0
        %3687 = vmatpush1.msra.mxu0 %v3640
        %3688 = vmatprep.subr.mxu0 0.0
        %3689 = vmatpush2.msra.mxu0 0.0
        %3690 = vmatprep.subr.mxu0 0.0
        %3691 = vmatpush2.msra.mxu0 0.0
        %3692 = vmatprep.subr.mxu0 0.0
        %3693 = vmatpush2.msra.mxu0 0.0
        %3694 = vmatprep.subr.mxu0 0.0
        %3695 = vmatpush2.msra.mxu0 0.0
        %3696 = vmatprep.subr.mxu0 0.0
        %3697 = vmatpush2.msra.mxu0 0.0
        %3698 = vmatprep.subr.mxu0 0.0
        %3699 = vmatpush2.msra.mxu0 0.0
        %3700 = vmatprep.subr.mxu0 0.0
        %3701 = vmatpush2.msra.mxu0 0.0
        %3702 = vmatprep.subr.mxu0 0.0
        %3703 = vmatpush2.msra.mxu0 0.0
        %3704 = vmatprep.subr.mxu0 0.0
        %3705 = vmatpush2.msra.mxu0 0.0
        %3706 = vmatprep.subr.mxu0 0.0
        %3707 = vmatpush2.msra.mxu0 0.0
        %3708 = vmatprep.subr.mxu0 0.0
        %3709 = vmatpush2.msra.mxu0 0.0
        %3710 = vmatprep.subr.mxu0 0.0
        %3711 = vmatpush2.msra.mxu0 0.0
        %3712 = vmatprep.subr.mxu0 0.0
        %3713 = vmatpush2.msra.mxu0 0.0
        %3714 = vmatprep.subr.mxu0 0.0
        %3715 = vmatpush2.msra.mxu0 0.0
        %3716 = vmatprep.subr.mxu0 0.0
        %3717 = vmatpush2.msra.mxu0 0.0
        %3718 = vmatprep.subr.mxu0 0.0
        %3719 = vmatpush2.msra.mxu0 0.0
        %3720 = vmatprep.mubr.f32.mxu0 0.0
        %3721 = vmatmul.mubr.f32.gmra.mxu0 %v3632
        %v3722 = vpop.f32.mrf.mxu0
        %v3723 = vadd.f32 0.0, %v3722
        %v3724 = vpop.f32.mrf.mxu0
        %3725 = vmatprep.mubr.f32.mxu0 0.0
        %3726 = vmatmul.mubr.f32.gmra.mxu0 %v3637
        %v3727 = vpop.f32.mrf.mxu0
        %v3728 = vadd.f32 0.0, %v3727
        %v3729 = vpop.f32.mrf.mxu0
        %3730 = vdwg.mxu0
        %v3731 = vadd.f32 %v3563, %v3723
        %v3732 = vadd.f32 %v3564, %v3728
        %3733 = vmatprep.subr.mxu0 0.0
        %3734 = vmatpush1.msra.mxu0 0.0
        %3735 = vmatprep.subr.mxu0 0.0
        %3736 = vmatpush1.msra.mxu0 0.0
        %3737 = vmatprep.subr.mxu0 0.0
        %3738 = vmatpush1.msra.mxu0 0.0
        %3739 = vmatprep.subr.mxu0 0.0
        %3740 = vmatpush1.msra.mxu0 0.0
        %3741 = vmatprep.subr.mxu0 0.0
        %3742 = vmatpush1.msra.mxu0 0.0
        %3743 = vmatprep.subr.mxu0 0.0
        %3744 = vmatpush1.msra.mxu0 0.0
        %3745 = vmatprep.subr.mxu0 0.0
        %3746 = vmatpush1.msra.mxu0 0.0
        %3747 = vmatprep.subr.mxu0 0.0
        %3748 = vmatpush1.msra.mxu0 0.0
        %3749 = vmatprep.subr.mxu0 0.0
        %3750 = vmatpush1.msra.mxu0 0.0
        %3751 = vmatprep.subr.mxu0 0.0
        %3752 = vmatpush1.msra.mxu0 0.0
        %3753 = vmatprep.subr.mxu0 0.0
        %3754 = vmatpush1.msra.mxu0 0.0
        %3755 = vmatprep.subr.mxu0 0.0
        %3756 = vmatpush1.msra.mxu0 0.0
        %3757 = vmatprep.subr.mxu0 0.0
        %3758 = vmatpush1.msra.mxu0 0.0
        %3759 = vmatprep.subr.mxu0 0.0
        %3760 = vmatpush1.msra.mxu0 0.0
        %3761 = vmatprep.subr.mxu0 0.0
        %3762 = vmatpush1.msra.mxu0 %v2896
        %3763 = vmatprep.subr.mxu0 0.0
        %3764 = vmatpush1.msra.mxu0 %v2895
        %3765 = vmatprep.subr.mxu0 0.0
        %3766 = vmatpush2.msra.mxu0 0.0
        %3767 = vmatprep.subr.mxu0 0.0
        %3768 = vmatpush2.msra.mxu0 0.0
        %3769 = vmatprep.subr.mxu0 0.0
        %3770 = vmatpush2.msra.mxu0 0.0
        %3771 = vmatprep.subr.mxu0 0.0
        %3772 = vmatpush2.msra.mxu0 0.0
        %3773 = vmatprep.subr.mxu0 0.0
        %3774 = vmatpush2.msra.mxu0 0.0
        %3775 = vmatprep.subr.mxu0 0.0
        %3776 = vmatpush2.msra.mxu0 0.0
        %3777 = vmatprep.subr.mxu0 0.0
        %3778 = vmatpush2.msra.mxu0 0.0
        %3779 = vmatprep.subr.mxu0 0.0
        %3780 = vmatpush2.msra.mxu0 0.0
        %3781 = vmatprep.subr.mxu0 0.0
        %3782 = vmatpush2.msra.mxu0 0.0
        %3783 = vmatprep.subr.mxu0 0.0
        %3784 = vmatpush2.msra.mxu0 0.0
        %3785 = vmatprep.subr.mxu0 0.0
        %3786 = vmatpush2.msra.mxu0 0.0
        %3787 = vmatprep.subr.mxu0 0.0
        %3788 = vmatpush2.msra.mxu0 0.0
        %3789 = vmatprep.subr.mxu0 0.0
        %3790 = vmatpush2.msra.mxu0 0.0
        %3791 = vmatprep.subr.mxu0 0.0
        %3792 = vmatpush2.msra.mxu0 0.0
        %3793 = vmatprep.subr.mxu0 0.0
        %3794 = vmatpush2.msra.mxu0 0.0
        %3795 = vmatprep.subr.mxu0 0.0
        %3796 = vmatpush2.msra.mxu0 0.0
        %3797 = vmatprep.mubr.f32.mxu0 0.0
        %3798 = vmatmul.mubr.f32.gmra.mxu0 %v1876
        %v3799 = vpop.f32.mrf.mxu0
        %v3800 = vadd.f32 0.0, %v3799
        %v3801 = vpop.f32.mrf.mxu0
        %3802 = vmatprep.mubr.f32.mxu0 0.0
        %3803 = vmatmul.mubr.f32.gmra.mxu0 %v1879
        %v3804 = vpop.f32.mrf.mxu0
        %v3805 = vadd.f32 0.0, %v3804
        %v3806 = vpop.f32.mrf.mxu0
        %3807 = vdwg.mxu0
        %v3808 = vld [vmem:[#allocation13 + $0x280] sm:$0xff]
        %v3809 = vld [vmem:[#allocation13 + $0x288] sm:$0xff]
        %v3810 = vld [vmem:[#allocation13 + $0x290] sm:$0xff]
        %v3811 = vld [vmem:[#allocation13 + $0x298] sm:$0xff]
        %v3812 = vld [vmem:[#allocation13 + $0x2a0] sm:$0xff]
        %v3813 = vld [vmem:[#allocation13 + $0x2a8] sm:$0xff]
        %v3814 = vld [vmem:[#allocation13 + $0x2b0] sm:$0xff]
        %v3815 = vld [vmem:[#allocation13 + $0x2b8] sm:$0xff]
        %v3816 = vld [vmem:[#allocation13 + $0x2c0] sm:$0xff]
        %v3817 = vld [vmem:[#allocation13 + $0x2c8] sm:$0xff]
        %v3818 = vld [vmem:[#allocation13 + $0x2d0] sm:$0xff]
        %v3819 = vld [vmem:[#allocation13 + $0x2d8] sm:$0xff]
        %v3820 = vld [vmem:[#allocation13 + $0x2e0] sm:$0xff]
        %v3821 = vld [vmem:[#allocation13 + $0x2e8] sm:$0xff]
        %v3822 = vld [vmem:[#allocation13 + $0x2f0] sm:$0xff]
        %v3823 = vld [vmem:[#allocation13 + $0x2f8] sm:$0xff]
        %3824 = vmatprep.subr.mxu0 0.0
        %3825 = vmatpush1.msra.mxu0 %v3823
        %3826 = vmatprep.subr.mxu0 0.0
        %3827 = vmatpush1.msra.mxu0 %v3822
        %3828 = vmatprep.subr.mxu0 0.0
        %3829 = vmatpush1.msra.mxu0 %v3821
        %3830 = vmatprep.subr.mxu0 0.0
        %3831 = vmatpush1.msra.mxu0 %v3820
        %3832 = vmatprep.subr.mxu0 0.0
        %3833 = vmatpush1.msra.mxu0 %v3819
        %3834 = vmatprep.subr.mxu0 0.0
        %3835 = vmatpush1.msra.mxu0 %v3818
        %3836 = vmatprep.subr.mxu0 0.0
        %3837 = vmatpush1.msra.mxu0 %v3817
        %3838 = vmatprep.subr.mxu0 0.0
        %3839 = vmatpush1.msra.mxu0 %v3816
        %3840 = vmatprep.subr.mxu0 0.0
        %3841 = vmatpush1.msra.mxu0 %v3815
        %3842 = vmatprep.subr.mxu0 0.0
        %3843 = vmatpush1.msra.mxu0 %v3814
        %3844 = vmatprep.subr.mxu0 0.0
        %3845 = vmatpush1.msra.mxu0 %v3813
        %3846 = vmatprep.subr.mxu0 0.0
        %3847 = vmatpush1.msra.mxu0 %v3812
        %3848 = vmatprep.subr.mxu0 0.0
        %3849 = vmatpush1.msra.mxu0 %v3811
        %3850 = vmatprep.subr.mxu0 0.0
        %3851 = vmatpush1.msra.mxu0 %v3810
        %3852 = vmatprep.subr.mxu0 0.0
        %3853 = vmatpush1.msra.mxu0 %v3809
        %3854 = vmatprep.subr.mxu0 0.0
        %3855 = vmatpush1.msra.mxu0 %v3808
        %3856 = vmatprep.subr.mxu0 0.0
        %3857 = vmatpush2.msra.mxu0 0.0
        %3858 = vmatprep.subr.mxu0 0.0
        %3859 = vmatpush2.msra.mxu0 0.0
        %3860 = vmatprep.subr.mxu0 0.0
        %3861 = vmatpush2.msra.mxu0 0.0
        %3862 = vmatprep.subr.mxu0 0.0
        %3863 = vmatpush2.msra.mxu0 0.0
        %3864 = vmatprep.subr.mxu0 0.0
        %3865 = vmatpush2.msra.mxu0 0.0
        %3866 = vmatprep.subr.mxu0 0.0
        %3867 = vmatpush2.msra.mxu0 0.0
        %3868 = vmatprep.subr.mxu0 0.0
        %3869 = vmatpush2.msra.mxu0 0.0
        %3870 = vmatprep.subr.mxu0 0.0
        %3871 = vmatpush2.msra.mxu0 0.0
        %3872 = vmatprep.subr.mxu0 0.0
        %3873 = vmatpush2.msra.mxu0 0.0
        %3874 = vmatprep.subr.mxu0 0.0
        %3875 = vmatpush2.msra.mxu0 0.0
        %3876 = vmatprep.subr.mxu0 0.0
        %3877 = vmatpush2.msra.mxu0 0.0
        %3878 = vmatprep.subr.mxu0 0.0
        %3879 = vmatpush2.msra.mxu0 0.0
        %3880 = vmatprep.subr.mxu0 0.0
        %3881 = vmatpush2.msra.mxu0 0.0
        %3882 = vmatprep.subr.mxu0 0.0
        %3883 = vmatpush2.msra.mxu0 0.0
        %3884 = vmatprep.subr.mxu0 0.0
        %3885 = vmatpush2.msra.mxu0 0.0
        %3886 = vmatprep.subr.mxu0 0.0
        %3887 = vmatpush2.msra.mxu0 0.0
        %3888 = vmatprep.mubr.f32.mxu0 0.0
        %3889 = vmatmul.mubr.f32.gmra.mxu0 %v3800
        %v3890 = vpop.f32.mrf.mxu0
        %v3891 = vadd.f32 0.0, %v3890
        %v3892 = vpop.f32.mrf.mxu0
        %3893 = vmatprep.mubr.f32.mxu0 0.0
        %3894 = vmatmul.mubr.f32.gmra.mxu0 %v3805
        %v3895 = vpop.f32.mrf.mxu0
        %v3896 = vadd.f32 0.0, %v3895
        %v3897 = vpop.f32.mrf.mxu0
        %3898 = vdwg.mxu0
        %v3899 = vadd.f32 %v3731, %v3891
        %v3900 = vadd.f32 %v3732, %v3896
        %3901 = vmatprep.subr.mxu0 0.0
        %3902 = vmatpush1.msra.mxu0 0.0
        %3903 = vmatprep.subr.mxu0 0.0
        %3904 = vmatpush1.msra.mxu0 0.0
        %3905 = vmatprep.subr.mxu0 0.0
        %3906 = vmatpush1.msra.mxu0 0.0
        %3907 = vmatprep.subr.mxu0 0.0
        %3908 = vmatpush1.msra.mxu0 0.0
        %3909 = vmatprep.subr.mxu0 0.0
        %3910 = vmatpush1.msra.mxu0 0.0
        %3911 = vmatprep.subr.mxu0 0.0
        %3912 = vmatpush1.msra.mxu0 0.0
        %3913 = vmatprep.subr.mxu0 0.0
        %3914 = vmatpush1.msra.mxu0 0.0
        %3915 = vmatprep.subr.mxu0 0.0
        %3916 = vmatpush1.msra.mxu0 0.0
        %3917 = vmatprep.subr.mxu0 0.0
        %3918 = vmatpush1.msra.mxu0 0.0
        %3919 = vmatprep.subr.mxu0 0.0
        %3920 = vmatpush1.msra.mxu0 0.0
        %3921 = vmatprep.subr.mxu0 0.0
        %3922 = vmatpush1.msra.mxu0 0.0
        %3923 = vmatprep.subr.mxu0 0.0
        %3924 = vmatpush1.msra.mxu0 0.0
        %3925 = vmatprep.subr.mxu0 0.0
        %3926 = vmatpush1.msra.mxu0 0.0
        %3927 = vmatprep.subr.mxu0 0.0
        %3928 = vmatpush1.msra.mxu0 0.0
        %3929 = vmatprep.subr.mxu0 0.0
        %3930 = vmatpush1.msra.mxu0 %v2896
        %3931 = vmatprep.subr.mxu0 0.0
        %3932 = vmatpush1.msra.mxu0 %v2895
        %3933 = vmatprep.subr.mxu0 0.0
        %3934 = vmatpush2.msra.mxu0 0.0
        %3935 = vmatprep.subr.mxu0 0.0
        %3936 = vmatpush2.msra.mxu0 0.0
        %3937 = vmatprep.subr.mxu0 0.0
        %3938 = vmatpush2.msra.mxu0 0.0
        %3939 = vmatprep.subr.mxu0 0.0
        %3940 = vmatpush2.msra.mxu0 0.0
        %3941 = vmatprep.subr.mxu0 0.0
        %3942 = vmatpush2.msra.mxu0 0.0
        %3943 = vmatprep.subr.mxu0 0.0
        %3944 = vmatpush2.msra.mxu0 0.0
        %3945 = vmatprep.subr.mxu0 0.0
        %3946 = vmatpush2.msra.mxu0 0.0
        %3947 = vmatprep.subr.mxu0 0.0
        %3948 = vmatpush2.msra.mxu0 0.0
        %3949 = vmatprep.subr.mxu0 0.0
        %3950 = vmatpush2.msra.mxu0 0.0
        %3951 = vmatprep.subr.mxu0 0.0
        %3952 = vmatpush2.msra.mxu0 0.0
        %3953 = vmatprep.subr.mxu0 0.0
        %3954 = vmatpush2.msra.mxu0 0.0
        %3955 = vmatprep.subr.mxu0 0.0
        %3956 = vmatpush2.msra.mxu0 0.0
        %3957 = vmatprep.subr.mxu0 0.0
        %3958 = vmatpush2.msra.mxu0 0.0
        %3959 = vmatprep.subr.mxu0 0.0
        %3960 = vmatpush2.msra.mxu0 0.0
        %3961 = vmatprep.subr.mxu0 0.0
        %3962 = vmatpush2.msra.mxu0 0.0
        %3963 = vmatprep.subr.mxu0 0.0
        %3964 = vmatpush2.msra.mxu0 0.0
        %3965 = vmatprep.mubr.f32.mxu0 0.0
        %3966 = vmatmul.mubr.f32.gmra.mxu0 %v2043
        %v3967 = vpop.f32.mrf.mxu0
        %v3968 = vadd.f32 0.0, %v3967
        %v3969 = vpop.f32.mrf.mxu0
        %3970 = vmatprep.mubr.f32.mxu0 0.0
        %3971 = vmatmul.mubr.f32.gmra.mxu0 %v2046
        %v3972 = vpop.f32.mrf.mxu0
        %v3973 = vadd.f32 0.0, %v3972
        %v3974 = vpop.f32.mrf.mxu0
        %3975 = vdwg.mxu0
        %v3976 = vld [vmem:[#allocation13 + $0x300] sm:$0xff]
        %v3977 = vld [vmem:[#allocation13 + $0x308] sm:$0xff]
        %v3978 = vld [vmem:[#allocation13 + $0x310] sm:$0xff]
        %v3979 = vld [vmem:[#allocation13 + $0x318] sm:$0xff]
        %v3980 = vld [vmem:[#allocation13 + $0x320] sm:$0xff]
        %v3981 = vld [vmem:[#allocation13 + $0x328] sm:$0xff]
        %v3982 = vld [vmem:[#allocation13 + $0x330] sm:$0xff]
        %v3983 = vld [vmem:[#allocation13 + $0x338] sm:$0xff]
        %v3984 = vld [vmem:[#allocation13 + $0x340] sm:$0xff]
        %v3985 = vld [vmem:[#allocation13 + $0x348] sm:$0xff]
        %v3986 = vld [vmem:[#allocation13 + $0x350] sm:$0xff]
        %v3987 = vld [vmem:[#allocation13 + $0x358] sm:$0xff]
        %v3988 = vld [vmem:[#allocation13 + $0x360] sm:$0xff]
        %v3989 = vld [vmem:[#allocation13 + $0x368] sm:$0xff]
        %v3990 = vld [vmem:[#allocation13 + $0x370] sm:$0xff]
        %v3991 = vld [vmem:[#allocation13 + $0x378] sm:$0xff]
        %3992 = vmatprep.subr.mxu0 0.0
        %3993 = vmatpush1.msra.mxu0 %v3991
        %3994 = vmatprep.subr.mxu0 0.0
        %3995 = vmatpush1.msra.mxu0 %v3990
        %3996 = vmatprep.subr.mxu0 0.0
        %3997 = vmatpush1.msra.mxu0 %v3989
        %3998 = vmatprep.subr.mxu0 0.0
        %3999 = vmatpush1.msra.mxu0 %v3988
        %4000 = vmatprep.subr.mxu0 0.0
        %4001 = vmatpush1.msra.mxu0 %v3987
        %4002 = vmatprep.subr.mxu0 0.0
        %4003 = vmatpush1.msra.mxu0 %v3986
        %4004 = vmatprep.subr.mxu0 0.0
        %4005 = vmatpush1.msra.mxu0 %v3985
        %4006 = vmatprep.subr.mxu0 0.0
        %4007 = vmatpush1.msra.mxu0 %v3984
        %4008 = vmatprep.subr.mxu0 0.0
        %4009 = vmatpush1.msra.mxu0 %v3983
        %4010 = vmatprep.subr.mxu0 0.0
        %4011 = vmatpush1.msra.mxu0 %v3982
        %4012 = vmatprep.subr.mxu0 0.0
        %4013 = vmatpush1.msra.mxu0 %v3981
        %4014 = vmatprep.subr.mxu0 0.0
        %4015 = vmatpush1.msra.mxu0 %v3980
        %4016 = vmatprep.subr.mxu0 0.0
        %4017 = vmatpush1.msra.mxu0 %v3979
        %4018 = vmatprep.subr.mxu0 0.0
        %4019 = vmatpush1.msra.mxu0 %v3978
        %4020 = vmatprep.subr.mxu0 0.0
        %4021 = vmatpush1.msra.mxu0 %v3977
        %4022 = vmatprep.subr.mxu0 0.0
        %4023 = vmatpush1.msra.mxu0 %v3976
        %4024 = vmatprep.subr.mxu0 0.0
        %4025 = vmatpush2.msra.mxu0 0.0
        %4026 = vmatprep.subr.mxu0 0.0
        %4027 = vmatpush2.msra.mxu0 0.0
        %4028 = vmatprep.subr.mxu0 0.0
        %4029 = vmatpush2.msra.mxu0 0.0
        %4030 = vmatprep.subr.mxu0 0.0
        %4031 = vmatpush2.msra.mxu0 0.0
        %4032 = vmatprep.subr.mxu0 0.0
        %4033 = vmatpush2.msra.mxu0 0.0
        %4034 = vmatprep.subr.mxu0 0.0
        %4035 = vmatpush2.msra.mxu0 0.0
        %4036 = vmatprep.subr.mxu0 0.0
        %4037 = vmatpush2.msra.mxu0 0.0
        %4038 = vmatprep.subr.mxu0 0.0
        %4039 = vmatpush2.msra.mxu0 0.0
        %4040 = vmatprep.subr.mxu0 0.0
        %4041 = vmatpush2.msra.mxu0 0.0
        %4042 = vmatprep.subr.mxu0 0.0
        %4043 = vmatpush2.msra.mxu0 0.0
        %4044 = vmatprep.subr.mxu0 0.0
        %4045 = vmatpush2.msra.mxu0 0.0
        %4046 = vmatprep.subr.mxu0 0.0
        %4047 = vmatpush2.msra.mxu0 0.0
        %4048 = vmatprep.subr.mxu0 0.0
        %4049 = vmatpush2.msra.mxu0 0.0
        %4050 = vmatprep.subr.mxu0 0.0
        %4051 = vmatpush2.msra.mxu0 0.0
        %4052 = vmatprep.subr.mxu0 0.0
        %4053 = vmatpush2.msra.mxu0 0.0
        %4054 = vmatprep.subr.mxu0 0.0
        %4055 = vmatpush2.msra.mxu0 0.0
        %4056 = vmatprep.mubr.f32.mxu0 0.0
        %4057 = vmatmul.mubr.f32.gmra.mxu0 %v3968
        %v4058 = vpop.f32.mrf.mxu0
        %v4059 = vadd.f32 0.0, %v4058
        %v4060 = vpop.f32.mrf.mxu0
        %4061 = vmatprep.mubr.f32.mxu0 0.0
        %4062 = vmatmul.mubr.f32.gmra.mxu0 %v3973
        %v4063 = vpop.f32.mrf.mxu0
        %v4064 = vadd.f32 0.0, %v4063
        %v4065 = vpop.f32.mrf.mxu0
        %4066 = vdwg.mxu0
        %v4067 = vadd.f32 %v3899, %v4059
        %v4068 = vadd.f32 %v3900, %v4064
        %4069 = vmatprep.subr.mxu0 0.0
        %4070 = vmatpush1.msra.mxu0 0.0
        %4071 = vmatprep.subr.mxu0 0.0
        %4072 = vmatpush1.msra.mxu0 0.0
        %4073 = vmatprep.subr.mxu0 0.0
        %4074 = vmatpush1.msra.mxu0 0.0
        %4075 = vmatprep.subr.mxu0 0.0
        %4076 = vmatpush1.msra.mxu0 0.0
        %4077 = vmatprep.subr.mxu0 0.0
        %4078 = vmatpush1.msra.mxu0 0.0
        %4079 = vmatprep.subr.mxu0 0.0
        %4080 = vmatpush1.msra.mxu0 0.0
        %4081 = vmatprep.subr.mxu0 0.0
        %4082 = vmatpush1.msra.mxu0 0.0
        %4083 = vmatprep.subr.mxu0 0.0
        %4084 = vmatpush1.msra.mxu0 0.0
        %4085 = vmatprep.subr.mxu0 0.0
        %4086 = vmatpush1.msra.mxu0 0.0
        %4087 = vmatprep.subr.mxu0 0.0
        %4088 = vmatpush1.msra.mxu0 0.0
        %4089 = vmatprep.subr.mxu0 0.0
        %4090 = vmatpush1.msra.mxu0 0.0
        %4091 = vmatprep.subr.mxu0 0.0
        %4092 = vmatpush1.msra.mxu0 0.0
        %4093 = vmatprep.subr.mxu0 0.0
        %4094 = vmatpush1.msra.mxu0 0.0
        %4095 = vmatprep.subr.mxu0 0.0
        %4096 = vmatpush1.msra.mxu0 0.0
        %4097 = vmatprep.subr.mxu0 0.0
        %4098 = vmatpush1.msra.mxu0 %v2896
        %4099 = vmatprep.subr.mxu0 0.0
        %4100 = vmatpush1.msra.mxu0 %v2895
        %4101 = vmatprep.subr.mxu0 0.0
        %4102 = vmatpush2.msra.mxu0 0.0
        %4103 = vmatprep.subr.mxu0 0.0
        %4104 = vmatpush2.msra.mxu0 0.0
        %4105 = vmatprep.subr.mxu0 0.0
        %4106 = vmatpush2.msra.mxu0 0.0
        %4107 = vmatprep.subr.mxu0 0.0
        %4108 = vmatpush2.msra.mxu0 0.0
        %4109 = vmatprep.subr.mxu0 0.0
        %4110 = vmatpush2.msra.mxu0 0.0
        %4111 = vmatprep.subr.mxu0 0.0
        %4112 = vmatpush2.msra.mxu0 0.0
        %4113 = vmatprep.subr.mxu0 0.0
        %4114 = vmatpush2.msra.mxu0 0.0
        %4115 = vmatprep.subr.mxu0 0.0
        %4116 = vmatpush2.msra.mxu0 0.0
        %4117 = vmatprep.subr.mxu0 0.0
        %4118 = vmatpush2.msra.mxu0 0.0
        %4119 = vmatprep.subr.mxu0 0.0
        %4120 = vmatpush2.msra.mxu0 0.0
        %4121 = vmatprep.subr.mxu0 0.0
        %4122 = vmatpush2.msra.mxu0 0.0
        %4123 = vmatprep.subr.mxu0 0.0
        %4124 = vmatpush2.msra.mxu0 0.0
        %4125 = vmatprep.subr.mxu0 0.0
        %4126 = vmatpush2.msra.mxu0 0.0
        %4127 = vmatprep.subr.mxu0 0.0
        %4128 = vmatpush2.msra.mxu0 0.0
        %4129 = vmatprep.subr.mxu0 0.0
        %4130 = vmatpush2.msra.mxu0 0.0
        %4131 = vmatprep.subr.mxu0 0.0
        %4132 = vmatpush2.msra.mxu0 0.0
        %4133 = vmatprep.mubr.f32.mxu0 0.0
        %4134 = vmatmul.mubr.f32.gmra.mxu0 %v2210
        %v4135 = vpop.f32.mrf.mxu0
        %v4136 = vadd.f32 0.0, %v4135
        %v4137 = vpop.f32.mrf.mxu0
        %4138 = vmatprep.mubr.f32.mxu0 0.0
        %4139 = vmatmul.mubr.f32.gmra.mxu0 %v2213
        %v4140 = vpop.f32.mrf.mxu0
        %v4141 = vadd.f32 0.0, %v4140
        %v4142 = vpop.f32.mrf.mxu0
        %4143 = vdwg.mxu0
        %v4144 = vld [vmem:[#allocation13 + $0x380] sm:$0xff]
        %v4145 = vld [vmem:[#allocation13 + $0x388] sm:$0xff]
        %v4146 = vld [vmem:[#allocation13 + $0x390] sm:$0xff]
        %v4147 = vld [vmem:[#allocation13 + $0x398] sm:$0xff]
        %v4148 = vld [vmem:[#allocation13 + $0x3a0] sm:$0xff]
        %v4149 = vld [vmem:[#allocation13 + $0x3a8] sm:$0xff]
        %v4150 = vld [vmem:[#allocation13 + $0x3b0] sm:$0xff]
        %v4151 = vld [vmem:[#allocation13 + $0x3b8] sm:$0xff]
        %v4152 = vld [vmem:[#allocation13 + $0x3c0] sm:$0xff]
        %v4153 = vld [vmem:[#allocation13 + $0x3c8] sm:$0xff]
        %v4154 = vld [vmem:[#allocation13 + $0x3d0] sm:$0xff]
        %v4155 = vld [vmem:[#allocation13 + $0x3d8] sm:$0xff]
        %v4156 = vld [vmem:[#allocation13 + $0x3e0] sm:$0xff]
        %v4157 = vld [vmem:[#allocation13 + $0x3e8] sm:$0xff]
        %v4158 = vld [vmem:[#allocation13 + $0x3f0] sm:$0xff]
        %v4159 = vld [vmem:[#allocation13 + $0x3f8] sm:$0xff]
        %4160 = vmatprep.subr.mxu0 0.0
        %4161 = vmatpush1.msra.mxu0 %v4159
        %4162 = vmatprep.subr.mxu0 0.0
        %4163 = vmatpush1.msra.mxu0 %v4158
        %4164 = vmatprep.subr.mxu0 0.0
        %4165 = vmatpush1.msra.mxu0 %v4157
        %4166 = vmatprep.subr.mxu0 0.0
        %4167 = vmatpush1.msra.mxu0 %v4156
        %4168 = vmatprep.subr.mxu0 0.0
        %4169 = vmatpush1.msra.mxu0 %v4155
        %4170 = vmatprep.subr.mxu0 0.0
        %4171 = vmatpush1.msra.mxu0 %v4154
        %4172 = vmatprep.subr.mxu0 0.0
        %4173 = vmatpush1.msra.mxu0 %v4153
        %4174 = vmatprep.subr.mxu0 0.0
        %4175 = vmatpush1.msra.mxu0 %v4152
        %4176 = vmatprep.subr.mxu0 0.0
        %4177 = vmatpush1.msra.mxu0 %v4151
        %4178 = vmatprep.subr.mxu0 0.0
        %4179 = vmatpush1.msra.mxu0 %v4150
        %4180 = vmatprep.subr.mxu0 0.0
        %4181 = vmatpush1.msra.mxu0 %v4149
        %4182 = vmatprep.subr.mxu0 0.0
        %4183 = vmatpush1.msra.mxu0 %v4148
        %4184 = vmatprep.subr.mxu0 0.0
        %4185 = vmatpush1.msra.mxu0 %v4147
        %4186 = vmatprep.subr.mxu0 0.0
        %4187 = vmatpush1.msra.mxu0 %v4146
        %4188 = vmatprep.subr.mxu0 0.0
        %4189 = vmatpush1.msra.mxu0 %v4145
        %4190 = vmatprep.subr.mxu0 0.0
        %4191 = vmatpush1.msra.mxu0 %v4144
        %4192 = vmatprep.subr.mxu0 0.0
        %4193 = vmatpush2.msra.mxu0 0.0
        %4194 = vmatprep.subr.mxu0 0.0
        %4195 = vmatpush2.msra.mxu0 0.0
        %4196 = vmatprep.subr.mxu0 0.0
        %4197 = vmatpush2.msra.mxu0 0.0
        %4198 = vmatprep.subr.mxu0 0.0
        %4199 = vmatpush2.msra.mxu0 0.0
        %4200 = vmatprep.subr.mxu0 0.0
        %4201 = vmatpush2.msra.mxu0 0.0
        %4202 = vmatprep.subr.mxu0 0.0
        %4203 = vmatpush2.msra.mxu0 0.0
        %4204 = vmatprep.subr.mxu0 0.0
        %4205 = vmatpush2.msra.mxu0 0.0
        %4206 = vmatprep.subr.mxu0 0.0
        %4207 = vmatpush2.msra.mxu0 0.0
        %4208 = vmatprep.subr.mxu0 0.0
        %4209 = vmatpush2.msra.mxu0 0.0
        %4210 = vmatprep.subr.mxu0 0.0
        %4211 = vmatpush2.msra.mxu0 0.0
        %4212 = vmatprep.subr.mxu0 0.0
        %4213 = vmatpush2.msra.mxu0 0.0
        %4214 = vmatprep.subr.mxu0 0.0
        %4215 = vmatpush2.msra.mxu0 0.0
        %4216 = vmatprep.subr.mxu0 0.0
        %4217 = vmatpush2.msra.mxu0 0.0
        %4218 = vmatprep.subr.mxu0 0.0
        %4219 = vmatpush2.msra.mxu0 0.0
        %4220 = vmatprep.subr.mxu0 0.0
        %4221 = vmatpush2.msra.mxu0 0.0
        %4222 = vmatprep.subr.mxu0 0.0
        %4223 = vmatpush2.msra.mxu0 0.0
        %4224 = vmatprep.mubr.f32.mxu0 0.0
        %4225 = vmatmul.mubr.f32.gmra.mxu0 %v4136
        %v4226 = vpop.f32.mrf.mxu0
        %v4227 = vadd.f32 0.0, %v4226
        %v4228 = vpop.f32.mrf.mxu0
        %4229 = vmatprep.mubr.f32.mxu0 0.0
        %4230 = vmatmul.mubr.f32.gmra.mxu0 %v4141
        %v4231 = vpop.f32.mrf.mxu0
        %v4232 = vadd.f32 0.0, %v4231
        %v4233 = vpop.f32.mrf.mxu0
        %4234 = vdwg.mxu0
        %v4235 = vadd.f32 %v4067, %v4227
        %v4236 = vadd.f32 %v4068, %v4232
        %4237 = vmatprep.subr.mxu0 0.0
        %4238 = vmatpush1.msra.mxu0 0.0
        %4239 = vmatprep.subr.mxu0 0.0
        %4240 = vmatpush1.msra.mxu0 0.0
        %4241 = vmatprep.subr.mxu0 0.0
        %4242 = vmatpush1.msra.mxu0 0.0
        %4243 = vmatprep.subr.mxu0 0.0
        %4244 = vmatpush1.msra.mxu0 0.0
        %4245 = vmatprep.subr.mxu0 0.0
        %4246 = vmatpush1.msra.mxu0 0.0
        %4247 = vmatprep.subr.mxu0 0.0
        %4248 = vmatpush1.msra.mxu0 0.0
        %4249 = vmatprep.subr.mxu0 0.0
        %4250 = vmatpush1.msra.mxu0 0.0
        %4251 = vmatprep.subr.mxu0 0.0
        %4252 = vmatpush1.msra.mxu0 0.0
        %4253 = vmatprep.subr.mxu0 0.0
        %4254 = vmatpush1.msra.mxu0 0.0
        %4255 = vmatprep.subr.mxu0 0.0
        %4256 = vmatpush1.msra.mxu0 0.0
        %4257 = vmatprep.subr.mxu0 0.0
        %4258 = vmatpush1.msra.mxu0 0.0
        %4259 = vmatprep.subr.mxu0 0.0
        %4260 = vmatpush1.msra.mxu0 0.0
        %4261 = vmatprep.subr.mxu0 0.0
        %4262 = vmatpush1.msra.mxu0 0.0
        %4263 = vmatprep.subr.mxu0 0.0
        %4264 = vmatpush1.msra.mxu0 0.0
        %4265 = vmatprep.subr.mxu0 0.0
        %4266 = vmatpush1.msra.mxu0 %v2896
        %4267 = vmatprep.subr.mxu0 0.0
        %4268 = vmatpush1.msra.mxu0 %v2895
        %4269 = vmatprep.subr.mxu0 0.0
        %4270 = vmatpush2.msra.mxu0 0.0
        %4271 = vmatprep.subr.mxu0 0.0
        %4272 = vmatpush2.msra.mxu0 0.0
        %4273 = vmatprep.subr.mxu0 0.0
        %4274 = vmatpush2.msra.mxu0 0.0
        %4275 = vmatprep.subr.mxu0 0.0
        %4276 = vmatpush2.msra.mxu0 0.0
        %4277 = vmatprep.subr.mxu0 0.0
        %4278 = vmatpush2.msra.mxu0 0.0
        %4279 = vmatprep.subr.mxu0 0.0
        %4280 = vmatpush2.msra.mxu0 0.0
        %4281 = vmatprep.subr.mxu0 0.0
        %4282 = vmatpush2.msra.mxu0 0.0
        %4283 = vmatprep.subr.mxu0 0.0
        %4284 = vmatpush2.msra.mxu0 0.0
        %4285 = vmatprep.subr.mxu0 0.0
        %4286 = vmatpush2.msra.mxu0 0.0
        %4287 = vmatprep.subr.mxu0 0.0
        %4288 = vmatpush2.msra.mxu0 0.0
        %4289 = vmatprep.subr.mxu0 0.0
        %4290 = vmatpush2.msra.mxu0 0.0
        %4291 = vmatprep.subr.mxu0 0.0
        %4292 = vmatpush2.msra.mxu0 0.0
        %4293 = vmatprep.subr.mxu0 0.0
        %4294 = vmatpush2.msra.mxu0 0.0
        %4295 = vmatprep.subr.mxu0 0.0
        %4296 = vmatpush2.msra.mxu0 0.0
        %4297 = vmatprep.subr.mxu0 0.0
        %4298 = vmatpush2.msra.mxu0 0.0
        %4299 = vmatprep.subr.mxu0 0.0
        %4300 = vmatpush2.msra.mxu0 0.0
        %4301 = vmatprep.mubr.f32.mxu0 0.0
        %4302 = vmatmul.mubr.f32.gmra.mxu0 %v2377
        %v4303 = vpop.f32.mrf.mxu0
        %v4304 = vadd.f32 0.0, %v4303
        %v4305 = vpop.f32.mrf.mxu0
        %4306 = vmatprep.mubr.f32.mxu0 0.0
        %4307 = vmatmul.mubr.f32.gmra.mxu0 %v2380
        %v4308 = vpop.f32.mrf.mxu0
        %v4309 = vadd.f32 0.0, %v4308
        %v4310 = vpop.f32.mrf.mxu0
        %4311 = vdwg.mxu0
        %v4312 = vld [vmem:[#allocation13 + $0x400] sm:$0xff]
        %v4313 = vld [vmem:[#allocation13 + $0x408] sm:$0xff]
        %v4314 = vld [vmem:[#allocation13 + $0x410] sm:$0xff]
        %v4315 = vld [vmem:[#allocation13 + $0x418] sm:$0xff]
        %v4316 = vld [vmem:[#allocation13 + $0x420] sm:$0xff]
        %v4317 = vld [vmem:[#allocation13 + $0x428] sm:$0xff]
        %v4318 = vld [vmem:[#allocation13 + $0x430] sm:$0xff]
        %v4319 = vld [vmem:[#allocation13 + $0x438] sm:$0xff]
        %v4320 = vld [vmem:[#allocation13 + $0x440] sm:$0xff]
        %v4321 = vld [vmem:[#allocation13 + $0x448] sm:$0xff]
        %v4322 = vld [vmem:[#allocation13 + $0x450] sm:$0xff]
        %v4323 = vld [vmem:[#allocation13 + $0x458] sm:$0xff]
        %v4324 = vld [vmem:[#allocation13 + $0x460] sm:$0xff]
        %v4325 = vld [vmem:[#allocation13 + $0x468] sm:$0xff]
        %v4326 = vld [vmem:[#allocation13 + $0x470] sm:$0xff]
        %v4327 = vld [vmem:[#allocation13 + $0x478] sm:$0xff]
        %4328 = vmatprep.subr.mxu0 0.0
        %4329 = vmatpush1.msra.mxu0 %v4327
        %4330 = vmatprep.subr.mxu0 0.0
        %4331 = vmatpush1.msra.mxu0 %v4326
        %4332 = vmatprep.subr.mxu0 0.0
        %4333 = vmatpush1.msra.mxu0 %v4325
        %4334 = vmatprep.subr.mxu0 0.0
        %4335 = vmatpush1.msra.mxu0 %v4324
        %4336 = vmatprep.subr.mxu0 0.0
        %4337 = vmatpush1.msra.mxu0 %v4323
        %4338 = vmatprep.subr.mxu0 0.0
        %4339 = vmatpush1.msra.mxu0 %v4322
        %4340 = vmatprep.subr.mxu0 0.0
        %4341 = vmatpush1.msra.mxu0 %v4321
        %4342 = vmatprep.subr.mxu0 0.0
        %4343 = vmatpush1.msra.mxu0 %v4320
        %4344 = vmatprep.subr.mxu0 0.0
        %4345 = vmatpush1.msra.mxu0 %v4319
        %4346 = vmatprep.subr.mxu0 0.0
        %4347 = vmatpush1.msra.mxu0 %v4318
        %4348 = vmatprep.subr.mxu0 0.0
        %4349 = vmatpush1.msra.mxu0 %v4317
        %4350 = vmatprep.subr.mxu0 0.0
        %4351 = vmatpush1.msra.mxu0 %v4316
        %4352 = vmatprep.subr.mxu0 0.0
        %4353 = vmatpush1.msra.mxu0 %v4315
        %4354 = vmatprep.subr.mxu0 0.0
        %4355 = vmatpush1.msra.mxu0 %v4314
        %4356 = vmatprep.subr.mxu0 0.0
        %4357 = vmatpush1.msra.mxu0 %v4313
        %4358 = vmatprep.subr.mxu0 0.0
        %4359 = vmatpush1.msra.mxu0 %v4312
        %4360 = vmatprep.subr.mxu0 0.0
        %4361 = vmatpush2.msra.mxu0 0.0
        %4362 = vmatprep.subr.mxu0 0.0
        %4363 = vmatpush2.msra.mxu0 0.0
        %4364 = vmatprep.subr.mxu0 0.0
        %4365 = vmatpush2.msra.mxu0 0.0
        %4366 = vmatprep.subr.mxu0 0.0
        %4367 = vmatpush2.msra.mxu0 0.0
        %4368 = vmatprep.subr.mxu0 0.0
        %4369 = vmatpush2.msra.mxu0 0.0
        %4370 = vmatprep.subr.mxu0 0.0
        %4371 = vmatpush2.msra.mxu0 0.0
        %4372 = vmatprep.subr.mxu0 0.0
        %4373 = vmatpush2.msra.mxu0 0.0
        %4374 = vmatprep.subr.mxu0 0.0
        %4375 = vmatpush2.msra.mxu0 0.0
        %4376 = vmatprep.subr.mxu0 0.0
        %4377 = vmatpush2.msra.mxu0 0.0
        %4378 = vmatprep.subr.mxu0 0.0
        %4379 = vmatpush2.msra.mxu0 0.0
        %4380 = vmatprep.subr.mxu0 0.0
        %4381 = vmatpush2.msra.mxu0 0.0
        %4382 = vmatprep.subr.mxu0 0.0
        %4383 = vmatpush2.msra.mxu0 0.0
        %4384 = vmatprep.subr.mxu0 0.0
        %4385 = vmatpush2.msra.mxu0 0.0
        %4386 = vmatprep.subr.mxu0 0.0
        %4387 = vmatpush2.msra.mxu0 0.0
        %4388 = vmatprep.subr.mxu0 0.0
        %4389 = vmatpush2.msra.mxu0 0.0
        %4390 = vmatprep.subr.mxu0 0.0
        %4391 = vmatpush2.msra.mxu0 0.0
        %4392 = vmatprep.mubr.f32.mxu0 0.0
        %4393 = vmatmul.mubr.f32.gmra.mxu0 %v4304
        %v4394 = vpop.f32.mrf.mxu0
        %v4395 = vadd.f32 0.0, %v4394
        %v4396 = vpop.f32.mrf.mxu0
        %4397 = vmatprep.mubr.f32.mxu0 0.0
        %4398 = vmatmul.mubr.f32.gmra.mxu0 %v4309
        %v4399 = vpop.f32.mrf.mxu0
        %v4400 = vadd.f32 0.0, %v4399
        %v4401 = vpop.f32.mrf.mxu0
        %4402 = vdwg.mxu0
        %v4403 = vadd.f32 %v4235, %v4395
        %v4404 = vadd.f32 %v4236, %v4400
        %v4405 = vld [vmem:[#allocation14] sm:$0x1]
        %v4407 = vlaneseq
        %v4408 = vshrl.u32 %v4407, 7
        %v4409 = vsub.s32 0, %v4408
        %v4410 = vrot.slane %v4405, %v4409
        %v4412 = vadd.f32 %v4403, %v4410
        %v4413 = vadd.f32 %v4404, %v4410
        %v4414 = vmul.f32 %v4412, 0.5
        %v4415 = vmul.f32 %v4413, 0.5
        %v4416 = vmul.f32 %v4412, 0.70710677
        %v4417 = vmul.f32 %v4413, 0.70710677
        %v4418 = verf.f32.pop %v4416
        %v4419 = verf.f32.pop %v4417
        %v4420 = vadd.f32 %v4418, 1.0
        %v4421 = vadd.f32 %v4419, 1.0
        %v4422 = vmul.f32 %v4414, %v4420
        %v4423 = vmul.f32 %v4415, %v4421
        %v4424 = vadd.f32 %v4422, %v4423
        %v4425 = vrot.slane %v4424, 4
        %v4426 = vadd.f32 %v4424, %v4425
        %v4427 = vrot.slane %v4426, 2
        %v4428 = vadd.f32 %v4426, %v4427
        %v4429 = vrot.slane %v4428, 1
        %v4430 = vadd.f32 %v4428, %v4429
        %4431 = vmatprep.subr.mxu0 0.0
        %4432 = vmatpush1.msra.mxu0 %v948
        %4433 = vmatprep.subr.mxu0 0.0
        %4434 = vmatpush1.msra.mxu0 %v947
        %4435 = vmatprep.subr.mxu0 0.0
        %4436 = vmatpush1.msra.mxu0 %v946
        %4437 = vmatprep.subr.mxu0 0.0
        %4438 = vmatpush1.msra.mxu0 %v945
        %4439 = vmatprep.subr.mxu0 0.0
        %4440 = vmatpush1.msra.mxu0 %v944
        %4441 = vmatprep.subr.mxu0 0.0
        %4442 = vmatpush1.msra.mxu0 %v943
        %4443 = vmatprep.subr.mxu0 0.0
        %4444 = vmatpush1.msra.mxu0 %v942
        %4445 = vmatprep.subr.mxu0 0.0
        %4446 = vmatpush1.msra.mxu0 %v941
        %4447 = vmatprep.subr.mxu0 0.0
        %4448 = vmatpush1.msra.mxu0 %v940
        %4449 = vmatprep.subr.mxu0 0.0
        %4450 = vmatpush1.msra.mxu0 %v939
        %4451 = vmatprep.subr.mxu0 0.0
        %4452 = vmatpush1.msra.mxu0 %v938
        %4453 = vmatprep.subr.mxu0 0.0
        %4454 = vmatpush1.msra.mxu0 %v937
        %4455 = vmatprep.subr.mxu0 0.0
        %4456 = vmatpush1.msra.mxu0 %v936
        %4457 = vmatprep.subr.mxu0 0.0
        %4458 = vmatpush1.msra.mxu0 %v935
        %4459 = vmatprep.subr.mxu0 0.0
        %4460 = vmatpush1.msra.mxu0 %v934
        %4461 = vmatprep.subr.mxu0 0.0
        %4462 = vmatpush1.msra.mxu0 %v933
        %4463 = vmatprep.subr.mxu0 0.0
        %4464 = vmatpush2.msra.mxu0 0.0
        %4465 = vmatprep.subr.mxu0 0.0
        %4466 = vmatpush2.msra.mxu0 0.0
        %4467 = vmatprep.subr.mxu0 0.0
        %4468 = vmatpush2.msra.mxu0 0.0
        %4469 = vmatprep.subr.mxu0 0.0
        %4470 = vmatpush2.msra.mxu0 0.0
        %4471 = vmatprep.subr.mxu0 0.0
        %4472 = vmatpush2.msra.mxu0 0.0
        %4473 = vmatprep.subr.mxu0 0.0
        %4474 = vmatpush2.msra.mxu0 0.0
        %4475 = vmatprep.subr.mxu0 0.0
        %4476 = vmatpush2.msra.mxu0 0.0
        %4477 = vmatprep.subr.mxu0 0.0
        %4478 = vmatpush2.msra.mxu0 0.0
        %4479 = vmatprep.subr.mxu0 0.0
        %4480 = vmatpush2.msra.mxu0 0.0
        %4481 = vmatprep.subr.mxu0 0.0
        %4482 = vmatpush2.msra.mxu0 0.0
        %4483 = vmatprep.subr.mxu0 0.0
        %4484 = vmatpush2.msra.mxu0 0.0
        %4485 = vmatprep.subr.mxu0 0.0
        %4486 = vmatpush2.msra.mxu0 0.0
        %4487 = vmatprep.subr.mxu0 0.0
        %4488 = vmatpush2.msra.mxu0 0.0
        %4489 = vmatprep.subr.mxu0 0.0
        %4490 = vmatpush2.msra.mxu0 0.0
        %4491 = vmatprep.subr.mxu0 0.0
        %4492 = vmatpush2.msra.mxu0 0.0
        %4493 = vmatprep.subr.mxu0 0.0
        %4494 = vmatpush2.msra.mxu0 0.0
        %4495 = vmatprep.mubr.f32.mxu0 0.0
        %4496 = vmatmul.mubr.f32.gmra.mxu0 %v4430
        %v4497 = vpop.f32.mrf.mxu0
        %v4498 = vadd.f32 0.0, %v4497
        %v4499 = vpop.f32.mrf.mxu0
        %4500 = vdwg.mxu0
        %v4501 = vmul.f32 %v4498, %v2637
        %v4503 = vsel %vm1043, %v4501, 0
        %4505 = vmatprep.subr.mxu0 0.0
        %4506 = vmatpush1.msra.mxu0 0.0
        %4507 = vmatprep.subr.mxu0 0.0
        %4508 = vmatpush1.msra.mxu0 0.0
        %4509 = vmatprep.subr.mxu0 0.0
        %4510 = vmatpush1.msra.mxu0 0.0
        %4511 = vmatprep.subr.mxu0 0.0
        %4512 = vmatpush1.msra.mxu0 0.0
        %4513 = vmatprep.subr.mxu0 0.0
        %4514 = vmatpush1.msra.mxu0 0.0
        %4515 = vmatprep.subr.mxu0 0.0
        %4516 = vmatpush1.msra.mxu0 0.0
        %4517 = vmatprep.subr.mxu0 0.0
        %4518 = vmatpush1.msra.mxu0 0.0
        %4519 = vmatprep.subr.mxu0 0.0
        %4520 = vmatpush1.msra.mxu0 0.0
        %4521 = vmatprep.subr.mxu0 0.0
        %4522 = vmatpush1.msra.mxu0 0.0
        %4523 = vmatprep.subr.mxu0 0.0
        %4524 = vmatpush1.msra.mxu0 0.0
        %4525 = vmatprep.subr.mxu0 0.0
        %4526 = vmatpush1.msra.mxu0 0.0
        %4527 = vmatprep.subr.mxu0 0.0
        %4528 = vmatpush1.msra.mxu0 0.0
        %4529 = vmatprep.subr.mxu0 0.0
        %4530 = vmatpush1.msra.mxu0 0.0
        %4531 = vmatprep.subr.mxu0 0.0
        %4532 = vmatpush1.msra.mxu0 0.0
        %4533 = vmatprep.subr.mxu0 0.0
        %4534 = vmatpush1.msra.mxu0 %v950
        %4535 = vmatprep.subr.mxu0 0.0
        %4536 = vmatpush1.msra.mxu0 %v949
        %4537 = vmatprep.subr.mxu0 0.0
        %4538 = vmatpush2.msra.mxu0 0.0
        %4539 = vmatprep.subr.mxu0 0.0
        %4540 = vmatpush2.msra.mxu0 0.0
        %4541 = vmatprep.subr.mxu0 0.0
        %4542 = vmatpush2.msra.mxu0 0.0
        %4543 = vmatprep.subr.mxu0 0.0
        %4544 = vmatpush2.msra.mxu0 0.0
        %4545 = vmatprep.subr.mxu0 0.0
        %4546 = vmatpush2.msra.mxu0 0.0
        %4547 = vmatprep.subr.mxu0 0.0
        %4548 = vmatpush2.msra.mxu0 0.0
        %4549 = vmatprep.subr.mxu0 0.0
        %4550 = vmatpush2.msra.mxu0 0.0
        %4551 = vmatprep.subr.mxu0 0.0
        %4552 = vmatpush2.msra.mxu0 0.0
        %4553 = vmatprep.subr.mxu0 0.0
        %4554 = vmatpush2.msra.mxu0 0.0
        %4555 = vmatprep.subr.mxu0 0.0
        %4556 = vmatpush2.msra.mxu0 0.0
        %4557 = vmatprep.subr.mxu0 0.0
        %4558 = vmatpush2.msra.mxu0 0.0
        %4559 = vmatprep.subr.mxu0 0.0
        %4560 = vmatpush2.msra.mxu0 0.0
        %4561 = vmatprep.subr.mxu0 0.0
        %4562 = vmatpush2.msra.mxu0 0.0
        %4563 = vmatprep.subr.mxu0 0.0
        %4564 = vmatpush2.msra.mxu0 0.0
        %4565 = vmatprep.subr.mxu0 0.0
        %4566 = vmatpush2.msra.mxu0 0.0
        %4567 = vmatprep.subr.mxu0 0.0
        %4568 = vmatpush2.msra.mxu0 0.0
        %4569 = vmatprep.mubr.f32.mxu0 0.0
        %4570 = vmatmul.mubr.f32.gmra.mxu0 %v4503
        %v4571 = vpop.f32.mrf.mxu0
        %v4572 = vadd.f32 0.0, %v4571
        %v4573 = vpop.f32.mrf.mxu0
        %4574 = vdwg.mxu0
        %v4575 = vlaneseq
        %v4576 = vshrl.u32 %v4575, 7
        %v4577 = vsub.s32 0, %v4576
        %v4578 = vrot.slane %v4572, %v4577
        %v4579 = vsub.f32 %v4422, %v4578
        %v4580 = vsub.f32 %v4423, %v4578
        %v4581 = vmul.f32 %v4579, %v4579
        %v4582 = vmul.f32 %v4580, %v4580
        %v4583 = vadd.f32 %v4581, %v4582
        %v4584 = vrot.slane %v4583, 4
        %v4585 = vadd.f32 %v4583, %v4584
        %v4586 = vrot.slane %v4585, 2
        %v4587 = vadd.f32 %v4585, %v4586
        %v4588 = vrot.slane %v4587, 1
        %v4589 = vadd.f32 %v4587, %v4588
        %4590 = vmatprep.subr.mxu0 0.0
        %4591 = vmatpush1.msra.mxu0 %v948
        %4592 = vmatprep.subr.mxu0 0.0
        %4593 = vmatpush1.msra.mxu0 %v947
        %4594 = vmatprep.subr.mxu0 0.0
        %4595 = vmatpush1.msra.mxu0 %v946
        %4596 = vmatprep.subr.mxu0 0.0
        %4597 = vmatpush1.msra.mxu0 %v945
        %4598 = vmatprep.subr.mxu0 0.0
        %4599 = vmatpush1.msra.mxu0 %v944
        %4600 = vmatprep.subr.mxu0 0.0
        %4601 = vmatpush1.msra.mxu0 %v943
        %4602 = vmatprep.subr.mxu0 0.0
        %4603 = vmatpush1.msra.mxu0 %v942
        %4604 = vmatprep.subr.mxu0 0.0
        %4605 = vmatpush1.msra.mxu0 %v941
        %4606 = vmatprep.subr.mxu0 0.0
        %4607 = vmatpush1.msra.mxu0 %v940
        %4608 = vmatprep.subr.mxu0 0.0
        %4609 = vmatpush1.msra.mxu0 %v939
        %4610 = vmatprep.subr.mxu0 0.0
        %4611 = vmatpush1.msra.mxu0 %v938
        %4612 = vmatprep.subr.mxu0 0.0
        %4613 = vmatpush1.msra.mxu0 %v937
        %4614 = vmatprep.subr.mxu0 0.0
        %4615 = vmatpush1.msra.mxu0 %v936
        %4616 = vmatprep.subr.mxu0 0.0
        %4617 = vmatpush1.msra.mxu0 %v935
        %4618 = vmatprep.subr.mxu0 0.0
        %4619 = vmatpush1.msra.mxu0 %v934
        %4620 = vmatprep.subr.mxu0 0.0
        %4621 = vmatpush1.msra.mxu0 %v933
        %4622 = vmatprep.subr.mxu0 0.0
        %4623 = vmatpush2.msra.mxu0 0.0
        %4624 = vmatprep.subr.mxu0 0.0
        %4625 = vmatpush2.msra.mxu0 0.0
        %4626 = vmatprep.subr.mxu0 0.0
        %4627 = vmatpush2.msra.mxu0 0.0
        %4628 = vmatprep.subr.mxu0 0.0
        %4629 = vmatpush2.msra.mxu0 0.0
        %4630 = vmatprep.subr.mxu0 0.0
        %4631 = vmatpush2.msra.mxu0 0.0
        %4632 = vmatprep.subr.mxu0 0.0
        %4633 = vmatpush2.msra.mxu0 0.0
        %4634 = vmatprep.subr.mxu0 0.0
        %4635 = vmatpush2.msra.mxu0 0.0
        %4636 = vmatprep.subr.mxu0 0.0
        %4637 = vmatpush2.msra.mxu0 0.0
        %4638 = vmatprep.subr.mxu0 0.0
        %4639 = vmatpush2.msra.mxu0 0.0
        %4640 = vmatprep.subr.mxu0 0.0
        %4641 = vmatpush2.msra.mxu0 0.0
        %4642 = vmatprep.subr.mxu0 0.0
        %4643 = vmatpush2.msra.mxu0 0.0
        %4644 = vmatprep.subr.mxu0 0.0
        %4645 = vmatpush2.msra.mxu0 0.0
        %4646 = vmatprep.subr.mxu0 0.0
        %4647 = vmatpush2.msra.mxu0 0.0
        %4648 = vmatprep.subr.mxu0 0.0
        %4649 = vmatpush2.msra.mxu0 0.0
        %4650 = vmatprep.subr.mxu0 0.0
        %4651 = vmatpush2.msra.mxu0 0.0
        %4652 = vmatprep.subr.mxu0 0.0
        %4653 = vmatpush2.msra.mxu0 0.0
        %4654 = vmatprep.mubr.f32.mxu0 0.0
        %4655 = vmatmul.mubr.f32.gmra.mxu0 %v4589
        %v4656 = vpop.f32.mrf.mxu0
        %v4657 = vadd.f32 0.0, %v4656
        %v4658 = vpop.f32.mrf.mxu0
        %4659 = vdwg.mxu0
        %v4660 = vmul.f32 %v4657, %v2637
        %v4661 = vadd.f32 %v4660, 1e-05
        %v4662 = vrsqrt.pop %v4661
        %v4664 = vsel %vm1043, %v4662, 0
        %4666 = vmatprep.subr.mxu0 0.0
        %4667 = vmatpush1.msra.mxu0 0.0
        %4668 = vmatprep.subr.mxu0 0.0
        %4669 = vmatpush1.msra.mxu0 0.0
        %4670 = vmatprep.subr.mxu0 0.0
        %4671 = vmatpush1.msra.mxu0 0.0
        %4672 = vmatprep.subr.mxu0 0.0
        %4673 = vmatpush1.msra.mxu0 0.0
        %4674 = vmatprep.subr.mxu0 0.0
        %4675 = vmatpush1.msra.mxu0 0.0
        %4676 = vmatprep.subr.mxu0 0.0
        %4677 = vmatpush1.msra.mxu0 0.0
        %4678 = vmatprep.subr.mxu0 0.0
        %4679 = vmatpush1.msra.mxu0 0.0
        %4680 = vmatprep.subr.mxu0 0.0
        %4681 = vmatpush1.msra.mxu0 0.0
        %4682 = vmatprep.subr.mxu0 0.0
        %4683 = vmatpush1.msra.mxu0 0.0
        %4684 = vmatprep.subr.mxu0 0.0
        %4685 = vmatpush1.msra.mxu0 0.0
        %4686 = vmatprep.subr.mxu0 0.0
        %4687 = vmatpush1.msra.mxu0 0.0
        %4688 = vmatprep.subr.mxu0 0.0
        %4689 = vmatpush1.msra.mxu0 0.0
        %4690 = vmatprep.subr.mxu0 0.0
        %4691 = vmatpush1.msra.mxu0 0.0
        %4692 = vmatprep.subr.mxu0 0.0
        %4693 = vmatpush1.msra.mxu0 0.0
        %4694 = vmatprep.subr.mxu0 0.0
        %4695 = vmatpush1.msra.mxu0 %v950
        %4696 = vmatprep.subr.mxu0 0.0
        %4697 = vmatpush1.msra.mxu0 %v949
        %4698 = vmatprep.subr.mxu0 0.0
        %4699 = vmatpush2.msra.mxu0 0.0
        %4700 = vmatprep.subr.mxu0 0.0
        %4701 = vmatpush2.msra.mxu0 0.0
        %4702 = vmatprep.subr.mxu0 0.0
        %4703 = vmatpush2.msra.mxu0 0.0
        %4704 = vmatprep.subr.mxu0 0.0
        %4705 = vmatpush2.msra.mxu0 0.0
        %4706 = vmatprep.subr.mxu0 0.0
        %4707 = vmatpush2.msra.mxu0 0.0
        %4708 = vmatprep.subr.mxu0 0.0
        %4709 = vmatpush2.msra.mxu0 0.0
        %4710 = vmatprep.subr.mxu0 0.0
        %4711 = vmatpush2.msra.mxu0 0.0
        %4712 = vmatprep.subr.mxu0 0.0
        %4713 = vmatpush2.msra.mxu0 0.0
        %4714 = vmatprep.subr.mxu0 0.0
        %4715 = vmatpush2.msra.mxu0 0.0
        %4716 = vmatprep.subr.mxu0 0.0
        %4717 = vmatpush2.msra.mxu0 0.0
        %4718 = vmatprep.subr.mxu0 0.0
        %4719 = vmatpush2.msra.mxu0 0.0
        %4720 = vmatprep.subr.mxu0 0.0
        %4721 = vmatpush2.msra.mxu0 0.0
        %4722 = vmatprep.subr.mxu0 0.0
        %4723 = vmatpush2.msra.mxu0 0.0
        %4724 = vmatprep.subr.mxu0 0.0
        %4725 = vmatpush2.msra.mxu0 0.0
        %4726 = vmatprep.subr.mxu0 0.0
        %4727 = vmatpush2.msra.mxu0 0.0
        %4728 = vmatprep.subr.mxu0 0.0
        %4729 = vmatpush2.msra.mxu0 0.0
        %4730 = vmatprep.mubr.f32.mxu0 0.0
        %4731 = vmatmul.mubr.f32.gmra.mxu0 %v4664
        %v4732 = vpop.f32.mrf.mxu0
        %v4733 = vadd.f32 0.0, %v4732
        %v4734 = vpop.f32.mrf.mxu0
        %4735 = vdwg.mxu0
        %v4736 = vlaneseq
        %v4737 = vshrl.u32 %v4736, 7
        %v4738 = vsub.s32 0, %v4737
        %v4739 = vrot.slane %v4733, %v4738
        %v4740 = vmul.f32 %v4579, %v4739
        %v4741 = vmul.f32 %v4580, %v4739
        %v4742 = vld [vmem:[#allocation16] sm:$0x1]
        %v4744 = vlaneseq
        %v4745 = vshrl.u32 %v4744, 7
        %v4746 = vsub.s32 0, %v4745
        %v4747 = vrot.slane %v4742, %v4746
        %v4749 = vmul.f32 %v4740, %v4747
        %v4750 = vmul.f32 %v4741, %v4747
        %v4751 = vld [vmem:[#allocation17] sm:$0x1]
        %v4753 = vlaneseq
        %v4754 = vshrl.u32 %v4753, 7
        %v4755 = vsub.s32 0, %v4754
        %v4756 = vrot.slane %v4751, %v4755
        %v4758 = vadd.f32 %v4749, %v4756
        %v4759 = vadd.f32 %v4750, %v4756
        %4760 = vmatprep.subr.mxu0 0.0
        %4761 = vmatpush1.msra.mxu0 0.0
        %4762 = vmatprep.subr.mxu0 0.0
        %4763 = vmatpush1.msra.mxu0 0.0
        %4764 = vmatprep.subr.mxu0 0.0
        %4765 = vmatpush1.msra.mxu0 0.0
        %4766 = vmatprep.subr.mxu0 0.0
        %4767 = vmatpush1.msra.mxu0 0.0
        %4768 = vmatprep.subr.mxu0 0.0
        %4769 = vmatpush1.msra.mxu0 0.0
        %4770 = vmatprep.subr.mxu0 0.0
        %4771 = vmatpush1.msra.mxu0 0.0
        %4772 = vmatprep.subr.mxu0 0.0
        %4773 = vmatpush1.msra.mxu0 0.0
        %4774 = vmatprep.subr.mxu0 0.0
        %4775 = vmatpush1.msra.mxu0 0.0
        %4776 = vmatprep.subr.mxu0 0.0
        %4777 = vmatpush1.msra.mxu0 0.0
        %4778 = vmatprep.subr.mxu0 0.0
        %4779 = vmatpush1.msra.mxu0 0.0
        %4780 = vmatprep.subr.mxu0 0.0
        %4781 = vmatpush1.msra.mxu0 0.0
        %4782 = vmatprep.subr.mxu0 0.0
        %4783 = vmatpush1.msra.mxu0 0.0
        %4784 = vmatprep.subr.mxu0 0.0
        %4785 = vmatpush1.msra.mxu0 0.0
        %4786 = vmatprep.subr.mxu0 0.0
        %4787 = vmatpush1.msra.mxu0 0.0
        %4788 = vmatprep.subr.mxu0 0.0
        %4789 = vmatpush1.msra.mxu0 %v4759
        %4790 = vmatprep.subr.mxu0 0.0
        %4791 = vmatpush1.msra.mxu0 %v4758
        %4792 = vmatprep.subr.mxu0 0.0
        %4793 = vmatpush2.msra.mxu0 0.0
        %4794 = vmatprep.subr.mxu0 0.0
        %4795 = vmatpush2.msra.mxu0 0.0
        %4796 = vmatprep.subr.mxu0 0.0
        %4797 = vmatpush2.msra.mxu0 0.0
        %4798 = vmatprep.subr.mxu0 0.0
        %4799 = vmatpush2.msra.mxu0 0.0
        %4800 = vmatprep.subr.mxu0 0.0
        %4801 = vmatpush2.msra.mxu0 0.0
        %4802 = vmatprep.subr.mxu0 0.0
        %4803 = vmatpush2.msra.mxu0 0.0
        %4804 = vmatprep.subr.mxu0 0.0
        %4805 = vmatpush2.msra.mxu0 0.0
        %4806 = vmatprep.subr.mxu0 0.0
        %4807 = vmatpush2.msra.mxu0 0.0
        %4808 = vmatprep.subr.mxu0 0.0
        %4809 = vmatpush2.msra.mxu0 0.0
        %4810 = vmatprep.subr.mxu0 0.0
        %4811 = vmatpush2.msra.mxu0 0.0
        %4812 = vmatprep.subr.mxu0 0.0
        %4813 = vmatpush2.msra.mxu0 0.0
        %4814 = vmatprep.subr.mxu0 0.0
        %4815 = vmatpush2.msra.mxu0 0.0
        %4816 = vmatprep.subr.mxu0 0.0
        %4817 = vmatpush2.msra.mxu0 0.0
        %4818 = vmatprep.subr.mxu0 0.0
        %4819 = vmatpush2.msra.mxu0 0.0
        %4820 = vmatprep.subr.mxu0 0.0
        %4821 = vmatpush2.msra.mxu0 0.0
        %4822 = vmatprep.subr.mxu0 0.0
        %4823 = vmatpush2.msra.mxu0 0.0
        %4824 = vmatprep.mubr.f32.mxu0 0.0
        %4825 = vmatmul.mubr.f32.gmra.mxu0 %v1045
        %v4826 = vpop.f32.mrf.mxu0
        %v4827 = vadd.f32 0.0, %v4826
        %v4828 = vpop.f32.mrf.mxu0
        %4829 = vmatprep.mubr.f32.mxu0 0.0
        %4830 = vmatmul.mubr.f32.gmra.mxu0 %v1048
        %v4831 = vpop.f32.mrf.mxu0
        %v4832 = vadd.f32 0.0, %v4831
        %v4833 = vpop.f32.mrf.mxu0
        %4834 = vdwg.mxu0
        %v4835 = vld [vmem:[#allocation19] sm:$0xff]
        %v4836 = vld [vmem:[#allocation19 + $0x8] sm:$0xff]
        %v4837 = vld [vmem:[#allocation19 + $0x10] sm:$0xff]
        %v4838 = vld [vmem:[#allocation19 + $0x18] sm:$0xff]
        %v4839 = vld [vmem:[#allocation19 + $0x20] sm:$0xff]
        %v4840 = vld [vmem:[#allocation19 + $0x28] sm:$0xff]
        %v4841 = vld [vmem:[#allocation19 + $0x30] sm:$0xff]
        %v4842 = vld [vmem:[#allocation19 + $0x38] sm:$0xff]
        %v4843 = vld [vmem:[#allocation19 + $0x40] sm:$0xff]
        %v4844 = vld [vmem:[#allocation19 + $0x48] sm:$0xff]
        %v4845 = vld [vmem:[#allocation19 + $0x50] sm:$0xff]
        %v4846 = vld [vmem:[#allocation19 + $0x58] sm:$0xff]
        %v4847 = vld [vmem:[#allocation19 + $0x60] sm:$0xff]
        %v4848 = vld [vmem:[#allocation19 + $0x68] sm:$0xff]
        %v4849 = vld [vmem:[#allocation19 + $0x70] sm:$0xff]
        %v4850 = vld [vmem:[#allocation19 + $0x78] sm:$0xff]
        %4851 = vmatprep.subr.mxu0 0.0
        %4852 = vmatpush1.msra.mxu0 0.0
        %4853 = vmatprep.subr.mxu0 0.0
        %4854 = vmatpush1.msra.mxu0 0.0
        %4855 = vmatprep.subr.mxu0 0.0
        %4856 = vmatpush1.msra.mxu0 0.0
        %4857 = vmatprep.subr.mxu0 0.0
        %4858 = vmatpush1.msra.mxu0 0.0
        %4859 = vmatprep.subr.mxu0 0.0
        %4860 = vmatpush1.msra.mxu0 0.0
        %4861 = vmatprep.subr.mxu0 0.0
        %4862 = vmatpush1.msra.mxu0 0.0
        %4863 = vmatprep.subr.mxu0 0.0
        %4864 = vmatpush1.msra.mxu0 0.0
        %4865 = vmatprep.subr.mxu0 0.0
        %4866 = vmatpush1.msra.mxu0 0.0
        %4867 = vmatprep.subr.mxu0 0.0
        %4868 = vmatpush1.msra.mxu0 0.0
        %4869 = vmatprep.subr.mxu0 0.0
        %4870 = vmatpush1.msra.mxu0 0.0
        %4871 = vmatprep.subr.mxu0 0.0
        %4872 = vmatpush1.msra.mxu0 0.0
        %4873 = vmatprep.subr.mxu0 0.0
        %4874 = vmatpush1.msra.mxu0 0.0
        %4875 = vmatprep.subr.mxu0 0.0
        %4876 = vmatpush1.msra.mxu0 0.0
        %4877 = vmatprep.subr.mxu0 0.0
        %4878 = vmatpush1.msra.mxu0 0.0
        %4879 = vmatprep.subr.mxu0 0.0
        %4880 = vmatpush1.msra.mxu0 %v4759
        %4881 = vmatprep.subr.mxu0 0.0
        %4882 = vmatpush1.msra.mxu0 %v4758
        %4883 = vmatprep.subr.mxu0 0.0
        %4884 = vmatpush2.msra.mxu0 0.0
        %4885 = vmatprep.subr.mxu0 0.0
        %4886 = vmatpush2.msra.mxu0 0.0
        %4887 = vmatprep.subr.mxu0 0.0
        %4888 = vmatpush2.msra.mxu0 0.0
        %4889 = vmatprep.subr.mxu0 0.0
        %4890 = vmatpush2.msra.mxu0 0.0
        %4891 = vmatprep.subr.mxu0 0.0
        %4892 = vmatpush2.msra.mxu0 0.0
        %4893 = vmatprep.subr.mxu0 0.0
        %4894 = vmatpush2.msra.mxu0 0.0
        %4895 = vmatprep.subr.mxu0 0.0
        %4896 = vmatpush2.msra.mxu0 0.0
        %4897 = vmatprep.subr.mxu0 0.0
        %4898 = vmatpush2.msra.mxu0 0.0
        %4899 = vmatprep.subr.mxu0 0.0
        %4900 = vmatpush2.msra.mxu0 0.0
        %4901 = vmatprep.subr.mxu0 0.0
        %4902 = vmatpush2.msra.mxu0 0.0
        %4903 = vmatprep.subr.mxu0 0.0
        %4904 = vmatpush2.msra.mxu0 0.0
        %4905 = vmatprep.subr.mxu0 0.0
        %4906 = vmatpush2.msra.mxu0 0.0
        %4907 = vmatprep.subr.mxu0 0.0
        %4908 = vmatpush2.msra.mxu0 0.0
        %4909 = vmatprep.subr.mxu0 0.0
        %4910 = vmatpush2.msra.mxu0 0.0
        %4911 = vmatprep.subr.mxu0 0.0
        %4912 = vmatpush2.msra.mxu0 0.0
        %4913 = vmatprep.subr.mxu0 0.0
        %4914 = vmatpush2.msra.mxu0 0.0
        %4915 = vmatprep.mubr.f32.mxu0 0.0
        %4916 = vmatmul.mubr.f32.gmra.mxu0 %v1129
        %v4917 = vpop.f32.mrf.mxu0
        %v4918 = vadd.f32 0.0, %v4917
        %v4919 = vpop.f32.mrf.mxu0
        %4920 = vmatprep.mubr.f32.mxu0 0.0
        %4921 = vmatmul.mubr.f32.gmra.mxu0 %v1132
        %v4922 = vpop.f32.mrf.mxu0
        %v4923 = vadd.f32 0.0, %v4922
        %v4924 = vpop.f32.mrf.mxu0
        %4925 = vdwg.mxu0
        %v4926 = vld [vmem:[#allocation19 + $0x80] sm:$0xff]
        %v4927 = vld [vmem:[#allocation19 + $0x88] sm:$0xff]
        %v4928 = vld [vmem:[#allocation19 + $0x90] sm:$0xff]
        %v4929 = vld [vmem:[#allocation19 + $0x98] sm:$0xff]
        %v4930 = vld [vmem:[#allocation19 + $0xa0] sm:$0xff]
        %v4931 = vld [vmem:[#allocation19 + $0xa8] sm:$0xff]
        %v4932 = vld [vmem:[#allocation19 + $0xb0] sm:$0xff]
        %v4933 = vld [vmem:[#allocation19 + $0xb8] sm:$0xff]
        %v4934 = vld [vmem:[#allocation19 + $0xc0] sm:$0xff]
        %v4935 = vld [vmem:[#allocation19 + $0xc8] sm:$0xff]
        %v4936 = vld [vmem:[#allocation19 + $0xd0] sm:$0xff]
        %v4937 = vld [vmem:[#allocation19 + $0xd8] sm:$0xff]
        %v4938 = vld [vmem:[#allocation19 + $0xe0] sm:$0xff]
        %v4939 = vld [vmem:[#allocation19 + $0xe8] sm:$0xff]
        %v4940 = vld [vmem:[#allocation19 + $0xf0] sm:$0xff]
        %v4941 = vld [vmem:[#allocation19 + $0xf8] sm:$0xff]
        %4942 = vmatprep.subr.mxu0 0.0
        %4943 = vmatpush1.msra.mxu0 %v4941
        %4944 = vmatprep.subr.mxu0 0.0
        %4945 = vmatpush1.msra.mxu0 %v4940
        %4946 = vmatprep.subr.mxu0 0.0
        %4947 = vmatpush1.msra.mxu0 %v4939
        %4948 = vmatprep.subr.mxu0 0.0
        %4949 = vmatpush1.msra.mxu0 %v4938
        %4950 = vmatprep.subr.mxu0 0.0
        %4951 = vmatpush1.msra.mxu0 %v4937
        %4952 = vmatprep.subr.mxu0 0.0
        %4953 = vmatpush1.msra.mxu0 %v4936
        %4954 = vmatprep.subr.mxu0 0.0
        %4955 = vmatpush1.msra.mxu0 %v4935
        %4956 = vmatprep.subr.mxu0 0.0
        %4957 = vmatpush1.msra.mxu0 %v4934
        %4958 = vmatprep.subr.mxu0 0.0
        %4959 = vmatpush1.msra.mxu0 %v4933
        %4960 = vmatprep.subr.mxu0 0.0
        %4961 = vmatpush1.msra.mxu0 %v4932
        %4962 = vmatprep.subr.mxu0 0.0
        %4963 = vmatpush1.msra.mxu0 %v4931
        %4964 = vmatprep.subr.mxu0 0.0
        %4965 = vmatpush1.msra.mxu0 %v4930
        %4966 = vmatprep.subr.mxu0 0.0
        %4967 = vmatpush1.msra.mxu0 %v4929
        %4968 = vmatprep.subr.mxu0 0.0
        %4969 = vmatpush1.msra.mxu0 %v4928
        %4970 = vmatprep.subr.mxu0 0.0
        %4971 = vmatpush1.msra.mxu0 %v4927
        %4972 = vmatprep.subr.mxu0 0.0
        %4973 = vmatpush1.msra.mxu0 %v4926
        %4974 = vmatprep.subr.mxu0 0.0
        %4975 = vmatpush2.msra.mxu0 0.0
        %4976 = vmatprep.subr.mxu0 0.0
        %4977 = vmatpush2.msra.mxu0 0.0
        %4978 = vmatprep.subr.mxu0 0.0
        %4979 = vmatpush2.msra.mxu0 0.0
        %4980 = vmatprep.subr.mxu0 0.0
        %4981 = vmatpush2.msra.mxu0 0.0
        %4982 = vmatprep.subr.mxu0 0.0
        %4983 = vmatpush2.msra.mxu0 0.0
        %4984 = vmatprep.subr.mxu0 0.0
        %4985 = vmatpush2.msra.mxu0 0.0
        %4986 = vmatprep.subr.mxu0 0.0
        %4987 = vmatpush2.msra.mxu0 0.0
        %4988 = vmatprep.subr.mxu0 0.0
        %4989 = vmatpush2.msra.mxu0 0.0
        %4990 = vmatprep.subr.mxu0 0.0
        %4991 = vmatpush2.msra.mxu0 0.0
        %4992 = vmatprep.subr.mxu0 0.0
        %4993 = vmatpush2.msra.mxu0 0.0
        %4994 = vmatprep.subr.mxu0 0.0
        %4995 = vmatpush2.msra.mxu0 0.0
        %4996 = vmatprep.subr.mxu0 0.0
        %4997 = vmatpush2.msra.mxu0 0.0
        %4998 = vmatprep.subr.mxu0 0.0
        %4999 = vmatpush2.msra.mxu0 0.0
        %5000 = vmatprep.subr.mxu0 0.0
        %5001 = vmatpush2.msra.mxu0 0.0
        %5002 = vmatprep.subr.mxu0 0.0
        %5003 = vmatpush2.msra.mxu0 0.0
        %5004 = vmatprep.subr.mxu0 0.0
        %5005 = vmatpush2.msra.mxu0 0.0
        %5006 = vmatprep.mubr.f32.mxu0 0.0
        %5007 = vmatmul.mubr.f32.gmra.mxu0 %v4918
        %v5008 = vpop.f32.mrf.mxu0
        %v5009 = vadd.f32 0.0, %v5008
        %v5010 = vpop.f32.mrf.mxu0
        %5011 = vmatprep.mubr.f32.mxu0 0.0
        %5012 = vmatmul.mubr.f32.gmra.mxu0 %v4923
        %v5013 = vpop.f32.mrf.mxu0
        %v5014 = vadd.f32 0.0, %v5013
        %v5015 = vpop.f32.mrf.mxu0
        %5016 = vdwg.mxu0
        %5017 = vmatprep.subr.mxu0 0.0
        %5018 = vmatpush1.msra.mxu0 %v4850
        %5019 = vmatprep.subr.mxu0 0.0
        %5020 = vmatpush1.msra.mxu0 %v4849
        %5021 = vmatprep.subr.mxu0 0.0
        %5022 = vmatpush1.msra.mxu0 %v4848
        %5023 = vmatprep.subr.mxu0 0.0
        %5024 = vmatpush1.msra.mxu0 %v4847
        %5025 = vmatprep.subr.mxu0 0.0
        %5026 = vmatpush1.msra.mxu0 %v4846
        %5027 = vmatprep.subr.mxu0 0.0
        %5028 = vmatpush1.msra.mxu0 %v4845
        %5029 = vmatprep.subr.mxu0 0.0
        %5030 = vmatpush1.msra.mxu0 %v4844
        %5031 = vmatprep.subr.mxu0 0.0
        %5032 = vmatpush1.msra.mxu0 %v4843
        %5033 = vmatprep.subr.mxu0 0.0
        %5034 = vmatpush1.msra.mxu0 %v4842
        %5035 = vmatprep.subr.mxu0 0.0
        %5036 = vmatpush1.msra.mxu0 %v4841
        %5037 = vmatprep.subr.mxu0 0.0
        %5038 = vmatpush1.msra.mxu0 %v4840
        %5039 = vmatprep.subr.mxu0 0.0
        %5040 = vmatpush1.msra.mxu0 %v4839
        %5041 = vmatprep.subr.mxu0 0.0
        %5042 = vmatpush1.msra.mxu0 %v4838
        %5043 = vmatprep.subr.mxu0 0.0
        %5044 = vmatpush1.msra.mxu0 %v4837
        %5045 = vmatprep.subr.mxu0 0.0
        %5046 = vmatpush1.msra.mxu0 %v4836
        %5047 = vmatprep.subr.mxu0 0.0
        %5048 = vmatpush1.msra.mxu0 %v4835
        %5049 = vmatprep.subr.mxu0 0.0
        %5050 = vmatpush2.msra.mxu0 0.0
        %5051 = vmatprep.subr.mxu0 0.0
        %5052 = vmatpush2.msra.mxu0 0.0
        %5053 = vmatprep.subr.mxu0 0.0
        %5054 = vmatpush2.msra.mxu0 0.0
        %5055 = vmatprep.subr.mxu0 0.0
        %5056 = vmatpush2.msra.mxu0 0.0
        %5057 = vmatprep.subr.mxu0 0.0
        %5058 = vmatpush2.msra.mxu0 0.0
        %5059 = vmatprep.subr.mxu0 0.0
        %5060 = vmatpush2.msra.mxu0 0.0
        %5061 = vmatprep.subr.mxu0 0.0
        %5062 = vmatpush2.msra.mxu0 0.0
        %5063 = vmatprep.subr.mxu0 0.0
        %5064 = vmatpush2.msra.mxu0 0.0
        %5065 = vmatprep.subr.mxu0 0.0
        %5066 = vmatpush2.msra.mxu0 0.0
        %5067 = vmatprep.subr.mxu0 0.0
        %5068 = vmatpush2.msra.mxu0 0.0
        %5069 = vmatprep.subr.mxu0 0.0
        %5070 = vmatpush2.msra.mxu0 0.0
        %5071 = vmatprep.subr.mxu0 0.0
        %5072 = vmatpush2.msra.mxu0 0.0
        %5073 = vmatprep.subr.mxu0 0.0
        %5074 = vmatpush2.msra.mxu0 0.0
        %5075 = vmatprep.subr.mxu0 0.0
        %5076 = vmatpush2.msra.mxu0 0.0
        %5077 = vmatprep.subr.mxu0 0.0
        %5078 = vmatpush2.msra.mxu0 0.0
        %5079 = vmatprep.subr.mxu0 0.0
        %5080 = vmatpush2.msra.mxu0 0.0
        %5081 = vmatprep.mubr.f32.mxu0 0.0
        %5082 = vmatmul.mubr.f32.gmra.mxu0 %v4827
        %v5083 = vpop.f32.mrf.mxu0
        %v5084 = vadd.f32 %v5009, %v5083
        %v5085 = vpop.f32.mrf.mxu0
        %5086 = vmatprep.mubr.f32.mxu0 0.0
        %5087 = vmatmul.mubr.f32.gmra.mxu0 %v4832
        %v5088 = vpop.f32.mrf.mxu0
        %v5089 = vadd.f32 %v5014, %v5088
        %v5090 = vpop.f32.mrf.mxu0
        %5091 = vdwg.mxu0
        %5092 = vmatprep.subr.mxu0 0.0
        %5093 = vmatpush1.msra.mxu0 0.0
        %5094 = vmatprep.subr.mxu0 0.0
        %5095 = vmatpush1.msra.mxu0 0.0
        %5096 = vmatprep.subr.mxu0 0.0
        %5097 = vmatpush1.msra.mxu0 0.0
        %5098 = vmatprep.subr.mxu0 0.0
        %5099 = vmatpush1.msra.mxu0 0.0
        %5100 = vmatprep.subr.mxu0 0.0
        %5101 = vmatpush1.msra.mxu0 0.0
        %5102 = vmatprep.subr.mxu0 0.0
        %5103 = vmatpush1.msra.mxu0 0.0
        %5104 = vmatprep.subr.mxu0 0.0
        %5105 = vmatpush1.msra.mxu0 0.0
        %5106 = vmatprep.subr.mxu0 0.0
        %5107 = vmatpush1.msra.mxu0 0.0
        %5108 = vmatprep.subr.mxu0 0.0
        %5109 = vmatpush1.msra.mxu0 0.0
        %5110 = vmatprep.subr.mxu0 0.0
        %5111 = vmatpush1.msra.mxu0 0.0
        %5112 = vmatprep.subr.mxu0 0.0
        %5113 = vmatpush1.msra.mxu0 0.0
        %5114 = vmatprep.subr.mxu0 0.0
        %5115 = vmatpush1.msra.mxu0 0.0
        %5116 = vmatprep.subr.mxu0 0.0
        %5117 = vmatpush1.msra.mxu0 0.0
        %5118 = vmatprep.subr.mxu0 0.0
        %5119 = vmatpush1.msra.mxu0 0.0
        %5120 = vmatprep.subr.mxu0 0.0
        %5121 = vmatpush1.msra.mxu0 %v4759
        %5122 = vmatprep.subr.mxu0 0.0
        %5123 = vmatpush1.msra.mxu0 %v4758
        %5124 = vmatprep.subr.mxu0 0.0
        %5125 = vmatpush2.msra.mxu0 0.0
        %5126 = vmatprep.subr.mxu0 0.0
        %5127 = vmatpush2.msra.mxu0 0.0
        %5128 = vmatprep.subr.mxu0 0.0
        %5129 = vmatpush2.msra.mxu0 0.0
        %5130 = vmatprep.subr.mxu0 0.0
        %5131 = vmatpush2.msra.mxu0 0.0
        %5132 = vmatprep.subr.mxu0 0.0
        %5133 = vmatpush2.msra.mxu0 0.0
        %5134 = vmatprep.subr.mxu0 0.0
        %5135 = vmatpush2.msra.mxu0 0.0
        %5136 = vmatprep.subr.mxu0 0.0
        %5137 = vmatpush2.msra.mxu0 0.0
        %5138 = vmatprep.subr.mxu0 0.0
        %5139 = vmatpush2.msra.mxu0 0.0
        %5140 = vmatprep.subr.mxu0 0.0
        %5141 = vmatpush2.msra.mxu0 0.0
        %5142 = vmatprep.subr.mxu0 0.0
        %5143 = vmatpush2.msra.mxu0 0.0
        %5144 = vmatprep.subr.mxu0 0.0
        %5145 = vmatpush2.msra.mxu0 0.0
        %5146 = vmatprep.subr.mxu0 0.0
        %5147 = vmatpush2.msra.mxu0 0.0
        %5148 = vmatprep.subr.mxu0 0.0
        %5149 = vmatpush2.msra.mxu0 0.0
        %5150 = vmatprep.subr.mxu0 0.0
        %5151 = vmatpush2.msra.mxu0 0.0
        %5152 = vmatprep.subr.mxu0 0.0
        %5153 = vmatpush2.msra.mxu0 0.0
        %5154 = vmatprep.subr.mxu0 0.0
        %5155 = vmatpush2.msra.mxu0 0.0
        %5156 = vmatprep.mubr.f32.mxu0 0.0
        %5157 = vmatmul.mubr.f32.gmra.mxu0 %v1375
        %v5158 = vpop.f32.mrf.mxu0
        %v5159 = vadd.f32 0.0, %v5158
        %v5160 = vpop.f32.mrf.mxu0
        %5161 = vmatprep.mubr.f32.mxu0 0.0
        %5162 = vmatmul.mubr.f32.gmra.mxu0 %v1378
        %v5163 = vpop.f32.mrf.mxu0
        %v5164 = vadd.f32 0.0, %v5163
        %v5165 = vpop.f32.mrf.mxu0
        %5166 = vdwg.mxu0
        %v5167 = vld [vmem:[#allocation19 + $0x100] sm:$0xff]
        %v5168 = vld [vmem:[#allocation19 + $0x108] sm:$0xff]
        %v5169 = vld [vmem:[#allocation19 + $0x110] sm:$0xff]
        %v5170 = vld [vmem:[#allocation19 + $0x118] sm:$0xff]
        %v5171 = vld [vmem:[#allocation19 + $0x120] sm:$0xff]
        %v5172 = vld [vmem:[#allocation19 + $0x128] sm:$0xff]
        %v5173 = vld [vmem:[#allocation19 + $0x130] sm:$0xff]
        %v5174 = vld [vmem:[#allocation19 + $0x138] sm:$0xff]
        %v5175 = vld [vmem:[#allocation19 + $0x140] sm:$0xff]
        %v5176 = vld [vmem:[#allocation19 + $0x148] sm:$0xff]
        %v5177 = vld [vmem:[#allocation19 + $0x150] sm:$0xff]
        %v5178 = vld [vmem:[#allocation19 + $0x158] sm:$0xff]
        %v5179 = vld [vmem:[#allocation19 + $0x160] sm:$0xff]
        %v5180 = vld [vmem:[#allocation19 + $0x168] sm:$0xff]
        %v5181 = vld [vmem:[#allocation19 + $0x170] sm:$0xff]
        %v5182 = vld [vmem:[#allocation19 + $0x178] sm:$0xff]
        %5183 = vmatprep.subr.mxu0 0.0
        %5184 = vmatpush1.msra.mxu0 %v5182
        %5185 = vmatprep.subr.mxu0 0.0
        %5186 = vmatpush1.msra.mxu0 %v5181
        %5187 = vmatprep.subr.mxu0 0.0
        %5188 = vmatpush1.msra.mxu0 %v5180
        %5189 = vmatprep.subr.mxu0 0.0
        %5190 = vmatpush1.msra.mxu0 %v5179
        %5191 = vmatprep.subr.mxu0 0.0
        %5192 = vmatpush1.msra.mxu0 %v5178
        %5193 = vmatprep.subr.mxu0 0.0
        %5194 = vmatpush1.msra.mxu0 %v5177
        %5195 = vmatprep.subr.mxu0 0.0
        %5196 = vmatpush1.msra.mxu0 %v5176
        %5197 = vmatprep.subr.mxu0 0.0
        %5198 = vmatpush1.msra.mxu0 %v5175
        %5199 = vmatprep.subr.mxu0 0.0
        %5200 = vmatpush1.msra.mxu0 %v5174
        %5201 = vmatprep.subr.mxu0 0.0
        %5202 = vmatpush1.msra.mxu0 %v5173
        %5203 = vmatprep.subr.mxu0 0.0
        %5204 = vmatpush1.msra.mxu0 %v5172
        %5205 = vmatprep.subr.mxu0 0.0
        %5206 = vmatpush1.msra.mxu0 %v5171
        %5207 = vmatprep.subr.mxu0 0.0
        %5208 = vmatpush1.msra.mxu0 %v5170
        %5209 = vmatprep.subr.mxu0 0.0
        %5210 = vmatpush1.msra.mxu0 %v5169
        %5211 = vmatprep.subr.mxu0 0.0
        %5212 = vmatpush1.msra.mxu0 %v5168
        %5213 = vmatprep.subr.mxu0 0.0
        %5214 = vmatpush1.msra.mxu0 %v5167
        %5215 = vmatprep.subr.mxu0 0.0
        %5216 = vmatpush2.msra.mxu0 0.0
        %5217 = vmatprep.subr.mxu0 0.0
        %5218 = vmatpush2.msra.mxu0 0.0
        %5219 = vmatprep.subr.mxu0 0.0
        %5220 = vmatpush2.msra.mxu0 0.0
        %5221 = vmatprep.subr.mxu0 0.0
        %5222 = vmatpush2.msra.mxu0 0.0
        %5223 = vmatprep.subr.mxu0 0.0
        %5224 = vmatpush2.msra.mxu0 0.0
        %5225 = vmatprep.subr.mxu0 0.0
        %5226 = vmatpush2.msra.mxu0 0.0
        %5227 = vmatprep.subr.mxu0 0.0
        %5228 = vmatpush2.msra.mxu0 0.0
        %5229 = vmatprep.subr.mxu0 0.0
        %5230 = vmatpush2.msra.mxu0 0.0
        %5231 = vmatprep.subr.mxu0 0.0
        %5232 = vmatpush2.msra.mxu0 0.0
        %5233 = vmatprep.subr.mxu0 0.0
        %5234 = vmatpush2.msra.mxu0 0.0
        %5235 = vmatprep.subr.mxu0 0.0
        %5236 = vmatpush2.msra.mxu0 0.0
        %5237 = vmatprep.subr.mxu0 0.0
        %5238 = vmatpush2.msra.mxu0 0.0
        %5239 = vmatprep.subr.mxu0 0.0
        %5240 = vmatpush2.msra.mxu0 0.0
        %5241 = vmatprep.subr.mxu0 0.0
        %5242 = vmatpush2.msra.mxu0 0.0
        %5243 = vmatprep.subr.mxu0 0.0
        %5244 = vmatpush2.msra.mxu0 0.0
        %5245 = vmatprep.subr.mxu0 0.0
        %5246 = vmatpush2.msra.mxu0 0.0
        %5247 = vmatprep.mubr.f32.mxu0 0.0
        %5248 = vmatmul.mubr.f32.gmra.mxu0 %v5159
        %v5249 = vpop.f32.mrf.mxu0
        %v5250 = vadd.f32 0.0, %v5249
        %v5251 = vpop.f32.mrf.mxu0
        %5252 = vmatprep.mubr.f32.mxu0 0.0
        %5253 = vmatmul.mubr.f32.gmra.mxu0 %v5164
        %v5254 = vpop.f32.mrf.mxu0
        %v5255 = vadd.f32 0.0, %v5254
        %v5256 = vpop.f32.mrf.mxu0
        %5257 = vdwg.mxu0
        %v5258 = vadd.f32 %v5084, %v5250
        %v5259 = vadd.f32 %v5089, %v5255
        %5260 = vmatprep.subr.mxu0 0.0
        %5261 = vmatpush1.msra.mxu0 0.0
        %5262 = vmatprep.subr.mxu0 0.0
        %5263 = vmatpush1.msra.mxu0 0.0
        %5264 = vmatprep.subr.mxu0 0.0
        %5265 = vmatpush1.msra.mxu0 0.0
        %5266 = vmatprep.subr.mxu0 0.0
        %5267 = vmatpush1.msra.mxu0 0.0
        %5268 = vmatprep.subr.mxu0 0.0
        %5269 = vmatpush1.msra.mxu0 0.0
        %5270 = vmatprep.subr.mxu0 0.0
        %5271 = vmatpush1.msra.mxu0 0.0
        %5272 = vmatprep.subr.mxu0 0.0
        %5273 = vmatpush1.msra.mxu0 0.0
        %5274 = vmatprep.subr.mxu0 0.0
        %5275 = vmatpush1.msra.mxu0 0.0
        %5276 = vmatprep.subr.mxu0 0.0
        %5277 = vmatpush1.msra.mxu0 0.0
        %5278 = vmatprep.subr.mxu0 0.0
        %5279 = vmatpush1.msra.mxu0 0.0
        %5280 = vmatprep.subr.mxu0 0.0
        %5281 = vmatpush1.msra.mxu0 0.0
        %5282 = vmatprep.subr.mxu0 0.0
        %5283 = vmatpush1.msra.mxu0 0.0
        %5284 = vmatprep.subr.mxu0 0.0
        %5285 = vmatpush1.msra.mxu0 0.0
        %5286 = vmatprep.subr.mxu0 0.0
        %5287 = vmatpush1.msra.mxu0 0.0
        %5288 = vmatprep.subr.mxu0 0.0
        %5289 = vmatpush1.msra.mxu0 %v4759
        %5290 = vmatprep.subr.mxu0 0.0
        %5291 = vmatpush1.msra.mxu0 %v4758
        %5292 = vmatprep.subr.mxu0 0.0
        %5293 = vmatpush2.msra.mxu0 0.0
        %5294 = vmatprep.subr.mxu0 0.0
        %5295 = vmatpush2.msra.mxu0 0.0
        %5296 = vmatprep.subr.mxu0 0.0
        %5297 = vmatpush2.msra.mxu0 0.0
        %5298 = vmatprep.subr.mxu0 0.0
        %5299 = vmatpush2.msra.mxu0 0.0
        %5300 = vmatprep.subr.mxu0 0.0
        %5301 = vmatpush2.msra.mxu0 0.0
        %5302 = vmatprep.subr.mxu0 0.0
        %5303 = vmatpush2.msra.mxu0 0.0
        %5304 = vmatprep.subr.mxu0 0.0
        %5305 = vmatpush2.msra.mxu0 0.0
        %5306 = vmatprep.subr.mxu0 0.0
        %5307 = vmatpush2.msra.mxu0 0.0
        %5308 = vmatprep.subr.mxu0 0.0
        %5309 = vmatpush2.msra.mxu0 0.0
        %5310 = vmatprep.subr.mxu0 0.0
        %5311 = vmatpush2.msra.mxu0 0.0
        %5312 = vmatprep.subr.mxu0 0.0
        %5313 = vmatpush2.msra.mxu0 0.0
        %5314 = vmatprep.subr.mxu0 0.0
        %5315 = vmatpush2.msra.mxu0 0.0
        %5316 = vmatprep.subr.mxu0 0.0
        %5317 = vmatpush2.msra.mxu0 0.0
        %5318 = vmatprep.subr.mxu0 0.0
        %5319 = vmatpush2.msra.mxu0 0.0
        %5320 = vmatprep.subr.mxu0 0.0
        %5321 = vmatpush2.msra.mxu0 0.0
        %5322 = vmatprep.subr.mxu0 0.0
        %5323 = vmatpush2.msra.mxu0 0.0
        %5324 = vmatprep.mubr.f32.mxu0 0.0
        %5325 = vmatmul.mubr.f32.gmra.mxu0 %v1542
        %v5326 = vpop.f32.mrf.mxu0
        %v5327 = vadd.f32 0.0, %v5326
        %v5328 = vpop.f32.mrf.mxu0
        %5329 = vmatprep.mubr.f32.mxu0 0.0
        %5330 = vmatmul.mubr.f32.gmra.mxu0 %v1545
        %v5331 = vpop.f32.mrf.mxu0
        %v5332 = vadd.f32 0.0, %v5331
        %v5333 = vpop.f32.mrf.mxu0
        %5334 = vdwg.mxu0
        %v5335 = vld [vmem:[#allocation19 + $0x180] sm:$0xff]
        %v5336 = vld [vmem:[#allocation19 + $0x188] sm:$0xff]
        %v5337 = vld [vmem:[#allocation19 + $0x190] sm:$0xff]
        %v5338 = vld [vmem:[#allocation19 + $0x198] sm:$0xff]
        %v5339 = vld [vmem:[#allocation19 + $0x1a0] sm:$0xff]
        %v5340 = vld [vmem:[#allocation19 + $0x1a8] sm:$0xff]
        %v5341 = vld [vmem:[#allocation19 + $0x1b0] sm:$0xff]
        %v5342 = vld [vmem:[#allocation19 + $0x1b8] sm:$0xff]
        %v5343 = vld [vmem:[#allocation19 + $0x1c0] sm:$0xff]
        %v5344 = vld [vmem:[#allocation19 + $0x1c8] sm:$0xff]
        %v5345 = vld [vmem:[#allocation19 + $0x1d0] sm:$0xff]
        %v5346 = vld [vmem:[#allocation19 + $0x1d8] sm:$0xff]
        %v5347 = vld [vmem:[#allocation19 + $0x1e0] sm:$0xff]
        %v5348 = vld [vmem:[#allocation19 + $0x1e8] sm:$0xff]
        %v5349 = vld [vmem:[#allocation19 + $0x1f0] sm:$0xff]
        %v5350 = vld [vmem:[#allocation19 + $0x1f8] sm:$0xff]
        %5351 = vmatprep.subr.mxu0 0.0
        %5352 = vmatpush1.msra.mxu0 %v5350
        %5353 = vmatprep.subr.mxu0 0.0
        %5354 = vmatpush1.msra.mxu0 %v5349
        %5355 = vmatprep.subr.mxu0 0.0
        %5356 = vmatpush1.msra.mxu0 %v5348
        %5357 = vmatprep.subr.mxu0 0.0
        %5358 = vmatpush1.msra.mxu0 %v5347
        %5359 = vmatprep.subr.mxu0 0.0
        %5360 = vmatpush1.msra.mxu0 %v5346
        %5361 = vmatprep.subr.mxu0 0.0
        %5362 = vmatpush1.msra.mxu0 %v5345
        %5363 = vmatprep.subr.mxu0 0.0
        %5364 = vmatpush1.msra.mxu0 %v5344
        %5365 = vmatprep.subr.mxu0 0.0
        %5366 = vmatpush1.msra.mxu0 %v5343
        %5367 = vmatprep.subr.mxu0 0.0
        %5368 = vmatpush1.msra.mxu0 %v5342
        %5369 = vmatprep.subr.mxu0 0.0
        %5370 = vmatpush1.msra.mxu0 %v5341
        %5371 = vmatprep.subr.mxu0 0.0
        %5372 = vmatpush1.msra.mxu0 %v5340
        %5373 = vmatprep.subr.mxu0 0.0
        %5374 = vmatpush1.msra.mxu0 %v5339
        %5375 = vmatprep.subr.mxu0 0.0
        %5376 = vmatpush1.msra.mxu0 %v5338
        %5377 = vmatprep.subr.mxu0 0.0
        %5378 = vmatpush1.msra.mxu0 %v5337
        %5379 = vmatprep.subr.mxu0 0.0
        %5380 = vmatpush1.msra.mxu0 %v5336
        %5381 = vmatprep.subr.mxu0 0.0
        %5382 = vmatpush1.msra.mxu0 %v5335
        %5383 = vmatprep.subr.mxu0 0.0
        %5384 = vmatpush2.msra.mxu0 0.0
        %5385 = vmatprep.subr.mxu0 0.0
        %5386 = vmatpush2.msra.mxu0 0.0
        %5387 = vmatprep.subr.mxu0 0.0
        %5388 = vmatpush2.msra.mxu0 0.0
        %5389 = vmatprep.subr.mxu0 0.0
        %5390 = vmatpush2.msra.mxu0 0.0
        %5391 = vmatprep.subr.mxu0 0.0
        %5392 = vmatpush2.msra.mxu0 0.0
        %5393 = vmatprep.subr.mxu0 0.0
        %5394 = vmatpush2.msra.mxu0 0.0
        %5395 = vmatprep.subr.mxu0 0.0
        %5396 = vmatpush2.msra.mxu0 0.0
        %5397 = vmatprep.subr.mxu0 0.0
        %5398 = vmatpush2.msra.mxu0 0.0
        %5399 = vmatprep.subr.mxu0 0.0
        %5400 = vmatpush2.msra.mxu0 0.0
        %5401 = vmatprep.subr.mxu0 0.0
        %5402 = vmatpush2.msra.mxu0 0.0
        %5403 = vmatprep.subr.mxu0 0.0
        %5404 = vmatpush2.msra.mxu0 0.0
        %5405 = vmatprep.subr.mxu0 0.0
        %5406 = vmatpush2.msra.mxu0 0.0
        %5407 = vmatprep.subr.mxu0 0.0
        %5408 = vmatpush2.msra.mxu0 0.0
        %5409 = vmatprep.subr.mxu0 0.0
        %5410 = vmatpush2.msra.mxu0 0.0
        %5411 = vmatprep.subr.mxu0 0.0
        %5412 = vmatpush2.msra.mxu0 0.0
        %5413 = vmatprep.subr.mxu0 0.0
        %5414 = vmatpush2.msra.mxu0 0.0
        %5415 = vmatprep.mubr.f32.mxu0 0.0
        %5416 = vmatmul.mubr.f32.gmra.mxu0 %v5327
        %v5417 = vpop.f32.mrf.mxu0
        %v5418 = vadd.f32 0.0, %v5417
        %v5419 = vpop.f32.mrf.mxu0
        %5420 = vmatprep.mubr.f32.mxu0 0.0
        %5421 = vmatmul.mubr.f32.gmra.mxu0 %v5332
        %v5422 = vpop.f32.mrf.mxu0
        %v5423 = vadd.f32 0.0, %v5422
        %v5424 = vpop.f32.mrf.mxu0
        %5425 = vdwg.mxu0
        %v5426 = vadd.f32 %v5258, %v5418
        %v5427 = vadd.f32 %v5259, %v5423
        %5428 = vmatprep.subr.mxu0 0.0
        %5429 = vmatpush1.msra.mxu0 0.0
        %5430 = vmatprep.subr.mxu0 0.0
        %5431 = vmatpush1.msra.mxu0 0.0
        %5432 = vmatprep.subr.mxu0 0.0
        %5433 = vmatpush1.msra.mxu0 0.0
        %5434 = vmatprep.subr.mxu0 0.0
        %5435 = vmatpush1.msra.mxu0 0.0
        %5436 = vmatprep.subr.mxu0 0.0
        %5437 = vmatpush1.msra.mxu0 0.0
        %5438 = vmatprep.subr.mxu0 0.0
        %5439 = vmatpush1.msra.mxu0 0.0
        %5440 = vmatprep.subr.mxu0 0.0
        %5441 = vmatpush1.msra.mxu0 0.0
        %5442 = vmatprep.subr.mxu0 0.0
        %5443 = vmatpush1.msra.mxu0 0.0
        %5444 = vmatprep.subr.mxu0 0.0
        %5445 = vmatpush1.msra.mxu0 0.0
        %5446 = vmatprep.subr.mxu0 0.0
        %5447 = vmatpush1.msra.mxu0 0.0
        %5448 = vmatprep.subr.mxu0 0.0
        %5449 = vmatpush1.msra.mxu0 0.0
        %5450 = vmatprep.subr.mxu0 0.0
        %5451 = vmatpush1.msra.mxu0 0.0
        %5452 = vmatprep.subr.mxu0 0.0
        %5453 = vmatpush1.msra.mxu0 0.0
        %5454 = vmatprep.subr.mxu0 0.0
        %5455 = vmatpush1.msra.mxu0 0.0
        %5456 = vmatprep.subr.mxu0 0.0
        %5457 = vmatpush1.msra.mxu0 %v4759
        %5458 = vmatprep.subr.mxu0 0.0
        %5459 = vmatpush1.msra.mxu0 %v4758
        %5460 = vmatprep.subr.mxu0 0.0
        %5461 = vmatpush2.msra.mxu0 0.0
        %5462 = vmatprep.subr.mxu0 0.0
        %5463 = vmatpush2.msra.mxu0 0.0
        %5464 = vmatprep.subr.mxu0 0.0
        %5465 = vmatpush2.msra.mxu0 0.0
        %5466 = vmatprep.subr.mxu0 0.0
        %5467 = vmatpush2.msra.mxu0 0.0
        %5468 = vmatprep.subr.mxu0 0.0
        %5469 = vmatpush2.msra.mxu0 0.0
        %5470 = vmatprep.subr.mxu0 0.0
        %5471 = vmatpush2.msra.mxu0 0.0
        %5472 = vmatprep.subr.mxu0 0.0
        %5473 = vmatpush2.msra.mxu0 0.0
        %5474 = vmatprep.subr.mxu0 0.0
        %5475 = vmatpush2.msra.mxu0 0.0
        %5476 = vmatprep.subr.mxu0 0.0
        %5477 = vmatpush2.msra.mxu0 0.0
        %5478 = vmatprep.subr.mxu0 0.0
        %5479 = vmatpush2.msra.mxu0 0.0
        %5480 = vmatprep.subr.mxu0 0.0
        %5481 = vmatpush2.msra.mxu0 0.0
        %5482 = vmatprep.subr.mxu0 0.0
        %5483 = vmatpush2.msra.mxu0 0.0
        %5484 = vmatprep.subr.mxu0 0.0
        %5485 = vmatpush2.msra.mxu0 0.0
        %5486 = vmatprep.subr.mxu0 0.0
        %5487 = vmatpush2.msra.mxu0 0.0
        %5488 = vmatprep.subr.mxu0 0.0
        %5489 = vmatpush2.msra.mxu0 0.0
        %5490 = vmatprep.subr.mxu0 0.0
        %5491 = vmatpush2.msra.mxu0 0.0
        %5492 = vmatprep.mubr.f32.mxu0 0.0
        %5493 = vmatmul.mubr.f32.gmra.mxu0 %v1709
        %v5494 = vpop.f32.mrf.mxu0
        %v5495 = vadd.f32 0.0, %v5494
        %v5496 = vpop.f32.mrf.mxu0
        %5497 = vmatprep.mubr.f32.mxu0 0.0
        %5498 = vmatmul.mubr.f32.gmra.mxu0 %v1712
        %v5499 = vpop.f32.mrf.mxu0
        %v5500 = vadd.f32 0.0, %v5499
        %v5501 = vpop.f32.mrf.mxu0
        %5502 = vdwg.mxu0
        %v5503 = vld [vmem:[#allocation19 + $0x200] sm:$0xff]
        %v5504 = vld [vmem:[#allocation19 + $0x208] sm:$0xff]
        %v5505 = vld [vmem:[#allocation19 + $0x210] sm:$0xff]
        %v5506 = vld [vmem:[#allocation19 + $0x218] sm:$0xff]
        %v5507 = vld [vmem:[#allocation19 + $0x220] sm:$0xff]
        %v5508 = vld [vmem:[#allocation19 + $0x228] sm:$0xff]
        %v5509 = vld [vmem:[#allocation19 + $0x230] sm:$0xff]
        %v5510 = vld [vmem:[#allocation19 + $0x238] sm:$0xff]
        %v5511 = vld [vmem:[#allocation19 + $0x240] sm:$0xff]
        %v5512 = vld [vmem:[#allocation19 + $0x248] sm:$0xff]
        %v5513 = vld [vmem:[#allocation19 + $0x250] sm:$0xff]
        %v5514 = vld [vmem:[#allocation19 + $0x258] sm:$0xff]
        %v5515 = vld [vmem:[#allocation19 + $0x260] sm:$0xff]
        %v5516 = vld [vmem:[#allocation19 + $0x268] sm:$0xff]
        %v5517 = vld [vmem:[#allocation19 + $0x270] sm:$0xff]
        %v5518 = vld [vmem:[#allocation19 + $0x278] sm:$0xff]
        %5519 = vmatprep.subr.mxu0 0.0
        %5520 = vmatpush1.msra.mxu0 %v5518
        %5521 = vmatprep.subr.mxu0 0.0
        %5522 = vmatpush1.msra.mxu0 %v5517
        %5523 = vmatprep.subr.mxu0 0.0
        %5524 = vmatpush1.msra.mxu0 %v5516
        %5525 = vmatprep.subr.mxu0 0.0
        %5526 = vmatpush1.msra.mxu0 %v5515
        %5527 = vmatprep.subr.mxu0 0.0
        %5528 = vmatpush1.msra.mxu0 %v5514
        %5529 = vmatprep.subr.mxu0 0.0
        %5530 = vmatpush1.msra.mxu0 %v5513
        %5531 = vmatprep.subr.mxu0 0.0
        %5532 = vmatpush1.msra.mxu0 %v5512
        %5533 = vmatprep.subr.mxu0 0.0
        %5534 = vmatpush1.msra.mxu0 %v5511
        %5535 = vmatprep.subr.mxu0 0.0
        %5536 = vmatpush1.msra.mxu0 %v5510
        %5537 = vmatprep.subr.mxu0 0.0
        %5538 = vmatpush1.msra.mxu0 %v5509
        %5539 = vmatprep.subr.mxu0 0.0
        %5540 = vmatpush1.msra.mxu0 %v5508
        %5541 = vmatprep.subr.mxu0 0.0
        %5542 = vmatpush1.msra.mxu0 %v5507
        %5543 = vmatprep.subr.mxu0 0.0
        %5544 = vmatpush1.msra.mxu0 %v5506
        %5545 = vmatprep.subr.mxu0 0.0
        %5546 = vmatpush1.msra.mxu0 %v5505
        %5547 = vmatprep.subr.mxu0 0.0
        %5548 = vmatpush1.msra.mxu0 %v5504
        %5549 = vmatprep.subr.mxu0 0.0
        %5550 = vmatpush1.msra.mxu0 %v5503
        %5551 = vmatprep.subr.mxu0 0.0
        %5552 = vmatpush2.msra.mxu0 0.0
        %5553 = vmatprep.subr.mxu0 0.0
        %5554 = vmatpush2.msra.mxu0 0.0
        %5555 = vmatprep.subr.mxu0 0.0
        %5556 = vmatpush2.msra.mxu0 0.0
        %5557 = vmatprep.subr.mxu0 0.0
        %5558 = vmatpush2.msra.mxu0 0.0
        %5559 = vmatprep.subr.mxu0 0.0
        %5560 = vmatpush2.msra.mxu0 0.0
        %5561 = vmatprep.subr.mxu0 0.0
        %5562 = vmatpush2.msra.mxu0 0.0
        %5563 = vmatprep.subr.mxu0 0.0
        %5564 = vmatpush2.msra.mxu0 0.0
        %5565 = vmatprep.subr.mxu0 0.0
        %5566 = vmatpush2.msra.mxu0 0.0
        %5567 = vmatprep.subr.mxu0 0.0
        %5568 = vmatpush2.msra.mxu0 0.0
        %5569 = vmatprep.subr.mxu0 0.0
        %5570 = vmatpush2.msra.mxu0 0.0
        %5571 = vmatprep.subr.mxu0 0.0
        %5572 = vmatpush2.msra.mxu0 0.0
        %5573 = vmatprep.subr.mxu0 0.0
        %5574 = vmatpush2.msra.mxu0 0.0
        %5575 = vmatprep.subr.mxu0 0.0
        %5576 = vmatpush2.msra.mxu0 0.0
        %5577 = vmatprep.subr.mxu0 0.0
        %5578 = vmatpush2.msra.mxu0 0.0
        %5579 = vmatprep.subr.mxu0 0.0
        %5580 = vmatpush2.msra.mxu0 0.0
        %5581 = vmatprep.subr.mxu0 0.0
        %5582 = vmatpush2.msra.mxu0 0.0
        %5583 = vmatprep.mubr.f32.mxu0 0.0
        %5584 = vmatmul.mubr.f32.gmra.mxu0 %v5495
        %v5585 = vpop.f32.mrf.mxu0
        %v5586 = vadd.f32 0.0, %v5585
        %v5587 = vpop.f32.mrf.mxu0
        %5588 = vmatprep.mubr.f32.mxu0 0.0
        %5589 = vmatmul.mubr.f32.gmra.mxu0 %v5500
        %v5590 = vpop.f32.mrf.mxu0
        %v5591 = vadd.f32 0.0, %v5590
        %v5592 = vpop.f32.mrf.mxu0
        %5593 = vdwg.mxu0
        %v5594 = vadd.f32 %v5426, %v5586
        %v5595 = vadd.f32 %v5427, %v5591
        %5596 = vmatprep.subr.mxu0 0.0
        %5597 = vmatpush1.msra.mxu0 0.0
        %5598 = vmatprep.subr.mxu0 0.0
        %5599 = vmatpush1.msra.mxu0 0.0
        %5600 = vmatprep.subr.mxu0 0.0
        %5601 = vmatpush1.msra.mxu0 0.0
        %5602 = vmatprep.subr.mxu0 0.0
        %5603 = vmatpush1.msra.mxu0 0.0
        %5604 = vmatprep.subr.mxu0 0.0
        %5605 = vmatpush1.msra.mxu0 0.0
        %5606 = vmatprep.subr.mxu0 0.0
        %5607 = vmatpush1.msra.mxu0 0.0
        %5608 = vmatprep.subr.mxu0 0.0
        %5609 = vmatpush1.msra.mxu0 0.0
        %5610 = vmatprep.subr.mxu0 0.0
        %5611 = vmatpush1.msra.mxu0 0.0
        %5612 = vmatprep.subr.mxu0 0.0
        %5613 = vmatpush1.msra.mxu0 0.0
        %5614 = vmatprep.subr.mxu0 0.0
        %5615 = vmatpush1.msra.mxu0 0.0
        %5616 = vmatprep.subr.mxu0 0.0
        %5617 = vmatpush1.msra.mxu0 0.0
        %5618 = vmatprep.subr.mxu0 0.0
        %5619 = vmatpush1.msra.mxu0 0.0
        %5620 = vmatprep.subr.mxu0 0.0
        %5621 = vmatpush1.msra.mxu0 0.0
        %5622 = vmatprep.subr.mxu0 0.0
        %5623 = vmatpush1.msra.mxu0 0.0
        %5624 = vmatprep.subr.mxu0 0.0
        %5625 = vmatpush1.msra.mxu0 %v4759
        %5626 = vmatprep.subr.mxu0 0.0
        %5627 = vmatpush1.msra.mxu0 %v4758
        %5628 = vmatprep.subr.mxu0 0.0
        %5629 = vmatpush2.msra.mxu0 0.0
        %5630 = vmatprep.subr.mxu0 0.0
        %5631 = vmatpush2.msra.mxu0 0.0
        %5632 = vmatprep.subr.mxu0 0.0
        %5633 = vmatpush2.msra.mxu0 0.0
        %5634 = vmatprep.subr.mxu0 0.0
        %5635 = vmatpush2.msra.mxu0 0.0
        %5636 = vmatprep.subr.mxu0 0.0
        %5637 = vmatpush2.msra.mxu0 0.0
        %5638 = vmatprep.subr.mxu0 0.0
        %5639 = vmatpush2.msra.mxu0 0.0
        %5640 = vmatprep.subr.mxu0 0.0
        %5641 = vmatpush2.msra.mxu0 0.0
        %5642 = vmatprep.subr.mxu0 0.0
        %5643 = vmatpush2.msra.mxu0 0.0
        %5644 = vmatprep.subr.mxu0 0.0
        %5645 = vmatpush2.msra.mxu0 0.0
        %5646 = vmatprep.subr.mxu0 0.0
        %5647 = vmatpush2.msra.mxu0 0.0
        %5648 = vmatprep.subr.mxu0 0.0
        %5649 = vmatpush2.msra.mxu0 0.0
        %5650 = vmatprep.subr.mxu0 0.0
        %5651 = vmatpush2.msra.mxu0 0.0
        %5652 = vmatprep.subr.mxu0 0.0
        %5653 = vmatpush2.msra.mxu0 0.0
        %5654 = vmatprep.subr.mxu0 0.0
        %5655 = vmatpush2.msra.mxu0 0.0
        %5656 = vmatprep.subr.mxu0 0.0
        %5657 = vmatpush2.msra.mxu0 0.0
        %5658 = vmatprep.subr.mxu0 0.0
        %5659 = vmatpush2.msra.mxu0 0.0
        %5660 = vmatprep.mubr.f32.mxu0 0.0
        %5661 = vmatmul.mubr.f32.gmra.mxu0 %v1876
        %v5662 = vpop.f32.mrf.mxu0
        %v5663 = vadd.f32 0.0, %v5662
        %v5664 = vpop.f32.mrf.mxu0
        %5665 = vmatprep.mubr.f32.mxu0 0.0
        %5666 = vmatmul.mubr.f32.gmra.mxu0 %v1879
        %v5667 = vpop.f32.mrf.mxu0
        %v5668 = vadd.f32 0.0, %v5667
        %v5669 = vpop.f32.mrf.mxu0
        %5670 = vdwg.mxu0
        %v5671 = vld [vmem:[#allocation19 + $0x280] sm:$0xff]
        %v5672 = vld [vmem:[#allocation19 + $0x288] sm:$0xff]
        %v5673 = vld [vmem:[#allocation19 + $0x290] sm:$0xff]
        %v5674 = vld [vmem:[#allocation19 + $0x298] sm:$0xff]
        %v5675 = vld [vmem:[#allocation19 + $0x2a0] sm:$0xff]
        %v5676 = vld [vmem:[#allocation19 + $0x2a8] sm:$0xff]
        %v5677 = vld [vmem:[#allocation19 + $0x2b0] sm:$0xff]
        %v5678 = vld [vmem:[#allocation19 + $0x2b8] sm:$0xff]
        %v5679 = vld [vmem:[#allocation19 + $0x2c0] sm:$0xff]
        %v5680 = vld [vmem:[#allocation19 + $0x2c8] sm:$0xff]
        %v5681 = vld [vmem:[#allocation19 + $0x2d0] sm:$0xff]
        %v5682 = vld [vmem:[#allocation19 + $0x2d8] sm:$0xff]
        %v5683 = vld [vmem:[#allocation19 + $0x2e0] sm:$0xff]
        %v5684 = vld [vmem:[#allocation19 + $0x2e8] sm:$0xff]
        %v5685 = vld [vmem:[#allocation19 + $0x2f0] sm:$0xff]
        %v5686 = vld [vmem:[#allocation19 + $0x2f8] sm:$0xff]
        %5687 = vmatprep.subr.mxu0 0.0
        %5688 = vmatpush1.msra.mxu0 %v5686
        %5689 = vmatprep.subr.mxu0 0.0
        %5690 = vmatpush1.msra.mxu0 %v5685
        %5691 = vmatprep.subr.mxu0 0.0
        %5692 = vmatpush1.msra.mxu0 %v5684
        %5693 = vmatprep.subr.mxu0 0.0
        %5694 = vmatpush1.msra.mxu0 %v5683
        %5695 = vmatprep.subr.mxu0 0.0
        %5696 = vmatpush1.msra.mxu0 %v5682
        %5697 = vmatprep.subr.mxu0 0.0
        %5698 = vmatpush1.msra.mxu0 %v5681
        %5699 = vmatprep.subr.mxu0 0.0
        %5700 = vmatpush1.msra.mxu0 %v5680
        %5701 = vmatprep.subr.mxu0 0.0
        %5702 = vmatpush1.msra.mxu0 %v5679
        %5703 = vmatprep.subr.mxu0 0.0
        %5704 = vmatpush1.msra.mxu0 %v5678
        %5705 = vmatprep.subr.mxu0 0.0
        %5706 = vmatpush1.msra.mxu0 %v5677
        %5707 = vmatprep.subr.mxu0 0.0
        %5708 = vmatpush1.msra.mxu0 %v5676
        %5709 = vmatprep.subr.mxu0 0.0
        %5710 = vmatpush1.msra.mxu0 %v5675
        %5711 = vmatprep.subr.mxu0 0.0
        %5712 = vmatpush1.msra.mxu0 %v5674
        %5713 = vmatprep.subr.mxu0 0.0
        %5714 = vmatpush1.msra.mxu0 %v5673
        %5715 = vmatprep.subr.mxu0 0.0
        %5716 = vmatpush1.msra.mxu0 %v5672
        %5717 = vmatprep.subr.mxu0 0.0
        %5718 = vmatpush1.msra.mxu0 %v5671
        %5719 = vmatprep.subr.mxu0 0.0
        %5720 = vmatpush2.msra.mxu0 0.0
        %5721 = vmatprep.subr.mxu0 0.0
        %5722 = vmatpush2.msra.mxu0 0.0
        %5723 = vmatprep.subr.mxu0 0.0
        %5724 = vmatpush2.msra.mxu0 0.0
        %5725 = vmatprep.subr.mxu0 0.0
        %5726 = vmatpush2.msra.mxu0 0.0
        %5727 = vmatprep.subr.mxu0 0.0
        %5728 = vmatpush2.msra.mxu0 0.0
        %5729 = vmatprep.subr.mxu0 0.0
        %5730 = vmatpush2.msra.mxu0 0.0
        %5731 = vmatprep.subr.mxu0 0.0
        %5732 = vmatpush2.msra.mxu0 0.0
        %5733 = vmatprep.subr.mxu0 0.0
        %5734 = vmatpush2.msra.mxu0 0.0
        %5735 = vmatprep.subr.mxu0 0.0
        %5736 = vmatpush2.msra.mxu0 0.0
        %5737 = vmatprep.subr.mxu0 0.0
        %5738 = vmatpush2.msra.mxu0 0.0
        %5739 = vmatprep.subr.mxu0 0.0
        %5740 = vmatpush2.msra.mxu0 0.0
        %5741 = vmatprep.subr.mxu0 0.0
        %5742 = vmatpush2.msra.mxu0 0.0
        %5743 = vmatprep.subr.mxu0 0.0
        %5744 = vmatpush2.msra.mxu0 0.0
        %5745 = vmatprep.subr.mxu0 0.0
        %5746 = vmatpush2.msra.mxu0 0.0
        %5747 = vmatprep.subr.mxu0 0.0
        %5748 = vmatpush2.msra.mxu0 0.0
        %5749 = vmatprep.subr.mxu0 0.0
        %5750 = vmatpush2.msra.mxu0 0.0
        %5751 = vmatprep.mubr.f32.mxu0 0.0
        %5752 = vmatmul.mubr.f32.gmra.mxu0 %v5663
        %v5753 = vpop.f32.mrf.mxu0
        %v5754 = vadd.f32 0.0, %v5753
        %v5755 = vpop.f32.mrf.mxu0
        %5756 = vmatprep.mubr.f32.mxu0 0.0
        %5757 = vmatmul.mubr.f32.gmra.mxu0 %v5668
        %v5758 = vpop.f32.mrf.mxu0
        %v5759 = vadd.f32 0.0, %v5758
        %v5760 = vpop.f32.mrf.mxu0
        %5761 = vdwg.mxu0
        %v5762 = vadd.f32 %v5594, %v5754
        %v5763 = vadd.f32 %v5595, %v5759
        %5764 = vmatprep.subr.mxu0 0.0
        %5765 = vmatpush1.msra.mxu0 0.0
        %5766 = vmatprep.subr.mxu0 0.0
        %5767 = vmatpush1.msra.mxu0 0.0
        %5768 = vmatprep.subr.mxu0 0.0
        %5769 = vmatpush1.msra.mxu0 0.0
        %5770 = vmatprep.subr.mxu0 0.0
        %5771 = vmatpush1.msra.mxu0 0.0
        %5772 = vmatprep.subr.mxu0 0.0
        %5773 = vmatpush1.msra.mxu0 0.0
        %5774 = vmatprep.subr.mxu0 0.0
        %5775 = vmatpush1.msra.mxu0 0.0
        %5776 = vmatprep.subr.mxu0 0.0
        %5777 = vmatpush1.msra.mxu0 0.0
        %5778 = vmatprep.subr.mxu0 0.0
        %5779 = vmatpush1.msra.mxu0 0.0
        %5780 = vmatprep.subr.mxu0 0.0
        %5781 = vmatpush1.msra.mxu0 0.0
        %5782 = vmatprep.subr.mxu0 0.0
        %5783 = vmatpush1.msra.mxu0 0.0
        %5784 = vmatprep.subr.mxu0 0.0
        %5785 = vmatpush1.msra.mxu0 0.0
        %5786 = vmatprep.subr.mxu0 0.0
        %5787 = vmatpush1.msra.mxu0 0.0
        %5788 = vmatprep.subr.mxu0 0.0
        %5789 = vmatpush1.msra.mxu0 0.0
        %5790 = vmatprep.subr.mxu0 0.0
        %5791 = vmatpush1.msra.mxu0 0.0
        %5792 = vmatprep.subr.mxu0 0.0
        %5793 = vmatpush1.msra.mxu0 %v4759
        %5794 = vmatprep.subr.mxu0 0.0
        %5795 = vmatpush1.msra.mxu0 %v4758
        %5796 = vmatprep.subr.mxu0 0.0
        %5797 = vmatpush2.msra.mxu0 0.0
        %5798 = vmatprep.subr.mxu0 0.0
        %5799 = vmatpush2.msra.mxu0 0.0
        %5800 = vmatprep.subr.mxu0 0.0
        %5801 = vmatpush2.msra.mxu0 0.0
        %5802 = vmatprep.subr.mxu0 0.0
        %5803 = vmatpush2.msra.mxu0 0.0
        %5804 = vmatprep.subr.mxu0 0.0
        %5805 = vmatpush2.msra.mxu0 0.0
        %5806 = vmatprep.subr.mxu0 0.0
        %5807 = vmatpush2.msra.mxu0 0.0
        %5808 = vmatprep.subr.mxu0 0.0
        %5809 = vmatpush2.msra.mxu0 0.0
        %5810 = vmatprep.subr.mxu0 0.0
        %5811 = vmatpush2.msra.mxu0 0.0
        %5812 = vmatprep.subr.mxu0 0.0
        %5813 = vmatpush2.msra.mxu0 0.0
        %5814 = vmatprep.subr.mxu0 0.0
        %5815 = vmatpush2.msra.mxu0 0.0
        %5816 = vmatprep.subr.mxu0 0.0
        %5817 = vmatpush2.msra.mxu0 0.0
        %5818 = vmatprep.subr.mxu0 0.0
        %5819 = vmatpush2.msra.mxu0 0.0
        %5820 = vmatprep.subr.mxu0 0.0
        %5821 = vmatpush2.msra.mxu0 0.0
        %5822 = vmatprep.subr.mxu0 0.0
        %5823 = vmatpush2.msra.mxu0 0.0
        %5824 = vmatprep.subr.mxu0 0.0
        %5825 = vmatpush2.msra.mxu0 0.0
        %5826 = vmatprep.subr.mxu0 0.0
        %5827 = vmatpush2.msra.mxu0 0.0
        %5828 = vmatprep.mubr.f32.mxu0 0.0
        %5829 = vmatmul.mubr.f32.gmra.mxu0 %v2043
        %v5830 = vpop.f32.mrf.mxu0
        %v5831 = vadd.f32 0.0, %v5830
        %v5832 = vpop.f32.mrf.mxu0
        %5833 = vmatprep.mubr.f32.mxu0 0.0
        %5834 = vmatmul.mubr.f32.gmra.mxu0 %v2046
        %v5835 = vpop.f32.mrf.mxu0
        %v5836 = vadd.f32 0.0, %v5835
        %v5837 = vpop.f32.mrf.mxu0
        %5838 = vdwg.mxu0
        %v5839 = vld [vmem:[#allocation19 + $0x300] sm:$0xff]
        %v5840 = vld [vmem:[#allocation19 + $0x308] sm:$0xff]
        %v5841 = vld [vmem:[#allocation19 + $0x310] sm:$0xff]
        %v5842 = vld [vmem:[#allocation19 + $0x318] sm:$0xff]
        %v5843 = vld [vmem:[#allocation19 + $0x320] sm:$0xff]
        %v5844 = vld [vmem:[#allocation19 + $0x328] sm:$0xff]
        %v5845 = vld [vmem:[#allocation19 + $0x330] sm:$0xff]
        %v5846 = vld [vmem:[#allocation19 + $0x338] sm:$0xff]
        %v5847 = vld [vmem:[#allocation19 + $0x340] sm:$0xff]
        %v5848 = vld [vmem:[#allocation19 + $0x348] sm:$0xff]
        %v5849 = vld [vmem:[#allocation19 + $0x350] sm:$0xff]
        %v5850 = vld [vmem:[#allocation19 + $0x358] sm:$0xff]
        %v5851 = vld [vmem:[#allocation19 + $0x360] sm:$0xff]
        %v5852 = vld [vmem:[#allocation19 + $0x368] sm:$0xff]
        %v5853 = vld [vmem:[#allocation19 + $0x370] sm:$0xff]
        %v5854 = vld [vmem:[#allocation19 + $0x378] sm:$0xff]
        %5855 = vmatprep.subr.mxu0 0.0
        %5856 = vmatpush1.msra.mxu0 %v5854
        %5857 = vmatprep.subr.mxu0 0.0
        %5858 = vmatpush1.msra.mxu0 %v5853
        %5859 = vmatprep.subr.mxu0 0.0
        %5860 = vmatpush1.msra.mxu0 %v5852
        %5861 = vmatprep.subr.mxu0 0.0
        %5862 = vmatpush1.msra.mxu0 %v5851
        %5863 = vmatprep.subr.mxu0 0.0
        %5864 = vmatpush1.msra.mxu0 %v5850
        %5865 = vmatprep.subr.mxu0 0.0
        %5866 = vmatpush1.msra.mxu0 %v5849
        %5867 = vmatprep.subr.mxu0 0.0
        %5868 = vmatpush1.msra.mxu0 %v5848
        %5869 = vmatprep.subr.mxu0 0.0
        %5870 = vmatpush1.msra.mxu0 %v5847
        %5871 = vmatprep.subr.mxu0 0.0
        %5872 = vmatpush1.msra.mxu0 %v5846
        %5873 = vmatprep.subr.mxu0 0.0
        %5874 = vmatpush1.msra.mxu0 %v5845
        %5875 = vmatprep.subr.mxu0 0.0
        %5876 = vmatpush1.msra.mxu0 %v5844
        %5877 = vmatprep.subr.mxu0 0.0
        %5878 = vmatpush1.msra.mxu0 %v5843
        %5879 = vmatprep.subr.mxu0 0.0
        %5880 = vmatpush1.msra.mxu0 %v5842
        %5881 = vmatprep.subr.mxu0 0.0
        %5882 = vmatpush1.msra.mxu0 %v5841
        %5883 = vmatprep.subr.mxu0 0.0
        %5884 = vmatpush1.msra.mxu0 %v5840
        %5885 = vmatprep.subr.mxu0 0.0
        %5886 = vmatpush1.msra.mxu0 %v5839
        %5887 = vmatprep.subr.mxu0 0.0
        %5888 = vmatpush2.msra.mxu0 0.0
        %5889 = vmatprep.subr.mxu0 0.0
        %5890 = vmatpush2.msra.mxu0 0.0
        %5891 = vmatprep.subr.mxu0 0.0
        %5892 = vmatpush2.msra.mxu0 0.0
        %5893 = vmatprep.subr.mxu0 0.0
        %5894 = vmatpush2.msra.mxu0 0.0
        %5895 = vmatprep.subr.mxu0 0.0
        %5896 = vmatpush2.msra.mxu0 0.0
        %5897 = vmatprep.subr.mxu0 0.0
        %5898 = vmatpush2.msra.mxu0 0.0
        %5899 = vmatprep.subr.mxu0 0.0
        %5900 = vmatpush2.msra.mxu0 0.0
        %5901 = vmatprep.subr.mxu0 0.0
        %5902 = vmatpush2.msra.mxu0 0.0
        %5903 = vmatprep.subr.mxu0 0.0
        %5904 = vmatpush2.msra.mxu0 0.0
        %5905 = vmatprep.subr.mxu0 0.0
        %5906 = vmatpush2.msra.mxu0 0.0
        %5907 = vmatprep.subr.mxu0 0.0
        %5908 = vmatpush2.msra.mxu0 0.0
        %5909 = vmatprep.subr.mxu0 0.0
        %5910 = vmatpush2.msra.mxu0 0.0
        %5911 = vmatprep.subr.mxu0 0.0
        %5912 = vmatpush2.msra.mxu0 0.0
        %5913 = vmatprep.subr.mxu0 0.0
        %5914 = vmatpush2.msra.mxu0 0.0
        %5915 = vmatprep.subr.mxu0 0.0
        %5916 = vmatpush2.msra.mxu0 0.0
        %5917 = vmatprep.subr.mxu0 0.0
        %5918 = vmatpush2.msra.mxu0 0.0
        %5919 = vmatprep.mubr.f32.mxu0 0.0
        %5920 = vmatmul.mubr.f32.gmra.mxu0 %v5831
        %v5921 = vpop.f32.mrf.mxu0
        %v5922 = vadd.f32 0.0, %v5921
        %v5923 = vpop.f32.mrf.mxu0
        %5924 = vmatprep.mubr.f32.mxu0 0.0
        %5925 = vmatmul.mubr.f32.gmra.mxu0 %v5836
        %v5926 = vpop.f32.mrf.mxu0
        %v5927 = vadd.f32 0.0, %v5926
        %v5928 = vpop.f32.mrf.mxu0
        %5929 = vdwg.mxu0
        %v5930 = vadd.f32 %v5762, %v5922
        %v5931 = vadd.f32 %v5763, %v5927
        %5932 = vmatprep.subr.mxu0 0.0
        %5933 = vmatpush1.msra.mxu0 0.0
        %5934 = vmatprep.subr.mxu0 0.0
        %5935 = vmatpush1.msra.mxu0 0.0
        %5936 = vmatprep.subr.mxu0 0.0
        %5937 = vmatpush1.msra.mxu0 0.0
        %5938 = vmatprep.subr.mxu0 0.0
        %5939 = vmatpush1.msra.mxu0 0.0
        %5940 = vmatprep.subr.mxu0 0.0
        %5941 = vmatpush1.msra.mxu0 0.0
        %5942 = vmatprep.subr.mxu0 0.0
        %5943 = vmatpush1.msra.mxu0 0.0
        %5944 = vmatprep.subr.mxu0 0.0
        %5945 = vmatpush1.msra.mxu0 0.0
        %5946 = vmatprep.subr.mxu0 0.0
        %5947 = vmatpush1.msra.mxu0 0.0
        %5948 = vmatprep.subr.mxu0 0.0
        %5949 = vmatpush1.msra.mxu0 0.0
        %5950 = vmatprep.subr.mxu0 0.0
        %5951 = vmatpush1.msra.mxu0 0.0
        %5952 = vmatprep.subr.mxu0 0.0
        %5953 = vmatpush1.msra.mxu0 0.0
        %5954 = vmatprep.subr.mxu0 0.0
        %5955 = vmatpush1.msra.mxu0 0.0
        %5956 = vmatprep.subr.mxu0 0.0
        %5957 = vmatpush1.msra.mxu0 0.0
        %5958 = vmatprep.subr.mxu0 0.0
        %5959 = vmatpush1.msra.mxu0 0.0
        %5960 = vmatprep.subr.mxu0 0.0
        %5961 = vmatpush1.msra.mxu0 %v4759
        %5962 = vmatprep.subr.mxu0 0.0
        %5963 = vmatpush1.msra.mxu0 %v4758
        %5964 = vmatprep.subr.mxu0 0.0
        %5965 = vmatpush2.msra.mxu0 0.0
        %5966 = vmatprep.subr.mxu0 0.0
        %5967 = vmatpush2.msra.mxu0 0.0
        %5968 = vmatprep.subr.mxu0 0.0
        %5969 = vmatpush2.msra.mxu0 0.0
        %5970 = vmatprep.subr.mxu0 0.0
        %5971 = vmatpush2.msra.mxu0 0.0
        %5972 = vmatprep.subr.mxu0 0.0
        %5973 = vmatpush2.msra.mxu0 0.0
        %5974 = vmatprep.subr.mxu0 0.0
        %5975 = vmatpush2.msra.mxu0 0.0
        %5976 = vmatprep.subr.mxu0 0.0
        %5977 = vmatpush2.msra.mxu0 0.0
        %5978 = vmatprep.subr.mxu0 0.0
        %5979 = vmatpush2.msra.mxu0 0.0
        %5980 = vmatprep.subr.mxu0 0.0
        %5981 = vmatpush2.msra.mxu0 0.0
        %5982 = vmatprep.subr.mxu0 0.0
        %5983 = vmatpush2.msra.mxu0 0.0
        %5984 = vmatprep.subr.mxu0 0.0
        %5985 = vmatpush2.msra.mxu0 0.0
        %5986 = vmatprep.subr.mxu0 0.0
        %5987 = vmatpush2.msra.mxu0 0.0
        %5988 = vmatprep.subr.mxu0 0.0
        %5989 = vmatpush2.msra.mxu0 0.0
        %5990 = vmatprep.subr.mxu0 0.0
        %5991 = vmatpush2.msra.mxu0 0.0
        %5992 = vmatprep.subr.mxu0 0.0
        %5993 = vmatpush2.msra.mxu0 0.0
        %5994 = vmatprep.subr.mxu0 0.0
        %5995 = vmatpush2.msra.mxu0 0.0
        %5996 = vmatprep.mubr.f32.mxu0 0.0
        %5997 = vmatmul.mubr.f32.gmra.mxu0 %v2210
        %v5998 = vpop.f32.mrf.mxu0
        %v5999 = vadd.f32 0.0, %v5998
        %v6000 = vpop.f32.mrf.mxu0
        %6001 = vmatprep.mubr.f32.mxu0 0.0
        %6002 = vmatmul.mubr.f32.gmra.mxu0 %v2213
        %v6003 = vpop.f32.mrf.mxu0
        %v6004 = vadd.f32 0.0, %v6003
        %v6005 = vpop.f32.mrf.mxu0
        %6006 = vdwg.mxu0
        %v6007 = vld [vmem:[#allocation19 + $0x380] sm:$0xff]
        %v6008 = vld [vmem:[#allocation19 + $0x388] sm:$0xff]
        %v6009 = vld [vmem:[#allocation19 + $0x390] sm:$0xff]
        %v6010 = vld [vmem:[#allocation19 + $0x398] sm:$0xff]
        %v6011 = vld [vmem:[#allocation19 + $0x3a0] sm:$0xff]
        %v6012 = vld [vmem:[#allocation19 + $0x3a8] sm:$0xff]
        %v6013 = vld [vmem:[#allocation19 + $0x3b0] sm:$0xff]
        %v6014 = vld [vmem:[#allocation19 + $0x3b8] sm:$0xff]
        %v6015 = vld [vmem:[#allocation19 + $0x3c0] sm:$0xff]
        %v6016 = vld [vmem:[#allocation19 + $0x3c8] sm:$0xff]
        %v6017 = vld [vmem:[#allocation19 + $0x3d0] sm:$0xff]
        %v6018 = vld [vmem:[#allocation19 + $0x3d8] sm:$0xff]
        %v6019 = vld [vmem:[#allocation19 + $0x3e0] sm:$0xff]
        %v6020 = vld [vmem:[#allocation19 + $0x3e8] sm:$0xff]
        %v6021 = vld [vmem:[#allocation19 + $0x3f0] sm:$0xff]
        %v6022 = vld [vmem:[#allocation19 + $0x3f8] sm:$0xff]
        %6023 = vmatprep.subr.mxu0 0.0
        %6024 = vmatpush1.msra.mxu0 %v6022
        %6025 = vmatprep.subr.mxu0 0.0
        %6026 = vmatpush1.msra.mxu0 %v6021
        %6027 = vmatprep.subr.mxu0 0.0
        %6028 = vmatpush1.msra.mxu0 %v6020
        %6029 = vmatprep.subr.mxu0 0.0
        %6030 = vmatpush1.msra.mxu0 %v6019
        %6031 = vmatprep.subr.mxu0 0.0
        %6032 = vmatpush1.msra.mxu0 %v6018
        %6033 = vmatprep.subr.mxu0 0.0
        %6034 = vmatpush1.msra.mxu0 %v6017
        %6035 = vmatprep.subr.mxu0 0.0
        %6036 = vmatpush1.msra.mxu0 %v6016
        %6037 = vmatprep.subr.mxu0 0.0
        %6038 = vmatpush1.msra.mxu0 %v6015
        %6039 = vmatprep.subr.mxu0 0.0
        %6040 = vmatpush1.msra.mxu0 %v6014
        %6041 = vmatprep.subr.mxu0 0.0
        %6042 = vmatpush1.msra.mxu0 %v6013
        %6043 = vmatprep.subr.mxu0 0.0
        %6044 = vmatpush1.msra.mxu0 %v6012
        %6045 = vmatprep.subr.mxu0 0.0
        %6046 = vmatpush1.msra.mxu0 %v6011
        %6047 = vmatprep.subr.mxu0 0.0
        %6048 = vmatpush1.msra.mxu0 %v6010
        %6049 = vmatprep.subr.mxu0 0.0
        %6050 = vmatpush1.msra.mxu0 %v6009
        %6051 = vmatprep.subr.mxu0 0.0
        %6052 = vmatpush1.msra.mxu0 %v6008
        %6053 = vmatprep.subr.mxu0 0.0
        %6054 = vmatpush1.msra.mxu0 %v6007
        %6055 = vmatprep.subr.mxu0 0.0
        %6056 = vmatpush2.msra.mxu0 0.0
        %6057 = vmatprep.subr.mxu0 0.0
        %6058 = vmatpush2.msra.mxu0 0.0
        %6059 = vmatprep.subr.mxu0 0.0
        %6060 = vmatpush2.msra.mxu0 0.0
        %6061 = vmatprep.subr.mxu0 0.0
        %6062 = vmatpush2.msra.mxu0 0.0
        %6063 = vmatprep.subr.mxu0 0.0
        %6064 = vmatpush2.msra.mxu0 0.0
        %6065 = vmatprep.subr.mxu0 0.0
        %6066 = vmatpush2.msra.mxu0 0.0
        %6067 = vmatprep.subr.mxu0 0.0
        %6068 = vmatpush2.msra.mxu0 0.0
        %6069 = vmatprep.subr.mxu0 0.0
        %6070 = vmatpush2.msra.mxu0 0.0
        %6071 = vmatprep.subr.mxu0 0.0
        %6072 = vmatpush2.msra.mxu0 0.0
        %6073 = vmatprep.subr.mxu0 0.0
        %6074 = vmatpush2.msra.mxu0 0.0
        %6075 = vmatprep.subr.mxu0 0.0
        %6076 = vmatpush2.msra.mxu0 0.0
        %6077 = vmatprep.subr.mxu0 0.0
        %6078 = vmatpush2.msra.mxu0 0.0
        %6079 = vmatprep.subr.mxu0 0.0
        %6080 = vmatpush2.msra.mxu0 0.0
        %6081 = vmatprep.subr.mxu0 0.0
        %6082 = vmatpush2.msra.mxu0 0.0
        %6083 = vmatprep.subr.mxu0 0.0
        %6084 = vmatpush2.msra.mxu0 0.0
        %6085 = vmatprep.subr.mxu0 0.0
        %6086 = vmatpush2.msra.mxu0 0.0
        %6087 = vmatprep.mubr.f32.mxu0 0.0
        %6088 = vmatmul.mubr.f32.gmra.mxu0 %v5999
        %v6089 = vpop.f32.mrf.mxu0
        %v6090 = vadd.f32 0.0, %v6089
        %v6091 = vpop.f32.mrf.mxu0
        %6092 = vmatprep.mubr.f32.mxu0 0.0
        %6093 = vmatmul.mubr.f32.gmra.mxu0 %v6004
        %v6094 = vpop.f32.mrf.mxu0
        %v6095 = vadd.f32 0.0, %v6094
        %v6096 = vpop.f32.mrf.mxu0
        %6097 = vdwg.mxu0
        %v6098 = vadd.f32 %v5930, %v6090
        %v6099 = vadd.f32 %v5931, %v6095
        %6100 = vmatprep.subr.mxu0 0.0
        %6101 = vmatpush1.msra.mxu0 0.0
        %6102 = vmatprep.subr.mxu0 0.0
        %6103 = vmatpush1.msra.mxu0 0.0
        %6104 = vmatprep.subr.mxu0 0.0
        %6105 = vmatpush1.msra.mxu0 0.0
        %6106 = vmatprep.subr.mxu0 0.0
        %6107 = vmatpush1.msra.mxu0 0.0
        %6108 = vmatprep.subr.mxu0 0.0
        %6109 = vmatpush1.msra.mxu0 0.0
        %6110 = vmatprep.subr.mxu0 0.0
        %6111 = vmatpush1.msra.mxu0 0.0
        %6112 = vmatprep.subr.mxu0 0.0
        %6113 = vmatpush1.msra.mxu0 0.0
        %6114 = vmatprep.subr.mxu0 0.0
        %6115 = vmatpush1.msra.mxu0 0.0
        %6116 = vmatprep.subr.mxu0 0.0
        %6117 = vmatpush1.msra.mxu0 0.0
        %6118 = vmatprep.subr.mxu0 0.0
        %6119 = vmatpush1.msra.mxu0 0.0
        %6120 = vmatprep.subr.mxu0 0.0
        %6121 = vmatpush1.msra.mxu0 0.0
        %6122 = vmatprep.subr.mxu0 0.0
        %6123 = vmatpush1.msra.mxu0 0.0
        %6124 = vmatprep.subr.mxu0 0.0
        %6125 = vmatpush1.msra.mxu0 0.0
        %6126 = vmatprep.subr.mxu0 0.0
        %6127 = vmatpush1.msra.mxu0 0.0
        %6128 = vmatprep.subr.mxu0 0.0
        %6129 = vmatpush1.msra.mxu0 %v4759
        %6130 = vmatprep.subr.mxu0 0.0
        %6131 = vmatpush1.msra.mxu0 %v4758
        %6132 = vmatprep.subr.mxu0 0.0
        %6133 = vmatpush2.msra.mxu0 0.0
        %6134 = vmatprep.subr.mxu0 0.0
        %6135 = vmatpush2.msra.mxu0 0.0
        %6136 = vmatprep.subr.mxu0 0.0
        %6137 = vmatpush2.msra.mxu0 0.0
        %6138 = vmatprep.subr.mxu0 0.0
        %6139 = vmatpush2.msra.mxu0 0.0
        %6140 = vmatprep.subr.mxu0 0.0
        %6141 = vmatpush2.msra.mxu0 0.0
        %6142 = vmatprep.subr.mxu0 0.0
        %6143 = vmatpush2.msra.mxu0 0.0
        %6144 = vmatprep.subr.mxu0 0.0
        %6145 = vmatpush2.msra.mxu0 0.0
        %6146 = vmatprep.subr.mxu0 0.0
        %6147 = vmatpush2.msra.mxu0 0.0
        %6148 = vmatprep.subr.mxu0 0.0
        %6149 = vmatpush2.msra.mxu0 0.0
        %6150 = vmatprep.subr.mxu0 0.0
        %6151 = vmatpush2.msra.mxu0 0.0
        %6152 = vmatprep.subr.mxu0 0.0
        %6153 = vmatpush2.msra.mxu0 0.0
        %6154 = vmatprep.subr.mxu0 0.0
        %6155 = vmatpush2.msra.mxu0 0.0
        %6156 = vmatprep.subr.mxu0 0.0
        %6157 = vmatpush2.msra.mxu0 0.0
        %6158 = vmatprep.subr.mxu0 0.0
        %6159 = vmatpush2.msra.mxu0 0.0
        %6160 = vmatprep.subr.mxu0 0.0
        %6161 = vmatpush2.msra.mxu0 0.0
        %6162 = vmatprep.subr.mxu0 0.0
        %6163 = vmatpush2.msra.mxu0 0.0
        %6164 = vmatprep.mubr.f32.mxu0 0.0
        %6165 = vmatmul.mubr.f32.gmra.mxu0 %v2377
        %v6166 = vpop.f32.mrf.mxu0
        %v6167 = vadd.f32 0.0, %v6166
        %v6168 = vpop.f32.mrf.mxu0
        %6169 = vmatprep.mubr.f32.mxu0 0.0
        %6170 = vmatmul.mubr.f32.gmra.mxu0 %v2380
        %v6171 = vpop.f32.mrf.mxu0
        %v6172 = vadd.f32 0.0, %v6171
        %v6173 = vpop.f32.mrf.mxu0
        %6174 = vdwg.mxu0
        %v6175 = vld [vmem:[#allocation19 + $0x400] sm:$0xff]
        %v6176 = vld [vmem:[#allocation19 + $0x408] sm:$0xff]
        %v6177 = vld [vmem:[#allocation19 + $0x410] sm:$0xff]
        %v6178 = vld [vmem:[#allocation19 + $0x418] sm:$0xff]
        %v6179 = vld [vmem:[#allocation19 + $0x420] sm:$0xff]
        %v6180 = vld [vmem:[#allocation19 + $0x428] sm:$0xff]
        %v6181 = vld [vmem:[#allocation19 + $0x430] sm:$0xff]
        %v6182 = vld [vmem:[#allocation19 + $0x438] sm:$0xff]
        %v6183 = vld [vmem:[#allocation19 + $0x440] sm:$0xff]
        %v6184 = vld [vmem:[#allocation19 + $0x448] sm:$0xff]
        %v6185 = vld [vmem:[#allocation19 + $0x450] sm:$0xff]
        %v6186 = vld [vmem:[#allocation19 + $0x458] sm:$0xff]
        %v6187 = vld [vmem:[#allocation19 + $0x460] sm:$0xff]
        %v6188 = vld [vmem:[#allocation19 + $0x468] sm:$0xff]
        %v6189 = vld [vmem:[#allocation19 + $0x470] sm:$0xff]
        %v6190 = vld [vmem:[#allocation19 + $0x478] sm:$0xff]
        %6191 = vmatprep.subr.mxu0 0.0
        %6192 = vmatpush1.msra.mxu0 %v6190
        %6193 = vmatprep.subr.mxu0 0.0
        %6194 = vmatpush1.msra.mxu0 %v6189
        %6195 = vmatprep.subr.mxu0 0.0
        %6196 = vmatpush1.msra.mxu0 %v6188
        %6197 = vmatprep.subr.mxu0 0.0
        %6198 = vmatpush1.msra.mxu0 %v6187
        %6199 = vmatprep.subr.mxu0 0.0
        %6200 = vmatpush1.msra.mxu0 %v6186
        %6201 = vmatprep.subr.mxu0 0.0
        %6202 = vmatpush1.msra.mxu0 %v6185
        %6203 = vmatprep.subr.mxu0 0.0
        %6204 = vmatpush1.msra.mxu0 %v6184
        %6205 = vmatprep.subr.mxu0 0.0
        %6206 = vmatpush1.msra.mxu0 %v6183
        %6207 = vmatprep.subr.mxu0 0.0
        %6208 = vmatpush1.msra.mxu0 %v6182
        %6209 = vmatprep.subr.mxu0 0.0
        %6210 = vmatpush1.msra.mxu0 %v6181
        %6211 = vmatprep.subr.mxu0 0.0
        %6212 = vmatpush1.msra.mxu0 %v6180
        %6213 = vmatprep.subr.mxu0 0.0
        %6214 = vmatpush1.msra.mxu0 %v6179
        %6215 = vmatprep.subr.mxu0 0.0
        %6216 = vmatpush1.msra.mxu0 %v6178
        %6217 = vmatprep.subr.mxu0 0.0
        %6218 = vmatpush1.msra.mxu0 %v6177
        %6219 = vmatprep.subr.mxu0 0.0
        %6220 = vmatpush1.msra.mxu0 %v6176
        %6221 = vmatprep.subr.mxu0 0.0
        %6222 = vmatpush1.msra.mxu0 %v6175
        %6223 = vmatprep.subr.mxu0 0.0
        %6224 = vmatpush2.msra.mxu0 0.0
        %6225 = vmatprep.subr.mxu0 0.0
        %6226 = vmatpush2.msra.mxu0 0.0
        %6227 = vmatprep.subr.mxu0 0.0
        %6228 = vmatpush2.msra.mxu0 0.0
        %6229 = vmatprep.subr.mxu0 0.0
        %6230 = vmatpush2.msra.mxu0 0.0
        %6231 = vmatprep.subr.mxu0 0.0
        %6232 = vmatpush2.msra.mxu0 0.0
        %6233 = vmatprep.subr.mxu0 0.0
        %6234 = vmatpush2.msra.mxu0 0.0
        %6235 = vmatprep.subr.mxu0 0.0
        %6236 = vmatpush2.msra.mxu0 0.0
        %6237 = vmatprep.subr.mxu0 0.0
        %6238 = vmatpush2.msra.mxu0 0.0
        %6239 = vmatprep.subr.mxu0 0.0
        %6240 = vmatpush2.msra.mxu0 0.0
        %6241 = vmatprep.subr.mxu0 0.0
        %6242 = vmatpush2.msra.mxu0 0.0
        %6243 = vmatprep.subr.mxu0 0.0
        %6244 = vmatpush2.msra.mxu0 0.0
        %6245 = vmatprep.subr.mxu0 0.0
        %6246 = vmatpush2.msra.mxu0 0.0
        %6247 = vmatprep.subr.mxu0 0.0
        %6248 = vmatpush2.msra.mxu0 0.0
        %6249 = vmatprep.subr.mxu0 0.0
        %6250 = vmatpush2.msra.mxu0 0.0
        %6251 = vmatprep.subr.mxu0 0.0
        %6252 = vmatpush2.msra.mxu0 0.0
        %6253 = vmatprep.subr.mxu0 0.0
        %6254 = vmatpush2.msra.mxu0 0.0
        %6255 = vmatprep.mubr.f32.mxu0 0.0
        %6256 = vmatmul.mubr.f32.gmra.mxu0 %v6167
        %v6257 = vpop.f32.mrf.mxu0
        %v6258 = vadd.f32 0.0, %v6257
        %v6259 = vpop.f32.mrf.mxu0
        %6260 = vmatprep.mubr.f32.mxu0 0.0
        %6261 = vmatmul.mubr.f32.gmra.mxu0 %v6172
        %v6262 = vpop.f32.mrf.mxu0
        %v6263 = vadd.f32 0.0, %v6262
        %v6264 = vpop.f32.mrf.mxu0
        %6265 = vdwg.mxu0
        %v6266 = vadd.f32 %v6098, %v6258
        %v6267 = vadd.f32 %v6099, %v6263
        %v6268 = vld [vmem:[#allocation20] sm:$0x1]
        %v6270 = vlaneseq
        %v6271 = vshrl.u32 %v6270, 7
        %v6272 = vsub.s32 0, %v6271
        %v6273 = vrot.slane %v6268, %v6272
        %v6275 = vadd.f32 %v6266, %v6273
        %v6276 = vadd.f32 %v6267, %v6273
        %v6277 = vmul.f32 %v6275, 0.5
        %v6278 = vmul.f32 %v6276, 0.5
        %v6279 = vmul.f32 %v6275, 0.70710677
        %v6280 = vmul.f32 %v6276, 0.70710677
        %v6281 = verf.f32.pop %v6279
        %v6282 = verf.f32.pop %v6280
        %v6283 = vadd.f32 %v6281, 1.0
        %v6284 = vadd.f32 %v6282, 1.0
        %v6285 = vmul.f32 %v6277, %v6283
        %v6286 = vmul.f32 %v6278, %v6284
        %v6287 = vadd.f32 %v6285, %v6286
        %v6288 = vrot.slane %v6287, 4
        %v6289 = vadd.f32 %v6287, %v6288
        %v6290 = vrot.slane %v6289, 2
        %v6291 = vadd.f32 %v6289, %v6290
        %v6292 = vrot.slane %v6291, 1
        %v6293 = vadd.f32 %v6291, %v6292
        %6294 = vmatprep.subr.mxu0 0.0
        %6295 = vmatpush1.msra.mxu0 %v948
        %6296 = vmatprep.subr.mxu0 0.0
        %6297 = vmatpush1.msra.mxu0 %v947
        %6298 = vmatprep.subr.mxu0 0.0
        %6299 = vmatpush1.msra.mxu0 %v946
        %6300 = vmatprep.subr.mxu0 0.0
        %6301 = vmatpush1.msra.mxu0 %v945
        %6302 = vmatprep.subr.mxu0 0.0
        %6303 = vmatpush1.msra.mxu0 %v944
        %6304 = vmatprep.subr.mxu0 0.0
        %6305 = vmatpush1.msra.mxu0 %v943
        %6306 = vmatprep.subr.mxu0 0.0
        %6307 = vmatpush1.msra.mxu0 %v942
        %6308 = vmatprep.subr.mxu0 0.0
        %6309 = vmatpush1.msra.mxu0 %v941
        %6310 = vmatprep.subr.mxu0 0.0
        %6311 = vmatpush1.msra.mxu0 %v940
        %6312 = vmatprep.subr.mxu0 0.0
        %6313 = vmatpush1.msra.mxu0 %v939
        %6314 = vmatprep.subr.mxu0 0.0
        %6315 = vmatpush1.msra.mxu0 %v938
        %6316 = vmatprep.subr.mxu0 0.0
        %6317 = vmatpush1.msra.mxu0 %v937
        %6318 = vmatprep.subr.mxu0 0.0
        %6319 = vmatpush1.msra.mxu0 %v936
        %6320 = vmatprep.subr.mxu0 0.0
        %6321 = vmatpush1.msra.mxu0 %v935
        %6322 = vmatprep.subr.mxu0 0.0
        %6323 = vmatpush1.msra.mxu0 %v934
        %6324 = vmatprep.subr.mxu0 0.0
        %6325 = vmatpush1.msra.mxu0 %v933
        %6326 = vmatprep.subr.mxu0 0.0
        %6327 = vmatpush2.msra.mxu0 0.0
        %6328 = vmatprep.subr.mxu0 0.0
        %6329 = vmatpush2.msra.mxu0 0.0
        %6330 = vmatprep.subr.mxu0 0.0
        %6331 = vmatpush2.msra.mxu0 0.0
        %6332 = vmatprep.subr.mxu0 0.0
        %6333 = vmatpush2.msra.mxu0 0.0
        %6334 = vmatprep.subr.mxu0 0.0
        %6335 = vmatpush2.msra.mxu0 0.0
        %6336 = vmatprep.subr.mxu0 0.0
        %6337 = vmatpush2.msra.mxu0 0.0
        %6338 = vmatprep.subr.mxu0 0.0
        %6339 = vmatpush2.msra.mxu0 0.0
        %6340 = vmatprep.subr.mxu0 0.0
        %6341 = vmatpush2.msra.mxu0 0.0
        %6342 = vmatprep.subr.mxu0 0.0
        %6343 = vmatpush2.msra.mxu0 0.0
        %6344 = vmatprep.subr.mxu0 0.0
        %6345 = vmatpush2.msra.mxu0 0.0
        %6346 = vmatprep.subr.mxu0 0.0
        %6347 = vmatpush2.msra.mxu0 0.0
        %6348 = vmatprep.subr.mxu0 0.0
        %6349 = vmatpush2.msra.mxu0 0.0
        %6350 = vmatprep.subr.mxu0 0.0
        %6351 = vmatpush2.msra.mxu0 0.0
        %6352 = vmatprep.subr.mxu0 0.0
        %6353 = vmatpush2.msra.mxu0 0.0
        %6354 = vmatprep.subr.mxu0 0.0
        %6355 = vmatpush2.msra.mxu0 0.0
        %6356 = vmatprep.subr.mxu0 0.0
        %6357 = vmatpush2.msra.mxu0 0.0
        %6358 = vmatprep.mubr.f32.mxu0 0.0
        %6359 = vmatmul.mubr.f32.gmra.mxu0 %v6293
        %v6360 = vpop.f32.mrf.mxu0
        %v6361 = vadd.f32 0.0, %v6360
        %v6362 = vpop.f32.mrf.mxu0
        %6363 = vdwg.mxu0
        %v6364 = vmul.f32 %v6361, %v2637
        %v6366 = vsel %vm1043, %v6364, 0
        %6368 = vmatprep.subr.mxu0 0.0
        %6369 = vmatpush1.msra.mxu0 0.0
        %6370 = vmatprep.subr.mxu0 0.0
        %6371 = vmatpush1.msra.mxu0 0.0
        %6372 = vmatprep.subr.mxu0 0.0
        %6373 = vmatpush1.msra.mxu0 0.0
        %6374 = vmatprep.subr.mxu0 0.0
        %6375 = vmatpush1.msra.mxu0 0.0
        %6376 = vmatprep.subr.mxu0 0.0
        %6377 = vmatpush1.msra.mxu0 0.0
        %6378 = vmatprep.subr.mxu0 0.0
        %6379 = vmatpush1.msra.mxu0 0.0
        %6380 = vmatprep.subr.mxu0 0.0
        %6381 = vmatpush1.msra.mxu0 0.0
        %6382 = vmatprep.subr.mxu0 0.0
        %6383 = vmatpush1.msra.mxu0 0.0
        %6384 = vmatprep.subr.mxu0 0.0
        %6385 = vmatpush1.msra.mxu0 0.0
        %6386 = vmatprep.subr.mxu0 0.0
        %6387 = vmatpush1.msra.mxu0 0.0
        %6388 = vmatprep.subr.mxu0 0.0
        %6389 = vmatpush1.msra.mxu0 0.0
        %6390 = vmatprep.subr.mxu0 0.0
        %6391 = vmatpush1.msra.mxu0 0.0
        %6392 = vmatprep.subr.mxu0 0.0
        %6393 = vmatpush1.msra.mxu0 0.0
        %6394 = vmatprep.subr.mxu0 0.0
        %6395 = vmatpush1.msra.mxu0 0.0
        %6396 = vmatprep.subr.mxu0 0.0
        %6397 = vmatpush1.msra.mxu0 %v950
        %6398 = vmatprep.subr.mxu0 0.0
        %6399 = vmatpush1.msra.mxu0 %v949
        %6400 = vmatprep.subr.mxu0 0.0
        %6401 = vmatpush2.msra.mxu0 0.0
        %6402 = vmatprep.subr.mxu0 0.0
        %6403 = vmatpush2.msra.mxu0 0.0
        %6404 = vmatprep.subr.mxu0 0.0
        %6405 = vmatpush2.msra.mxu0 0.0
        %6406 = vmatprep.subr.mxu0 0.0
        %6407 = vmatpush2.msra.mxu0 0.0
        %6408 = vmatprep.subr.mxu0 0.0
        %6409 = vmatpush2.msra.mxu0 0.0
        %6410 = vmatprep.subr.mxu0 0.0
        %6411 = vmatpush2.msra.mxu0 0.0
        %6412 = vmatprep.subr.mxu0 0.0
        %6413 = vmatpush2.msra.mxu0 0.0
        %6414 = vmatprep.subr.mxu0 0.0
        %6415 = vmatpush2.msra.mxu0 0.0
        %6416 = vmatprep.subr.mxu0 0.0
        %6417 = vmatpush2.msra.mxu0 0.0
        %6418 = vmatprep.subr.mxu0 0.0
        %6419 = vmatpush2.msra.mxu0 0.0
        %6420 = vmatprep.subr.mxu0 0.0
        %6421 = vmatpush2.msra.mxu0 0.0
        %6422 = vmatprep.subr.mxu0 0.0
        %6423 = vmatpush2.msra.mxu0 0.0
        %6424 = vmatprep.subr.mxu0 0.0
        %6425 = vmatpush2.msra.mxu0 0.0
        %6426 = vmatprep.subr.mxu0 0.0
        %6427 = vmatpush2.msra.mxu0 0.0
        %6428 = vmatprep.subr.mxu0 0.0
        %6429 = vmatpush2.msra.mxu0 0.0
        %6430 = vmatprep.subr.mxu0 0.0
        %6431 = vmatpush2.msra.mxu0 0.0
        %6432 = vmatprep.mubr.f32.mxu0 0.0
        %6433 = vmatmul.mubr.f32.gmra.mxu0 %v6366
        %v6434 = vpop.f32.mrf.mxu0
        %v6435 = vadd.f32 0.0, %v6434
        %v6436 = vpop.f32.mrf.mxu0
        %6437 = vdwg.mxu0
        %v6438 = vlaneseq
        %v6439 = vshrl.u32 %v6438, 7
        %v6440 = vsub.s32 0, %v6439
        %v6441 = vrot.slane %v6435, %v6440
        %v6442 = vsub.f32 %v6285, %v6441
        %v6443 = vsub.f32 %v6286, %v6441
        %v6444 = vmul.f32 %v6442, %v6442
        %v6445 = vmul.f32 %v6443, %v6443
        %v6446 = vadd.f32 %v6444, %v6445
        %v6447 = vrot.slane %v6446, 4
        %v6448 = vadd.f32 %v6446, %v6447
        %v6449 = vrot.slane %v6448, 2
        %v6450 = vadd.f32 %v6448, %v6449
        %v6451 = vrot.slane %v6450, 1
        %v6452 = vadd.f32 %v6450, %v6451
        %6453 = vmatprep.subr.mxu0 0.0
        %6454 = vmatpush1.msra.mxu0 %v948
        %6455 = vmatprep.subr.mxu0 0.0
        %6456 = vmatpush1.msra.mxu0 %v947
        %6457 = vmatprep.subr.mxu0 0.0
        %6458 = vmatpush1.msra.mxu0 %v946
        %6459 = vmatprep.subr.mxu0 0.0
        %6460 = vmatpush1.msra.mxu0 %v945
        %6461 = vmatprep.subr.mxu0 0.0
        %6462 = vmatpush1.msra.mxu0 %v944
        %6463 = vmatprep.subr.mxu0 0.0
        %6464 = vmatpush1.msra.mxu0 %v943
        %6465 = vmatprep.subr.mxu0 0.0
        %6466 = vmatpush1.msra.mxu0 %v942
        %6467 = vmatprep.subr.mxu0 0.0
        %6468 = vmatpush1.msra.mxu0 %v941
        %6469 = vmatprep.subr.mxu0 0.0
        %6470 = vmatpush1.msra.mxu0 %v940
        %6471 = vmatprep.subr.mxu0 0.0
        %6472 = vmatpush1.msra.mxu0 %v939
        %6473 = vmatprep.subr.mxu0 0.0
        %6474 = vmatpush1.msra.mxu0 %v938
        %6475 = vmatprep.subr.mxu0 0.0
        %6476 = vmatpush1.msra.mxu0 %v937
        %6477 = vmatprep.subr.mxu0 0.0
        %6478 = vmatpush1.msra.mxu0 %v936
        %6479 = vmatprep.subr.mxu0 0.0
        %6480 = vmatpush1.msra.mxu0 %v935
        %6481 = vmatprep.subr.mxu0 0.0
        %6482 = vmatpush1.msra.mxu0 %v934
        %6483 = vmatprep.subr.mxu0 0.0
        %6484 = vmatpush1.msra.mxu0 %v933
        %6485 = vmatprep.subr.mxu0 0.0
        %6486 = vmatpush2.msra.mxu0 0.0
        %6487 = vmatprep.subr.mxu0 0.0
        %6488 = vmatpush2.msra.mxu0 0.0
        %6489 = vmatprep.subr.mxu0 0.0
        %6490 = vmatpush2.msra.mxu0 0.0
        %6491 = vmatprep.subr.mxu0 0.0
        %6492 = vmatpush2.msra.mxu0 0.0
        %6493 = vmatprep.subr.mxu0 0.0
        %6494 = vmatpush2.msra.mxu0 0.0
        %6495 = vmatprep.subr.mxu0 0.0
        %6496 = vmatpush2.msra.mxu0 0.0
        %6497 = vmatprep.subr.mxu0 0.0
        %6498 = vmatpush2.msra.mxu0 0.0
        %6499 = vmatprep.subr.mxu0 0.0
        %6500 = vmatpush2.msra.mxu0 0.0
        %6501 = vmatprep.subr.mxu0 0.0
        %6502 = vmatpush2.msra.mxu0 0.0
        %6503 = vmatprep.subr.mxu0 0.0
        %6504 = vmatpush2.msra.mxu0 0.0
        %6505 = vmatprep.subr.mxu0 0.0
        %6506 = vmatpush2.msra.mxu0 0.0
        %6507 = vmatprep.subr.mxu0 0.0
        %6508 = vmatpush2.msra.mxu0 0.0
        %6509 = vmatprep.subr.mxu0 0.0
        %6510 = vmatpush2.msra.mxu0 0.0
        %6511 = vmatprep.subr.mxu0 0.0
        %6512 = vmatpush2.msra.mxu0 0.0
        %6513 = vmatprep.subr.mxu0 0.0
        %6514 = vmatpush2.msra.mxu0 0.0
        %6515 = vmatprep.subr.mxu0 0.0
        %6516 = vmatpush2.msra.mxu0 0.0
        %6517 = vmatprep.mubr.f32.mxu0 0.0
        %6518 = vmatmul.mubr.f32.gmra.mxu0 %v6452
        %v6519 = vpop.f32.mrf.mxu0
        %v6520 = vadd.f32 0.0, %v6519
        %v6521 = vpop.f32.mrf.mxu0
        %6522 = vdwg.mxu0
        %v6523 = vmul.f32 %v6520, %v2637
        %v6524 = vadd.f32 %v6523, 1e-05
        %v6525 = vrsqrt.pop %v6524
        %v6527 = vsel %vm1043, %v6525, 0
        %6529 = vmatprep.subr.mxu0 0.0
        %6530 = vmatpush1.msra.mxu0 0.0
        %6531 = vmatprep.subr.mxu0 0.0
        %6532 = vmatpush1.msra.mxu0 0.0
        %6533 = vmatprep.subr.mxu0 0.0
        %6534 = vmatpush1.msra.mxu0 0.0
        %6535 = vmatprep.subr.mxu0 0.0
        %6536 = vmatpush1.msra.mxu0 0.0
        %6537 = vmatprep.subr.mxu0 0.0
        %6538 = vmatpush1.msra.mxu0 0.0
        %6539 = vmatprep.subr.mxu0 0.0
        %6540 = vmatpush1.msra.mxu0 0.0
        %6541 = vmatprep.subr.mxu0 0.0
        %6542 = vmatpush1.msra.mxu0 0.0
        %6543 = vmatprep.subr.mxu0 0.0
        %6544 = vmatpush1.msra.mxu0 0.0
        %6545 = vmatprep.subr.mxu0 0.0
        %6546 = vmatpush1.msra.mxu0 0.0
        %6547 = vmatprep.subr.mxu0 0.0
        %6548 = vmatpush1.msra.mxu0 0.0
        %6549 = vmatprep.subr.mxu0 0.0
        %6550 = vmatpush1.msra.mxu0 0.0
        %6551 = vmatprep.subr.mxu0 0.0
        %6552 = vmatpush1.msra.mxu0 0.0
        %6553 = vmatprep.subr.mxu0 0.0
        %6554 = vmatpush1.msra.mxu0 0.0
        %6555 = vmatprep.subr.mxu0 0.0
        %6556 = vmatpush1.msra.mxu0 0.0
        %6557 = vmatprep.subr.mxu0 0.0
        %6558 = vmatpush1.msra.mxu0 %v950
        %6559 = vmatprep.subr.mxu0 0.0
        %6560 = vmatpush1.msra.mxu0 %v949
        %6561 = vmatprep.subr.mxu0 0.0
        %6562 = vmatpush2.msra.mxu0 0.0
        %6563 = vmatprep.subr.mxu0 0.0
        %6564 = vmatpush2.msra.mxu0 0.0
        %6565 = vmatprep.subr.mxu0 0.0
        %6566 = vmatpush2.msra.mxu0 0.0
        %6567 = vmatprep.subr.mxu0 0.0
        %6568 = vmatpush2.msra.mxu0 0.0
        %6569 = vmatprep.subr.mxu0 0.0
        %6570 = vmatpush2.msra.mxu0 0.0
        %6571 = vmatprep.subr.mxu0 0.0
        %6572 = vmatpush2.msra.mxu0 0.0
        %6573 = vmatprep.subr.mxu0 0.0
        %6574 = vmatpush2.msra.mxu0 0.0
        %6575 = vmatprep.subr.mxu0 0.0
        %6576 = vmatpush2.msra.mxu0 0.0
        %6577 = vmatprep.subr.mxu0 0.0
        %6578 = vmatpush2.msra.mxu0 0.0
        %6579 = vmatprep.subr.mxu0 0.0
        %6580 = vmatpush2.msra.mxu0 0.0
        %6581 = vmatprep.subr.mxu0 0.0
        %6582 = vmatpush2.msra.mxu0 0.0
        %6583 = vmatprep.subr.mxu0 0.0
        %6584 = vmatpush2.msra.mxu0 0.0
        %6585 = vmatprep.subr.mxu0 0.0
        %6586 = vmatpush2.msra.mxu0 0.0
        %6587 = vmatprep.subr.mxu0 0.0
        %6588 = vmatpush2.msra.mxu0 0.0
        %6589 = vmatprep.subr.mxu0 0.0
        %6590 = vmatpush2.msra.mxu0 0.0
        %6591 = vmatprep.subr.mxu0 0.0
        %6592 = vmatpush2.msra.mxu0 0.0
        %6593 = vmatprep.mubr.f32.mxu0 0.0
        %6594 = vmatmul.mubr.f32.gmra.mxu0 %v6527
        %v6595 = vpop.f32.mrf.mxu0
        %v6596 = vadd.f32 0.0, %v6595
        %v6597 = vpop.f32.mrf.mxu0
        %6598 = vdwg.mxu0
        %v6599 = vlaneseq
        %v6600 = vshrl.u32 %v6599, 7
        %v6601 = vsub.s32 0, %v6600
        %v6602 = vrot.slane %v6596, %v6601
        %v6603 = vmul.f32 %v6442, %v6602
        %v6604 = vmul.f32 %v6443, %v6602
        %v6605 = vld [vmem:[#allocation22] sm:$0x1]
        %v6607 = vlaneseq
        %v6608 = vshrl.u32 %v6607, 7
        %v6609 = vsub.s32 0, %v6608
        %v6610 = vrot.slane %v6605, %v6609
        %v6612 = vmul.f32 %v6603, %v6610
        %v6613 = vmul.f32 %v6604, %v6610
        %v6614 = vld [vmem:[#allocation23] sm:$0x1]
        %v6616 = vlaneseq
        %v6617 = vshrl.u32 %v6616, 7
        %v6618 = vsub.s32 0, %v6617
        %v6619 = vrot.slane %v6614, %v6618
        %v6621 = vadd.f32 %v6612, %v6619
        %v6622 = vadd.f32 %v6613, %v6619
        %v6623 = vadd.f32 %v6621, %v1033
        %v6624 = vadd.f32 %v6622, %v1038
        %v6625 = vld [vmem:[#allocation26] sm:$0xff]
        %v6626 = vld [vmem:[#allocation26 + $0x8] sm:$0xff]
        %v6627 = vld [vmem:[#allocation26 + $0x10] sm:$0xff]
        %v6628 = vld [vmem:[#allocation26 + $0x18] sm:$0xff]
        %v6629 = vld [vmem:[#allocation26 + $0x20] sm:$0xff]
        %v6630 = vld [vmem:[#allocation26 + $0x28] sm:$0xff]
        %v6631 = vld [vmem:[#allocation26 + $0x30] sm:$0xff]
        %v6632 = vld [vmem:[#allocation26 + $0x38] sm:$0xff]
        %v6633 = vld [vmem:[#allocation26 + $0x40] sm:$0xff]
        %v6634 = vld [vmem:[#allocation26 + $0x48] sm:$0xff]
        %v6635 = vld [vmem:[#allocation26 + $0x50] sm:$0xff]
        %v6636 = vld [vmem:[#allocation26 + $0x58] sm:$0xff]
        %v6637 = vld [vmem:[#allocation26 + $0x60] sm:$0xff]
        %v6638 = vld [vmem:[#allocation26 + $0x68] sm:$0xff]
        %v6639 = vld [vmem:[#allocation26 + $0x70] sm:$0xff]
        %v6640 = vld [vmem:[#allocation26 + $0x78] sm:$0xff]
        %v6641 = vld [vmem:[#allocation26 + $0x80] sm:$0xff]
        %v6642 = vld [vmem:[#allocation26 + $0x88] sm:$0xff]
        %v6643 = vld [vmem:[#allocation26 + $0x90] sm:$0xff]
        %v6644 = vld [vmem:[#allocation26 + $0x98] sm:$0xff]
        %v6645 = vld [vmem:[#allocation26 + $0xa0] sm:$0xff]
        %v6646 = vld [vmem:[#allocation26 + $0xa8] sm:$0xff]
        %v6647 = vld [vmem:[#allocation26 + $0xb0] sm:$0xff]
        %v6648 = vld [vmem:[#allocation26 + $0xb8] sm:$0xff]
        %v6649 = vld [vmem:[#allocation26 + $0xc0] sm:$0xff]
        %v6650 = vld [vmem:[#allocation26 + $0xc8] sm:$0xff]
        %v6651 = vld [vmem:[#allocation26 + $0xd0] sm:$0xff]
        %v6652 = vld [vmem:[#allocation26 + $0xd8] sm:$0xff]
        %v6653 = vld [vmem:[#allocation26 + $0xe0] sm:$0xff]
        %v6654 = vld [vmem:[#allocation26 + $0xe8] sm:$0xff]
        %v6655 = vld [vmem:[#allocation26 + $0xf0] sm:$0xff]
        %v6656 = vld [vmem:[#allocation26 + $0xf8] sm:$0xff]
        %v6657 = vld [vmem:[#allocation26 + $0x100] sm:$0xff]
        %v6658 = vld [vmem:[#allocation26 + $0x108] sm:$0xff]
        %v6659 = vld [vmem:[#allocation26 + $0x110] sm:$0xff]
        %v6660 = vld [vmem:[#allocation26 + $0x118] sm:$0xff]
        %v6661 = vld [vmem:[#allocation26 + $0x120] sm:$0xff]
        %v6662 = vld [vmem:[#allocation26 + $0x128] sm:$0xff]
        %v6663 = vld [vmem:[#allocation26 + $0x130] sm:$0xff]
        %v6664 = vld [vmem:[#allocation26 + $0x138] sm:$0xff]
        %v6665 = vld [vmem:[#allocation26 + $0x140] sm:$0xff]
        %v6666 = vld [vmem:[#allocation26 + $0x148] sm:$0xff]
        %v6667 = vld [vmem:[#allocation26 + $0x150] sm:$0xff]
        %v6668 = vld [vmem:[#allocation26 + $0x158] sm:$0xff]
        %v6669 = vld [vmem:[#allocation26 + $0x160] sm:$0xff]
        %v6670 = vld [vmem:[#allocation26 + $0x168] sm:$0xff]
        %v6671 = vld [vmem:[#allocation26 + $0x170] sm:$0xff]
        %v6672 = vld [vmem:[#allocation26 + $0x178] sm:$0xff]
        %v6673 = vld [vmem:[#allocation26 + $0x180] sm:$0xff]
        %v6674 = vld [vmem:[#allocation26 + $0x188] sm:$0xff]
        %v6675 = vld [vmem:[#allocation26 + $0x190] sm:$0xff]
        %v6676 = vld [vmem:[#allocation26 + $0x198] sm:$0xff]
        %v6677 = vld [vmem:[#allocation26 + $0x1a0] sm:$0xff]
        %v6678 = vld [vmem:[#allocation26 + $0x1a8] sm:$0xff]
        %v6679 = vld [vmem:[#allocation26 + $0x1b0] sm:$0xff]
        %v6680 = vld [vmem:[#allocation26 + $0x1b8] sm:$0xff]
        %v6681 = vld [vmem:[#allocation26 + $0x1c0] sm:$0xff]
        %v6682 = vld [vmem:[#allocation26 + $0x1c8] sm:$0xff]
        %v6683 = vld [vmem:[#allocation26 + $0x1d0] sm:$0xff]
        %v6684 = vld [vmem:[#allocation26 + $0x1d8] sm:$0xff]
        %v6685 = vld [vmem:[#allocation26 + $0x1e0] sm:$0xff]
        %v6686 = vld [vmem:[#allocation26 + $0x1e8] sm:$0xff]
        %v6687 = vld [vmem:[#allocation26 + $0x1f0] sm:$0xff]
        %v6688 = vld [vmem:[#allocation26 + $0x1f8] sm:$0xff]
        %v6690 = vrot.slane %v6623, 1
        %6692 = vmatprep.subr.mxu0 %v6688
        %6693 = vmatpush1.msra.mxu0 %v6687
        %6694 = vmatprep.subr.mxu0 %v6686
        %6695 = vmatpush1.msra.mxu0 %v6685
        %6696 = vmatprep.subr.mxu0 %v6684
        %6697 = vmatpush1.msra.mxu0 %v6683
        %6698 = vmatprep.subr.mxu0 %v6682
        %6699 = vmatpush1.msra.mxu0 %v6681
        %6700 = vmatprep.subr.mxu0 %v6680
        %6701 = vmatpush1.msra.mxu0 %v6679
        %6702 = vmatprep.subr.mxu0 %v6678
        %6703 = vmatpush1.msra.mxu0 %v6677
        %6704 = vmatprep.subr.mxu0 %v6676
        %6705 = vmatpush1.msra.mxu0 %v6675
        %6706 = vmatprep.subr.mxu0 %v6674
        %6707 = vmatpush1.msra.mxu0 %v6673
        %6708 = vmatprep.subr.mxu0 %v6672
        %6709 = vmatpush1.msra.mxu0 %v6671
        %6710 = vmatprep.subr.mxu0 %v6670
        %6711 = vmatpush1.msra.mxu0 %v6669
        %6712 = vmatprep.subr.mxu0 %v6668
        %6713 = vmatpush1.msra.mxu0 %v6667
        %6714 = vmatprep.subr.mxu0 %v6666
        %6715 = vmatpush1.msra.mxu0 %v6665
        %6716 = vmatprep.subr.mxu0 %v6664
        %6717 = vmatpush1.msra.mxu0 %v6663
        %6718 = vmatprep.subr.mxu0 %v6662
        %6719 = vmatpush1.msra.mxu0 %v6661
        %6720 = vmatprep.subr.mxu0 %v6660
        %6721 = vmatpush1.msra.mxu0 %v6659
        %6722 = vmatprep.subr.mxu0 %v6658
        %6723 = vmatpush1.msra.mxu0 %v6657
        %6724 = vmatprep.subr.mxu0 0.0
        %6725 = vmatpush2.msra.mxu0 0.0
        %6726 = vmatprep.subr.mxu0 0.0
        %6727 = vmatpush2.msra.mxu0 0.0
        %6728 = vmatprep.subr.mxu0 0.0
        %6729 = vmatpush2.msra.mxu0 0.0
        %6730 = vmatprep.subr.mxu0 0.0
        %6731 = vmatpush2.msra.mxu0 0.0
        %6732 = vmatprep.subr.mxu0 0.0
        %6733 = vmatpush2.msra.mxu0 0.0
        %6734 = vmatprep.subr.mxu0 0.0
        %6735 = vmatpush2.msra.mxu0 0.0
        %6736 = vmatprep.subr.mxu0 0.0
        %6737 = vmatpush2.msra.mxu0 0.0
        %6738 = vmatprep.subr.mxu0 0.0
        %6739 = vmatpush2.msra.mxu0 0.0
        %6740 = vmatprep.subr.mxu0 0.0
        %6741 = vmatpush2.msra.mxu0 0.0
        %6742 = vmatprep.subr.mxu0 0.0
        %6743 = vmatpush2.msra.mxu0 0.0
        %6744 = vmatprep.subr.mxu0 0.0
        %6745 = vmatpush2.msra.mxu0 0.0
        %6746 = vmatprep.subr.mxu0 0.0
        %6747 = vmatpush2.msra.mxu0 0.0
        %6748 = vmatprep.subr.mxu0 0.0
        %6749 = vmatpush2.msra.mxu0 0.0
        %6750 = vmatprep.subr.mxu0 0.0
        %6751 = vmatpush2.msra.mxu0 0.0
        %6752 = vmatprep.subr.mxu0 0.0
        %6753 = vmatpush2.msra.mxu0 0.0
        %6754 = vmatprep.subr.mxu0 0.0
        %6755 = vmatpush2.msra.mxu0 0.0
        %6756 = vmatprep.mubr.f32.mxu0 0.0
        %6757 = vmatmul.mubr.f32.gmra.mxu0 %v6690
        %v6758 = vpop.f32.mrf.mxu0
        %v6759 = vadd.f32 0.0, %v6758
        %v6760 = vpop.f32.mrf.mxu0
        %v6761 = vadd.f32 0.0, %v6760
        %6762 = vdwg.mxu0
        %6763 = vmatprep.subr.mxu0 %v6656
        %6764 = vmatpush1.msra.mxu0 %v6655
        %6765 = vmatprep.subr.mxu0 %v6654
        %6766 = vmatpush1.msra.mxu0 %v6653
        %6767 = vmatprep.subr.mxu0 %v6652
        %6768 = vmatpush1.msra.mxu0 %v6651
        %6769 = vmatprep.subr.mxu0 %v6650
        %6770 = vmatpush1.msra.mxu0 %v6649
        %6771 = vmatprep.subr.mxu0 %v6648
        %6772 = vmatpush1.msra.mxu0 %v6647
        %6773 = vmatprep.subr.mxu0 %v6646
        %6774 = vmatpush1.msra.mxu0 %v6645
        %6775 = vmatprep.subr.mxu0 %v6644
        %6776 = vmatpush1.msra.mxu0 %v6643
        %6777 = vmatprep.subr.mxu0 %v6642
        %6778 = vmatpush1.msra.mxu0 %v6641
        %6779 = vmatprep.subr.mxu0 %v6640
        %6780 = vmatpush1.msra.mxu0 %v6639
        %6781 = vmatprep.subr.mxu0 %v6638
        %6782 = vmatpush1.msra.mxu0 %v6637
        %6783 = vmatprep.subr.mxu0 %v6636
        %6784 = vmatpush1.msra.mxu0 %v6635
        %6785 = vmatprep.subr.mxu0 %v6634
        %6786 = vmatpush1.msra.mxu0 %v6633
        %6787 = vmatprep.subr.mxu0 %v6632
        %6788 = vmatpush1.msra.mxu0 %v6631
        %6789 = vmatprep.subr.mxu0 %v6630
        %6790 = vmatpush1.msra.mxu0 %v6629
        %6791 = vmatprep.subr.mxu0 %v6628
        %6792 = vmatpush1.msra.mxu0 %v6627
        %6793 = vmatprep.subr.mxu0 %v6626
        %6794 = vmatpush1.msra.mxu0 %v6625
        %6795 = vmatprep.subr.mxu0 0.0
        %6796 = vmatpush2.msra.mxu0 0.0
        %6797 = vmatprep.subr.mxu0 0.0
        %6798 = vmatpush2.msra.mxu0 0.0
        %6799 = vmatprep.subr.mxu0 0.0
        %6800 = vmatpush2.msra.mxu0 0.0
        %6801 = vmatprep.subr.mxu0 0.0
        %6802 = vmatpush2.msra.mxu0 0.0
        %6803 = vmatprep.subr.mxu0 0.0
        %6804 = vmatpush2.msra.mxu0 0.0
        %6805 = vmatprep.subr.mxu0 0.0
        %6806 = vmatpush2.msra.mxu0 0.0
        %6807 = vmatprep.subr.mxu0 0.0
        %6808 = vmatpush2.msra.mxu0 0.0
        %6809 = vmatprep.subr.mxu0 0.0
        %6810 = vmatpush2.msra.mxu0 0.0
        %6811 = vmatprep.subr.mxu0 0.0
        %6812 = vmatpush2.msra.mxu0 0.0
        %6813 = vmatprep.subr.mxu0 0.0
        %6814 = vmatpush2.msra.mxu0 0.0
        %6815 = vmatprep.subr.mxu0 0.0
        %6816 = vmatpush2.msra.mxu0 0.0
        %6817 = vmatprep.subr.mxu0 0.0
        %6818 = vmatpush2.msra.mxu0 0.0
        %6819 = vmatprep.subr.mxu0 0.0
        %6820 = vmatpush2.msra.mxu0 0.0
        %6821 = vmatprep.subr.mxu0 0.0
        %6822 = vmatpush2.msra.mxu0 0.0
        %6823 = vmatprep.subr.mxu0 0.0
        %6824 = vmatpush2.msra.mxu0 0.0
        %6825 = vmatprep.subr.mxu0 0.0
        %6826 = vmatpush2.msra.mxu0 0.0
        %6827 = vmatprep.mubr.f32.mxu0 0.0
        %6828 = vmatmul.mubr.f32.gmra.mxu0 %v6623
        %v6829 = vpop.f32.mrf.mxu0
        %v6830 = vadd.f32 %v6759, %v6829
        %v6831 = vpop.f32.mrf.mxu0
        %v6832 = vadd.f32 %v6761, %v6831
        %6833 = vdwg.mxu0
        %v6834 = vld [vmem:[#allocation26 + $0x200] sm:$0xff]
        %v6835 = vld [vmem:[#allocation26 + $0x208] sm:$0xff]
        %v6836 = vld [vmem:[#allocation26 + $0x210] sm:$0xff]
        %v6837 = vld [vmem:[#allocation26 + $0x218] sm:$0xff]
        %v6838 = vld [vmem:[#allocation26 + $0x220] sm:$0xff]
        %v6839 = vld [vmem:[#allocation26 + $0x228] sm:$0xff]
        %v6840 = vld [vmem:[#allocation26 + $0x230] sm:$0xff]
        %v6841 = vld [vmem:[#allocation26 + $0x238] sm:$0xff]
        %v6842 = vld [vmem:[#allocation26 + $0x240] sm:$0xff]
        %v6843 = vld [vmem:[#allocation26 + $0x248] sm:$0xff]
        %v6844 = vld [vmem:[#allocation26 + $0x250] sm:$0xff]
        %v6845 = vld [vmem:[#allocation26 + $0x258] sm:$0xff]
        %v6846 = vld [vmem:[#allocation26 + $0x260] sm:$0xff]
        %v6847 = vld [vmem:[#allocation26 + $0x268] sm:$0xff]
        %v6848 = vld [vmem:[#allocation26 + $0x270] sm:$0xff]
        %v6849 = vld [vmem:[#allocation26 + $0x278] sm:$0xff]
        %v6850 = vld [vmem:[#allocation26 + $0x280] sm:$0xff]
        %v6851 = vld [vmem:[#allocation26 + $0x288] sm:$0xff]
        %v6852 = vld [vmem:[#allocation26 + $0x290] sm:$0xff]
        %v6853 = vld [vmem:[#allocation26 + $0x298] sm:$0xff]
        %v6854 = vld [vmem:[#allocation26 + $0x2a0] sm:$0xff]
        %v6855 = vld [vmem:[#allocation26 + $0x2a8] sm:$0xff]
        %v6856 = vld [vmem:[#allocation26 + $0x2b0] sm:$0xff]
        %v6857 = vld [vmem:[#allocation26 + $0x2b8] sm:$0xff]
        %v6858 = vld [vmem:[#allocation26 + $0x2c0] sm:$0xff]
        %v6859 = vld [vmem:[#allocation26 + $0x2c8] sm:$0xff]
        %v6860 = vld [vmem:[#allocation26 + $0x2d0] sm:$0xff]
        %v6861 = vld [vmem:[#allocation26 + $0x2d8] sm:$0xff]
        %v6862 = vld [vmem:[#allocation26 + $0x2e0] sm:$0xff]
        %v6863 = vld [vmem:[#allocation26 + $0x2e8] sm:$0xff]
        %v6864 = vld [vmem:[#allocation26 + $0x2f0] sm:$0xff]
        %v6865 = vld [vmem:[#allocation26 + $0x2f8] sm:$0xff]
        %v6866 = vrot.slane %v6623, 2
        %6868 = vmatprep.subr.mxu0 %v6865
        %6869 = vmatpush1.msra.mxu0 %v6864
        %6870 = vmatprep.subr.mxu0 %v6863
        %6871 = vmatpush1.msra.mxu0 %v6862
        %6872 = vmatprep.subr.mxu0 %v6861
        %6873 = vmatpush1.msra.mxu0 %v6860
        %6874 = vmatprep.subr.mxu0 %v6859
        %6875 = vmatpush1.msra.mxu0 %v6858
        %6876 = vmatprep.subr.mxu0 %v6857
        %6877 = vmatpush1.msra.mxu0 %v6856
        %6878 = vmatprep.subr.mxu0 %v6855
        %6879 = vmatpush1.msra.mxu0 %v6854
        %6880 = vmatprep.subr.mxu0 %v6853
        %6881 = vmatpush1.msra.mxu0 %v6852
        %6882 = vmatprep.subr.mxu0 %v6851
        %6883 = vmatpush1.msra.mxu0 %v6850
        %6884 = vmatprep.subr.mxu0 %v6849
        %6885 = vmatpush1.msra.mxu0 %v6848
        %6886 = vmatprep.subr.mxu0 %v6847
        %6887 = vmatpush1.msra.mxu0 %v6846
        %6888 = vmatprep.subr.mxu0 %v6845
        %6889 = vmatpush1.msra.mxu0 %v6844
        %6890 = vmatprep.subr.mxu0 %v6843
        %6891 = vmatpush1.msra.mxu0 %v6842
        %6892 = vmatprep.subr.mxu0 %v6841
        %6893 = vmatpush1.msra.mxu0 %v6840
        %6894 = vmatprep.subr.mxu0 %v6839
        %6895 = vmatpush1.msra.mxu0 %v6838
        %6896 = vmatprep.subr.mxu0 %v6837
        %6897 = vmatpush1.msra.mxu0 %v6836
        %6898 = vmatprep.subr.mxu0 %v6835
        %6899 = vmatpush1.msra.mxu0 %v6834
        %6900 = vmatprep.subr.mxu0 0.0
        %6901 = vmatpush2.msra.mxu0 0.0
        %6902 = vmatprep.subr.mxu0 0.0
        %6903 = vmatpush2.msra.mxu0 0.0
        %6904 = vmatprep.subr.mxu0 0.0
        %6905 = vmatpush2.msra.mxu0 0.0
        %6906 = vmatprep.subr.mxu0 0.0
        %6907 = vmatpush2.msra.mxu0 0.0
        %6908 = vmatprep.subr.mxu0 0.0
        %6909 = vmatpush2.msra.mxu0 0.0
        %6910 = vmatprep.subr.mxu0 0.0
        %6911 = vmatpush2.msra.mxu0 0.0
        %6912 = vmatprep.subr.mxu0 0.0
        %6913 = vmatpush2.msra.mxu0 0.0
        %6914 = vmatprep.subr.mxu0 0.0
        %6915 = vmatpush2.msra.mxu0 0.0
        %6916 = vmatprep.subr.mxu0 0.0
        %6917 = vmatpush2.msra.mxu0 0.0
        %6918 = vmatprep.subr.mxu0 0.0
        %6919 = vmatpush2.msra.mxu0 0.0
        %6920 = vmatprep.subr.mxu0 0.0
        %6921 = vmatpush2.msra.mxu0 0.0
        %6922 = vmatprep.subr.mxu0 0.0
        %6923 = vmatpush2.msra.mxu0 0.0
        %6924 = vmatprep.subr.mxu0 0.0
        %6925 = vmatpush2.msra.mxu0 0.0
        %6926 = vmatprep.subr.mxu0 0.0
        %6927 = vmatpush2.msra.mxu0 0.0
        %6928 = vmatprep.subr.mxu0 0.0
        %6929 = vmatpush2.msra.mxu0 0.0
        %6930 = vmatprep.subr.mxu0 0.0
        %6931 = vmatpush2.msra.mxu0 0.0
        %6932 = vmatprep.mubr.f32.mxu0 0.0
        %6933 = vmatmul.mubr.f32.gmra.mxu0 %v6866
        %v6934 = vpop.f32.mrf.mxu0
        %v6935 = vadd.f32 0.0, %v6934
        %v6936 = vpop.f32.mrf.mxu0
        %v6937 = vadd.f32 0.0, %v6936
        %6938 = vdwg.mxu0
        %v6939 = vadd.f32 %v6830, %v6935
        %v6940 = vadd.f32 %v6832, %v6937
        %v6941 = vld [vmem:[#allocation26 + $0x300] sm:$0xff]
        %v6942 = vld [vmem:[#allocation26 + $0x308] sm:$0xff]
        %v6943 = vld [vmem:[#allocation26 + $0x310] sm:$0xff]
        %v6944 = vld [vmem:[#allocation26 + $0x318] sm:$0xff]
        %v6945 = vld [vmem:[#allocation26 + $0x320] sm:$0xff]
        %v6946 = vld [vmem:[#allocation26 + $0x328] sm:$0xff]
        %v6947 = vld [vmem:[#allocation26 + $0x330] sm:$0xff]
        %v6948 = vld [vmem:[#allocation26 + $0x338] sm:$0xff]
        %v6949 = vld [vmem:[#allocation26 + $0x340] sm:$0xff]
        %v6950 = vld [vmem:[#allocation26 + $0x348] sm:$0xff]
        %v6951 = vld [vmem:[#allocation26 + $0x350] sm:$0xff]
        %v6952 = vld [vmem:[#allocation26 + $0x358] sm:$0xff]
        %v6953 = vld [vmem:[#allocation26 + $0x360] sm:$0xff]
        %v6954 = vld [vmem:[#allocation26 + $0x368] sm:$0xff]
        %v6955 = vld [vmem:[#allocation26 + $0x370] sm:$0xff]
        %v6956 = vld [vmem:[#allocation26 + $0x378] sm:$0xff]
        %v6957 = vld [vmem:[#allocation26 + $0x380] sm:$0xff]
        %v6958 = vld [vmem:[#allocation26 + $0x388] sm:$0xff]
        %v6959 = vld [vmem:[#allocation26 + $0x390] sm:$0xff]
        %v6960 = vld [vmem:[#allocation26 + $0x398] sm:$0xff]
        %v6961 = vld [vmem:[#allocation26 + $0x3a0] sm:$0xff]
        %v6962 = vld [vmem:[#allocation26 + $0x3a8] sm:$0xff]
        %v6963 = vld [vmem:[#allocation26 + $0x3b0] sm:$0xff]
        %v6964 = vld [vmem:[#allocation26 + $0x3b8] sm:$0xff]
        %v6965 = vld [vmem:[#allocation26 + $0x3c0] sm:$0xff]
        %v6966 = vld [vmem:[#allocation26 + $0x3c8] sm:$0xff]
        %v6967 = vld [vmem:[#allocation26 + $0x3d0] sm:$0xff]
        %v6968 = vld [vmem:[#allocation26 + $0x3d8] sm:$0xff]
        %v6969 = vld [vmem:[#allocation26 + $0x3e0] sm:$0xff]
        %v6970 = vld [vmem:[#allocation26 + $0x3e8] sm:$0xff]
        %v6971 = vld [vmem:[#allocation26 + $0x3f0] sm:$0xff]
        %v6972 = vld [vmem:[#allocation26 + $0x3f8] sm:$0xff]
        %v6973 = vrot.slane %v6623, 3
        %6975 = vmatprep.subr.mxu0 %v6972
        %6976 = vmatpush1.msra.mxu0 %v6971
        %6977 = vmatprep.subr.mxu0 %v6970
        %6978 = vmatpush1.msra.mxu0 %v6969
        %6979 = vmatprep.subr.mxu0 %v6968
        %6980 = vmatpush1.msra.mxu0 %v6967
        %6981 = vmatprep.subr.mxu0 %v6966
        %6982 = vmatpush1.msra.mxu0 %v6965
        %6983 = vmatprep.subr.mxu0 %v6964
        %6984 = vmatpush1.msra.mxu0 %v6963
        %6985 = vmatprep.subr.mxu0 %v6962
        %6986 = vmatpush1.msra.mxu0 %v6961
        %6987 = vmatprep.subr.mxu0 %v6960
        %6988 = vmatpush1.msra.mxu0 %v6959
        %6989 = vmatprep.subr.mxu0 %v6958
        %6990 = vmatpush1.msra.mxu0 %v6957
        %6991 = vmatprep.subr.mxu0 %v6956
        %6992 = vmatpush1.msra.mxu0 %v6955
        %6993 = vmatprep.subr.mxu0 %v6954
        %6994 = vmatpush1.msra.mxu0 %v6953
        %6995 = vmatprep.subr.mxu0 %v6952
        %6996 = vmatpush1.msra.mxu0 %v6951
        %6997 = vmatprep.subr.mxu0 %v6950
        %6998 = vmatpush1.msra.mxu0 %v6949
        %6999 = vmatprep.subr.mxu0 %v6948
        %7000 = vmatpush1.msra.mxu0 %v6947
        %7001 = vmatprep.subr.mxu0 %v6946
        %7002 = vmatpush1.msra.mxu0 %v6945
        %7003 = vmatprep.subr.mxu0 %v6944
        %7004 = vmatpush1.msra.mxu0 %v6943
        %7005 = vmatprep.subr.mxu0 %v6942
        %7006 = vmatpush1.msra.mxu0 %v6941
        %7007 = vmatprep.subr.mxu0 0.0
        %7008 = vmatpush2.msra.mxu0 0.0
        %7009 = vmatprep.subr.mxu0 0.0
        %7010 = vmatpush2.msra.mxu0 0.0
        %7011 = vmatprep.subr.mxu0 0.0
        %7012 = vmatpush2.msra.mxu0 0.0
        %7013 = vmatprep.subr.mxu0 0.0
        %7014 = vmatpush2.msra.mxu0 0.0
        %7015 = vmatprep.subr.mxu0 0.0
        %7016 = vmatpush2.msra.mxu0 0.0
        %7017 = vmatprep.subr.mxu0 0.0
        %7018 = vmatpush2.msra.mxu0 0.0
        %7019 = vmatprep.subr.mxu0 0.0
        %7020 = vmatpush2.msra.mxu0 0.0
        %7021 = vmatprep.subr.mxu0 0.0
        %7022 = vmatpush2.msra.mxu0 0.0
        %7023 = vmatprep.subr.mxu0 0.0
        %7024 = vmatpush2.msra.mxu0 0.0
        %7025 = vmatprep.subr.mxu0 0.0
        %7026 = vmatpush2.msra.mxu0 0.0
        %7027 = vmatprep.subr.mxu0 0.0
        %7028 = vmatpush2.msra.mxu0 0.0
        %7029 = vmatprep.subr.mxu0 0.0
        %7030 = vmatpush2.msra.mxu0 0.0
        %7031 = vmatprep.subr.mxu0 0.0
        %7032 = vmatpush2.msra.mxu0 0.0
        %7033 = vmatprep.subr.mxu0 0.0
        %7034 = vmatpush2.msra.mxu0 0.0
        %7035 = vmatprep.subr.mxu0 0.0
        %7036 = vmatpush2.msra.mxu0 0.0
        %7037 = vmatprep.subr.mxu0 0.0
        %7038 = vmatpush2.msra.mxu0 0.0
        %7039 = vmatprep.mubr.f32.mxu0 0.0
        %7040 = vmatmul.mubr.f32.gmra.mxu0 %v6973
        %v7041 = vpop.f32.mrf.mxu0
        %v7042 = vadd.f32 0.0, %v7041
        %v7043 = vpop.f32.mrf.mxu0
        %v7044 = vadd.f32 0.0, %v7043
        %7045 = vdwg.mxu0
        %v7046 = vadd.f32 %v6939, %v7042
        %v7047 = vadd.f32 %v6940, %v7044
        %v7048 = vld [vmem:[#allocation26 + $0x400] sm:$0xff]
        %v7049 = vld [vmem:[#allocation26 + $0x408] sm:$0xff]
        %v7050 = vld [vmem:[#allocation26 + $0x410] sm:$0xff]
        %v7051 = vld [vmem:[#allocation26 + $0x418] sm:$0xff]
        %v7052 = vld [vmem:[#allocation26 + $0x420] sm:$0xff]
        %v7053 = vld [vmem:[#allocation26 + $0x428] sm:$0xff]
        %v7054 = vld [vmem:[#allocation26 + $0x430] sm:$0xff]
        %v7055 = vld [vmem:[#allocation26 + $0x438] sm:$0xff]
        %v7056 = vld [vmem:[#allocation26 + $0x440] sm:$0xff]
        %v7057 = vld [vmem:[#allocation26 + $0x448] sm:$0xff]
        %v7058 = vld [vmem:[#allocation26 + $0x450] sm:$0xff]
        %v7059 = vld [vmem:[#allocation26 + $0x458] sm:$0xff]
        %v7060 = vld [vmem:[#allocation26 + $0x460] sm:$0xff]
        %v7061 = vld [vmem:[#allocation26 + $0x468] sm:$0xff]
        %v7062 = vld [vmem:[#allocation26 + $0x470] sm:$0xff]
        %v7063 = vld [vmem:[#allocation26 + $0x478] sm:$0xff]
        %v7064 = vld [vmem:[#allocation26 + $0x480] sm:$0xff]
        %v7065 = vld [vmem:[#allocation26 + $0x488] sm:$0xff]
        %v7066 = vld [vmem:[#allocation26 + $0x490] sm:$0xff]
        %v7067 = vld [vmem:[#allocation26 + $0x498] sm:$0xff]
        %v7068 = vld [vmem:[#allocation26 + $0x4a0] sm:$0xff]
        %v7069 = vld [vmem:[#allocation26 + $0x4a8] sm:$0xff]
        %v7070 = vld [vmem:[#allocation26 + $0x4b0] sm:$0xff]
        %v7071 = vld [vmem:[#allocation26 + $0x4b8] sm:$0xff]
        %v7072 = vld [vmem:[#allocation26 + $0x4c0] sm:$0xff]
        %v7073 = vld [vmem:[#allocation26 + $0x4c8] sm:$0xff]
        %v7074 = vld [vmem:[#allocation26 + $0x4d0] sm:$0xff]
        %v7075 = vld [vmem:[#allocation26 + $0x4d8] sm:$0xff]
        %v7076 = vld [vmem:[#allocation26 + $0x4e0] sm:$0xff]
        %v7077 = vld [vmem:[#allocation26 + $0x4e8] sm:$0xff]
        %v7078 = vld [vmem:[#allocation26 + $0x4f0] sm:$0xff]
        %v7079 = vld [vmem:[#allocation26 + $0x4f8] sm:$0xff]
        %v7080 = vrot.slane %v6623, 4
        %7082 = vmatprep.subr.mxu0 %v7079
        %7083 = vmatpush1.msra.mxu0 %v7078
        %7084 = vmatprep.subr.mxu0 %v7077
        %7085 = vmatpush1.msra.mxu0 %v7076
        %7086 = vmatprep.subr.mxu0 %v7075
        %7087 = vmatpush1.msra.mxu0 %v7074
        %7088 = vmatprep.subr.mxu0 %v7073
        %7089 = vmatpush1.msra.mxu0 %v7072
        %7090 = vmatprep.subr.mxu0 %v7071
        %7091 = vmatpush1.msra.mxu0 %v7070
        %7092 = vmatprep.subr.mxu0 %v7069
        %7093 = vmatpush1.msra.mxu0 %v7068
        %7094 = vmatprep.subr.mxu0 %v7067
        %7095 = vmatpush1.msra.mxu0 %v7066
        %7096 = vmatprep.subr.mxu0 %v7065
        %7097 = vmatpush1.msra.mxu0 %v7064
        %7098 = vmatprep.subr.mxu0 %v7063
        %7099 = vmatpush1.msra.mxu0 %v7062
        %7100 = vmatprep.subr.mxu0 %v7061
        %7101 = vmatpush1.msra.mxu0 %v7060
        %7102 = vmatprep.subr.mxu0 %v7059
        %7103 = vmatpush1.msra.mxu0 %v7058
        %7104 = vmatprep.subr.mxu0 %v7057
        %7105 = vmatpush1.msra.mxu0 %v7056
        %7106 = vmatprep.subr.mxu0 %v7055
        %7107 = vmatpush1.msra.mxu0 %v7054
        %7108 = vmatprep.subr.mxu0 %v7053
        %7109 = vmatpush1.msra.mxu0 %v7052
        %7110 = vmatprep.subr.mxu0 %v7051
        %7111 = vmatpush1.msra.mxu0 %v7050
        %7112 = vmatprep.subr.mxu0 %v7049
        %7113 = vmatpush1.msra.mxu0 %v7048
        %7114 = vmatprep.subr.mxu0 0.0
        %7115 = vmatpush2.msra.mxu0 0.0
        %7116 = vmatprep.subr.mxu0 0.0
        %7117 = vmatpush2.msra.mxu0 0.0
        %7118 = vmatprep.subr.mxu0 0.0
        %7119 = vmatpush2.msra.mxu0 0.0
        %7120 = vmatprep.subr.mxu0 0.0
        %7121 = vmatpush2.msra.mxu0 0.0
        %7122 = vmatprep.subr.mxu0 0.0
        %7123 = vmatpush2.msra.mxu0 0.0
        %7124 = vmatprep.subr.mxu0 0.0
        %7125 = vmatpush2.msra.mxu0 0.0
        %7126 = vmatprep.subr.mxu0 0.0
        %7127 = vmatpush2.msra.mxu0 0.0
        %7128 = vmatprep.subr.mxu0 0.0
        %7129 = vmatpush2.msra.mxu0 0.0
        %7130 = vmatprep.subr.mxu0 0.0
        %7131 = vmatpush2.msra.mxu0 0.0
        %7132 = vmatprep.subr.mxu0 0.0
        %7133 = vmatpush2.msra.mxu0 0.0
        %7134 = vmatprep.subr.mxu0 0.0
        %7135 = vmatpush2.msra.mxu0 0.0
        %7136 = vmatprep.subr.mxu0 0.0
        %7137 = vmatpush2.msra.mxu0 0.0
        %7138 = vmatprep.subr.mxu0 0.0
        %7139 = vmatpush2.msra.mxu0 0.0
        %7140 = vmatprep.subr.mxu0 0.0
        %7141 = vmatpush2.msra.mxu0 0.0
        %7142 = vmatprep.subr.mxu0 0.0
        %7143 = vmatpush2.msra.mxu0 0.0
        %7144 = vmatprep.subr.mxu0 0.0
        %7145 = vmatpush2.msra.mxu0 0.0
        %7146 = vmatprep.mubr.f32.mxu0 0.0
        %7147 = vmatmul.mubr.f32.gmra.mxu0 %v7080
        %v7148 = vpop.f32.mrf.mxu0
        %v7149 = vadd.f32 0.0, %v7148
        %v7150 = vpop.f32.mrf.mxu0
        %v7151 = vadd.f32 0.0, %v7150
        %7152 = vdwg.mxu0
        %v7153 = vadd.f32 %v7046, %v7149
        %v7154 = vadd.f32 %v7047, %v7151
        %v7155 = vld [vmem:[#allocation26 + $0x500] sm:$0xff]
        %v7156 = vld [vmem:[#allocation26 + $0x508] sm:$0xff]
        %v7157 = vld [vmem:[#allocation26 + $0x510] sm:$0xff]
        %v7158 = vld [vmem:[#allocation26 + $0x518] sm:$0xff]
        %v7159 = vld [vmem:[#allocation26 + $0x520] sm:$0xff]
        %v7160 = vld [vmem:[#allocation26 + $0x528] sm:$0xff]
        %v7161 = vld [vmem:[#allocation26 + $0x530] sm:$0xff]
        %v7162 = vld [vmem:[#allocation26 + $0x538] sm:$0xff]
        %v7163 = vld [vmem:[#allocation26 + $0x540] sm:$0xff]
        %v7164 = vld [vmem:[#allocation26 + $0x548] sm:$0xff]
        %v7165 = vld [vmem:[#allocation26 + $0x550] sm:$0xff]
        %v7166 = vld [vmem:[#allocation26 + $0x558] sm:$0xff]
        %v7167 = vld [vmem:[#allocation26 + $0x560] sm:$0xff]
        %v7168 = vld [vmem:[#allocation26 + $0x568] sm:$0xff]
        %v7169 = vld [vmem:[#allocation26 + $0x570] sm:$0xff]
        %v7170 = vld [vmem:[#allocation26 + $0x578] sm:$0xff]
        %v7171 = vld [vmem:[#allocation26 + $0x580] sm:$0xff]
        %v7172 = vld [vmem:[#allocation26 + $0x588] sm:$0xff]
        %v7173 = vld [vmem:[#allocation26 + $0x590] sm:$0xff]
        %v7174 = vld [vmem:[#allocation26 + $0x598] sm:$0xff]
        %v7175 = vld [vmem:[#allocation26 + $0x5a0] sm:$0xff]
        %v7176 = vld [vmem:[#allocation26 + $0x5a8] sm:$0xff]
        %v7177 = vld [vmem:[#allocation26 + $0x5b0] sm:$0xff]
        %v7178 = vld [vmem:[#allocation26 + $0x5b8] sm:$0xff]
        %v7179 = vld [vmem:[#allocation26 + $0x5c0] sm:$0xff]
        %v7180 = vld [vmem:[#allocation26 + $0x5c8] sm:$0xff]
        %v7181 = vld [vmem:[#allocation26 + $0x5d0] sm:$0xff]
        %v7182 = vld [vmem:[#allocation26 + $0x5d8] sm:$0xff]
        %v7183 = vld [vmem:[#allocation26 + $0x5e0] sm:$0xff]
        %v7184 = vld [vmem:[#allocation26 + $0x5e8] sm:$0xff]
        %v7185 = vld [vmem:[#allocation26 + $0x5f0] sm:$0xff]
        %v7186 = vld [vmem:[#allocation26 + $0x5f8] sm:$0xff]
        %v7187 = vrot.slane %v6623, 5
        %7189 = vmatprep.subr.mxu0 %v7186
        %7190 = vmatpush1.msra.mxu0 %v7185
        %7191 = vmatprep.subr.mxu0 %v7184
        %7192 = vmatpush1.msra.mxu0 %v7183
        %7193 = vmatprep.subr.mxu0 %v7182
        %7194 = vmatpush1.msra.mxu0 %v7181
        %7195 = vmatprep.subr.mxu0 %v7180
        %7196 = vmatpush1.msra.mxu0 %v7179
        %7197 = vmatprep.subr.mxu0 %v7178
        %7198 = vmatpush1.msra.mxu0 %v7177
        %7199 = vmatprep.subr.mxu0 %v7176
        %7200 = vmatpush1.msra.mxu0 %v7175
        %7201 = vmatprep.subr.mxu0 %v7174
        %7202 = vmatpush1.msra.mxu0 %v7173
        %7203 = vmatprep.subr.mxu0 %v7172
        %7204 = vmatpush1.msra.mxu0 %v7171
        %7205 = vmatprep.subr.mxu0 %v7170
        %7206 = vmatpush1.msra.mxu0 %v7169
        %7207 = vmatprep.subr.mxu0 %v7168
        %7208 = vmatpush1.msra.mxu0 %v7167
        %7209 = vmatprep.subr.mxu0 %v7166
        %7210 = vmatpush1.msra.mxu0 %v7165
        %7211 = vmatprep.subr.mxu0 %v7164
        %7212 = vmatpush1.msra.mxu0 %v7163
        %7213 = vmatprep.subr.mxu0 %v7162
        %7214 = vmatpush1.msra.mxu0 %v7161
        %7215 = vmatprep.subr.mxu0 %v7160
        %7216 = vmatpush1.msra.mxu0 %v7159
        %7217 = vmatprep.subr.mxu0 %v7158
        %7218 = vmatpush1.msra.mxu0 %v7157
        %7219 = vmatprep.subr.mxu0 %v7156
        %7220 = vmatpush1.msra.mxu0 %v7155
        %7221 = vmatprep.subr.mxu0 0.0
        %7222 = vmatpush2.msra.mxu0 0.0
        %7223 = vmatprep.subr.mxu0 0.0
        %7224 = vmatpush2.msra.mxu0 0.0
        %7225 = vmatprep.subr.mxu0 0.0
        %7226 = vmatpush2.msra.mxu0 0.0
        %7227 = vmatprep.subr.mxu0 0.0
        %7228 = vmatpush2.msra.mxu0 0.0
        %7229 = vmatprep.subr.mxu0 0.0
        %7230 = vmatpush2.msra.mxu0 0.0
        %7231 = vmatprep.subr.mxu0 0.0
        %7232 = vmatpush2.msra.mxu0 0.0
        %7233 = vmatprep.subr.mxu0 0.0
        %7234 = vmatpush2.msra.mxu0 0.0
        %7235 = vmatprep.subr.mxu0 0.0
        %7236 = vmatpush2.msra.mxu0 0.0
        %7237 = vmatprep.subr.mxu0 0.0
        %7238 = vmatpush2.msra.mxu0 0.0
        %7239 = vmatprep.subr.mxu0 0.0
        %7240 = vmatpush2.msra.mxu0 0.0
        %7241 = vmatprep.subr.mxu0 0.0
        %7242 = vmatpush2.msra.mxu0 0.0
        %7243 = vmatprep.subr.mxu0 0.0
        %7244 = vmatpush2.msra.mxu0 0.0
        %7245 = vmatprep.subr.mxu0 0.0
        %7246 = vmatpush2.msra.mxu0 0.0
        %7247 = vmatprep.subr.mxu0 0.0
        %7248 = vmatpush2.msra.mxu0 0.0
        %7249 = vmatprep.subr.mxu0 0.0
        %7250 = vmatpush2.msra.mxu0 0.0
        %7251 = vmatprep.subr.mxu0 0.0
        %7252 = vmatpush2.msra.mxu0 0.0
        %7253 = vmatprep.mubr.f32.mxu0 0.0
        %7254 = vmatmul.mubr.f32.gmra.mxu0 %v7187
        %v7255 = vpop.f32.mrf.mxu0
        %v7256 = vadd.f32 0.0, %v7255
        %v7257 = vpop.f32.mrf.mxu0
        %v7258 = vadd.f32 0.0, %v7257
        %7259 = vdwg.mxu0
        %v7260 = vadd.f32 %v7153, %v7256
        %v7261 = vadd.f32 %v7154, %v7258
        %v7262 = vld [vmem:[#allocation26 + $0x600] sm:$0xff]
        %v7263 = vld [vmem:[#allocation26 + $0x608] sm:$0xff]
        %v7264 = vld [vmem:[#allocation26 + $0x610] sm:$0xff]
        %v7265 = vld [vmem:[#allocation26 + $0x618] sm:$0xff]
        %v7266 = vld [vmem:[#allocation26 + $0x620] sm:$0xff]
        %v7267 = vld [vmem:[#allocation26 + $0x628] sm:$0xff]
        %v7268 = vld [vmem:[#allocation26 + $0x630] sm:$0xff]
        %v7269 = vld [vmem:[#allocation26 + $0x638] sm:$0xff]
        %v7270 = vld [vmem:[#allocation26 + $0x640] sm:$0xff]
        %v7271 = vld [vmem:[#allocation26 + $0x648] sm:$0xff]
        %v7272 = vld [vmem:[#allocation26 + $0x650] sm:$0xff]
        %v7273 = vld [vmem:[#allocation26 + $0x658] sm:$0xff]
        %v7274 = vld [vmem:[#allocation26 + $0x660] sm:$0xff]
        %v7275 = vld [vmem:[#allocation26 + $0x668] sm:$0xff]
        %v7276 = vld [vmem:[#allocation26 + $0x670] sm:$0xff]
        %v7277 = vld [vmem:[#allocation26 + $0x678] sm:$0xff]
        %v7278 = vld [vmem:[#allocation26 + $0x680] sm:$0xff]
        %v7279 = vld [vmem:[#allocation26 + $0x688] sm:$0xff]
        %v7280 = vld [vmem:[#allocation26 + $0x690] sm:$0xff]
        %v7281 = vld [vmem:[#allocation26 + $0x698] sm:$0xff]
        %v7282 = vld [vmem:[#allocation26 + $0x6a0] sm:$0xff]
        %v7283 = vld [vmem:[#allocation26 + $0x6a8] sm:$0xff]
        %v7284 = vld [vmem:[#allocation26 + $0x6b0] sm:$0xff]
        %v7285 = vld [vmem:[#allocation26 + $0x6b8] sm:$0xff]
        %v7286 = vld [vmem:[#allocation26 + $0x6c0] sm:$0xff]
        %v7287 = vld [vmem:[#allocation26 + $0x6c8] sm:$0xff]
        %v7288 = vld [vmem:[#allocation26 + $0x6d0] sm:$0xff]
        %v7289 = vld [vmem:[#allocation26 + $0x6d8] sm:$0xff]
        %v7290 = vld [vmem:[#allocation26 + $0x6e0] sm:$0xff]
        %v7291 = vld [vmem:[#allocation26 + $0x6e8] sm:$0xff]
        %v7292 = vld [vmem:[#allocation26 + $0x6f0] sm:$0xff]
        %v7293 = vld [vmem:[#allocation26 + $0x6f8] sm:$0xff]
        %v7294 = vrot.slane %v6623, 6
        %7296 = vmatprep.subr.mxu0 %v7293
        %7297 = vmatpush1.msra.mxu0 %v7292
        %7298 = vmatprep.subr.mxu0 %v7291
        %7299 = vmatpush1.msra.mxu0 %v7290
        %7300 = vmatprep.subr.mxu0 %v7289
        %7301 = vmatpush1.msra.mxu0 %v7288
        %7302 = vmatprep.subr.mxu0 %v7287
        %7303 = vmatpush1.msra.mxu0 %v7286
        %7304 = vmatprep.subr.mxu0 %v7285
        %7305 = vmatpush1.msra.mxu0 %v7284
        %7306 = vmatprep.subr.mxu0 %v7283
        %7307 = vmatpush1.msra.mxu0 %v7282
        %7308 = vmatprep.subr.mxu0 %v7281
        %7309 = vmatpush1.msra.mxu0 %v7280
        %7310 = vmatprep.subr.mxu0 %v7279
        %7311 = vmatpush1.msra.mxu0 %v7278
        %7312 = vmatprep.subr.mxu0 %v7277
        %7313 = vmatpush1.msra.mxu0 %v7276
        %7314 = vmatprep.subr.mxu0 %v7275
        %7315 = vmatpush1.msra.mxu0 %v7274
        %7316 = vmatprep.subr.mxu0 %v7273
        %7317 = vmatpush1.msra.mxu0 %v7272
        %7318 = vmatprep.subr.mxu0 %v7271
        %7319 = vmatpush1.msra.mxu0 %v7270
        %7320 = vmatprep.subr.mxu0 %v7269
        %7321 = vmatpush1.msra.mxu0 %v7268
        %7322 = vmatprep.subr.mxu0 %v7267
        %7323 = vmatpush1.msra.mxu0 %v7266
        %7324 = vmatprep.subr.mxu0 %v7265
        %7325 = vmatpush1.msra.mxu0 %v7264
        %7326 = vmatprep.subr.mxu0 %v7263
        %7327 = vmatpush1.msra.mxu0 %v7262
        %7328 = vmatprep.subr.mxu0 0.0
        %7329 = vmatpush2.msra.mxu0 0.0
        %7330 = vmatprep.subr.mxu0 0.0
        %7331 = vmatpush2.msra.mxu0 0.0
        %7332 = vmatprep.subr.mxu0 0.0
        %7333 = vmatpush2.msra.mxu0 0.0
        %7334 = vmatprep.subr.mxu0 0.0
        %7335 = vmatpush2.msra.mxu0 0.0
        %7336 = vmatprep.subr.mxu0 0.0
        %7337 = vmatpush2.msra.mxu0 0.0
        %7338 = vmatprep.subr.mxu0 0.0
        %7339 = vmatpush2.msra.mxu0 0.0
        %7340 = vmatprep.subr.mxu0 0.0
        %7341 = vmatpush2.msra.mxu0 0.0
        %7342 = vmatprep.subr.mxu0 0.0
        %7343 = vmatpush2.msra.mxu0 0.0
        %7344 = vmatprep.subr.mxu0 0.0
        %7345 = vmatpush2.msra.mxu0 0.0
        %7346 = vmatprep.subr.mxu0 0.0
        %7347 = vmatpush2.msra.mxu0 0.0
        %7348 = vmatprep.subr.mxu0 0.0
        %7349 = vmatpush2.msra.mxu0 0.0
        %7350 = vmatprep.subr.mxu0 0.0
        %7351 = vmatpush2.msra.mxu0 0.0
        %7352 = vmatprep.subr.mxu0 0.0
        %7353 = vmatpush2.msra.mxu0 0.0
        %7354 = vmatprep.subr.mxu0 0.0
        %7355 = vmatpush2.msra.mxu0 0.0
        %7356 = vmatprep.subr.mxu0 0.0
        %7357 = vmatpush2.msra.mxu0 0.0
        %7358 = vmatprep.subr.mxu0 0.0
        %7359 = vmatpush2.msra.mxu0 0.0
        %7360 = vmatprep.mubr.f32.mxu0 0.0
        %7361 = vmatmul.mubr.f32.gmra.mxu0 %v7294
        %v7362 = vpop.f32.mrf.mxu0
        %v7363 = vadd.f32 0.0, %v7362
        %v7364 = vpop.f32.mrf.mxu0
        %v7365 = vadd.f32 0.0, %v7364
        %7366 = vdwg.mxu0
        %v7367 = vadd.f32 %v7260, %v7363
        %v7368 = vadd.f32 %v7261, %v7365
        %v7369 = vld [vmem:[#allocation26 + $0x700] sm:$0xff]
        %v7370 = vld [vmem:[#allocation26 + $0x708] sm:$0xff]
        %v7371 = vld [vmem:[#allocation26 + $0x710] sm:$0xff]
        %v7372 = vld [vmem:[#allocation26 + $0x718] sm:$0xff]
        %v7373 = vld [vmem:[#allocation26 + $0x720] sm:$0xff]
        %v7374 = vld [vmem:[#allocation26 + $0x728] sm:$0xff]
        %v7375 = vld [vmem:[#allocation26 + $0x730] sm:$0xff]
        %v7376 = vld [vmem:[#allocation26 + $0x738] sm:$0xff]
        %v7377 = vld [vmem:[#allocation26 + $0x740] sm:$0xff]
        %v7378 = vld [vmem:[#allocation26 + $0x748] sm:$0xff]
        %v7379 = vld [vmem:[#allocation26 + $0x750] sm:$0xff]
        %v7380 = vld [vmem:[#allocation26 + $0x758] sm:$0xff]
        %v7381 = vld [vmem:[#allocation26 + $0x760] sm:$0xff]
        %v7382 = vld [vmem:[#allocation26 + $0x768] sm:$0xff]
        %v7383 = vld [vmem:[#allocation26 + $0x770] sm:$0xff]
        %v7384 = vld [vmem:[#allocation26 + $0x778] sm:$0xff]
        %v7385 = vld [vmem:[#allocation26 + $0x780] sm:$0xff]
        %v7386 = vld [vmem:[#allocation26 + $0x788] sm:$0xff]
        %v7387 = vld [vmem:[#allocation26 + $0x790] sm:$0xff]
        %v7388 = vld [vmem:[#allocation26 + $0x798] sm:$0xff]
        %v7389 = vld [vmem:[#allocation26 + $0x7a0] sm:$0xff]
        %v7390 = vld [vmem:[#allocation26 + $0x7a8] sm:$0xff]
        %v7391 = vld [vmem:[#allocation26 + $0x7b0] sm:$0xff]
        %v7392 = vld [vmem:[#allocation26 + $0x7b8] sm:$0xff]
        %v7393 = vld [vmem:[#allocation26 + $0x7c0] sm:$0xff]
        %v7394 = vld [vmem:[#allocation26 + $0x7c8] sm:$0xff]
        %v7395 = vld [vmem:[#allocation26 + $0x7d0] sm:$0xff]
        %v7396 = vld [vmem:[#allocation26 + $0x7d8] sm:$0xff]
        %v7397 = vld [vmem:[#allocation26 + $0x7e0] sm:$0xff]
        %v7398 = vld [vmem:[#allocation26 + $0x7e8] sm:$0xff]
        %v7399 = vld [vmem:[#allocation26 + $0x7f0] sm:$0xff]
        %v7400 = vld [vmem:[#allocation26 + $0x7f8] sm:$0xff]
        %v7401 = vrot.slane %v6623, 7
        %7403 = vmatprep.subr.mxu0 %v7400
        %7404 = vmatpush1.msra.mxu0 %v7399
        %7405 = vmatprep.subr.mxu0 %v7398
        %7406 = vmatpush1.msra.mxu0 %v7397
        %7407 = vmatprep.subr.mxu0 %v7396
        %7408 = vmatpush1.msra.mxu0 %v7395
        %7409 = vmatprep.subr.mxu0 %v7394
        %7410 = vmatpush1.msra.mxu0 %v7393
        %7411 = vmatprep.subr.mxu0 %v7392
        %7412 = vmatpush1.msra.mxu0 %v7391
        %7413 = vmatprep.subr.mxu0 %v7390
        %7414 = vmatpush1.msra.mxu0 %v7389
        %7415 = vmatprep.subr.mxu0 %v7388
        %7416 = vmatpush1.msra.mxu0 %v7387
        %7417 = vmatprep.subr.mxu0 %v7386
        %7418 = vmatpush1.msra.mxu0 %v7385
        %7419 = vmatprep.subr.mxu0 %v7384
        %7420 = vmatpush1.msra.mxu0 %v7383
        %7421 = vmatprep.subr.mxu0 %v7382
        %7422 = vmatpush1.msra.mxu0 %v7381
        %7423 = vmatprep.subr.mxu0 %v7380
        %7424 = vmatpush1.msra.mxu0 %v7379
        %7425 = vmatprep.subr.mxu0 %v7378
        %7426 = vmatpush1.msra.mxu0 %v7377
        %7427 = vmatprep.subr.mxu0 %v7376
        %7428 = vmatpush1.msra.mxu0 %v7375
        %7429 = vmatprep.subr.mxu0 %v7374
        %7430 = vmatpush1.msra.mxu0 %v7373
        %7431 = vmatprep.subr.mxu0 %v7372
        %7432 = vmatpush1.msra.mxu0 %v7371
        %7433 = vmatprep.subr.mxu0 %v7370
        %7434 = vmatpush1.msra.mxu0 %v7369
        %7435 = vmatprep.subr.mxu0 0.0
        %7436 = vmatpush2.msra.mxu0 0.0
        %7437 = vmatprep.subr.mxu0 0.0
        %7438 = vmatpush2.msra.mxu0 0.0
        %7439 = vmatprep.subr.mxu0 0.0
        %7440 = vmatpush2.msra.mxu0 0.0
        %7441 = vmatprep.subr.mxu0 0.0
        %7442 = vmatpush2.msra.mxu0 0.0
        %7443 = vmatprep.subr.mxu0 0.0
        %7444 = vmatpush2.msra.mxu0 0.0
        %7445 = vmatprep.subr.mxu0 0.0
        %7446 = vmatpush2.msra.mxu0 0.0
        %7447 = vmatprep.subr.mxu0 0.0
        %7448 = vmatpush2.msra.mxu0 0.0
        %7449 = vmatprep.subr.mxu0 0.0
        %7450 = vmatpush2.msra.mxu0 0.0
        %7451 = vmatprep.subr.mxu0 0.0
        %7452 = vmatpush2.msra.mxu0 0.0
        %7453 = vmatprep.subr.mxu0 0.0
        %7454 = vmatpush2.msra.mxu0 0.0
        %7455 = vmatprep.subr.mxu0 0.0
        %7456 = vmatpush2.msra.mxu0 0.0
        %7457 = vmatprep.subr.mxu0 0.0
        %7458 = vmatpush2.msra.mxu0 0.0
        %7459 = vmatprep.subr.mxu0 0.0
        %7460 = vmatpush2.msra.mxu0 0.0
        %7461 = vmatprep.subr.mxu0 0.0
        %7462 = vmatpush2.msra.mxu0 0.0
        %7463 = vmatprep.subr.mxu0 0.0
        %7464 = vmatpush2.msra.mxu0 0.0
        %7465 = vmatprep.subr.mxu0 0.0
        %7466 = vmatpush2.msra.mxu0 0.0
        %7467 = vmatprep.mubr.f32.mxu0 0.0
        %7468 = vmatmul.mubr.f32.gmra.mxu0 %v7401
        %v7469 = vpop.f32.mrf.mxu0
        %v7470 = vadd.f32 0.0, %v7469
        %v7471 = vpop.f32.mrf.mxu0
        %v7472 = vadd.f32 0.0, %v7471
        %7473 = vdwg.mxu0
        %v7474 = vadd.f32 %v7367, %v7470
        %v7475 = vadd.f32 %v7368, %v7472
        %v7476 = vld [vmem:[#allocation26 + $0x800] sm:$0xff]
        %v7477 = vld [vmem:[#allocation26 + $0x808] sm:$0xff]
        %v7478 = vld [vmem:[#allocation26 + $0x810] sm:$0xff]
        %v7479 = vld [vmem:[#allocation26 + $0x818] sm:$0xff]
        %v7480 = vld [vmem:[#allocation26 + $0x820] sm:$0xff]
        %v7481 = vld [vmem:[#allocation26 + $0x828] sm:$0xff]
        %v7482 = vld [vmem:[#allocation26 + $0x830] sm:$0xff]
        %v7483 = vld [vmem:[#allocation26 + $0x838] sm:$0xff]
        %v7484 = vld [vmem:[#allocation26 + $0x840] sm:$0xff]
        %v7485 = vld [vmem:[#allocation26 + $0x848] sm:$0xff]
        %v7486 = vld [vmem:[#allocation26 + $0x850] sm:$0xff]
        %v7487 = vld [vmem:[#allocation26 + $0x858] sm:$0xff]
        %v7488 = vld [vmem:[#allocation26 + $0x860] sm:$0xff]
        %v7489 = vld [vmem:[#allocation26 + $0x868] sm:$0xff]
        %v7490 = vld [vmem:[#allocation26 + $0x870] sm:$0xff]
        %v7491 = vld [vmem:[#allocation26 + $0x878] sm:$0xff]
        %v7492 = vld [vmem:[#allocation26 + $0x880] sm:$0xff]
        %v7493 = vld [vmem:[#allocation26 + $0x888] sm:$0xff]
        %v7494 = vld [vmem:[#allocation26 + $0x890] sm:$0xff]
        %v7495 = vld [vmem:[#allocation26 + $0x898] sm:$0xff]
        %v7496 = vld [vmem:[#allocation26 + $0x8a0] sm:$0xff]
        %v7497 = vld [vmem:[#allocation26 + $0x8a8] sm:$0xff]
        %v7498 = vld [vmem:[#allocation26 + $0x8b0] sm:$0xff]
        %v7499 = vld [vmem:[#allocation26 + $0x8b8] sm:$0xff]
        %v7500 = vld [vmem:[#allocation26 + $0x8c0] sm:$0xff]
        %v7501 = vld [vmem:[#allocation26 + $0x8c8] sm:$0xff]
        %v7502 = vld [vmem:[#allocation26 + $0x8d0] sm:$0xff]
        %v7503 = vld [vmem:[#allocation26 + $0x8d8] sm:$0xff]
        %v7504 = vld [vmem:[#allocation26 + $0x8e0] sm:$0xff]
        %v7505 = vld [vmem:[#allocation26 + $0x8e8] sm:$0xff]
        %v7506 = vld [vmem:[#allocation26 + $0x8f0] sm:$0xff]
        %v7507 = vld [vmem:[#allocation26 + $0x8f8] sm:$0xff]
        %7508 = vmatprep.subr.mxu0 %v7507
        %7509 = vmatpush1.msra.mxu0 %v7506
        %7510 = vmatprep.subr.mxu0 %v7505
        %7511 = vmatpush1.msra.mxu0 %v7504
        %7512 = vmatprep.subr.mxu0 %v7503
        %7513 = vmatpush1.msra.mxu0 %v7502
        %7514 = vmatprep.subr.mxu0 %v7501
        %7515 = vmatpush1.msra.mxu0 %v7500
        %7516 = vmatprep.subr.mxu0 %v7499
        %7517 = vmatpush1.msra.mxu0 %v7498
        %7518 = vmatprep.subr.mxu0 %v7497
        %7519 = vmatpush1.msra.mxu0 %v7496
        %7520 = vmatprep.subr.mxu0 %v7495
        %7521 = vmatpush1.msra.mxu0 %v7494
        %7522 = vmatprep.subr.mxu0 %v7493
        %7523 = vmatpush1.msra.mxu0 %v7492
        %7524 = vmatprep.subr.mxu0 %v7491
        %7525 = vmatpush1.msra.mxu0 %v7490
        %7526 = vmatprep.subr.mxu0 %v7489
        %7527 = vmatpush1.msra.mxu0 %v7488
        %7528 = vmatprep.subr.mxu0 %v7487
        %7529 = vmatpush1.msra.mxu0 %v7486
        %7530 = vmatprep.subr.mxu0 %v7485
        %7531 = vmatpush1.msra.mxu0 %v7484
        %7532 = vmatprep.subr.mxu0 %v7483
        %7533 = vmatpush1.msra.mxu0 %v7482
        %7534 = vmatprep.subr.mxu0 %v7481
        %7535 = vmatpush1.msra.mxu0 %v7480
        %7536 = vmatprep.subr.mxu0 %v7479
        %7537 = vmatpush1.msra.mxu0 %v7478
        %7538 = vmatprep.subr.mxu0 %v7477
        %7539 = vmatpush1.msra.mxu0 %v7476
        %7540 = vmatprep.subr.mxu0 0.0
        %7541 = vmatpush2.msra.mxu0 0.0
        %7542 = vmatprep.subr.mxu0 0.0
        %7543 = vmatpush2.msra.mxu0 0.0
        %7544 = vmatprep.subr.mxu0 0.0
        %7545 = vmatpush2.msra.mxu0 0.0
        %7546 = vmatprep.subr.mxu0 0.0
        %7547 = vmatpush2.msra.mxu0 0.0
        %7548 = vmatprep.subr.mxu0 0.0
        %7549 = vmatpush2.msra.mxu0 0.0
        %7550 = vmatprep.subr.mxu0 0.0
        %7551 = vmatpush2.msra.mxu0 0.0
        %7552 = vmatprep.subr.mxu0 0.0
        %7553 = vmatpush2.msra.mxu0 0.0
        %7554 = vmatprep.subr.mxu0 0.0
        %7555 = vmatpush2.msra.mxu0 0.0
        %7556 = vmatprep.subr.mxu0 0.0
        %7557 = vmatpush2.msra.mxu0 0.0
        %7558 = vmatprep.subr.mxu0 0.0
        %7559 = vmatpush2.msra.mxu0 0.0
        %7560 = vmatprep.subr.mxu0 0.0
        %7561 = vmatpush2.msra.mxu0 0.0
        %7562 = vmatprep.subr.mxu0 0.0
        %7563 = vmatpush2.msra.mxu0 0.0
        %7564 = vmatprep.subr.mxu0 0.0
        %7565 = vmatpush2.msra.mxu0 0.0
        %7566 = vmatprep.subr.mxu0 0.0
        %7567 = vmatpush2.msra.mxu0 0.0
        %7568 = vmatprep.subr.mxu0 0.0
        %7569 = vmatpush2.msra.mxu0 0.0
        %7570 = vmatprep.subr.mxu0 0.0
        %7571 = vmatpush2.msra.mxu0 0.0
        %7572 = vmatprep.mubr.f32.mxu0 0.0
        %7573 = vmatmul.mubr.f32.gmra.mxu0 %v6624
        %v7574 = vpop.f32.mrf.mxu0
        %v7575 = vadd.f32 0.0, %v7574
        %v7576 = vpop.f32.mrf.mxu0
        %v7577 = vadd.f32 0.0, %v7576
        %7578 = vdwg.mxu0
        %v7579 = vadd.f32 %v7474, %v7575
        %v7580 = vadd.f32 %v7475, %v7577
        %v7581 = vld [vmem:[#allocation26 + $0x900] sm:$0xff]
        %v7582 = vld [vmem:[#allocation26 + $0x908] sm:$0xff]
        %v7583 = vld [vmem:[#allocation26 + $0x910] sm:$0xff]
        %v7584 = vld [vmem:[#allocation26 + $0x918] sm:$0xff]
        %v7585 = vld [vmem:[#allocation26 + $0x920] sm:$0xff]
        %v7586 = vld [vmem:[#allocation26 + $0x928] sm:$0xff]
        %v7587 = vld [vmem:[#allocation26 + $0x930] sm:$0xff]
        %v7588 = vld [vmem:[#allocation26 + $0x938] sm:$0xff]
        %v7589 = vld [vmem:[#allocation26 + $0x940] sm:$0xff]
        %v7590 = vld [vmem:[#allocation26 + $0x948] sm:$0xff]
        %v7591 = vld [vmem:[#allocation26 + $0x950] sm:$0xff]
        %v7592 = vld [vmem:[#allocation26 + $0x958] sm:$0xff]
        %v7593 = vld [vmem:[#allocation26 + $0x960] sm:$0xff]
        %v7594 = vld [vmem:[#allocation26 + $0x968] sm:$0xff]
        %v7595 = vld [vmem:[#allocation26 + $0x970] sm:$0xff]
        %v7596 = vld [vmem:[#allocation26 + $0x978] sm:$0xff]
        %v7597 = vld [vmem:[#allocation26 + $0x980] sm:$0xff]
        %v7598 = vld [vmem:[#allocation26 + $0x988] sm:$0xff]
        %v7599 = vld [vmem:[#allocation26 + $0x990] sm:$0xff]
        %v7600 = vld [vmem:[#allocation26 + $0x998] sm:$0xff]
        %v7601 = vld [vmem:[#allocation26 + $0x9a0] sm:$0xff]
        %v7602 = vld [vmem:[#allocation26 + $0x9a8] sm:$0xff]
        %v7603 = vld [vmem:[#allocation26 + $0x9b0] sm:$0xff]
        %v7604 = vld [vmem:[#allocation26 + $0x9b8] sm:$0xff]
        %v7605 = vld [vmem:[#allocation26 + $0x9c0] sm:$0xff]
        %v7606 = vld [vmem:[#allocation26 + $0x9c8] sm:$0xff]
        %v7607 = vld [vmem:[#allocation26 + $0x9d0] sm:$0xff]
        %v7608 = vld [vmem:[#allocation26 + $0x9d8] sm:$0xff]
        %v7609 = vld [vmem:[#allocation26 + $0x9e0] sm:$0xff]
        %v7610 = vld [vmem:[#allocation26 + $0x9e8] sm:$0xff]
        %v7611 = vld [vmem:[#allocation26 + $0x9f0] sm:$0xff]
        %v7612 = vld [vmem:[#allocation26 + $0x9f8] sm:$0xff]
        %v7614 = vrot.slane %v6624, 1
        %7616 = vmatprep.subr.mxu0 %v7612
        %7617 = vmatpush1.msra.mxu0 %v7611
        %7618 = vmatprep.subr.mxu0 %v7610
        %7619 = vmatpush1.msra.mxu0 %v7609
        %7620 = vmatprep.subr.mxu0 %v7608
        %7621 = vmatpush1.msra.mxu0 %v7607
        %7622 = vmatprep.subr.mxu0 %v7606
        %7623 = vmatpush1.msra.mxu0 %v7605
        %7624 = vmatprep.subr.mxu0 %v7604
        %7625 = vmatpush1.msra.mxu0 %v7603
        %7626 = vmatprep.subr.mxu0 %v7602
        %7627 = vmatpush1.msra.mxu0 %v7601
        %7628 = vmatprep.subr.mxu0 %v7600
        %7629 = vmatpush1.msra.mxu0 %v7599
        %7630 = vmatprep.subr.mxu0 %v7598
        %7631 = vmatpush1.msra.mxu0 %v7597
        %7632 = vmatprep.subr.mxu0 %v7596
        %7633 = vmatpush1.msra.mxu0 %v7595
        %7634 = vmatprep.subr.mxu0 %v7594
        %7635 = vmatpush1.msra.mxu0 %v7593
        %7636 = vmatprep.subr.mxu0 %v7592
        %7637 = vmatpush1.msra.mxu0 %v7591
        %7638 = vmatprep.subr.mxu0 %v7590
        %7639 = vmatpush1.msra.mxu0 %v7589
        %7640 = vmatprep.subr.mxu0 %v7588
        %7641 = vmatpush1.msra.mxu0 %v7587
        %7642 = vmatprep.subr.mxu0 %v7586
        %7643 = vmatpush1.msra.mxu0 %v7585
        %7644 = vmatprep.subr.mxu0 %v7584
        %7645 = vmatpush1.msra.mxu0 %v7583
        %7646 = vmatprep.subr.mxu0 %v7582
        %7647 = vmatpush1.msra.mxu0 %v7581
        %7648 = vmatprep.subr.mxu0 0.0
        %7649 = vmatpush2.msra.mxu0 0.0
        %7650 = vmatprep.subr.mxu0 0.0
        %7651 = vmatpush2.msra.mxu0 0.0
        %7652 = vmatprep.subr.mxu0 0.0
        %7653 = vmatpush2.msra.mxu0 0.0
        %7654 = vmatprep.subr.mxu0 0.0
        %7655 = vmatpush2.msra.mxu0 0.0
        %7656 = vmatprep.subr.mxu0 0.0
        %7657 = vmatpush2.msra.mxu0 0.0
        %7658 = vmatprep.subr.mxu0 0.0
        %7659 = vmatpush2.msra.mxu0 0.0
        %7660 = vmatprep.subr.mxu0 0.0
        %7661 = vmatpush2.msra.mxu0 0.0
        %7662 = vmatprep.subr.mxu0 0.0
        %7663 = vmatpush2.msra.mxu0 0.0
        %7664 = vmatprep.subr.mxu0 0.0
        %7665 = vmatpush2.msra.mxu0 0.0
        %7666 = vmatprep.subr.mxu0 0.0
        %7667 = vmatpush2.msra.mxu0 0.0
        %7668 = vmatprep.subr.mxu0 0.0
        %7669 = vmatpush2.msra.mxu0 0.0
        %7670 = vmatprep.subr.mxu0 0.0
        %7671 = vmatpush2.msra.mxu0 0.0
        %7672 = vmatprep.subr.mxu0 0.0
        %7673 = vmatpush2.msra.mxu0 0.0
        %7674 = vmatprep.subr.mxu0 0.0
        %7675 = vmatpush2.msra.mxu0 0.0
        %7676 = vmatprep.subr.mxu0 0.0
        %7677 = vmatpush2.msra.mxu0 0.0
        %7678 = vmatprep.subr.mxu0 0.0
        %7679 = vmatpush2.msra.mxu0 0.0
        %7680 = vmatprep.mubr.f32.mxu0 0.0
        %7681 = vmatmul.mubr.f32.gmra.mxu0 %v7614
        %v7682 = vpop.f32.mrf.mxu0
        %v7683 = vadd.f32 0.0, %v7682
        %v7684 = vpop.f32.mrf.mxu0
        %v7685 = vadd.f32 0.0, %v7684
        %7686 = vdwg.mxu0
        %v7687 = vadd.f32 %v7579, %v7683
        %v7688 = vadd.f32 %v7580, %v7685
        %v7689 = vld [vmem:[#allocation26 + $0xa00] sm:$0xff]
        %v7690 = vld [vmem:[#allocation26 + $0xa08] sm:$0xff]
        %v7691 = vld [vmem:[#allocation26 + $0xa10] sm:$0xff]
        %v7692 = vld [vmem:[#allocation26 + $0xa18] sm:$0xff]
        %v7693 = vld [vmem:[#allocation26 + $0xa20] sm:$0xff]
        %v7694 = vld [vmem:[#allocation26 + $0xa28] sm:$0xff]
        %v7695 = vld [vmem:[#allocation26 + $0xa30] sm:$0xff]
        %v7696 = vld [vmem:[#allocation26 + $0xa38] sm:$0xff]
        %v7697 = vld [vmem:[#allocation26 + $0xa40] sm:$0xff]
        %v7698 = vld [vmem:[#allocation26 + $0xa48] sm:$0xff]
        %v7699 = vld [vmem:[#allocation26 + $0xa50] sm:$0xff]
        %v7700 = vld [vmem:[#allocation26 + $0xa58] sm:$0xff]
        %v7701 = vld [vmem:[#allocation26 + $0xa60] sm:$0xff]
        %v7702 = vld [vmem:[#allocation26 + $0xa68] sm:$0xff]
        %v7703 = vld [vmem:[#allocation26 + $0xa70] sm:$0xff]
        %v7704 = vld [vmem:[#allocation26 + $0xa78] sm:$0xff]
        %v7705 = vld [vmem:[#allocation26 + $0xa80] sm:$0xff]
        %v7706 = vld [vmem:[#allocation26 + $0xa88] sm:$0xff]
        %v7707 = vld [vmem:[#allocation26 + $0xa90] sm:$0xff]
        %v7708 = vld [vmem:[#allocation26 + $0xa98] sm:$0xff]
        %v7709 = vld [vmem:[#allocation26 + $0xaa0] sm:$0xff]
        %v7710 = vld [vmem:[#allocation26 + $0xaa8] sm:$0xff]
        %v7711 = vld [vmem:[#allocation26 + $0xab0] sm:$0xff]
        %v7712 = vld [vmem:[#allocation26 + $0xab8] sm:$0xff]
        %v7713 = vld [vmem:[#allocation26 + $0xac0] sm:$0xff]
        %v7714 = vld [vmem:[#allocation26 + $0xac8] sm:$0xff]
        %v7715 = vld [vmem:[#allocation26 + $0xad0] sm:$0xff]
        %v7716 = vld [vmem:[#allocation26 + $0xad8] sm:$0xff]
        %v7717 = vld [vmem:[#allocation26 + $0xae0] sm:$0xff]
        %v7718 = vld [vmem:[#allocation26 + $0xae8] sm:$0xff]
        %v7719 = vld [vmem:[#allocation26 + $0xaf0] sm:$0xff]
        %v7720 = vld [vmem:[#allocation26 + $0xaf8] sm:$0xff]
        %v7721 = vrot.slane %v6624, 2
        %7723 = vmatprep.subr.mxu0 %v7720
        %7724 = vmatpush1.msra.mxu0 %v7719
        %7725 = vmatprep.subr.mxu0 %v7718
        %7726 = vmatpush1.msra.mxu0 %v7717
        %7727 = vmatprep.subr.mxu0 %v7716
        %7728 = vmatpush1.msra.mxu0 %v7715
        %7729 = vmatprep.subr.mxu0 %v7714
        %7730 = vmatpush1.msra.mxu0 %v7713
        %7731 = vmatprep.subr.mxu0 %v7712
        %7732 = vmatpush1.msra.mxu0 %v7711
        %7733 = vmatprep.subr.mxu0 %v7710
        %7734 = vmatpush1.msra.mxu0 %v7709
        %7735 = vmatprep.subr.mxu0 %v7708
        %7736 = vmatpush1.msra.mxu0 %v7707
        %7737 = vmatprep.subr.mxu0 %v7706
        %7738 = vmatpush1.msra.mxu0 %v7705
        %7739 = vmatprep.subr.mxu0 %v7704
        %7740 = vmatpush1.msra.mxu0 %v7703
        %7741 = vmatprep.subr.mxu0 %v7702
        %7742 = vmatpush1.msra.mxu0 %v7701
        %7743 = vmatprep.subr.mxu0 %v7700
        %7744 = vmatpush1.msra.mxu0 %v7699
        %7745 = vmatprep.subr.mxu0 %v7698
        %7746 = vmatpush1.msra.mxu0 %v7697
        %7747 = vmatprep.subr.mxu0 %v7696
        %7748 = vmatpush1.msra.mxu0 %v7695
        %7749 = vmatprep.subr.mxu0 %v7694
        %7750 = vmatpush1.msra.mxu0 %v7693
        %7751 = vmatprep.subr.mxu0 %v7692
        %7752 = vmatpush1.msra.mxu0 %v7691
        %7753 = vmatprep.subr.mxu0 %v7690
        %7754 = vmatpush1.msra.mxu0 %v7689
        %7755 = vmatprep.subr.mxu0 0.0
        %7756 = vmatpush2.msra.mxu0 0.0
        %7757 = vmatprep.subr.mxu0 0.0
        %7758 = vmatpush2.msra.mxu0 0.0
        %7759 = vmatprep.subr.mxu0 0.0
        %7760 = vmatpush2.msra.mxu0 0.0
        %7761 = vmatprep.subr.mxu0 0.0
        %7762 = vmatpush2.msra.mxu0 0.0
        %7763 = vmatprep.subr.mxu0 0.0
        %7764 = vmatpush2.msra.mxu0 0.0
        %7765 = vmatprep.subr.mxu0 0.0
        %7766 = vmatpush2.msra.mxu0 0.0
        %7767 = vmatprep.subr.mxu0 0.0
        %7768 = vmatpush2.msra.mxu0 0.0
        %7769 = vmatprep.subr.mxu0 0.0
        %7770 = vmatpush2.msra.mxu0 0.0
        %7771 = vmatprep.subr.mxu0 0.0
        %7772 = vmatpush2.msra.mxu0 0.0
        %7773 = vmatprep.subr.mxu0 0.0
        %7774 = vmatpush2.msra.mxu0 0.0
        %7775 = vmatprep.subr.mxu0 0.0
        %7776 = vmatpush2.msra.mxu0 0.0
        %7777 = vmatprep.subr.mxu0 0.0
        %7778 = vmatpush2.msra.mxu0 0.0
        %7779 = vmatprep.subr.mxu0 0.0
        %7780 = vmatpush2.msra.mxu0 0.0
        %7781 = vmatprep.subr.mxu0 0.0
        %7782 = vmatpush2.msra.mxu0 0.0
        %7783 = vmatprep.subr.mxu0 0.0
        %7784 = vmatpush2.msra.mxu0 0.0
        %7785 = vmatprep.subr.mxu0 0.0
        %7786 = vmatpush2.msra.mxu0 0.0
        %7787 = vmatprep.mubr.f32.mxu0 0.0
        %7788 = vmatmul.mubr.f32.gmra.mxu0 %v7721
        %v7789 = vpop.f32.mrf.mxu0
        %v7790 = vadd.f32 0.0, %v7789
        %v7791 = vpop.f32.mrf.mxu0
        %v7792 = vadd.f32 0.0, %v7791
        %7793 = vdwg.mxu0
        %v7794 = vadd.f32 %v7687, %v7790
        %v7795 = vadd.f32 %v7688, %v7792
        %v7796 = vld [vmem:[#allocation26 + $0xb00] sm:$0xff]
        %v7797 = vld [vmem:[#allocation26 + $0xb08] sm:$0xff]
        %v7798 = vld [vmem:[#allocation26 + $0xb10] sm:$0xff]
        %v7799 = vld [vmem:[#allocation26 + $0xb18] sm:$0xff]
        %v7800 = vld [vmem:[#allocation26 + $0xb20] sm:$0xff]
        %v7801 = vld [vmem:[#allocation26 + $0xb28] sm:$0xff]
        %v7802 = vld [vmem:[#allocation26 + $0xb30] sm:$0xff]
        %v7803 = vld [vmem:[#allocation26 + $0xb38] sm:$0xff]
        %v7804 = vld [vmem:[#allocation26 + $0xb40] sm:$0xff]
        %v7805 = vld [vmem:[#allocation26 + $0xb48] sm:$0xff]
        %v7806 = vld [vmem:[#allocation26 + $0xb50] sm:$0xff]
        %v7807 = vld [vmem:[#allocation26 + $0xb58] sm:$0xff]
        %v7808 = vld [vmem:[#allocation26 + $0xb60] sm:$0xff]
        %v7809 = vld [vmem:[#allocation26 + $0xb68] sm:$0xff]
        %v7810 = vld [vmem:[#allocation26 + $0xb70] sm:$0xff]
        %v7811 = vld [vmem:[#allocation26 + $0xb78] sm:$0xff]
        %v7812 = vld [vmem:[#allocation26 + $0xb80] sm:$0xff]
        %v7813 = vld [vmem:[#allocation26 + $0xb88] sm:$0xff]
        %v7814 = vld [vmem:[#allocation26 + $0xb90] sm:$0xff]
        %v7815 = vld [vmem:[#allocation26 + $0xb98] sm:$0xff]
        %v7816 = vld [vmem:[#allocation26 + $0xba0] sm:$0xff]
        %v7817 = vld [vmem:[#allocation26 + $0xba8] sm:$0xff]
        %v7818 = vld [vmem:[#allocation26 + $0xbb0] sm:$0xff]
        %v7819 = vld [vmem:[#allocation26 + $0xbb8] sm:$0xff]
        %v7820 = vld [vmem:[#allocation26 + $0xbc0] sm:$0xff]
        %v7821 = vld [vmem:[#allocation26 + $0xbc8] sm:$0xff]
        %v7822 = vld [vmem:[#allocation26 + $0xbd0] sm:$0xff]
        %v7823 = vld [vmem:[#allocation26 + $0xbd8] sm:$0xff]
        %v7824 = vld [vmem:[#allocation26 + $0xbe0] sm:$0xff]
        %v7825 = vld [vmem:[#allocation26 + $0xbe8] sm:$0xff]
        %v7826 = vld [vmem:[#allocation26 + $0xbf0] sm:$0xff]
        %v7827 = vld [vmem:[#allocation26 + $0xbf8] sm:$0xff]
        %v7828 = vrot.slane %v6624, 3
        %7830 = vmatprep.subr.mxu0 %v7827
        %7831 = vmatpush1.msra.mxu0 %v7826
        %7832 = vmatprep.subr.mxu0 %v7825
        %7833 = vmatpush1.msra.mxu0 %v7824
        %7834 = vmatprep.subr.mxu0 %v7823
        %7835 = vmatpush1.msra.mxu0 %v7822
        %7836 = vmatprep.subr.mxu0 %v7821
        %7837 = vmatpush1.msra.mxu0 %v7820
        %7838 = vmatprep.subr.mxu0 %v7819
        %7839 = vmatpush1.msra.mxu0 %v7818
        %7840 = vmatprep.subr.mxu0 %v7817
        %7841 = vmatpush1.msra.mxu0 %v7816
        %7842 = vmatprep.subr.mxu0 %v7815
        %7843 = vmatpush1.msra.mxu0 %v7814
        %7844 = vmatprep.subr.mxu0 %v7813
        %7845 = vmatpush1.msra.mxu0 %v7812
        %7846 = vmatprep.subr.mxu0 %v7811
        %7847 = vmatpush1.msra.mxu0 %v7810
        %7848 = vmatprep.subr.mxu0 %v7809
        %7849 = vmatpush1.msra.mxu0 %v7808
        %7850 = vmatprep.subr.mxu0 %v7807
        %7851 = vmatpush1.msra.mxu0 %v7806
        %7852 = vmatprep.subr.mxu0 %v7805
        %7853 = vmatpush1.msra.mxu0 %v7804
        %7854 = vmatprep.subr.mxu0 %v7803
        %7855 = vmatpush1.msra.mxu0 %v7802
        %7856 = vmatprep.subr.mxu0 %v7801
        %7857 = vmatpush1.msra.mxu0 %v7800
        %7858 = vmatprep.subr.mxu0 %v7799
        %7859 = vmatpush1.msra.mxu0 %v7798
        %7860 = vmatprep.subr.mxu0 %v7797
        %7861 = vmatpush1.msra.mxu0 %v7796
        %7862 = vmatprep.subr.mxu0 0.0
        %7863 = vmatpush2.msra.mxu0 0.0
        %7864 = vmatprep.subr.mxu0 0.0
        %7865 = vmatpush2.msra.mxu0 0.0
        %7866 = vmatprep.subr.mxu0 0.0
        %7867 = vmatpush2.msra.mxu0 0.0
        %7868 = vmatprep.subr.mxu0 0.0
        %7869 = vmatpush2.msra.mxu0 0.0
        %7870 = vmatprep.subr.mxu0 0.0
        %7871 = vmatpush2.msra.mxu0 0.0
        %7872 = vmatprep.subr.mxu0 0.0
        %7873 = vmatpush2.msra.mxu0 0.0
        %7874 = vmatprep.subr.mxu0 0.0
        %7875 = vmatpush2.msra.mxu0 0.0
        %7876 = vmatprep.subr.mxu0 0.0
        %7877 = vmatpush2.msra.mxu0 0.0
        %7878 = vmatprep.subr.mxu0 0.0
        %7879 = vmatpush2.msra.mxu0 0.0
        %7880 = vmatprep.subr.mxu0 0.0
        %7881 = vmatpush2.msra.mxu0 0.0
        %7882 = vmatprep.subr.mxu0 0.0
        %7883 = vmatpush2.msra.mxu0 0.0
        %7884 = vmatprep.subr.mxu0 0.0
        %7885 = vmatpush2.msra.mxu0 0.0
        %7886 = vmatprep.subr.mxu0 0.0
        %7887 = vmatpush2.msra.mxu0 0.0
        %7888 = vmatprep.subr.mxu0 0.0
        %7889 = vmatpush2.msra.mxu0 0.0
        %7890 = vmatprep.subr.mxu0 0.0
        %7891 = vmatpush2.msra.mxu0 0.0
        %7892 = vmatprep.subr.mxu0 0.0
        %7893 = vmatpush2.msra.mxu0 0.0
        %7894 = vmatprep.mubr.f32.mxu0 0.0
        %7895 = vmatmul.mubr.f32.gmra.mxu0 %v7828
        %v7896 = vpop.f32.mrf.mxu0
        %v7897 = vadd.f32 0.0, %v7896
        %v7898 = vpop.f32.mrf.mxu0
        %v7899 = vadd.f32 0.0, %v7898
        %7900 = vdwg.mxu0
        %v7901 = vadd.f32 %v7794, %v7897
        %v7902 = vadd.f32 %v7795, %v7899
        %v7903 = vld [vmem:[#allocation26 + $0xc00] sm:$0xff]
        %v7904 = vld [vmem:[#allocation26 + $0xc08] sm:$0xff]
        %v7905 = vld [vmem:[#allocation26 + $0xc10] sm:$0xff]
        %v7906 = vld [vmem:[#allocation26 + $0xc18] sm:$0xff]
        %v7907 = vld [vmem:[#allocation26 + $0xc20] sm:$0xff]
        %v7908 = vld [vmem:[#allocation26 + $0xc28] sm:$0xff]
        %v7909 = vld [vmem:[#allocation26 + $0xc30] sm:$0xff]
        %v7910 = vld [vmem:[#allocation26 + $0xc38] sm:$0xff]
        %v7911 = vld [vmem:[#allocation26 + $0xc40] sm:$0xff]
        %v7912 = vld [vmem:[#allocation26 + $0xc48] sm:$0xff]
        %v7913 = vld [vmem:[#allocation26 + $0xc50] sm:$0xff]
        %v7914 = vld [vmem:[#allocation26 + $0xc58] sm:$0xff]
        %v7915 = vld [vmem:[#allocation26 + $0xc60] sm:$0xff]
        %v7916 = vld [vmem:[#allocation26 + $0xc68] sm:$0xff]
        %v7917 = vld [vmem:[#allocation26 + $0xc70] sm:$0xff]
        %v7918 = vld [vmem:[#allocation26 + $0xc78] sm:$0xff]
        %v7919 = vld [vmem:[#allocation26 + $0xc80] sm:$0xff]
        %v7920 = vld [vmem:[#allocation26 + $0xc88] sm:$0xff]
        %v7921 = vld [vmem:[#allocation26 + $0xc90] sm:$0xff]
        %v7922 = vld [vmem:[#allocation26 + $0xc98] sm:$0xff]
        %v7923 = vld [vmem:[#allocation26 + $0xca0] sm:$0xff]
        %v7924 = vld [vmem:[#allocation26 + $0xca8] sm:$0xff]
        %v7925 = vld [vmem:[#allocation26 + $0xcb0] sm:$0xff]
        %v7926 = vld [vmem:[#allocation26 + $0xcb8] sm:$0xff]
        %v7927 = vld [vmem:[#allocation26 + $0xcc0] sm:$0xff]
        %v7928 = vld [vmem:[#allocation26 + $0xcc8] sm:$0xff]
        %v7929 = vld [vmem:[#allocation26 + $0xcd0] sm:$0xff]
        %v7930 = vld [vmem:[#allocation26 + $0xcd8] sm:$0xff]
        %v7931 = vld [vmem:[#allocation26 + $0xce0] sm:$0xff]
        %v7932 = vld [vmem:[#allocation26 + $0xce8] sm:$0xff]
        %v7933 = vld [vmem:[#allocation26 + $0xcf0] sm:$0xff]
        %v7934 = vld [vmem:[#allocation26 + $0xcf8] sm:$0xff]
        %v7935 = vrot.slane %v6624, 4
        %7937 = vmatprep.subr.mxu0 %v7934
        %7938 = vmatpush1.msra.mxu0 %v7933
        %7939 = vmatprep.subr.mxu0 %v7932
        %7940 = vmatpush1.msra.mxu0 %v7931
        %7941 = vmatprep.subr.mxu0 %v7930
        %7942 = vmatpush1.msra.mxu0 %v7929
        %7943 = vmatprep.subr.mxu0 %v7928
        %7944 = vmatpush1.msra.mxu0 %v7927
        %7945 = vmatprep.subr.mxu0 %v7926
        %7946 = vmatpush1.msra.mxu0 %v7925
        %7947 = vmatprep.subr.mxu0 %v7924
        %7948 = vmatpush1.msra.mxu0 %v7923
        %7949 = vmatprep.subr.mxu0 %v7922
        %7950 = vmatpush1.msra.mxu0 %v7921
        %7951 = vmatprep.subr.mxu0 %v7920
        %7952 = vmatpush1.msra.mxu0 %v7919
        %7953 = vmatprep.subr.mxu0 %v7918
        %7954 = vmatpush1.msra.mxu0 %v7917
        %7955 = vmatprep.subr.mxu0 %v7916
        %7956 = vmatpush1.msra.mxu0 %v7915
        %7957 = vmatprep.subr.mxu0 %v7914
        %7958 = vmatpush1.msra.mxu0 %v7913
        %7959 = vmatprep.subr.mxu0 %v7912
        %7960 = vmatpush1.msra.mxu0 %v7911
        %7961 = vmatprep.subr.mxu0 %v7910
        %7962 = vmatpush1.msra.mxu0 %v7909
        %7963 = vmatprep.subr.mxu0 %v7908
        %7964 = vmatpush1.msra.mxu0 %v7907
        %7965 = vmatprep.subr.mxu0 %v7906
        %7966 = vmatpush1.msra.mxu0 %v7905
        %7967 = vmatprep.subr.mxu0 %v7904
        %7968 = vmatpush1.msra.mxu0 %v7903
        %7969 = vmatprep.subr.mxu0 0.0
        %7970 = vmatpush2.msra.mxu0 0.0
        %7971 = vmatprep.subr.mxu0 0.0
        %7972 = vmatpush2.msra.mxu0 0.0
        %7973 = vmatprep.subr.mxu0 0.0
        %7974 = vmatpush2.msra.mxu0 0.0
        %7975 = vmatprep.subr.mxu0 0.0
        %7976 = vmatpush2.msra.mxu0 0.0
        %7977 = vmatprep.subr.mxu0 0.0
        %7978 = vmatpush2.msra.mxu0 0.0
        %7979 = vmatprep.subr.mxu0 0.0
        %7980 = vmatpush2.msra.mxu0 0.0
        %7981 = vmatprep.subr.mxu0 0.0
        %7982 = vmatpush2.msra.mxu0 0.0
        %7983 = vmatprep.subr.mxu0 0.0
        %7984 = vmatpush2.msra.mxu0 0.0
        %7985 = vmatprep.subr.mxu0 0.0
        %7986 = vmatpush2.msra.mxu0 0.0
        %7987 = vmatprep.subr.mxu0 0.0
        %7988 = vmatpush2.msra.mxu0 0.0
        %7989 = vmatprep.subr.mxu0 0.0
        %7990 = vmatpush2.msra.mxu0 0.0
        %7991 = vmatprep.subr.mxu0 0.0
        %7992 = vmatpush2.msra.mxu0 0.0
        %7993 = vmatprep.subr.mxu0 0.0
        %7994 = vmatpush2.msra.mxu0 0.0
        %7995 = vmatprep.subr.mxu0 0.0
        %7996 = vmatpush2.msra.mxu0 0.0
        %7997 = vmatprep.subr.mxu0 0.0
        %7998 = vmatpush2.msra.mxu0 0.0
        %7999 = vmatprep.subr.mxu0 0.0
        %8000 = vmatpush2.msra.mxu0 0.0
        %8001 = vmatprep.mubr.f32.mxu0 0.0
        %8002 = vmatmul.mubr.f32.gmra.mxu0 %v7935
        %v8003 = vpop.f32.mrf.mxu0
        %v8004 = vadd.f32 0.0, %v8003
        %v8005 = vpop.f32.mrf.mxu0
        %v8006 = vadd.f32 0.0, %v8005
        %8007 = vdwg.mxu0
        %v8008 = vadd.f32 %v7901, %v8004
        %v8009 = vadd.f32 %v7902, %v8006
        %v8010 = vld [vmem:[#allocation26 + $0xd00] sm:$0xff]
        %v8011 = vld [vmem:[#allocation26 + $0xd08] sm:$0xff]
        %v8012 = vld [vmem:[#allocation26 + $0xd10] sm:$0xff]
        %v8013 = vld [vmem:[#allocation26 + $0xd18] sm:$0xff]
        %v8014 = vld [vmem:[#allocation26 + $0xd20] sm:$0xff]
        %v8015 = vld [vmem:[#allocation26 + $0xd28] sm:$0xff]
        %v8016 = vld [vmem:[#allocation26 + $0xd30] sm:$0xff]
        %v8017 = vld [vmem:[#allocation26 + $0xd38] sm:$0xff]
        %v8018 = vld [vmem:[#allocation26 + $0xd40] sm:$0xff]
        %v8019 = vld [vmem:[#allocation26 + $0xd48] sm:$0xff]
        %v8020 = vld [vmem:[#allocation26 + $0xd50] sm:$0xff]
        %v8021 = vld [vmem:[#allocation26 + $0xd58] sm:$0xff]
        %v8022 = vld [vmem:[#allocation26 + $0xd60] sm:$0xff]
        %v8023 = vld [vmem:[#allocation26 + $0xd68] sm:$0xff]
        %v8024 = vld [vmem:[#allocation26 + $0xd70] sm:$0xff]
        %v8025 = vld [vmem:[#allocation26 + $0xd78] sm:$0xff]
        %v8026 = vld [vmem:[#allocation26 + $0xd80] sm:$0xff]
        %v8027 = vld [vmem:[#allocation26 + $0xd88] sm:$0xff]
        %v8028 = vld [vmem:[#allocation26 + $0xd90] sm:$0xff]
        %v8029 = vld [vmem:[#allocation26 + $0xd98] sm:$0xff]
        %v8030 = vld [vmem:[#allocation26 + $0xda0] sm:$0xff]
        %v8031 = vld [vmem:[#allocation26 + $0xda8] sm:$0xff]
        %v8032 = vld [vmem:[#allocation26 + $0xdb0] sm:$0xff]
        %v8033 = vld [vmem:[#allocation26 + $0xdb8] sm:$0xff]
        %v8034 = vld [vmem:[#allocation26 + $0xdc0] sm:$0xff]
        %v8035 = vld [vmem:[#allocation26 + $0xdc8] sm:$0xff]
        %v8036 = vld [vmem:[#allocation26 + $0xdd0] sm:$0xff]
        %v8037 = vld [vmem:[#allocation26 + $0xdd8] sm:$0xff]
        %v8038 = vld [vmem:[#allocation26 + $0xde0] sm:$0xff]
        %v8039 = vld [vmem:[#allocation26 + $0xde8] sm:$0xff]
        %v8040 = vld [vmem:[#allocation26 + $0xdf0] sm:$0xff]
        %v8041 = vld [vmem:[#allocation26 + $0xdf8] sm:$0xff]
        %v8042 = vrot.slane %v6624, 5
        %8044 = vmatprep.subr.mxu0 %v8041
        %8045 = vmatpush1.msra.mxu0 %v8040
        %8046 = vmatprep.subr.mxu0 %v8039
        %8047 = vmatpush1.msra.mxu0 %v8038
        %8048 = vmatprep.subr.mxu0 %v8037
        %8049 = vmatpush1.msra.mxu0 %v8036
        %8050 = vmatprep.subr.mxu0 %v8035
        %8051 = vmatpush1.msra.mxu0 %v8034
        %8052 = vmatprep.subr.mxu0 %v8033
        %8053 = vmatpush1.msra.mxu0 %v8032
        %8054 = vmatprep.subr.mxu0 %v8031
        %8055 = vmatpush1.msra.mxu0 %v8030
        %8056 = vmatprep.subr.mxu0 %v8029
        %8057 = vmatpush1.msra.mxu0 %v8028
        %8058 = vmatprep.subr.mxu0 %v8027
        %8059 = vmatpush1.msra.mxu0 %v8026
        %8060 = vmatprep.subr.mxu0 %v8025
        %8061 = vmatpush1.msra.mxu0 %v8024
        %8062 = vmatprep.subr.mxu0 %v8023
        %8063 = vmatpush1.msra.mxu0 %v8022
        %8064 = vmatprep.subr.mxu0 %v8021
        %8065 = vmatpush1.msra.mxu0 %v8020
        %8066 = vmatprep.subr.mxu0 %v8019
        %8067 = vmatpush1.msra.mxu0 %v8018
        %8068 = vmatprep.subr.mxu0 %v8017
        %8069 = vmatpush1.msra.mxu0 %v8016
        %8070 = vmatprep.subr.mxu0 %v8015
        %8071 = vmatpush1.msra.mxu0 %v8014
        %8072 = vmatprep.subr.mxu0 %v8013
        %8073 = vmatpush1.msra.mxu0 %v8012
        %8074 = vmatprep.subr.mxu0 %v8011
        %8075 = vmatpush1.msra.mxu0 %v8010
        %8076 = vmatprep.subr.mxu0 0.0
        %8077 = vmatpush2.msra.mxu0 0.0
        %8078 = vmatprep.subr.mxu0 0.0
        %8079 = vmatpush2.msra.mxu0 0.0
        %8080 = vmatprep.subr.mxu0 0.0
        %8081 = vmatpush2.msra.mxu0 0.0
        %8082 = vmatprep.subr.mxu0 0.0
        %8083 = vmatpush2.msra.mxu0 0.0
        %8084 = vmatprep.subr.mxu0 0.0
        %8085 = vmatpush2.msra.mxu0 0.0
        %8086 = vmatprep.subr.mxu0 0.0
        %8087 = vmatpush2.msra.mxu0 0.0
        %8088 = vmatprep.subr.mxu0 0.0
        %8089 = vmatpush2.msra.mxu0 0.0
        %8090 = vmatprep.subr.mxu0 0.0
        %8091 = vmatpush2.msra.mxu0 0.0
        %8092 = vmatprep.subr.mxu0 0.0
        %8093 = vmatpush2.msra.mxu0 0.0
        %8094 = vmatprep.subr.mxu0 0.0
        %8095 = vmatpush2.msra.mxu0 0.0
        %8096 = vmatprep.subr.mxu0 0.0
        %8097 = vmatpush2.msra.mxu0 0.0
        %8098 = vmatprep.subr.mxu0 0.0
        %8099 = vmatpush2.msra.mxu0 0.0
        %8100 = vmatprep.subr.mxu0 0.0
        %8101 = vmatpush2.msra.mxu0 0.0
        %8102 = vmatprep.subr.mxu0 0.0
        %8103 = vmatpush2.msra.mxu0 0.0
        %8104 = vmatprep.subr.mxu0 0.0
        %8105 = vmatpush2.msra.mxu0 0.0
        %8106 = vmatprep.subr.mxu0 0.0
        %8107 = vmatpush2.msra.mxu0 0.0
        %8108 = vmatprep.mubr.f32.mxu0 0.0
        %8109 = vmatmul.mubr.f32.gmra.mxu0 %v8042
        %v8110 = vpop.f32.mrf.mxu0
        %v8111 = vadd.f32 0.0, %v8110
        %v8112 = vpop.f32.mrf.mxu0
        %v8113 = vadd.f32 0.0, %v8112
        %8114 = vdwg.mxu0
        %v8115 = vadd.f32 %v8008, %v8111
        %v8116 = vadd.f32 %v8009, %v8113
        %v8117 = vld [vmem:[#allocation26 + $0xe00] sm:$0xff]
        %v8118 = vld [vmem:[#allocation26 + $0xe08] sm:$0xff]
        %v8119 = vld [vmem:[#allocation26 + $0xe10] sm:$0xff]
        %v8120 = vld [vmem:[#allocation26 + $0xe18] sm:$0xff]
        %v8121 = vld [vmem:[#allocation26 + $0xe20] sm:$0xff]
        %v8122 = vld [vmem:[#allocation26 + $0xe28] sm:$0xff]
        %v8123 = vld [vmem:[#allocation26 + $0xe30] sm:$0xff]
        %v8124 = vld [vmem:[#allocation26 + $0xe38] sm:$0xff]
        %v8125 = vld [vmem:[#allocation26 + $0xe40] sm:$0xff]
        %v8126 = vld [vmem:[#allocation26 + $0xe48] sm:$0xff]
        %v8127 = vld [vmem:[#allocation26 + $0xe50] sm:$0xff]
        %v8128 = vld [vmem:[#allocation26 + $0xe58] sm:$0xff]
        %v8129 = vld [vmem:[#allocation26 + $0xe60] sm:$0xff]
        %v8130 = vld [vmem:[#allocation26 + $0xe68] sm:$0xff]
        %v8131 = vld [vmem:[#allocation26 + $0xe70] sm:$0xff]
        %v8132 = vld [vmem:[#allocation26 + $0xe78] sm:$0xff]
        %v8133 = vld [vmem:[#allocation26 + $0xe80] sm:$0xff]
        %v8134 = vld [vmem:[#allocation26 + $0xe88] sm:$0xff]
        %v8135 = vld [vmem:[#allocation26 + $0xe90] sm:$0xff]
        %v8136 = vld [vmem:[#allocation26 + $0xe98] sm:$0xff]
        %v8137 = vld [vmem:[#allocation26 + $0xea0] sm:$0xff]
        %v8138 = vld [vmem:[#allocation26 + $0xea8] sm:$0xff]
        %v8139 = vld [vmem:[#allocation26 + $0xeb0] sm:$0xff]
        %v8140 = vld [vmem:[#allocation26 + $0xeb8] sm:$0xff]
        %v8141 = vld [vmem:[#allocation26 + $0xec0] sm:$0xff]
        %v8142 = vld [vmem:[#allocation26 + $0xec8] sm:$0xff]
        %v8143 = vld [vmem:[#allocation26 + $0xed0] sm:$0xff]
        %v8144 = vld [vmem:[#allocation26 + $0xed8] sm:$0xff]
        %v8145 = vld [vmem:[#allocation26 + $0xee0] sm:$0xff]
        %v8146 = vld [vmem:[#allocation26 + $0xee8] sm:$0xff]
        %v8147 = vld [vmem:[#allocation26 + $0xef0] sm:$0xff]
        %v8148 = vld [vmem:[#allocation26 + $0xef8] sm:$0xff]
        %v8149 = vrot.slane %v6624, 6
        %8151 = vmatprep.subr.mxu0 %v8148
        %8152 = vmatpush1.msra.mxu0 %v8147
        %8153 = vmatprep.subr.mxu0 %v8146
        %8154 = vmatpush1.msra.mxu0 %v8145
        %8155 = vmatprep.subr.mxu0 %v8144
        %8156 = vmatpush1.msra.mxu0 %v8143
        %8157 = vmatprep.subr.mxu0 %v8142
        %8158 = vmatpush1.msra.mxu0 %v8141
        %8159 = vmatprep.subr.mxu0 %v8140
        %8160 = vmatpush1.msra.mxu0 %v8139
        %8161 = vmatprep.subr.mxu0 %v8138
        %8162 = vmatpush1.msra.mxu0 %v8137
        %8163 = vmatprep.subr.mxu0 %v8136
        %8164 = vmatpush1.msra.mxu0 %v8135
        %8165 = vmatprep.subr.mxu0 %v8134
        %8166 = vmatpush1.msra.mxu0 %v8133
        %8167 = vmatprep.subr.mxu0 %v8132
        %8168 = vmatpush1.msra.mxu0 %v8131
        %8169 = vmatprep.subr.mxu0 %v8130
        %8170 = vmatpush1.msra.mxu0 %v8129
        %8171 = vmatprep.subr.mxu0 %v8128
        %8172 = vmatpush1.msra.mxu0 %v8127
        %8173 = vmatprep.subr.mxu0 %v8126
        %8174 = vmatpush1.msra.mxu0 %v8125
        %8175 = vmatprep.subr.mxu0 %v8124
        %8176 = vmatpush1.msra.mxu0 %v8123
        %8177 = vmatprep.subr.mxu0 %v8122
        %8178 = vmatpush1.msra.mxu0 %v8121
        %8179 = vmatprep.subr.mxu0 %v8120
        %8180 = vmatpush1.msra.mxu0 %v8119
        %8181 = vmatprep.subr.mxu0 %v8118
        %8182 = vmatpush1.msra.mxu0 %v8117
        %8183 = vmatprep.subr.mxu0 0.0
        %8184 = vmatpush2.msra.mxu0 0.0
        %8185 = vmatprep.subr.mxu0 0.0
        %8186 = vmatpush2.msra.mxu0 0.0
        %8187 = vmatprep.subr.mxu0 0.0
        %8188 = vmatpush2.msra.mxu0 0.0
        %8189 = vmatprep.subr.mxu0 0.0
        %8190 = vmatpush2.msra.mxu0 0.0
        %8191 = vmatprep.subr.mxu0 0.0
        %8192 = vmatpush2.msra.mxu0 0.0
        %8193 = vmatprep.subr.mxu0 0.0
        %8194 = vmatpush2.msra.mxu0 0.0
        %8195 = vmatprep.subr.mxu0 0.0
        %8196 = vmatpush2.msra.mxu0 0.0
        %8197 = vmatprep.subr.mxu0 0.0
        %8198 = vmatpush2.msra.mxu0 0.0
        %8199 = vmatprep.subr.mxu0 0.0
        %8200 = vmatpush2.msra.mxu0 0.0
        %8201 = vmatprep.subr.mxu0 0.0
        %8202 = vmatpush2.msra.mxu0 0.0
        %8203 = vmatprep.subr.mxu0 0.0
        %8204 = vmatpush2.msra.mxu0 0.0
        %8205 = vmatprep.subr.mxu0 0.0
        %8206 = vmatpush2.msra.mxu0 0.0
        %8207 = vmatprep.subr.mxu0 0.0
        %8208 = vmatpush2.msra.mxu0 0.0
        %8209 = vmatprep.subr.mxu0 0.0
        %8210 = vmatpush2.msra.mxu0 0.0
        %8211 = vmatprep.subr.mxu0 0.0
        %8212 = vmatpush2.msra.mxu0 0.0
        %8213 = vmatprep.subr.mxu0 0.0
        %8214 = vmatpush2.msra.mxu0 0.0
        %8215 = vmatprep.mubr.f32.mxu0 0.0
        %8216 = vmatmul.mubr.f32.gmra.mxu0 %v8149
        %v8217 = vpop.f32.mrf.mxu0
        %v8218 = vadd.f32 0.0, %v8217
        %v8219 = vpop.f32.mrf.mxu0
        %v8220 = vadd.f32 0.0, %v8219
        %8221 = vdwg.mxu0
        %v8222 = vadd.f32 %v8115, %v8218
        %v8223 = vadd.f32 %v8116, %v8220
        %v8224 = vld [vmem:[#allocation26 + $0xf00] sm:$0xff]
        %v8225 = vld [vmem:[#allocation26 + $0xf08] sm:$0xff]
        %v8226 = vld [vmem:[#allocation26 + $0xf10] sm:$0xff]
        %v8227 = vld [vmem:[#allocation26 + $0xf18] sm:$0xff]
        %v8228 = vld [vmem:[#allocation26 + $0xf20] sm:$0xff]
        %v8229 = vld [vmem:[#allocation26 + $0xf28] sm:$0xff]
        %v8230 = vld [vmem:[#allocation26 + $0xf30] sm:$0xff]
        %v8231 = vld [vmem:[#allocation26 + $0xf38] sm:$0xff]
        %v8232 = vld [vmem:[#allocation26 + $0xf40] sm:$0xff]
        %v8233 = vld [vmem:[#allocation26 + $0xf48] sm:$0xff]
        %v8234 = vld [vmem:[#allocation26 + $0xf50] sm:$0xff]
        %v8235 = vld [vmem:[#allocation26 + $0xf58] sm:$0xff]
        %v8236 = vld [vmem:[#allocation26 + $0xf60] sm:$0xff]
        %v8237 = vld [vmem:[#allocation26 + $0xf68] sm:$0xff]
        %v8238 = vld [vmem:[#allocation26 + $0xf70] sm:$0xff]
        %v8239 = vld [vmem:[#allocation26 + $0xf78] sm:$0xff]
        %v8240 = vld [vmem:[#allocation26 + $0xf80] sm:$0xff]
        %v8241 = vld [vmem:[#allocation26 + $0xf88] sm:$0xff]
        %v8242 = vld [vmem:[#allocation26 + $0xf90] sm:$0xff]
        %v8243 = vld [vmem:[#allocation26 + $0xf98] sm:$0xff]
        %v8244 = vld [vmem:[#allocation26 + $0xfa0] sm:$0xff]
        %v8245 = vld [vmem:[#allocation26 + $0xfa8] sm:$0xff]
        %v8246 = vld [vmem:[#allocation26 + $0xfb0] sm:$0xff]
        %v8247 = vld [vmem:[#allocation26 + $0xfb8] sm:$0xff]
        %v8248 = vld [vmem:[#allocation26 + $0xfc0] sm:$0xff]
        %v8249 = vld [vmem:[#allocation26 + $0xfc8] sm:$0xff]
        %v8250 = vld [vmem:[#allocation26 + $0xfd0] sm:$0xff]
        %v8251 = vld [vmem:[#allocation26 + $0xfd8] sm:$0xff]
        %v8252 = vld [vmem:[#allocation26 + $0xfe0] sm:$0xff]
        %v8253 = vld [vmem:[#allocation26 + $0xfe8] sm:$0xff]
        %v8254 = vld [vmem:[#allocation26 + $0xff0] sm:$0xff]
        %v8255 = vld [vmem:[#allocation26 + $0xff8] sm:$0xff]
        %v8256 = vrot.slane %v6624, 7
        %8258 = vmatprep.subr.mxu0 %v8255
        %8259 = vmatpush1.msra.mxu0 %v8254
        %8260 = vmatprep.subr.mxu0 %v8253
        %8261 = vmatpush1.msra.mxu0 %v8252
        %8262 = vmatprep.subr.mxu0 %v8251
        %8263 = vmatpush1.msra.mxu0 %v8250
        %8264 = vmatprep.subr.mxu0 %v8249
        %8265 = vmatpush1.msra.mxu0 %v8248
        %8266 = vmatprep.subr.mxu0 %v8247
        %8267 = vmatpush1.msra.mxu0 %v8246
        %8268 = vmatprep.subr.mxu0 %v8245
        %8269 = vmatpush1.msra.mxu0 %v8244
        %8270 = vmatprep.subr.mxu0 %v8243
        %8271 = vmatpush1.msra.mxu0 %v8242
        %8272 = vmatprep.subr.mxu0 %v8241
        %8273 = vmatpush1.msra.mxu0 %v8240
        %8274 = vmatprep.subr.mxu0 %v8239
        %8275 = vmatpush1.msra.mxu0 %v8238
        %8276 = vmatprep.subr.mxu0 %v8237
        %8277 = vmatpush1.msra.mxu0 %v8236
        %8278 = vmatprep.subr.mxu0 %v8235
        %8279 = vmatpush1.msra.mxu0 %v8234
        %8280 = vmatprep.subr.mxu0 %v8233
        %8281 = vmatpush1.msra.mxu0 %v8232
        %8282 = vmatprep.subr.mxu0 %v8231
        %8283 = vmatpush1.msra.mxu0 %v8230
        %8284 = vmatprep.subr.mxu0 %v8229
        %8285 = vmatpush1.msra.mxu0 %v8228
        %8286 = vmatprep.subr.mxu0 %v8227
        %8287 = vmatpush1.msra.mxu0 %v8226
        %8288 = vmatprep.subr.mxu0 %v8225
        %8289 = vmatpush1.msra.mxu0 %v8224
        %8290 = vmatprep.subr.mxu0 0.0
        %8291 = vmatpush2.msra.mxu0 0.0
        %8292 = vmatprep.subr.mxu0 0.0
        %8293 = vmatpush2.msra.mxu0 0.0
        %8294 = vmatprep.subr.mxu0 0.0
        %8295 = vmatpush2.msra.mxu0 0.0
        %8296 = vmatprep.subr.mxu0 0.0
        %8297 = vmatpush2.msra.mxu0 0.0
        %8298 = vmatprep.subr.mxu0 0.0
        %8299 = vmatpush2.msra.mxu0 0.0
        %8300 = vmatprep.subr.mxu0 0.0
        %8301 = vmatpush2.msra.mxu0 0.0
        %8302 = vmatprep.subr.mxu0 0.0
        %8303 = vmatpush2.msra.mxu0 0.0
        %8304 = vmatprep.subr.mxu0 0.0
        %8305 = vmatpush2.msra.mxu0 0.0
        %8306 = vmatprep.subr.mxu0 0.0
        %8307 = vmatpush2.msra.mxu0 0.0
        %8308 = vmatprep.subr.mxu0 0.0
        %8309 = vmatpush2.msra.mxu0 0.0
        %8310 = vmatprep.subr.mxu0 0.0
        %8311 = vmatpush2.msra.mxu0 0.0
        %8312 = vmatprep.subr.mxu0 0.0
        %8313 = vmatpush2.msra.mxu0 0.0
        %8314 = vmatprep.subr.mxu0 0.0
        %8315 = vmatpush2.msra.mxu0 0.0
        %8316 = vmatprep.subr.mxu0 0.0
        %8317 = vmatpush2.msra.mxu0 0.0
        %8318 = vmatprep.subr.mxu0 0.0
        %8319 = vmatpush2.msra.mxu0 0.0
        %8320 = vmatprep.subr.mxu0 0.0
        %8321 = vmatpush2.msra.mxu0 0.0
        %8322 = vmatprep.mubr.f32.mxu0 0.0
        %8323 = vmatmul.mubr.f32.gmra.mxu0 %v8256
        %v8324 = vpop.f32.mrf.mxu0
        %v8325 = vadd.f32 0.0, %v8324
        %v8326 = vpop.f32.mrf.mxu0
        %v8327 = vadd.f32 0.0, %v8326
        %8328 = vdwg.mxu0
        %v8329 = vadd.f32 %v8222, %v8325
        %v8330 = vadd.f32 %v8223, %v8327
        %v8331 = vld [vmem:[#allocation28] sm:$0x3]
        %v8333 = vlaneseq
        %v8334 = vshrl.u32 %v8333, 7
        %v8335 = vsub.s32 0, %v8334
        %v8336 = vrot.slane %v8331, %v8335
        %v8337 = vlaneseq
        %v8338 = vshrl.u32 %v8337, 7
        %v8339 = vsub.s32 1, %v8338
        %v8340 = vrot.slane %v8331, %v8339
        %v8343 = vadd.f32 %v8329, %v8336
        %v8344 = vadd.f32 %v8330, %v8340
        %v8345 = vmul.f32 %v8344, 0.5
        %v8346 = vmul.f32 %v8344, 0.70710677
        %v8347 = verf.f32.pop %v8346
        %v8348 = vadd.f32 %v8347, 1.0
        %v8349 = vmul.f32 %v8345, %v8348
        %v8350 = vld [vmem:[#allocation29] sm:$0xff]
        %v8351 = vld [vmem:[#allocation29 + $0x8] sm:$0xff]
        %v8352 = vld [vmem:[#allocation29 + $0x10] sm:$0xff]
        %v8353 = vld [vmem:[#allocation29 + $0x18] sm:$0xff]
        %v8354 = vld [vmem:[#allocation29 + $0x20] sm:$0xff]
        %v8355 = vld [vmem:[#allocation29 + $0x28] sm:$0xff]
        %v8356 = vld [vmem:[#allocation29 + $0x30] sm:$0xff]
        %v8357 = vld [vmem:[#allocation29 + $0x38] sm:$0xff]
        %v8358 = vld [vmem:[#allocation29 + $0x40] sm:$0xff]
        %v8359 = vld [vmem:[#allocation29 + $0x48] sm:$0xff]
        %v8360 = vld [vmem:[#allocation29 + $0x50] sm:$0xff]
        %v8361 = vld [vmem:[#allocation29 + $0x58] sm:$0xff]
        %v8362 = vld [vmem:[#allocation29 + $0x60] sm:$0xff]
        %v8363 = vld [vmem:[#allocation29 + $0x68] sm:$0xff]
        %v8364 = vld [vmem:[#allocation29 + $0x70] sm:$0xff]
        %v8365 = vld [vmem:[#allocation29 + $0x78] sm:$0xff]
        %v8366 = vld [vmem:[#allocation31] sm:$0x1]
        %8367 = vmatprep.subr.mxu0 0.0
        %8368 = vmatpush1.msra.mxu0 %v8365
        %8369 = vmatprep.subr.mxu0 0.0
        %8370 = vmatpush1.msra.mxu0 %v8364
        %8371 = vmatprep.subr.mxu0 0.0
        %8372 = vmatpush1.msra.mxu0 %v8363
        %8373 = vmatprep.subr.mxu0 0.0
        %8374 = vmatpush1.msra.mxu0 %v8362
        %8375 = vmatprep.subr.mxu0 0.0
        %8376 = vmatpush1.msra.mxu0 %v8361
        %8377 = vmatprep.subr.mxu0 0.0
        %8378 = vmatpush1.msra.mxu0 %v8360
        %8379 = vmatprep.subr.mxu0 0.0
        %8380 = vmatpush1.msra.mxu0 %v8359
        %8381 = vmatprep.subr.mxu0 0.0
        %8382 = vmatpush1.msra.mxu0 %v8358
        %8383 = vmatprep.subr.mxu0 0.0
        %8384 = vmatpush1.msra.mxu0 %v8357
        %8385 = vmatprep.subr.mxu0 0.0
        %8386 = vmatpush1.msra.mxu0 %v8356
        %8387 = vmatprep.subr.mxu0 0.0
        %8388 = vmatpush1.msra.mxu0 %v8355
        %8389 = vmatprep.subr.mxu0 0.0
        %8390 = vmatpush1.msra.mxu0 %v8354
        %8391 = vmatprep.subr.mxu0 0.0
        %8392 = vmatpush1.msra.mxu0 %v8353
        %8393 = vmatprep.subr.mxu0 0.0
        %8394 = vmatpush1.msra.mxu0 %v8352
        %8395 = vmatprep.subr.mxu0 0.0
        %8396 = vmatpush1.msra.mxu0 %v8351
        %8397 = vmatprep.subr.mxu0 0.0
        %8398 = vmatpush1.msra.mxu0 %v8350
        %8399 = vmatprep.subr.mxu0 0.0
        %8400 = vmatpush2.msra.mxu0 0.0
        %8401 = vmatprep.subr.mxu0 0.0
        %8402 = vmatpush2.msra.mxu0 0.0
        %8403 = vmatprep.subr.mxu0 0.0
        %8404 = vmatpush2.msra.mxu0 0.0
        %8405 = vmatprep.subr.mxu0 0.0
        %8406 = vmatpush2.msra.mxu0 0.0
        %8407 = vmatprep.subr.mxu0 0.0
        %8408 = vmatpush2.msra.mxu0 0.0
        %8409 = vmatprep.subr.mxu0 0.0
        %8410 = vmatpush2.msra.mxu0 0.0
        %8411 = vmatprep.subr.mxu0 0.0
        %8412 = vmatpush2.msra.mxu0 0.0
        %8413 = vmatprep.subr.mxu0 0.0
        %8414 = vmatpush2.msra.mxu0 0.0
        %8415 = vmatprep.subr.mxu0 0.0
        %8416 = vmatpush2.msra.mxu0 0.0
        %8417 = vmatprep.subr.mxu0 0.0
        %8418 = vmatpush2.msra.mxu0 0.0
        %8419 = vmatprep.subr.mxu0 0.0
        %8420 = vmatpush2.msra.mxu0 0.0
        %8421 = vmatprep.subr.mxu0 0.0
        %8422 = vmatpush2.msra.mxu0 0.0
        %8423 = vmatprep.subr.mxu0 0.0
        %8424 = vmatpush2.msra.mxu0 0.0
        %8425 = vmatprep.subr.mxu0 0.0
        %8426 = vmatpush2.msra.mxu0 0.0
        %8427 = vmatprep.subr.mxu0 0.0
        %8428 = vmatpush2.msra.mxu0 0.0
        %8429 = vmatprep.subr.mxu0 0.0
        %8430 = vmatpush2.msra.mxu0 0.0
        %8431 = vmatprep.mubr.f32.mxu0 0.0
        %8432 = vmatmul.mubr.f32.gmra.mxu0 %v8349
        %v8433 = vpop.f32.mrf.mxu0
        %v8434 = vadd.f32 %v8366, %v8433
        %v8435 = vpop.f32.mrf.mxu0
        %8436 = vdwg.mxu0
        %v8437 = vadd.f32 %v8434, %v8343
        %8438 = vst [vmem:[%s925] sm:$0x1] %v8437
        %s8439 = sand.u32 %s521, 1
        %s8440 = scalar_lea.sflag [#allocation4], %s8439
        %s8441 = sand.u32 %s521, 1
        %s8442 = scalar_lea.vmem [#allocation32], %s8441
        // Predicated region
        $region185: #{encoder_forward.1} parent=107 // pred_check
          %p8443 = pneg %p531
        $region186: #{encoder_forward.1} parent=107 // pred_check_branch
          %8445 = sbr.rel (%p8443) target = $region188
        $region187: #{encoder_forward.1} parent=107 // pred_region
          %s8447 = ssub.s32 16, 16
          %8448 = vsyncadd %s8440, %s8447
          %s8449 = smul.addr %s46, 16
          %s8450 = scalar_lea.hbm %s22, %s8449
          %s8452 = sshll.u32 %s8442, 4
          %s8453 = int_to_ptr.vmem [resolvable:$true] %s8452
          %8455 = dma.vmem_to_hbm [thread:$0]  %s8453, 16, %s8450, %s8440
        $region188: #{encoder_forward.1} parent=107 // pred_fallthru
          _
      $region108: #{encoder_forward.1} parent=5 // pred_fallthru
        _
      %p8456 = scmp.le.s32.totalorder 2, %s41
      // Predicated region
      $region189: #{encoder_forward.1} parent=5 // pred_check
        %p8457 = pneg %p8456
      $region190: #{encoder_forward.1} parent=5 // pred_check_branch
        %8459 = sbr.rel (%p8457) target = $region192
      $region191: #{encoder_forward.1} parent=5 // pred_region
        %s8460 = ssub.s32 %s41, 2
        // Predicated region
        $region193: #{encoder_forward.1} parent=191 // pred_check
          %p8461 = pneg %p537
        $region194: #{encoder_forward.1} parent=191 // pred_check_branch
          %8463 = sbr.rel (%p8461) target = $region196
        $region195: #{encoder_forward.1} parent=191 // pred_region
          %s8464 = sand.u32 %s522, 1
          %s8465 = scalar_lea.sflag [#allocation4], %s8464
          %s8466 = sand.u32 %s522, 1
          %s8467 = scalar_lea.vmem [#allocation32], %s8466
          %8468 = dma.done %s8465, 16
        $region196: #{encoder_forward.1} parent=191 // pred_fallthru
          _
      $region192: #{encoder_forward.1} parent=5 // pred_fallthru
        _
    $region6: #{encoder_forward.1} parent=1 // loop_footer
      %s45 = sadd.s32 1, %s41
    $region7: #{encoder_forward.1} parent=1 // loop_footer_branch
      %40 = sbr.rel target = $region3
    $region8: #{encoder_forward.1} parent=1 // loop_exit
      _
    %8469 = vsyncpa [#allocation3], 1
    %s8470 = scalar_lea.sflag [#allocation3], 1
    %8471 = vsyncpa %s8470, 1
    %8472 = vsyncpa [#allocation6], 1
    %8473 = vsyncpa [#allocation9], 1
    %8474 = vsyncpa [#allocation12], 1
    %8475 = vsyncpa [#allocation15], 1
    %8476 = vsyncpa [#allocation18], 1
    %8477 = vsyncpa [#allocation21], 1
    %8478 = vsyncpa [#allocation24], 1
    %8479 = vsyncpa [#allocation27], 1
    %8480 = vsyncpa [#allocation30], 1
    %8481 = vsyncpa [#allocation4], 1
    %s8482 = scalar_lea.sflag [#allocation4], 1
    %8483 = vsyncpa %s8482, 1

</llo_original>
